<compile_context>
chip_gen: v7x
topology: tpu7x:2x2x1
jax: 0.10.0
libtpu: 0.0.40
codegen_flags: <defaults>
</compile_context>

<pallas_src>
import functools

import jax
import jax.numpy as jnp
from jax.experimental import pallas as pl
from jax.experimental.pallas import tpu as pltpu


# ------------------------------- helpers ----------------------------------- #

def _round_up(x, m):
    return (x + m - 1) // m * m


def _largest_tile(n, cap=1024):
    """Largest multiple of 8 <= cap that divides n (n must be a multiple of 8)."""
    assert n % 8 == 0, f"row count must be a multiple of 8, got {n}"
    t = min(cap, n)
    t -= t % 8
    while n % t:
        t -= 8
    return t


def _gemm_tiles(M, K, Npad, out_bytes):
    """Pick an M tile so the single-K-step operands stay well inside VMEM."""
    tm = _round_up(min(2048, _round_up(M, 8)), 8)

    def vmem_bytes(t):
        # bf16 operands + output, each double-buffered by the pipeline
        return 2 * (t * K * 2) + 2 * (K * Npad * 2) + 2 * (t * Npad * out_bytes)

    while tm > 8 and vmem_bytes(tm) > 8 * 1024 * 1024:
        tm = max(8, _round_up(tm // 2, 8))
    if vmem_bytes(tm) > 32 * 1024 * 1024:
        # TODO(synk): add a K-tiled accumulator path for very large Cin configs.
        raise NotImplementedError("K too large for the single-K-step GEMM path")
    Mp = _round_up(M, tm)
    return tm, Mp


# ----------------------------- Pallas kernels ------------------------------ #

def _gemm_stats_kernel(a_ref, b_ref, o_ref, sum_ref, sq_ref):
    """Single-K-step GEMM with fused per-column sum / sum-of-squares accumulation.

    sum/sq outputs use a constant block index across the M grid axis (accumulator
    pattern), so that axis is marked "arbitrary".
    """
    y = jnp.dot(a_ref[...], b_ref[...], preferred_element_type=jnp.float32)

    @pl.when(pl.program_id(0) == 0)
    def _():
        sum_ref[...] = jnp.zeros_like(sum_ref)
        sq_ref[...] = jnp.zeros_like(sq_ref)

    sum_ref[...] += jnp.sum(y, axis=0, keepdims=True)
    sq_ref[...] += jnp.sum(y * y, axis=0, keepdims=True)
    o_ref[...] = y.astype(o_ref.dtype)


def _gemm_kernel(a_ref, b_ref, o_ref, *, activation):
    """Single-K-step GEMM with fused epilogue activation (tanh for the last layer)."""
    y = jnp.dot(a_ref[...], b_ref[...], preferred_element_type=jnp.float32)
    if activation == "tanh":
        y = jnp.tanh(y)
    o_ref[...] = y.astype(o_ref.dtype)


def _bn_apply_relu_kernel(x_ref, scale_ref, shift_ref, o_ref):
    """BN apply + ReLU: bf16 tile in, one upconvert, f32 math (v5e-friendly), bf16 out."""
    x = x_ref[...].astype(jnp.float32)
    y = x * scale_ref[...] + shift_ref[...]
    o_ref[...] = jnp.maximum(y, 0.0).astype(o_ref.dtype)


# ------------------------------ Pallas wrappers ----------------------------- #

def pallas_gemm(a, b, *, activation="none", out_dtype=jnp.bfloat16, with_stats=False):
    """GEMM a:(M,K) @ b:(K,N) -> (Mp, Npad) in out_dtype (+ optional (1,Npad) sum/sumsq).

    Output columns are padded to a multiple of 128 (lane-dense stores), rows to a tile
    multiple; the caller trims.  Operands are cast to bf16 (f32 accumulation on the MXU).
    K is kept as a single full-dim block (no reduction grid axis, no scratch).
    """
    M, K = a.shape
    K2, N = b.shape
    assert K == K2
    Npad = _round_up(N, 128)
    tm, Mp = _gemm_tiles(M, K, Npad, jnp.dtype(out_dtype).itemsize)

    a_p = a.astype(jnp.bfloat16)
    if Mp != M:
        a_p = jnp.pad(a_p, ((0, Mp - M), (0, 0)))
    b_p = b.astype(jnp.bfloat16)
    if Npad != N:
        b_p = jnp.pad(b_p, ((0, 0), (0, Npad - N)))

    grid = (Mp // tm,)

    if with_stats:
        return pl.pallas_call(
            _gemm_stats_kernel,
            out_shape=(jax.ShapeDtypeStruct((Mp, Npad), out_dtype),
                       jax.ShapeDtypeStruct((1, Npad), jnp.float32),
                       jax.ShapeDtypeStruct((1, Npad), jnp.float32)),
            grid=grid,
            in_specs=[pl.BlockSpec((tm, K), lambda i: (i, 0)),
                      pl.BlockSpec((K, Npad), lambda i: (0, 0))],
            out_specs=(pl.BlockSpec((tm, Npad), lambda i: (i, 0)),
                       pl.BlockSpec((1, Npad), lambda i: (0, 0)),
                       pl.BlockSpec((1, Npad), lambda i: (0, 0))),
            compiler_params=pltpu.CompilerParams(
                dimension_semantics=("arbitrary",)),   # stats accumulate across M tiles
        )(a_p, b_p)

    return pl.pallas_call(
        functools.partial(_gemm_kernel, activation=activation),
        out_shape=jax.ShapeDtypeStruct((Mp, Npad), out_dtype),
        grid=grid,
        in_specs=[pl.BlockSpec((tm, K), lambda i: (i, 0)),
                  pl.BlockSpec((K, Npad), lambda i: (0, 0))],
        out_specs=pl.BlockSpec((tm, Npad), lambda i: (i, 0)),
        compiler_params=pltpu.CompilerParams(
            dimension_semantics=("parallel",)),
    )(a_p, b_p)


def pallas_bn_relu_apply(x, scale, shift, out_dtype=jnp.bfloat16):
    """Apply y = relu(x * scale + shift) over a (R, Cpad) bf16 slab; per-column params."""
    R, Cpad = x.shape
    tm = _largest_tile(R, 1024)
    grid = (R // tm,)
    return pl.pallas_call(
        _bn_apply_relu_kernel,
        out_shape=jax.ShapeDtypeStruct((R, Cpad), out_dtype),
        grid=grid,
        in_specs=[pl.BlockSpec((tm, Cpad), lambda i: (i, 0)),
                  pl.BlockSpec((1, Cpad), lambda i: (0, 0)),
                  pl.BlockSpec((1, Cpad), lambda i: (0, 0))],
        out_specs=pl.BlockSpec((tm, Cpad), lambda i: (i, 0)),
        compiler_params=pltpu.CompilerParams(
            dimension_semantics=("parallel",)),
    )(x, scale, shift)


# ------------------------------ glue (plain JAX, fused under jit) ----------- #

def _im2col_full(x, w_t, pad):
    """stride-1 ConvTranspose2d -> single im2col GEMM operands (A, B, out dims)."""
    Nb, H, W, Cin = x.shape
    _, Cout, kH, kW = w_t.shape
    p = kH - 1 - pad
    xp = jnp.pad(x, ((0, 0), (p, p), (p, p), (0, 0)))
    Ho = H - 1 - 2 * pad + kH
    Wo = W - 1 - 2 * pad + kW
    patches = jnp.stack(
        [xp[:, dy:dy + Ho, dx:dx + Wo, :] for dy in range(kH) for dx in range(kW)],
        axis=3)                                              # (Nb, Ho, Wo, kH*kW, Cin)
    A = patches.reshape(Nb * Ho * Wo, kH * kW * Cin)
    # forward-conv equivalent weight: spatial flip + (kH,kW,Cin,Cout) ordering
    B = jnp.transpose(w_t[:, :, ::-1, ::-1], (2, 3, 0, 1)).reshape(kH * kW * Cin, Cout)
    return A, B, (Nb, Ho, Wo, Cout)


def _im2col_subpixel_s2(x, w_t):
    """stride-2, k=4, pad=1 ConvTranspose2d as ONE GEMM.

    Shared 3x3-tap im2col A (width 9*Cin) times a zero-structured B whose columns
    concatenate the 4 output parities (width 4*Cout):
        out[n, 2*qy+ry, 2*qx+rx, co] =
            sum_{ty,tx: (ty-ry),(tx-rx) in {0,1}} xpad[n, qy+ty, qx+tx, :]
                                                  . W[:, co, 3+ry-2*ty, 3+rx-2*tx]
    This skips the ~75% zeros of the dilated-input formulation, shares the A slab across
    all 4 parities, and presents a wide lane-dense N to the MXU.
    """
    Nb, H, W, Cin = x.shape
    _, Cout, kH, kW = w_t.shape
    assert kH == 4 and kW == 4
    xp = jnp.pad(x, ((0, 0), (1, 1), (1, 1), (0, 0)))
    patches = jnp.stack(
        [xp[:, ty:ty + H, tx:tx + W, :] for ty in range(3) for tx in range(3)],
        axis=3)                                              # (Nb, H, W, 9, Cin)
    A = patches.reshape(Nb * H * W, 9 * Cin)

    zero = jnp.zeros((Cin, Cout), w_t.dtype)
    row_blocks = []
    for ty in range(3):
        for tx in range(3):
            col_blocks = []
            for ry in range(2):
                for rx in range(2):
                    dy, dx = ty - ry, tx - rx
                    if 0 <= dy <= 1 and 0 <= dx <= 1:
                        col_blocks.append(w_t[:, :, 3 - ry - 2 * dy, 3 - rx - 2 * dx])
                    else:
                        col_blocks.append(zero)
            row_blocks.append(jnp.concatenate(col_blocks, axis=1))   # (Cin, 4*Cout)
    B = jnp.concatenate(row_blocks, axis=0)                          # (9*Cin, 4*Cout)
    return A, B, (Nb, H, W, Cout)


def init_generator_params(key, nz, ngf, nc):
    """Deterministic init matching the module's layer shapes (DCGAN-style N(0, 0.02))."""
    chans = [nz, ngf * 8, ngf * 4, ngf * 2, ngf, nc]
    params = {"w": [], "gamma": [], "beta": []}
    for li in range(5):
        key, sub = jax.random.split(key)
        cin, cout = chans[li], chans[li + 1]
        params["w"].append(0.02 * jax.random.normal(sub, (cin, cout, 4, 4), jnp.float32))
        if li < 4:
            params["gamma"].append(jnp.ones((cout,), jnp.float32))   # torch BN defaults
            params["beta"].append(jnp.zeros((cout,), jnp.float32))
    return params


_STRIDES = (1, 2, 2, 2, 2)
_PADS = (0, 1, 1, 1, 1)


def generator_forward(params, z_nchw, eps=1e-5):
    """z_nchw: (N, nz, 1, 1) -> (N, nc, 64, 64), matching torch NCHW convention."""
    x = jnp.transpose(z_nchw, (0, 2, 3, 1)).astype(jnp.float32)      # NHWC
    for li in range(5):
        last = li == 4
        w = params["w"][li]
        if _STRIDES[li] == 1:
            A, B, (Nb, Ho, Wo, Cout) = _im2col_full(x, w, _PADS[li])
            Hq, Wq = Ho, Wo
            reps = 1
        else:
            A, B, (Nb, Hq, Wq, Cout) = _im2col_subpixel_s2(x, w)
            Ho, Wo = 2 * Hq, 2 * Wq
            reps = 4
        M = A.shape[0]
        n_real = reps * Cout

        if last:
            y = pallas_gemm(A, B, activation="tanh", out_dtype=jnp.float32)
        else:
            y, sums, sqs = pallas_gemm(A, B, out_dtype=jnp.bfloat16, with_stats=True)
            Npad = y.shape[1]
            # per-channel stats pool the `reps` parity column blocks together
            count = float(reps * M)                          # = Nb * Ho * Wo real rows
            s_c = sums[0, :n_real].reshape(reps, Cout).sum(axis=0)
            q_c = sqs[0, :n_real].reshape(reps, Cout).sum(axis=0)
            mean = s_c / count
            # TODO(synk): E[x^2]-E[x]^2 in f32 can cancel for large activation means;
            # switch to a centered two-pass if activations grow during training.
            var = jnp.maximum(q_c / count - mean * mean, 0.0)
            scale_c = params["gamma"][li] * jax.lax.rsqrt(var + eps)
            shift_c = params["beta"][li] - mean * scale_c
            scale = jnp.zeros((1, Npad), jnp.float32).at[0, :n_real].set(
                jnp.tile(scale_c, reps))
            shift = jnp.zeros((1, Npad), jnp.float32).at[0, :n_real].set(
                jnp.tile(shift_c, reps))
            y = pallas_bn_relu_apply(y, scale, shift)

        y = y[:M, :n_real]                                   # trim row/column padding
        if reps == 1:
            x = y.reshape(Nb, Ho, Wo, Cout)
        else:                                                # interleave the 4 parities
            x = jnp.transpose(y.reshape(Nb, Hq, Wq, 2, 2, Cout),
                              (0, 1, 3, 2, 4, 5)).reshape(Nb, Ho, Wo, Cout)
    return jnp.transpose(x, (0, 3, 1, 2))                    # back to NCHW


# ------------------------- pure-JAX reference (for checking) ---------------- #

def reference_forward(params, z_nchw, eps=1e-5):
    """Same math via lax.conv_general_dilated (lhs_dilation == ConvTranspose2d)."""
    x = jnp.transpose(z_nchw, (0, 2, 3, 1)).astype(jnp.float32)
    for li in range(5):
        last = li == 4
        w = params["w"][li]                                   # (Cin, Cout, kH, kW)
        kH = w.shape[2]
        wk = jnp.transpose(w[:, :, ::-1, ::-1], (2, 3, 0, 1))  # (kH, kW, Cin, Cout)
        p = kH - 1 - _PADS[li]
        y = jax.lax.conv_general_dilated(
            x.astype(jnp.bfloat16), wk.astype(jnp.bfloat16),
            window_strides=(1, 1), padding=[(p, p), (p, p)],
            lhs_dilation=(_STRIDES[li], _STRIDES[li]),
            dimension_numbers=("NHWC", "HWIO", "NHWC"),
            preferred_element_type=jnp.float32)
        if last:
            x = jnp.tanh(y)
        else:
            mean = jnp.mean(y, axis=(0, 1, 2), keepdims=True)
            var = jnp.mean((y - mean) ** 2, axis=(0, 1, 2), keepdims=True)
            g = params["gamma"][li].reshape(1, 1, 1, -1)
            b = params["beta"][li].reshape(1, 1, 1, -1)
            x = jnp.maximum((y - mean) * jax.lax.rsqrt(var + eps) * g + b, 0.0)
            x = x.astype(jnp.bfloat16)        # match kernel path's bf16 activations
    return jnp.transpose(x, (0, 3, 1, 2))


# ---------------------------------- main ------------------------------------ #

if __name__ == "__main__":
    # small config consistent with the module: nz=16, ngf=8, nc=3, batch=2
    nz, ngf, nc, batch = 16, 8, 3, 2

    key = jax.random.PRNGKey(0)
    kp, kz = jax.random.split(key)
    params = init_generator_params(kp, nz, ngf, nc)
    z = jax.random.normal(kz, (batch, nz, 1, 1), jnp.float32)

    fwd = jax.jit(generator_forward)
    out = jax.block_until_ready(fwd(params, z))

    assert out.shape == (batch, nc, 64, 64), out.shape
    assert bool(jnp.all(jnp.isfinite(out)))
    assert bool(jnp.all(jnp.abs(out) <= 1.0 + 1e-6))          # tanh output range

    ref = jax.block_until_ready(jax.jit(reference_forward)(params, z))
    max_err = float(jnp.max(jnp.abs(out - ref)))
    assert max_err < 5e-2, f"mismatch vs reference: max|diff|={max_err}"

    print("KERNEL_OK")
</pallas_src>

<mosaic_0001>
module attributes {stable_mosaic.version = 11 : i64} {
  func.func @_gemm_stats_kernel(%arg0: i32, %arg1: memref<32x256xbf16, #tpu.memory_space<vmem>>, %arg2: memref<256x128xbf16, #tpu.memory_space<vmem>>, %arg3: memref<32x128xbf16, #tpu.memory_space<vmem>>, %arg4: memref<1x128xf32, #tpu.memory_space<vmem>>, %arg5: memref<1x128xf32, #tpu.memory_space<vmem>>) attributes {dimension_semantics = [#tpu.dimension_semantics<arbitrary>], iteration_bounds = array<i64: 1>, scalar_prefetch = 0 : i64, scratch_operands = 0 : i64, tpu.core_type = #tpu.core_type<tc>, window_params = [{transform_indices = @transform_0, window_bounds = array<i64: 32, 256>}, {pipeline_mode = #tpu.pipeline_mode<synchronous>, transform_indices = @transform_1, window_bounds = array<i64: 256, 128>}, {transform_indices = @transform_2, window_bounds = array<i64: 32, 128>}, {pipeline_mode = #tpu.pipeline_mode<synchronous>, transform_indices = @transform_3, window_bounds = array<i64: 1, 128>}, {pipeline_mode = #tpu.pipeline_mode<synchronous>, transform_indices = @transform_4, window_bounds = array<i64: 1, 128>}]} {
    %c0 = arith.constant 0 : index
    %c0_0 = arith.constant 0 : index
    %0 = vector.load %arg1[%c0, %c0_0] : memref<32x256xbf16, #tpu.memory_space<vmem>>, vector<32x256xbf16>
    %c0_1 = arith.constant 0 : index
    %c0_2 = arith.constant 0 : index
    %1 = vector.load %arg2[%c0_1, %c0_2] : memref<256x128xbf16, #tpu.memory_space<vmem>>, vector<256x128xbf16>
    %cst = arith.constant dense<0.000000e+00> : vector<32x128xf32>
    %2 = tpu.matmul %0, %1, %cst {dimension_numbers = #tpu.dot_dimension_numbers<[1], [0], [0], [1], [0, 0, 1, 1], [], []>} : vector<32x256xbf16>, vector<256x128xbf16>, vector<32x128xf32> -> vector<32x128xf32>
    %c0_i32 = arith.constant 0 : i32
    %3 = arith.cmpi eq, %arg0, %c0_i32 : i32
    %4 = arith.extui %3 : i1 to i32
    %c0_i32_3 = arith.constant 0 : i32
    %5 = arith.cmpi ne, %4, %c0_i32_3 : i32
    scf.if %5 {
      %cst_16 = arith.constant 0.000000e+00 : f32
      %19 = vector.broadcast %cst_16 : f32 to vector<1x128xf32>
      %c0_17 = arith.constant 0 : index
      %c0_18 = arith.constant 0 : index
      %20 = vector.load %arg4[%c0_17, %c0_18] : memref<1x128xf32, #tpu.memory_space<vmem>>, vector<1x128xf32>
      tpu.vector_store %arg4[%c0_17, %c0_18], %19 {strides = array<i32>} : memref<1x128xf32, #tpu.memory_space<vmem>>, vector<1x128xf32>,
      %cst_19 = arith.constant 0.000000e+00 : f32
      %21 = vector.broadcast %cst_19 : f32 to vector<1x128xf32>
      %c0_20 = arith.constant 0 : index
      %c0_21 = arith.constant 0 : index
      %22 = vector.load %arg5[%c0_20, %c0_21] : memref<1x128xf32, #tpu.memory_space<vmem>>, vector<1x128xf32>
      tpu.vector_store %arg5[%c0_20, %c0_21], %21 {strides = array<i32>} : memref<1x128xf32, #tpu.memory_space<vmem>>, vector<1x128xf32>,
    } else {
    }
    %c0_4 = arith.constant 0 : index
    %c0_5 = arith.constant 0 : index
    %6 = vector.load %arg4[%c0_4, %c0_5] : memref<1x128xf32, #tpu.memory_space<vmem>>, vector<1x128xf32>
    %cst_6 = arith.constant dense<0.000000e+00> : vector<128xf32>
    %7 = vector.multi_reduction <add>, %2, %cst_6 [0] : vector<32x128xf32> to vector<128xf32>
    %8 = vector.shape_cast %7 : vector<128xf32> to vector<1x128xf32>
    %9 = arith.addf %6, %8 : vector<1x128xf32>
    %c0_7 = arith.constant 0 : index
    %c0_8 = arith.constant 0 : index
    %10 = vector.load %arg4[%c0_7, %c0_8] : memref<1x128xf32, #tpu.memory_space<vmem>>, vector<1x128xf32>
    tpu.vector_store %arg4[%c0_7, %c0_8], %9 {strides = array<i32>} : memref<1x128xf32, #tpu.memory_space<vmem>>, vector<1x128xf32>,
    %c0_9 = arith.constant 0 : index
    %c0_10 = arith.constant 0 : index
    %11 = vector.load %arg5[%c0_9, %c0_10] : memref<1x128xf32, #tpu.memory_space<vmem>>, vector<1x128xf32>
    %12 = arith.mulf %2, %2 : vector<32x128xf32>
    %cst_11 = arith.constant dense<0.000000e+00> : vector<128xf32>
    %13 = vector.multi_reduction <add>, %12, %cst_11 [0] : vector<32x128xf32> to vector<128xf32>
    %14 = vector.shape_cast %13 : vector<128xf32> to vector<1x128xf32>
    %15 = arith.addf %11, %14 : vector<1x128xf32>
    %c0_12 = arith.constant 0 : index
    %c0_13 = arith.constant 0 : index
    %16 = vector.load %arg5[%c0_12, %c0_13] : memref<1x128xf32, #tpu.memory_space<vmem>>, vector<1x128xf32>
    tpu.vector_store %arg5[%c0_12, %c0_13], %15 {strides = array<i32>} : memref<1x128xf32, #tpu.memory_space<vmem>>, vector<1x128xf32>,
    %17 = arith.truncf %2 : vector<32x128xf32> to vector<32x128xbf16>
    %c0_14 = arith.constant 0 : index
    %c0_15 = arith.constant 0 : index
    %18 = vector.load %arg3[%c0_14, %c0_15] : memref<32x128xbf16, #tpu.memory_space<vmem>>, vector<32x128xbf16>
    tpu.vector_store %arg3[%c0_14, %c0_15], %17 {strides = array<i32>} : memref<32x128xbf16, #tpu.memory_space<vmem>>, vector<32x128xbf16>,
    return
  }
  func.func @transform_0(%arg0: i32) -> (i32, i32) {
    %c0_i32 = arith.constant 0 : i32
    %c0_i32_0 = arith.constant 0 : i32
    return %arg0, %c0_i32 : i32, i32
  }
  func.func @transform_1(%arg0: i32) -> (i32, i32) {
    %c0_i32 = arith.constant 0 : i32
    %c0_i32_0 = arith.constant 0 : i32
    %c0_i32_1 = arith.constant 0 : i32
    return %c0_i32, %c0_i32_0 : i32, i32
  }
  func.func @transform_2(%arg0: i32) -> (i32, i32) {
    %c0_i32 = arith.constant 0 : i32
    %c0_i32_0 = arith.constant 0 : i32
    return %arg0, %c0_i32 : i32, i32
  }
  func.func @transform_3(%arg0: i32) -> (i32, i32) {
    %c0_i32 = arith.constant 0 : i32
    %c0_i32_0 = arith.constant 0 : i32
    %c0_i32_1 = arith.constant 0 : i32
    return %c0_i32, %c0_i32_0 : i32, i32
  }
  func.func @transform_4(%arg0: i32) -> (i32, i32) {
    %c0_i32 = arith.constant 0 : i32
    %c0_i32_0 = arith.constant 0 : i32
    %c0_i32_1 = arith.constant 0 : i32
    return %c0_i32, %c0_i32_0 : i32, i32
  }
}

module attributes {stable_mosaic.version = 11 : i64} {
  func.func @_bn_apply_relu_kernel(%arg0: i32, %arg1: memref<32x128xbf16, #tpu.memory_space<vmem>>, %arg2: memref<1x128xf32, #tpu.memory_space<vmem>>, %arg3: memref<1x128xf32, #tpu.memory_space<vmem>>, %arg4: memref<32x128xbf16, #tpu.memory_space<vmem>>) attributes {dimension_semantics = [#tpu.dimension_semantics<parallel>], iteration_bounds = array<i64: 1>, scalar_prefetch = 0 : i64, scratch_operands = 0 : i64, tpu.core_type = #tpu.core_type<tc>, window_params = [{transform_indices = @transform_0, window_bounds = array<i64: 32, 128>}, {pipeline_mode = #tpu.pipeline_mode<synchronous>, transform_indices = @transform_1, window_bounds = array<i64: 1, 128>}, {pipeline_mode = #tpu.pipeline_mode<synchronous>, transform_indices = @transform_2, window_bounds = array<i64: 1, 128>}, {transform_indices = @transform_3, window_bounds = array<i64: 32, 128>}]} {
    %c0 = arith.constant 0 : index
    %c0_0 = arith.constant 0 : index
    %0 = vector.load %arg1[%c0, %c0_0] : memref<32x128xbf16, #tpu.memory_space<vmem>>, vector<32x128xbf16>
    %1 = arith.extf %0 : vector<32x128xbf16> to vector<32x128xf32>
    %c0_1 = arith.constant 0 : index
    %c0_2 = arith.constant 0 : index
    %2 = vector.load %arg2[%c0_1, %c0_2] : memref<1x128xf32, #tpu.memory_space<vmem>>, vector<1x128xf32>
    %3 = vector.broadcast %2 : vector<1x128xf32> to vector<32x128xf32>
    %4 = arith.mulf %1, %3 : vector<32x128xf32>
    %c0_3 = arith.constant 0 : index
    %c0_4 = arith.constant 0 : index
    %5 = vector.load %arg3[%c0_3, %c0_4] : memref<1x128xf32, #tpu.memory_space<vmem>>, vector<1x128xf32>
    %6 = vector.broadcast %5 : vector<1x128xf32> to vector<32x128xf32>
    %7 = arith.addf %4, %6 : vector<32x128xf32>
    %cst = arith.constant 0.000000e+00 : f32
    %8 = vector.broadcast %cst : f32 to vector<32x128xf32>
    %9 = arith.maximumf %7, %8 : vector<32x128xf32>
    %10 = arith.truncf %9 : vector<32x128xf32> to vector<32x128xbf16>
    %c0_5 = arith.constant 0 : index
    %c0_6 = arith.constant 0 : index
    %11 = vector.load %arg4[%c0_5, %c0_6] : memref<32x128xbf16, #tpu.memory_space<vmem>>, vector<32x128xbf16>
    tpu.vector_store %arg4[%c0_5, %c0_6], %10 {strides = array<i32>} : memref<32x128xbf16, #tpu.memory_space<vmem>>, vector<32x128xbf16>,
    return
  }
  func.func @transform_0(%arg0: i32) -> (i32, i32) {
    %c0_i32 = arith.constant 0 : i32
    %c0_i32_0 = arith.constant 0 : i32
    return %arg0, %c0_i32 : i32, i32
  }
  func.func @transform_1(%arg0: i32) -> (i32, i32) {
    %c0_i32 = arith.constant 0 : i32
    %c0_i32_0 = arith.constant 0 : i32
    %c0_i32_1 = arith.constant 0 : i32
    return %c0_i32, %c0_i32_0 : i32, i32
  }
  func.func @transform_2(%arg0: i32) -> (i32, i32) {
    %c0_i32 = arith.constant 0 : i32
    %c0_i32_0 = arith.constant 0 : i32
    %c0_i32_1 = arith.constant 0 : i32
    return %c0_i32, %c0_i32_0 : i32, i32
  }
  func.func @transform_3(%arg0: i32) -> (i32, i32) {
    %c0_i32 = arith.constant 0 : i32
    %c0_i32_0 = arith.constant 0 : i32
    return %arg0, %c0_i32 : i32, i32
  }
}

module attributes {stable_mosaic.version = 11 : i64} {
  func.func @_gemm_stats_kernel(%arg0: i32, %arg1: memref<32x576xbf16, #tpu.memory_space<vmem>>, %arg2: memref<576x128xbf16, #tpu.memory_space<vmem>>, %arg3: memref<32x128xbf16, #tpu.memory_space<vmem>>, %arg4: memref<1x128xf32, #tpu.memory_space<vmem>>, %arg5: memref<1x128xf32, #tpu.memory_space<vmem>>) attributes {dimension_semantics = [#tpu.dimension_semantics<arbitrary>], iteration_bounds = array<i64: 1>, scalar_prefetch = 0 : i64, scratch_operands = 0 : i64, tpu.core_type = #tpu.core_type<tc>, window_params = [{transform_indices = @transform_0, window_bounds = array<i64: 32, 576>}, {pipeline_mode = #tpu.pipeline_mode<synchronous>, transform_indices = @transform_1, window_bounds = array<i64: 576, 128>}, {transform_indices = @transform_2, window_bounds = array<i64: 32, 128>}, {pipeline_mode = #tpu.pipeline_mode<synchronous>, transform_indices = @transform_3, window_bounds = array<i64: 1, 128>}, {pipeline_mode = #tpu.pipeline_mode<synchronous>, transform_indices = @transform_4, window_bounds = array<i64: 1, 128>}]} {
    %c0 = arith.constant 0 : index
    %c0_0 = arith.constant 0 : index
    %0 = vector.load %arg1[%c0, %c0_0] : memref<32x576xbf16, #tpu.memory_space<vmem>>, vector<32x576xbf16>
    %c0_1 = arith.constant 0 : index
    %c0_2 = arith.constant 0 : index
    %1 = vector.load %arg2[%c0_1, %c0_2] : memref<576x128xbf16, #tpu.memory_space<vmem>>, vector<576x128xbf16>
    %cst = arith.constant dense<0.000000e+00> : vector<32x128xf32>
    %2 = tpu.matmul %0, %1, %cst {dimension_numbers = #tpu.dot_dimension_numbers<[1], [0], [0], [1], [0, 0, 1, 1], [], []>} : vector<32x576xbf16>, vector<576x128xbf16>, vector<32x128xf32> -> vector<32x128xf32>
    %c0_i32 = arith.constant 0 : i32
    %3 = arith.cmpi eq, %arg0, %c0_i32 : i32
    %4 = arith.extui %3 : i1 to i32
    %c0_i32_3 = arith.constant 0 : i32
    %5 = arith.cmpi ne, %4, %c0_i32_3 : i32
    scf.if %5 {
      %cst_16 = arith.constant 0.000000e+00 : f32
      %19 = vector.broadcast %cst_16 : f32 to vector<1x128xf32>
      %c0_17 = arith.constant 0 : index
      %c0_18 = arith.constant 0 : index
      %20 = vector.load %arg4[%c0_17, %c0_18] : memref<1x128xf32, #tpu.memory_space<vmem>>, vector<1x128xf32>
      tpu.vector_store %arg4[%c0_17, %c0_18], %19 {strides = array<i32>} : memref<1x128xf32, #tpu.memory_space<vmem>>, vector<1x128xf32>,
      %cst_19 = arith.constant 0.000000e+00 : f32
      %21 = vector.broadcast %cst_19 : f32 to vector<1x128xf32>
      %c0_20 = arith.constant 0 : index
      %c0_21 = arith.constant 0 : index
      %22 = vector.load %arg5[%c0_20, %c0_21] : memref<1x128xf32, #tpu.memory_space<vmem>>, vector<1x128xf32>
      tpu.vector_store %arg5[%c0_20, %c0_21], %21 {strides = array<i32>} : memref<1x128xf32, #tpu.memory_space<vmem>>, vector<1x128xf32>,
    } else {
    }
    %c0_4 = arith.constant 0 : index
    %c0_5 = arith.constant 0 : index
    %6 = vector.load %arg4[%c0_4, %c0_5] : memref<1x128xf32, #tpu.memory_space<vmem>>, vector<1x128xf32>
    %cst_6 = arith.constant dense<0.000000e+00> : vector<128xf32>
    %7 = vector.multi_reduction <add>, %2, %cst_6 [0] : vector<32x128xf32> to vector<128xf32>
    %8 = vector.shape_cast %7 : vector<128xf32> to vector<1x128xf32>
    %9 = arith.addf %6, %8 : vector<1x128xf32>
    %c0_7 = arith.constant 0 : index
    %c0_8 = arith.constant 0 : index
    %10 = vector.load %arg4[%c0_7, %c0_8] : memref<1x128xf32, #tpu.memory_space<vmem>>, vector<1x128xf32>
    tpu.vector_store %arg4[%c0_7, %c0_8], %9 {strides = array<i32>} : memref<1x128xf32, #tpu.memory_space<vmem>>, vector<1x128xf32>,
    %c0_9 = arith.constant 0 : index
    %c0_10 = arith.constant 0 : index
    %11 = vector.load %arg5[%c0_9, %c0_10] : memref<1x128xf32, #tpu.memory_space<vmem>>, vector<1x128xf32>
    %12 = arith.mulf %2, %2 : vector<32x128xf32>
    %cst_11 = arith.constant dense<0.000000e+00> : vector<128xf32>
    %13 = vector.multi_reduction <add>, %12, %cst_11 [0] : vector<32x128xf32> to vector<128xf32>
    %14 = vector.shape_cast %13 : vector<128xf32> to vector<1x128xf32>
    %15 = arith.addf %11, %14 : vector<1x128xf32>
    %c0_12 = arith.constant 0 : index
    %c0_13 = arith.constant 0 : index
    %16 = vector.load %arg5[%c0_12, %c0_13] : memref<1x128xf32, #tpu.memory_space<vmem>>, vector<1x128xf32>
    tpu.vector_store %arg5[%c0_12, %c0_13], %15 {strides = array<i32>} : memref<1x128xf32, #tpu.memory_space<vmem>>, vector<1x128xf32>,
    %17 = arith.truncf %2 : vector<32x128xf32> to vector<32x128xbf16>
    %c0_14 = arith.constant 0 : index
    %c0_15 = arith.constant 0 : index
    %18 = vector.load %arg3[%c0_14, %c0_15] : memref<32x128xbf16, #tpu.memory_space<vmem>>, vector<32x128xbf16>
    tpu.vector_store %arg3[%c0_14, %c0_15], %17 {strides = array<i32>} : memref<32x128xbf16, #tpu.memory_space<vmem>>, vector<32x128xbf16>,
    return
  }
  func.func @transform_0(%arg0: i32) -> (i32, i32) {
    %c0_i32 = arith.constant 0 : i32
    %c0_i32_0 = arith.constant 0 : i32
    return %arg0, %c0_i32 : i32, i32
  }
  func.func @transform_1(%arg0: i32) -> (i32, i32) {
    %c0_i32 = arith.constant 0 : i32
    %c0_i32_0 = arith.constant 0 : i32
    %c0_i32_1 = arith.constant 0 : i32
    return %c0_i32, %c0_i32_0 : i32, i32
  }
  func.func @transform_2(%arg0: i32) -> (i32, i32) {
    %c0_i32 = arith.constant 0 : i32
    %c0_i32_0 = arith.constant 0 : i32
    return %arg0, %c0_i32 : i32, i32
  }
  func.func @transform_3(%arg0: i32) -> (i32, i32) {
    %c0_i32 = arith.constant 0 : i32
    %c0_i32_0 = arith.constant 0 : i32
    %c0_i32_1 = arith.constant 0 : i32
    return %c0_i32, %c0_i32_0 : i32, i32
  }
  func.func @transform_4(%arg0: i32) -> (i32, i32) {
    %c0_i32 = arith.constant 0 : i32
    %c0_i32_0 = arith.constant 0 : i32
    %c0_i32_1 = arith.constant 0 : i32
    return %c0_i32, %c0_i32_0 : i32, i32
  }
}

module attributes {stable_mosaic.version = 11 : i64} {
  func.func @_gemm_stats_kernel(%arg0: i32, %arg1: memref<128x288xbf16, #tpu.memory_space<vmem>>, %arg2: memref<288x128xbf16, #tpu.memory_space<vmem>>, %arg3: memref<128x128xbf16, #tpu.memory_space<vmem>>, %arg4: memref<1x128xf32, #tpu.memory_space<vmem>>, %arg5: memref<1x128xf32, #tpu.memory_space<vmem>>) attributes {dimension_semantics = [#tpu.dimension_semantics<arbitrary>], iteration_bounds = array<i64: 1>, scalar_prefetch = 0 : i64, scratch_operands = 0 : i64, tpu.core_type = #tpu.core_type<tc>, window_params = [{transform_indices = @transform_0, window_bounds = array<i64: 128, 288>}, {pipeline_mode = #tpu.pipeline_mode<synchronous>, transform_indices = @transform_1, window_bounds = array<i64: 288, 128>}, {transform_indices = @transform_2, window_bounds = array<i64: 128, 128>}, {pipeline_mode = #tpu.pipeline_mode<synchronous>, transform_indices = @transform_3, window_bounds = array<i64: 1, 128>}, {pipeline_mode = #tpu.pipeline_mode<synchronous>, transform_indices = @transform_4, window_bounds = array<i64: 1, 128>}]} {
    %c0 = arith.constant 0 : index
    %c0_0 = arith.constant 0 : index
    %0 = vector.load %arg1[%c0, %c0_0] : memref<128x288xbf16, #tpu.memory_space<vmem>>, vector<128x288xbf16>
    %c0_1 = arith.constant 0 : index
    %c0_2 = arith.constant 0 : index
    %1 = vector.load %arg2[%c0_1, %c0_2] : memref<288x128xbf16, #tpu.memory_space<vmem>>, vector<288x128xbf16>
    %cst = arith.constant dense<0.000000e+00> : vector<128x128xf32>
    %2 = tpu.matmul %0, %1, %cst {dimension_numbers = #tpu.dot_dimension_numbers<[1], [0], [0], [1], [0, 0, 1, 1], [], []>} : vector<128x288xbf16>, vector<288x128xbf16>, vector<128x128xf32> -> vector<128x128xf32>
    %c0_i32 = arith.constant 0 : i32
    %3 = arith.cmpi eq, %arg0, %c0_i32 : i32
    %4 = arith.extui %3 : i1 to i32
    %c0_i32_3 = arith.constant 0 : i32
    %5 = arith.cmpi ne, %4, %c0_i32_3 : i32
    scf.if %5 {
      %cst_16 = arith.constant 0.000000e+00 : f32
      %19 = vector.broadcast %cst_16 : f32 to vector<1x128xf32>
      %c0_17 = arith.constant 0 : index
      %c0_18 = arith.constant 0 : index
      %20 = vector.load %arg4[%c0_17, %c0_18] : memref<1x128xf32, #tpu.memory_space<vmem>>, vector<1x128xf32>
      tpu.vector_store %arg4[%c0_17, %c0_18], %19 {strides = array<i32>} : memref<1x128xf32, #tpu.memory_space<vmem>>, vector<1x128xf32>,
      %cst_19 = arith.constant 0.000000e+00 : f32
      %21 = vector.broadcast %cst_19 : f32 to vector<1x128xf32>
      %c0_20 = arith.constant 0 : index
      %c0_21 = arith.constant 0 : index
      %22 = vector.load %arg5[%c0_20, %c0_21] : memref<1x128xf32, #tpu.memory_space<vmem>>, vector<1x128xf32>
      tpu.vector_store %arg5[%c0_20, %c0_21], %21 {strides = array<i32>} : memref<1x128xf32, #tpu.memory_space<vmem>>, vector<1x128xf32>,
    } else {
    }
    %c0_4 = arith.constant 0 : index
    %c0_5 = arith.constant 0 : index
    %6 = vector.load %arg4[%c0_4, %c0_5] : memref<1x128xf32, #tpu.memory_space<vmem>>, vector<1x128xf32>
    %cst_6 = arith.constant dense<0.000000e+00> : vector<128xf32>
    %7 = vector.multi_reduction <add>, %2, %cst_6 [0] : vector<128x128xf32> to vector<128xf32>
    %8 = vector.shape_cast %7 : vector<128xf32> to vector<1x128xf32>
    %9 = arith.addf %6, %8 : vector<1x128xf32>
    %c0_7 = arith.constant 0 : index
    %c0_8 = arith.constant 0 : index
    %10 = vector.load %arg4[%c0_7, %c0_8] : memref<1x128xf32, #tpu.memory_space<vmem>>, vector<1x128xf32>
    tpu.vector_store %arg4[%c0_7, %c0_8], %9 {strides = array<i32>} : memref<1x128xf32, #tpu.memory_space<vmem>>, vector<1x128xf32>,
    %c0_9 = arith.constant 0 : index
    %c0_10 = arith.constant 0 : index
    %11 = vector.load %arg5[%c0_9, %c0_10] : memref<1x128xf32, #tpu.memory_space<vmem>>, vector<1x128xf32>
    %12 = arith.mulf %2, %2 : vector<128x128xf32>
    %cst_11 = arith.constant dense<0.000000e+00> : vector<128xf32>
    %13 = vector.multi_reduction <add>, %12, %cst_11 [0] : vector<128x128xf32> to vector<128xf32>
    %14 = vector.shape_cast %13 : vector<128xf32> to vector<1x128xf32>
    %15 = arith.addf %11, %14 : vector<1x128xf32>
    %c0_12 = arith.constant 0 : index
    %c0_13 = arith.constant 0 : index
    %16 = vector.load %arg5[%c0_12, %c0_13] : memref<1x128xf32, #tpu.memory_space<vmem>>, vector<1x128xf32>
    tpu.vector_store %arg5[%c0_12, %c0_13], %15 {strides = array<i32>} : memref<1x128xf32, #tpu.memory_space<vmem>>, vector<1x128xf32>,
    %17 = arith.truncf %2 : vector<128x128xf32> to vector<128x128xbf16>
    %c0_14 = arith.constant 0 : index
    %c0_15 = arith.constant 0 : index
    %18 = vector.load %arg3[%c0_14, %c0_15] : memref<128x128xbf16, #tpu.memory_space<vmem>>, vector<128x128xbf16>
    tpu.vector_store %arg3[%c0_14, %c0_15], %17 {strides = array<i32>} : memref<128x128xbf16, #tpu.memory_space<vmem>>, vector<128x128xbf16>,
    return
  }
  func.func @transform_0(%arg0: i32) -> (i32, i32) {
    %c0_i32 = arith.constant 0 : i32
    %c0_i32_0 = arith.constant 0 : i32
    return %arg0, %c0_i32 : i32, i32
  }
  func.func @transform_1(%arg0: i32) -> (i32, i32) {
    %c0_i32 = arith.constant 0 : i32
    %c0_i32_0 = arith.constant 0 : i32
    %c0_i32_1 = arith.constant 0 : i32
    return %c0_i32, %c0_i32_0 : i32, i32
  }
  func.func @transform_2(%arg0: i32) -> (i32, i32) {
    %c0_i32 = arith.constant 0 : i32
    %c0_i32_0 = arith.constant 0 : i32
    return %arg0, %c0_i32 : i32, i32
  }
  func.func @transform_3(%arg0: i32) -> (i32, i32) {
    %c0_i32 = arith.constant 0 : i32
    %c0_i32_0 = arith.constant 0 : i32
    %c0_i32_1 = arith.constant 0 : i32
    return %c0_i32, %c0_i32_0 : i32, i32
  }
  func.func @transform_4(%arg0: i32) -> (i32, i32) {
    %c0_i32 = arith.constant 0 : i32
    %c0_i32_0 = arith.constant 0 : i32
    %c0_i32_1 = arith.constant 0 : i32
    return %c0_i32, %c0_i32_0 : i32, i32
  }
}

module attributes {stable_mosaic.version = 11 : i64} {
  func.func @_bn_apply_relu_kernel(%arg0: i32, %arg1: memref<128x128xbf16, #tpu.memory_space<vmem>>, %arg2: memref<1x128xf32, #tpu.memory_space<vmem>>, %arg3: memref<1x128xf32, #tpu.memory_space<vmem>>, %arg4: memref<128x128xbf16, #tpu.memory_space<vmem>>) attributes {dimension_semantics = [#tpu.dimension_semantics<parallel>], iteration_bounds = array<i64: 1>, scalar_prefetch = 0 : i64, scratch_operands = 0 : i64, tpu.core_type = #tpu.core_type<tc>, window_params = [{transform_indices = @transform_0, window_bounds = array<i64: 128, 128>}, {pipeline_mode = #tpu.pipeline_mode<synchronous>, transform_indices = @transform_1, window_bounds = array<i64: 1, 128>}, {pipeline_mode = #tpu.pipeline_mode<synchronous>, transform_indices = @transform_2, window_bounds = array<i64: 1, 128>}, {transform_indices = @transform_3, window_bounds = array<i64: 128, 128>}]} {
    %c0 = arith.constant 0 : index
    %c0_0 = arith.constant 0 : index
    %0 = vector.load %arg1[%c0, %c0_0] : memref<128x128xbf16, #tpu.memory_space<vmem>>, vector<128x128xbf16>
    %1 = arith.extf %0 : vector<128x128xbf16> to vector<128x128xf32>
    %c0_1 = arith.constant 0 : index
    %c0_2 = arith.constant 0 : index
    %2 = vector.load %arg2[%c0_1, %c0_2] : memref<1x128xf32, #tpu.memory_space<vmem>>, vector<1x128xf32>
    %3 = vector.broadcast %2 : vector<1x128xf32> to vector<128x128xf32>
    %4 = arith.mulf %1, %3 : vector<128x128xf32>
    %c0_3 = arith.constant 0 : index
    %c0_4 = arith.constant 0 : index
    %5 = vector.load %arg3[%c0_3, %c0_4] : memref<1x128xf32, #tpu.memory_space<vmem>>, vector<1x128xf32>
    %6 = vector.broadcast %5 : vector<1x128xf32> to vector<128x128xf32>
    %7 = arith.addf %4, %6 : vector<128x128xf32>
    %cst = arith.constant 0.000000e+00 : f32
    %8 = vector.broadcast %cst : f32 to vector<128x128xf32>
    %9 = arith.maximumf %7, %8 : vector<128x128xf32>
    %10 = arith.truncf %9 : vector<128x128xf32> to vector<128x128xbf16>
    %c0_5 = arith.constant 0 : index
    %c0_6 = arith.constant 0 : index
    %11 = vector.load %arg4[%c0_5, %c0_6] : memref<128x128xbf16, #tpu.memory_space<vmem>>, vector<128x128xbf16>
    tpu.vector_store %arg4[%c0_5, %c0_6], %10 {strides = array<i32>} : memref<128x128xbf16, #tpu.memory_space<vmem>>, vector<128x128xbf16>,
    return
  }
  func.func @transform_0(%arg0: i32) -> (i32, i32) {
    %c0_i32 = arith.constant 0 : i32
    %c0_i32_0 = arith.constant 0 : i32
    return %arg0, %c0_i32 : i32, i32
  }
  func.func @transform_1(%arg0: i32) -> (i32, i32) {
    %c0_i32 = arith.constant 0 : i32
    %c0_i32_0 = arith.constant 0 : i32
    %c0_i32_1 = arith.constant 0 : i32
    return %c0_i32, %c0_i32_0 : i32, i32
  }
  func.func @transform_2(%arg0: i32) -> (i32, i32) {
    %c0_i32 = arith.constant 0 : i32
    %c0_i32_0 = arith.constant 0 : i32
    %c0_i32_1 = arith.constant 0 : i32
    return %c0_i32, %c0_i32_0 : i32, i32
  }
  func.func @transform_3(%arg0: i32) -> (i32, i32) {
    %c0_i32 = arith.constant 0 : i32
    %c0_i32_0 = arith.constant 0 : i32
    return %arg0, %c0_i32 : i32, i32
  }
}

module attributes {stable_mosaic.version = 11 : i64} {
  func.func @_gemm_stats_kernel(%arg0: i32, %arg1: memref<512x144xbf16, #tpu.memory_space<vmem>>, %arg2: memref<144x128xbf16, #tpu.memory_space<vmem>>, %arg3: memref<512x128xbf16, #tpu.memory_space<vmem>>, %arg4: memref<1x128xf32, #tpu.memory_space<vmem>>, %arg5: memref<1x128xf32, #tpu.memory_space<vmem>>) attributes {dimension_semantics = [#tpu.dimension_semantics<arbitrary>], iteration_bounds = array<i64: 1>, scalar_prefetch = 0 : i64, scratch_operands = 0 : i64, tpu.core_type = #tpu.core_type<tc>, window_params = [{transform_indices = @transform_0, window_bounds = array<i64: 512, 144>}, {pipeline_mode = #tpu.pipeline_mode<synchronous>, transform_indices = @transform_1, window_bounds = array<i64: 144, 128>}, {transform_indices = @transform_2, window_bounds = array<i64: 512, 128>}, {pipeline_mode = #tpu.pipeline_mode<synchronous>, transform_indices = @transform_3, window_bounds = array<i64: 1, 128>}, {pipeline_mode = #tpu.pipeline_mode<synchronous>, transform_indices = @transform_4, window_bounds = array<i64: 1, 128>}]} {
    %c0 = arith.constant 0 : index
    %c0_0 = arith.constant 0 : index
    %0 = vector.load %arg1[%c0, %c0_0] : memref<512x144xbf16, #tpu.memory_space<vmem>>, vector<512x144xbf16>
    %c0_1 = arith.constant 0 : index
    %c0_2 = arith.constant 0 : index
    %1 = vector.load %arg2[%c0_1, %c0_2] : memref<144x128xbf16, #tpu.memory_space<vmem>>, vector<144x128xbf16>
    %cst = arith.constant dense<0.000000e+00> : vector<512x128xf32>
    %2 = tpu.matmul %0, %1, %cst {dimension_numbers = #tpu.dot_dimension_numbers<[1], [0], [0], [1], [0, 0, 1, 1], [], []>} : vector<512x144xbf16>, vector<144x128xbf16>, vector<512x128xf32> -> vector<512x128xf32>
    %c0_i32 = arith.constant 0 : i32
    %3 = arith.cmpi eq, %arg0, %c0_i32 : i32
    %4 = arith.extui %3 : i1 to i32
    %c0_i32_3 = arith.constant 0 : i32
    %5 = arith.cmpi ne, %4, %c0_i32_3 : i32
    scf.if %5 {
      %cst_16 = arith.constant 0.000000e+00 : f32
      %19 = vector.broadcast %cst_16 : f32 to vector<1x128xf32>
      %c0_17 = arith.constant 0 : index
      %c0_18 = arith.constant 0 : index
      %20 = vector.load %arg4[%c0_17, %c0_18] : memref<1x128xf32, #tpu.memory_space<vmem>>, vector<1x128xf32>
      tpu.vector_store %arg4[%c0_17, %c0_18], %19 {strides = array<i32>} : memref<1x128xf32, #tpu.memory_space<vmem>>, vector<1x128xf32>,
      %cst_19 = arith.constant 0.000000e+00 : f32
      %21 = vector.broadcast %cst_19 : f32 to vector<1x128xf32>
      %c0_20 = arith.constant 0 : index
      %c0_21 = arith.constant 0 : index
      %22 = vector.load %arg5[%c0_20, %c0_21] : memref<1x128xf32, #tpu.memory_space<vmem>>, vector<1x128xf32>
      tpu.vector_store %arg5[%c0_20, %c0_21], %21 {strides = array<i32>} : memref<1x128xf32, #tpu.memory_space<vmem>>, vector<1x128xf32>,
    } else {
    }
    %c0_4 = arith.constant 0 : index
    %c0_5 = arith.constant 0 : index
    %6 = vector.load %arg4[%c0_4, %c0_5] : memref<1x128xf32, #tpu.memory_space<vmem>>, vector<1x128xf32>
    %cst_6 = arith.constant dense<0.000000e+00> : vector<128xf32>
    %7 = vector.multi_reduction <add>, %2, %cst_6 [0] : vector<512x128xf32> to vector<128xf32>
    %8 = vector.shape_cast %7 : vector<128xf32> to vector<1x128xf32>
    %9 = arith.addf %6, %8 : vector<1x128xf32>
    %c0_7 = arith.constant 0 : index
    %c0_8 = arith.constant 0 : index
    %10 = vector.load %arg4[%c0_7, %c0_8] : memref<1x128xf32, #tpu.memory_space<vmem>>, vector<1x128xf32>
    tpu.vector_store %arg4[%c0_7, %c0_8], %9 {strides = array<i32>} : memref<1x128xf32, #tpu.memory_space<vmem>>, vector<1x128xf32>,
    %c0_9 = arith.constant 0 : index
    %c0_10 = arith.constant 0 : index
    %11 = vector.load %arg5[%c0_9, %c0_10] : memref<1x128xf32, #tpu.memory_space<vmem>>, vector<1x128xf32>
    %12 = arith.mulf %2, %2 : vector<512x128xf32>
    %cst_11 = arith.constant dense<0.000000e+00> : vector<128xf32>
    %13 = vector.multi_reduction <add>, %12, %cst_11 [0] : vector<512x128xf32> to vector<128xf32>
    %14 = vector.shape_cast %13 : vector<128xf32> to vector<1x128xf32>
    %15 = arith.addf %11, %14 : vector<1x128xf32>
    %c0_12 = arith.constant 0 : index
    %c0_13 = arith.constant 0 : index
    %16 = vector.load %arg5[%c0_12, %c0_13] : memref<1x128xf32, #tpu.memory_space<vmem>>, vector<1x128xf32>
    tpu.vector_store %arg5[%c0_12, %c0_13], %15 {strides = array<i32>} : memref<1x128xf32, #tpu.memory_space<vmem>>, vector<1x128xf32>,
    %17 = arith.truncf %2 : vector<512x128xf32> to vector<512x128xbf16>
    %c0_14 = arith.constant 0 : index
    %c0_15 = arith.constant 0 : index
    %18 = vector.load %arg3[%c0_14, %c0_15] : memref<512x128xbf16, #tpu.memory_space<vmem>>, vector<512x128xbf16>
    tpu.vector_store %arg3[%c0_14, %c0_15], %17 {strides = array<i32>} : memref<512x128xbf16, #tpu.memory_space<vmem>>, vector<512x128xbf16>,
    return
  }
  func.func @transform_0(%arg0: i32) -> (i32, i32) {
    %c0_i32 = arith.constant 0 : i32
    %c0_i32_0 = arith.constant 0 : i32
    return %arg0, %c0_i32 : i32, i32
  }
  func.func @transform_1(%arg0: i32) -> (i32, i32) {
    %c0_i32 = arith.constant 0 : i32
    %c0_i32_0 = arith.constant 0 : i32
    %c0_i32_1 = arith.constant 0 : i32
    return %c0_i32, %c0_i32_0 : i32, i32
  }
  func.func @transform_2(%arg0: i32) -> (i32, i32) {
    %c0_i32 = arith.constant 0 : i32
    %c0_i32_0 = arith.constant 0 : i32
    return %arg0, %c0_i32 : i32, i32
  }
  func.func @transform_3(%arg0: i32) -> (i32, i32) {
    %c0_i32 = arith.constant 0 : i32
    %c0_i32_0 = arith.constant 0 : i32
    %c0_i32_1 = arith.constant 0 : i32
    return %c0_i32, %c0_i32_0 : i32, i32
  }
  func.func @transform_4(%arg0: i32) -> (i32, i32) {
    %c0_i32 = arith.constant 0 : i32
    %c0_i32_0 = arith.constant 0 : i32
    %c0_i32_1 = arith.constant 0 : i32
    return %c0_i32, %c0_i32_0 : i32, i32
  }
}

module attributes {stable_mosaic.version = 11 : i64} {
  func.func @_bn_apply_relu_kernel(%arg0: i32, %arg1: memref<512x128xbf16, #tpu.memory_space<vmem>>, %arg2: memref<1x128xf32, #tpu.memory_space<vmem>>, %arg3: memref<1x128xf32, #tpu.memory_space<vmem>>, %arg4: memref<512x128xbf16, #tpu.memory_space<vmem>>) attributes {dimension_semantics = [#tpu.dimension_semantics<parallel>], iteration_bounds = array<i64: 1>, scalar_prefetch = 0 : i64, scratch_operands = 0 : i64, tpu.core_type = #tpu.core_type<tc>, window_params = [{transform_indices = @transform_0, window_bounds = array<i64: 512, 128>}, {pipeline_mode = #tpu.pipeline_mode<synchronous>, transform_indices = @transform_1, window_bounds = array<i64: 1, 128>}, {pipeline_mode = #tpu.pipeline_mode<synchronous>, transform_indices = @transform_2, window_bounds = array<i64: 1, 128>}, {transform_indices = @transform_3, window_bounds = array<i64: 512, 128>}]} {
    %c0 = arith.constant 0 : index
    %c0_0 = arith.constant 0 : index
    %0 = vector.load %arg1[%c0, %c0_0] : memref<512x128xbf16, #tpu.memory_space<vmem>>, vector<512x128xbf16>
    %1 = arith.extf %0 : vector<512x128xbf16> to vector<512x128xf32>
    %c0_1 = arith.constant 0 : index
    %c0_2 = arith.constant 0 : index
    %2 = vector.load %arg2[%c0_1, %c0_2] : memref<1x128xf32, #tpu.memory_space<vmem>>, vector<1x128xf32>
    %3 = vector.broadcast %2 : vector<1x128xf32> to vector<512x128xf32>
    %4 = arith.mulf %1, %3 : vector<512x128xf32>
    %c0_3 = arith.constant 0 : index
    %c0_4 = arith.constant 0 : index
    %5 = vector.load %arg3[%c0_3, %c0_4] : memref<1x128xf32, #tpu.memory_space<vmem>>, vector<1x128xf32>
    %6 = vector.broadcast %5 : vector<1x128xf32> to vector<512x128xf32>
    %7 = arith.addf %4, %6 : vector<512x128xf32>
    %cst = arith.constant 0.000000e+00 : f32
    %8 = vector.broadcast %cst : f32 to vector<512x128xf32>
    %9 = arith.maximumf %7, %8 : vector<512x128xf32>
    %10 = arith.truncf %9 : vector<512x128xf32> to vector<512x128xbf16>
    %c0_5 = arith.constant 0 : index
    %c0_6 = arith.constant 0 : index
    %11 = vector.load %arg4[%c0_5, %c0_6] : memref<512x128xbf16, #tpu.memory_space<vmem>>, vector<512x128xbf16>
    tpu.vector_store %arg4[%c0_5, %c0_6], %10 {strides = array<i32>} : memref<512x128xbf16, #tpu.memory_space<vmem>>, vector<512x128xbf16>,
    return
  }
  func.func @transform_0(%arg0: i32) -> (i32, i32) {
    %c0_i32 = arith.constant 0 : i32
    %c0_i32_0 = arith.constant 0 : i32
    return %arg0, %c0_i32 : i32, i32
  }
  func.func @transform_1(%arg0: i32) -> (i32, i32) {
    %c0_i32 = arith.constant 0 : i32
    %c0_i32_0 = arith.constant 0 : i32
    %c0_i32_1 = arith.constant 0 : i32
    return %c0_i32, %c0_i32_0 : i32, i32
  }
  func.func @transform_2(%arg0: i32) -> (i32, i32) {
    %c0_i32 = arith.constant 0 : i32
    %c0_i32_0 = arith.constant 0 : i32
    %c0_i32_1 = arith.constant 0 : i32
    return %c0_i32, %c0_i32_0 : i32, i32
  }
  func.func @transform_3(%arg0: i32) -> (i32, i32) {
    %c0_i32 = arith.constant 0 : i32
    %c0_i32_0 = arith.constant 0 : i32
    return %arg0, %c0_i32 : i32, i32
  }
}

module attributes {stable_mosaic.version = 11 : i64} {
  func.func @_gemm_kernel(%arg0: i32, %arg1: memref<2048x72xbf16, #tpu.memory_space<vmem>>, %arg2: memref<72x128xbf16, #tpu.memory_space<vmem>>, %arg3: memref<2048x128xf32, #tpu.memory_space<vmem>>) attributes {dimension_semantics = [#tpu.dimension_semantics<parallel>], iteration_bounds = array<i64: 1>, scalar_prefetch = 0 : i64, scratch_operands = 0 : i64, tpu.core_type = #tpu.core_type<tc>, window_params = [{transform_indices = @transform_0, window_bounds = array<i64: 2048, 72>}, {pipeline_mode = #tpu.pipeline_mode<synchronous>, transform_indices = @transform_1, window_bounds = array<i64: 72, 128>}, {transform_indices = @transform_2, window_bounds = array<i64: 2048, 128>}]} {
    %c0 = arith.constant 0 : index
    %c0_0 = arith.constant 0 : index
    %0 = vector.load %arg1[%c0, %c0_0] : memref<2048x72xbf16, #tpu.memory_space<vmem>>, vector<2048x72xbf16>
    %c0_1 = arith.constant 0 : index
    %c0_2 = arith.constant 0 : index
    %1 = vector.load %arg2[%c0_1, %c0_2] : memref<72x128xbf16, #tpu.memory_space<vmem>>, vector<72x128xbf16>
    %cst = arith.constant dense<0.000000e+00> : vector<2048x128xf32>
    %2 = tpu.matmul %0, %1, %cst {dimension_numbers = #tpu.dot_dimension_numbers<[1], [0], [0], [1], [0, 0, 1, 1], [], []>} : vector<2048x72xbf16>, vector<72x128xbf16>, vector<2048x128xf32> -> vector<2048x128xf32>
    %3 = math.tanh %2 : vector<2048x128xf32>
    %c0_3 = arith.constant 0 : index
    %c0_4 = arith.constant 0 : index
    %4 = vector.load %arg3[%c0_3, %c0_4] : memref<2048x128xf32, #tpu.memory_space<vmem>>, vector<2048x128xf32>
    tpu.vector_store %arg3[%c0_3, %c0_4], %3 {strides = array<i32>} : memref<2048x128xf32, #tpu.memory_space<vmem>>, vector<2048x128xf32>,
    return
  }
  func.func @transform_0(%arg0: i32) -> (i32, i32) {
    %c0_i32 = arith.constant 0 : i32
    %c0_i32_0 = arith.constant 0 : i32
    return %arg0, %c0_i32 : i32, i32
  }
  func.func @transform_1(%arg0: i32) -> (i32, i32) {
    %c0_i32 = arith.constant 0 : i32
    %c0_i32_0 = arith.constant 0 : i32
    %c0_i32_1 = arith.constant 0 : i32
    return %c0_i32, %c0_i32_0 : i32, i32
  }
  func.func @transform_2(%arg0: i32) -> (i32, i32) {
    %c0_i32 = arith.constant 0 : i32
    %c0_i32_0 = arith.constant 0 : i32
    return %arg0, %c0_i32 : i32, i32
  }
}

</mosaic_0001>

<llo_original>
// kernel: generator_forward.10
$region0: #{generator_forward.10}
  #allocation0 [shape = 'u32[]', space=smem, size = 0x4, offset = 0x4, fixed_abs, tag = 'smem constant byte address 0x4 - core index']
  #allocation1 [shape = 'u32[144,128]{1,0:T(1,128)}', space=vmem, size = 0x12000, scoped, tag = 'internal scratch']
  %s0 = inlined_call_operand.vmem [shape: bf16[32,128], index: 0, kind: input, shape index: {}]
  %s1 = inlined_call_operand.vmem [shape: f32[1,128], index: 1, kind: input, shape index: {}]
  %s2 = inlined_call_operand.vmem [shape: f32[1,128], index: 2, kind: input, shape index: {}]
  %s3 = inlined_call_operand.vmem [shape: bf16[32,128], index: 3, kind: output, shape index: {}]
  %s4 = sld [smem:[#allocation0]]
  $region22: #{generator_forward.10} parent=0
    _
  %s6 = ssub.s32 1, %s4
  %s7 = scalar_select 0, %s6, %s4
  // Predicated region
  $region2: #{generator_forward.10} parent=0 // pred_check
    _
  $region3: #{generator_forward.10} parent=0 // pred_check_branch
    %9 = sbr.rel (0) target = $region5
  $region4: #{generator_forward.10} parent=0 // pred_region
    _
  $region5: #{generator_forward.10} parent=0 // pred_fallthru
    _
  // Predicated region
  $region6: #{generator_forward.10} parent=0 // pred_check
    _
  $region7: #{generator_forward.10} parent=0 // pred_check_branch
    %11 = sbr.rel (0) target = $region9
  $region8: #{generator_forward.10} parent=0 // pred_region
    _
  $region9: #{generator_forward.10} parent=0 // pred_fallthru
    _
  // Predicated region
  $region10: #{generator_forward.10} parent=0 // pred_check
    _
  $region11: #{generator_forward.10} parent=0 // pred_check_branch
    %13 = sbr.rel (0) target = $region13
  $region12: #{generator_forward.10} parent=0 // pred_region
    _
  $region13: #{generator_forward.10} parent=0 // pred_fallthru
    _
  %v14 = vld [vmem:[%s0] sm:$0xf]
  %v15 = vld [vmem:[%s0 + $0x4] sm:$0xf]
  %v16 = vld [vmem:[%s0 + $0x8] sm:$0xf]
  %v17 = vld [vmem:[%s0 + $0xc] sm:$0xf]
  %v18 = vunpack.c.l.bf16 %v14
  %v19 = vunpack.c.l.bf16 %v15
  %v20 = vunpack.c.l.bf16 %v16
  %v21 = vunpack.c.l.bf16 %v17
  %v22 = vld [vmem:[%s1] sm:$0x1]
  %v24 = vlaneseq
  %v25 = vshrl.u32 %v24, 7
  %v26 = vsub.s32 0, %v25
  %v27 = vrot.slane %v22, %v26
  %v29 = vmul.f32 %v18, %v27
  %v30 = vmul.f32 %v19, %v27
  %v31 = vmul.f32 %v20, %v27
  %v32 = vmul.f32 %v21, %v27
  %v33 = vld [vmem:[%s2] sm:$0x1]
  %v35 = vlaneseq
  %v36 = vshrl.u32 %v35, 7
  %v37 = vsub.s32 0, %v36
  %v38 = vrot.slane %v33, %v37
  %v40 = vadd.f32 %v29, %v38
  %v41 = vadd.f32 %v30, %v38
  %v42 = vadd.f32 %v31, %v38
  %v43 = vadd.f32 %v32, %v38
  %v44 = vmax.f32 %v40, 0.0
  %v45 = vmax.f32 %v41, 0.0
  %v46 = vmax.f32 %v42, 0.0
  %v47 = vmax.f32 %v43, 0.0
  %v48 = vpack.c.bf16 %v45, %v44
  %v49 = vpack.c.bf16 %v47, %v46
  %v52 = vunpack.c.l.b16 %v48
  %v53 = vunpack.c.h.b16 %v48
  %v54 = vunpack.c.l.b16 %v49
  %v55 = vunpack.c.h.b16 %v49
  %v56 = vpack.c.b16 %v52, %v52
  %v57 = vpack.c.b16 %v53, %v53
  %v58 = vpack.c.b16 %v54, %v54
  %v59 = vpack.c.b16 %v55, %v55
  %64 = vst [vmem:[%s3] sm:$0xf] %v56
  %65 = vst [vmem:[%s3 + $0x4] sm:$0xf] %v57
  %66 = vst [vmem:[%s3 + $0x8] sm:$0xf] %v58
  %67 = vst [vmem:[%s3 + $0xc] sm:$0xf] %v59
  // Predicated region
  $region14: #{generator_forward.10} parent=0 // pred_check
    _
  $region15: #{generator_forward.10} parent=0 // pred_check_branch
    %69 = sbr.rel (0) target = $region17
  $region16: #{generator_forward.10} parent=0 // pred_region
    _
  $region17: #{generator_forward.10} parent=0 // pred_fallthru
    _
  // Predicated region
  $region18: #{generator_forward.10} parent=0 // pred_check
    _
  $region19: #{generator_forward.10} parent=0 // pred_check_branch
    %71 = sbr.rel (0) target = $region21
  $region20: #{generator_forward.10} parent=0 // pred_region
    _
  $region21: #{generator_forward.10} parent=0 // pred_fallthru
    _

// kernel: generator_forward.9
$region0: #{generator_forward.9}
  #allocation0 [shape = 'u32[]', space=smem, size = 0x4, offset = 0x4, fixed_abs, tag = 'smem constant byte address 0x4 - core index']
  #allocation1 [shape = 'u32[144,128]{1,0:T(1,128)}', space=vmem, size = 0x12000, scoped, tag = 'internal scratch']
  %s0 = inlined_call_operand.vmem [shape: bf16[32,256], index: 0, kind: input, shape index: {}]
  %s1 = inlined_call_operand.vmem [shape: bf16[256,128], index: 1, kind: input, shape index: {}]
  %s2 = inlined_call_operand.vmem [shape: bf16[32,128], index: 2, kind: output, shape index: {0}]
  %s3 = inlined_call_operand.vmem [shape: f32[1,128], index: 3, kind: output, shape index: {1}]
  %s4 = inlined_call_operand.vmem [shape: f32[1,128], index: 4, kind: output, shape index: {2}]
  %5 = xla_tuple %s2, %s3, %s4
  %s6 = sld [smem:[#allocation0]]
  $region38: #{generator_forward.9} parent=0
    _
  %s8 = ssub.s32 1, %s6
  %s9 = scalar_select 0, %s8, %s6
  // Predicated region
  $region2: #{generator_forward.9} parent=0 // pred_check
    _
  $region3: #{generator_forward.9} parent=0 // pred_check_branch
    %11 = sbr.rel (0) target = $region5
  $region4: #{generator_forward.9} parent=0 // pred_region
    _
  $region5: #{generator_forward.9} parent=0 // pred_fallthru
    _
  // Predicated region
  $region6: #{generator_forward.9} parent=0 // pred_check
    _
  $region7: #{generator_forward.9} parent=0 // pred_check_branch
    %13 = sbr.rel (0) target = $region9
  $region8: #{generator_forward.9} parent=0 // pred_region
    _
  $region9: #{generator_forward.9} parent=0 // pred_fallthru
    _
  %v15 = vld [vmem:[%s0] sm:$0xff]
  %v16 = vld [vmem:[%s0 + $0x8] sm:$0xff]
  %v17 = vld [vmem:[%s0 + $0x10] sm:$0xff]
  %v18 = vld [vmem:[%s0 + $0x18] sm:$0xff]
  %v19 = vld [vmem:[%s1] sm:$0xf]
  %v20 = vld [vmem:[%s1 + $0x4] sm:$0xf]
  %v21 = vld [vmem:[%s1 + $0x8] sm:$0xf]
  %v22 = vld [vmem:[%s1 + $0xc] sm:$0xf]
  %v23 = vld [vmem:[%s1 + $0x10] sm:$0xf]
  %v24 = vld [vmem:[%s1 + $0x14] sm:$0xf]
  %v25 = vld [vmem:[%s1 + $0x18] sm:$0xf]
  %v26 = vld [vmem:[%s1 + $0x1c] sm:$0xf]
  %v27 = vld [vmem:[%s1 + $0x20] sm:$0xf]
  %v28 = vld [vmem:[%s1 + $0x24] sm:$0xf]
  %v29 = vld [vmem:[%s1 + $0x28] sm:$0xf]
  %v30 = vld [vmem:[%s1 + $0x2c] sm:$0xf]
  %v31 = vld [vmem:[%s1 + $0x30] sm:$0xf]
  %v32 = vld [vmem:[%s1 + $0x34] sm:$0xf]
  %v33 = vld [vmem:[%s1 + $0x38] sm:$0xf]
  %v34 = vld [vmem:[%s1 + $0x3c] sm:$0xf]
  %v35 = vld [vmem:[%s1 + $0x40] sm:$0xf]
  %v36 = vld [vmem:[%s1 + $0x44] sm:$0xf]
  %v37 = vld [vmem:[%s1 + $0x48] sm:$0xf]
  %v38 = vld [vmem:[%s1 + $0x4c] sm:$0xf]
  %v39 = vld [vmem:[%s1 + $0x50] sm:$0xf]
  %v40 = vld [vmem:[%s1 + $0x54] sm:$0xf]
  %v41 = vld [vmem:[%s1 + $0x58] sm:$0xf]
  %v42 = vld [vmem:[%s1 + $0x5c] sm:$0xf]
  %v43 = vld [vmem:[%s1 + $0x60] sm:$0xf]
  %v44 = vld [vmem:[%s1 + $0x64] sm:$0xf]
  %v45 = vld [vmem:[%s1 + $0x68] sm:$0xf]
  %v46 = vld [vmem:[%s1 + $0x6c] sm:$0xf]
  %v47 = vld [vmem:[%s1 + $0x70] sm:$0xf]
  %v48 = vld [vmem:[%s1 + $0x74] sm:$0xf]
  %v49 = vld [vmem:[%s1 + $0x78] sm:$0xf]
  %v50 = vld [vmem:[%s1 + $0x7c] sm:$0xf]
  %v55 = vunpack.c.l.b16 %v15
  %v56 = vunpack.c.h.b16 %v15
  %v57 = vunpack.c.l.b16 %v16
  %v58 = vunpack.c.h.b16 %v16
  %v59 = vunpack.c.l.b16 %v17
  %v60 = vunpack.c.h.b16 %v17
  %v61 = vunpack.c.l.b16 %v18
  %v62 = vunpack.c.h.b16 %v18
  %v63 = vpack.c.b16 %v57, %v55
  %v64 = vpack.c.b16 %v58, %v56
  %v65 = vpack.c.b16 %v61, %v59
  %v66 = vpack.c.b16 %v62, %v60
  %v103 = vunpack.c.l.b16 %v19
  %v104 = vunpack.c.l.b16 %v20
  %v105 = vunpack.c.l.b16 %v21
  %v106 = vunpack.c.l.b16 %v22
  %v107 = vunpack.c.l.b16 %v23
  %v108 = vunpack.c.l.b16 %v24
  %v109 = vunpack.c.l.b16 %v25
  %v110 = vunpack.c.l.b16 %v26
  %v111 = vunpack.c.l.b16 %v27
  %v112 = vunpack.c.l.b16 %v28
  %v113 = vunpack.c.l.b16 %v29
  %v114 = vunpack.c.l.b16 %v30
  %v115 = vunpack.c.l.b16 %v31
  %v116 = vunpack.c.l.b16 %v32
  %v117 = vunpack.c.l.b16 %v33
  %v118 = vunpack.c.l.b16 %v34
  %v119 = vunpack.c.l.b16 %v35
  %v120 = vunpack.c.l.b16 %v36
  %v121 = vunpack.c.l.b16 %v37
  %v122 = vunpack.c.l.b16 %v38
  %v123 = vunpack.c.l.b16 %v39
  %v124 = vunpack.c.l.b16 %v40
  %v125 = vunpack.c.l.b16 %v41
  %v126 = vunpack.c.l.b16 %v42
  %v127 = vunpack.c.l.b16 %v43
  %v128 = vunpack.c.l.b16 %v44
  %v129 = vunpack.c.l.b16 %v45
  %v130 = vunpack.c.l.b16 %v46
  %v131 = vunpack.c.l.b16 %v47
  %v132 = vunpack.c.l.b16 %v48
  %v133 = vunpack.c.l.b16 %v49
  %v134 = vunpack.c.l.b16 %v50
  %v135 = vpack.c.b16 %v104, %v103
  %v136 = vpack.c.b16 %v106, %v105
  %v137 = vpack.c.b16 %v108, %v107
  %v138 = vpack.c.b16 %v110, %v109
  %v139 = vpack.c.b16 %v112, %v111
  %v140 = vpack.c.b16 %v114, %v113
  %v141 = vpack.c.b16 %v116, %v115
  %v142 = vpack.c.b16 %v118, %v117
  %v143 = vpack.c.b16 %v120, %v119
  %v144 = vpack.c.b16 %v122, %v121
  %v145 = vpack.c.b16 %v124, %v123
  %v146 = vpack.c.b16 %v126, %v125
  %v147 = vpack.c.b16 %v128, %v127
  %v148 = vpack.c.b16 %v130, %v129
  %v149 = vpack.c.b16 %v132, %v131
  %v150 = vpack.c.b16 %v134, %v133
  %167 = vmatprep.subr.bf16.mxu0 0
  %168 = vmatpush1.bf16.msra.mxu0 %v135
  %169 = vmatprep.subr.bf16.mxu0 0
  %170 = vmatpush1.bf16.msra.mxu0 %v136
  %171 = vmatprep.subr.bf16.mxu0 0
  %172 = vmatpush1.bf16.msra.mxu0 %v137
  %173 = vmatprep.subr.bf16.mxu0 0
  %174 = vmatpush1.bf16.msra.mxu0 %v138
  %175 = vmatprep.subr.bf16.mxu0 0
  %176 = vmatpush1.bf16.msra.mxu0 %v139
  %177 = vmatprep.subr.bf16.mxu0 0
  %178 = vmatpush1.bf16.msra.mxu0 %v140
  %179 = vmatprep.subr.bf16.mxu0 0
  %180 = vmatpush1.bf16.msra.mxu0 %v141
  %181 = vmatprep.subr.bf16.mxu0 0
  %182 = vmatpush1.bf16.msra.mxu0 %v142
  %183 = vmatprep.subr.bf16.mxu0 0
  %184 = vmatpush1.bf16.msra.mxu0 %v143
  %185 = vmatprep.subr.bf16.mxu0 0
  %186 = vmatpush1.bf16.msra.mxu0 %v144
  %187 = vmatprep.subr.bf16.mxu0 0
  %188 = vmatpush1.bf16.msra.mxu0 %v145
  %189 = vmatprep.subr.bf16.mxu0 0
  %190 = vmatpush1.bf16.msra.mxu0 %v146
  %191 = vmatprep.subr.bf16.mxu0 0
  %192 = vmatpush1.bf16.msra.mxu0 %v147
  %193 = vmatprep.subr.bf16.mxu0 0
  %194 = vmatpush1.bf16.msra.mxu0 %v148
  %195 = vmatprep.subr.bf16.mxu0 0
  %196 = vmatpush1.bf16.msra.mxu0 %v149
  %197 = vmatprep.subr.bf16.mxu0 0
  %198 = vmatpush1.bf16.msra.mxu0 %v150
  %199 = vmatprep.mubr.bf16.mxu0 %v64
  %200 = vmatmul.mubr.bf16.gmra.mrb[0].mxu0 %v63
  %v201 = vpop.f32.mrb[0].mxu0
  %v202 = vadd.f32 0.0, %v201
  %v203 = vpop.f32.mrb[0].mxu0
  %v204 = vpop.f32.mrb[0].mxu0
  %v205 = vadd.f32 0.0, %v204
  %v206 = vpop.f32.mrb[0].mxu0
  %207 = vmatprep.mubr.bf16.mxu0 %v66
  %208 = vmatmul.mubr.bf16.gmra.mrb[0].mxu0 %v65
  %v209 = vpop.f32.mrb[0].mxu0
  %v210 = vadd.f32 0.0, %v209
  %v211 = vpop.f32.mrb[0].mxu0
  %v212 = vpop.f32.mrb[0].mxu0
  %v213 = vadd.f32 0.0, %v212
  %v214 = vpop.f32.mrb[0].mxu0
  %215 = vdwg.mxu0
  %p216 = scmp.eq.s32.totalorder 0, 0
  // Predicated region
  $region10: #{generator_forward.9} parent=0 // pred_check
    %p217 = pneg %p216
  $region11: #{generator_forward.9} parent=0 // pred_check_branch
    %219 = sbr.rel (%p217) target = $region13
  $region12: #{generator_forward.9} parent=0 // pred_region
    %220 = vst [vmem:[%s3] sm:$0x1] 0.0
    %221 = vst [vmem:[%s4] sm:$0x1] 0.0
  $region13: #{generator_forward.9} parent=0 // pred_fallthru
    _
  %v222 = vld [vmem:[%s3] sm:$0x1]
  %v223 = vadd.f32 %v202, %v205
  %v224 = vadd.f32 %v223, %v210
  %v225 = vadd.f32 %v224, %v213
  %v226 = vrot.slane %v225, 4
  %v227 = vadd.f32 %v225, %v226
  %v228 = vrot.slane %v227, 2
  %v229 = vadd.f32 %v227, %v228
  %v230 = vrot.slane %v229, 1
  %v231 = vadd.f32 %v229, %v230
  %v232 = vadd.f32 %v222, %v231
  %233 = vst [vmem:[%s3] sm:$0x1] %v232
  %v234 = vld [vmem:[%s4] sm:$0x1]
  %v235 = vmul.f32 %v202, %v202
  %v236 = vmul.f32 %v205, %v205
  %v237 = vmul.f32 %v210, %v210
  %v238 = vmul.f32 %v213, %v213
  %v239 = vadd.f32 %v235, %v236
  %v240 = vadd.f32 %v239, %v237
  %v241 = vadd.f32 %v240, %v238
  %v242 = vrot.slane %v241, 4
  %v243 = vadd.f32 %v241, %v242
  %v244 = vrot.slane %v243, 2
  %v245 = vadd.f32 %v243, %v244
  %v246 = vrot.slane %v245, 1
  %v247 = vadd.f32 %v245, %v246
  %v248 = vadd.f32 %v234, %v247
  %249 = vst [vmem:[%s4] sm:$0x1] %v248
  %v250 = vpack.c.bf16 %v205, %v202
  %v251 = vpack.c.bf16 %v213, %v210
  %v254 = vunpack.c.l.b16 %v250
  %v255 = vunpack.c.h.b16 %v250
  %v256 = vunpack.c.l.b16 %v251
  %v257 = vunpack.c.h.b16 %v251
  %v258 = vpack.c.b16 %v254, %v254
  %v259 = vpack.c.b16 %v255, %v255
  %v260 = vpack.c.b16 %v256, %v256
  %v261 = vpack.c.b16 %v257, %v257
  %266 = vst [vmem:[%s2] sm:$0xf] %v258
  %267 = vst [vmem:[%s2 + $0x4] sm:$0xf] %v259
  %268 = vst [vmem:[%s2 + $0x8] sm:$0xf] %v260
  %269 = vst [vmem:[%s2 + $0xc] sm:$0xf] %v261
  // Predicated region
  $region14: #{generator_forward.9} parent=0 // pred_check
    _
  $region15: #{generator_forward.9} parent=0 // pred_check_branch
    %271 = sbr.rel (0) target = $region17
  $region16: #{generator_forward.9} parent=0 // pred_region
    _
  $region17: #{generator_forward.9} parent=0 // pred_fallthru
    _
  // Predicated region
  $region18: #{generator_forward.9} parent=0 // pred_check
    _
  $region19: #{generator_forward.9} parent=0 // pred_check_branch
    %273 = sbr.rel (0) target = $region21
  $region20: #{generator_forward.9} parent=0 // pred_region
    _
  $region21: #{generator_forward.9} parent=0 // pred_fallthru
    _
  // Predicated region
  $region22: #{generator_forward.9} parent=0 // pred_check
    _
  $region23: #{generator_forward.9} parent=0 // pred_check_branch
    %275 = sbr.rel (0) target = $region25
  $region24: #{generator_forward.9} parent=0 // pred_region
    _
  $region25: #{generator_forward.9} parent=0 // pred_fallthru
    _
  // Predicated region
  $region26: #{generator_forward.9} parent=0 // pred_check
    _
  $region27: #{generator_forward.9} parent=0 // pred_check_branch
    %277 = sbr.rel (0) target = $region29
  $region28: #{generator_forward.9} parent=0 // pred_region
    _
  $region29: #{generator_forward.9} parent=0 // pred_fallthru
    _
  // Predicated region
  $region30: #{generator_forward.9} parent=0 // pred_check
    _
  $region31: #{generator_forward.9} parent=0 // pred_check_branch
    %279 = sbr.rel (0) target = $region33
  $region32: #{generator_forward.9} parent=0 // pred_region
    _
  $region33: #{generator_forward.9} parent=0 // pred_fallthru
    _
  // Predicated region
  $region34: #{generator_forward.9} parent=0 // pred_check
    _
  $region35: #{generator_forward.9} parent=0 // pred_check_branch
    %281 = sbr.rel (0) target = $region37
  $region36: #{generator_forward.9} parent=0 // pred_region
    _
  $region37: #{generator_forward.9} parent=0 // pred_fallthru
    _

// kernel: squeeze.86
$region0: #{squeeze.86}
  %s0 = inlined_call_operand.vmem [shape: f32[128], index: 0, kind: input, shape index: {}]
  %s1 = inlined_call_operand.vmem [shape: f32[4,32], index: 1, kind: output, shape index: {}]
  $region1: #{squeeze.86} parent=0
    #allocation0 [shape = 'u8[4096]{0}', space=vmem, size = 0x1000, scoped, tag = 'scoped mem for output reshape']
    #allocation1 [shape = 'u8[4096]{0}', space=vmem, size = 0x1000, scoped, tag = 'scoped mem for input reshape']
    %s3 = sshllo.u32 0, 1
    %v4 = vld [vmem:[%s0] sm:%s3]
    %5 = vst [vmem:[#allocation1] sm:%s3] %v4
    %v6 = vld [vmem:[#allocation1] sm:$0x1]
    %vm7 = vcmask 261120
    %8 = vst.msk [vmem:[#allocation0] sm:$0x1] %vm7, %v6
    %v9 = vld [vmem:[#allocation1] sm:$0x1]
    %10 = vrot.lane.b32.xlu0 %v9, 96
    %v11 = vpop.permute.xlu0 %10
    %vm12 = vcmask 261120
    %s13 = scalar_lea.vmem [#allocation0], 1
    %14 = vst.msk [vmem:[%s13] sm:$0x1] %vm12, %v11
    %v15 = vld [vmem:[#allocation1] sm:$0x1]
    %16 = vrot.lane.b32.xlu0 %v15, 64
    %v17 = vpop.permute.xlu0 %16
    %vm18 = vcmask 261120
    %s19 = scalar_lea.vmem [#allocation0], 2
    %20 = vst.msk [vmem:[%s19] sm:$0x1] %vm18, %v17
    %v21 = vld [vmem:[#allocation1] sm:$0x1]
    %22 = vrot.lane.b32.xlu0 %v21, 32
    %v23 = vpop.permute.xlu0 %22
    %vm24 = vcmask 261120
    %s25 = scalar_lea.vmem [#allocation0], 3
    %26 = vst.msk [vmem:[%s25] sm:$0x1] %vm24, %v23
    %s28 = sshllo.u32 0, 4
    %v30 = vld [vmem:[#allocation0] sm:%s28]
    %s31 = sshllo.u32 0, 4
    %32 = vst [vmem:[%s1] sm:%s31] %v30

// kernel: tile.33
$region0: #{tile.33}
  #allocation0 [shape = 's32[1]{0}', space=sflag, size = 0x4, scoped, tag = 'scoped memory for tile.33']
  %s0 = inlined_call_operand.vmem [shape: f32[32], index: 0, kind: input, shape index: {}]
  %s1 = inlined_call_operand.vmem [shape: f32[4,32], index: 1, kind: output, shape index: {}]
  // Predicated region
  $region2: #{tile.33} parent=0 // pred_check
    _
  $region3: #{tile.33} parent=0 // pred_check_branch
    %3 = sbr.rel (0) target = $region5
  $region4: #{tile.33} parent=0 // pred_region
    _
  $region5: #{tile.33} parent=0 // pred_fallthru
    _
  %v4 = vld [vmem:[%s0] ss:$0 sm:$0xff]
  %5 = vst [vmem:[%s1] sm:$0xf] %v4

// kernel: generator_forward.11
$region0: #{generator_forward.11}
  #allocation0 [shape = 'u32[]', space=smem, size = 0x4, offset = 0x4, fixed_abs, tag = 'smem constant byte address 0x4 - core index']
  #allocation1 [shape = 'u32[144,128]{1,0:T(1,128)}', space=vmem, size = 0x12000, scoped, tag = 'internal scratch']
  %s0 = inlined_call_operand.vmem [shape: bf16[32,576], index: 0, kind: input, shape index: {}]
  %s1 = inlined_call_operand.vmem [shape: bf16[576,128], index: 1, kind: input, shape index: {}]
  %s2 = inlined_call_operand.vmem [shape: bf16[32,128], index: 2, kind: output, shape index: {0}]
  %s3 = inlined_call_operand.vmem [shape: f32[1,128], index: 3, kind: output, shape index: {1}]
  %s4 = inlined_call_operand.vmem [shape: f32[1,128], index: 4, kind: output, shape index: {2}]
  %5 = xla_tuple %s2, %s3, %s4
  %s6 = sld [smem:[#allocation0]]
  $region38: #{generator_forward.11} parent=0
    _
  %s8 = ssub.s32 1, %s6
  %s9 = scalar_select 0, %s8, %s6
  // Predicated region
  $region2: #{generator_forward.11} parent=0 // pred_check
    _
  $region3: #{generator_forward.11} parent=0 // pred_check_branch
    %11 = sbr.rel (0) target = $region5
  $region4: #{generator_forward.11} parent=0 // pred_region
    _
  $region5: #{generator_forward.11} parent=0 // pred_fallthru
    _
  // Predicated region
  $region6: #{generator_forward.11} parent=0 // pred_check
    _
  $region7: #{generator_forward.11} parent=0 // pred_check_branch
    %13 = sbr.rel (0) target = $region9
  $region8: #{generator_forward.11} parent=0 // pred_region
    _
  $region9: #{generator_forward.11} parent=0 // pred_fallthru
    _
  %v15 = vld [vmem:[%s0] sm:$0xff]
  %v16 = vld [vmem:[%s0 + $0x8] sm:$0xff]
  %v17 = vld [vmem:[%s0 + $0x10] sm:$0xf]
  %v18 = vld [vmem:[%s0 + $0x14] sm:$0xff]
  %v19 = vld [vmem:[%s0 + $0x1c] sm:$0xff]
  %v20 = vld [vmem:[%s0 + $0x24] sm:$0xf]
  %v21 = vld [vmem:[%s0 + $0x28] sm:$0xff]
  %v22 = vld [vmem:[%s0 + $0x30] sm:$0xff]
  %v23 = vld [vmem:[%s0 + $0x38] sm:$0xf]
  %v24 = vld [vmem:[%s0 + $0x3c] sm:$0xff]
  %v25 = vld [vmem:[%s0 + $0x44] sm:$0xff]
  %v26 = vld [vmem:[%s0 + $0x4c] sm:$0xf]
  %v27 = vld [vmem:[%s1] sm:$0xf]
  %v28 = vld [vmem:[%s1 + $0x4] sm:$0xf]
  %v29 = vld [vmem:[%s1 + $0x8] sm:$0xf]
  %v30 = vld [vmem:[%s1 + $0xc] sm:$0xf]
  %v31 = vld [vmem:[%s1 + $0x10] sm:$0xf]
  %v32 = vld [vmem:[%s1 + $0x14] sm:$0xf]
  %v33 = vld [vmem:[%s1 + $0x18] sm:$0xf]
  %v34 = vld [vmem:[%s1 + $0x1c] sm:$0xf]
  %v35 = vld [vmem:[%s1 + $0x20] sm:$0xf]
  %v36 = vld [vmem:[%s1 + $0x24] sm:$0xf]
  %v37 = vld [vmem:[%s1 + $0x28] sm:$0xf]
  %v38 = vld [vmem:[%s1 + $0x2c] sm:$0xf]
  %v39 = vld [vmem:[%s1 + $0x30] sm:$0xf]
  %v40 = vld [vmem:[%s1 + $0x34] sm:$0xf]
  %v41 = vld [vmem:[%s1 + $0x38] sm:$0xf]
  %v42 = vld [vmem:[%s1 + $0x3c] sm:$0xf]
  %v43 = vld [vmem:[%s1 + $0x40] sm:$0xf]
  %v44 = vld [vmem:[%s1 + $0x44] sm:$0xf]
  %v45 = vld [vmem:[%s1 + $0x48] sm:$0xf]
  %v46 = vld [vmem:[%s1 + $0x4c] sm:$0xf]
  %v47 = vld [vmem:[%s1 + $0x50] sm:$0xf]
  %v48 = vld [vmem:[%s1 + $0x54] sm:$0xf]
  %v49 = vld [vmem:[%s1 + $0x58] sm:$0xf]
  %v50 = vld [vmem:[%s1 + $0x5c] sm:$0xf]
  %v51 = vld [vmem:[%s1 + $0x60] sm:$0xf]
  %v52 = vld [vmem:[%s1 + $0x64] sm:$0xf]
  %v53 = vld [vmem:[%s1 + $0x68] sm:$0xf]
  %v54 = vld [vmem:[%s1 + $0x6c] sm:$0xf]
  %v55 = vld [vmem:[%s1 + $0x70] sm:$0xf]
  %v56 = vld [vmem:[%s1 + $0x74] sm:$0xf]
  %v57 = vld [vmem:[%s1 + $0x78] sm:$0xf]
  %v58 = vld [vmem:[%s1 + $0x7c] sm:$0xf]
  %v59 = vld [vmem:[%s1 + $0x80] sm:$0xf]
  %v60 = vld [vmem:[%s1 + $0x84] sm:$0xf]
  %v61 = vld [vmem:[%s1 + $0x88] sm:$0xf]
  %v62 = vld [vmem:[%s1 + $0x8c] sm:$0xf]
  %v63 = vld [vmem:[%s1 + $0x90] sm:$0xf]
  %v64 = vld [vmem:[%s1 + $0x94] sm:$0xf]
  %v65 = vld [vmem:[%s1 + $0x98] sm:$0xf]
  %v66 = vld [vmem:[%s1 + $0x9c] sm:$0xf]
  %v67 = vld [vmem:[%s1 + $0xa0] sm:$0xf]
  %v68 = vld [vmem:[%s1 + $0xa4] sm:$0xf]
  %v69 = vld [vmem:[%s1 + $0xa8] sm:$0xf]
  %v70 = vld [vmem:[%s1 + $0xac] sm:$0xf]
  %v71 = vld [vmem:[%s1 + $0xb0] sm:$0xf]
  %v72 = vld [vmem:[%s1 + $0xb4] sm:$0xf]
  %v73 = vld [vmem:[%s1 + $0xb8] sm:$0xf]
  %v74 = vld [vmem:[%s1 + $0xbc] sm:$0xf]
  %v75 = vld [vmem:[%s1 + $0xc0] sm:$0xf]
  %v76 = vld [vmem:[%s1 + $0xc4] sm:$0xf]
  %v77 = vld [vmem:[%s1 + $0xc8] sm:$0xf]
  %v78 = vld [vmem:[%s1 + $0xcc] sm:$0xf]
  %v79 = vld [vmem:[%s1 + $0xd0] sm:$0xf]
  %v80 = vld [vmem:[%s1 + $0xd4] sm:$0xf]
  %v81 = vld [vmem:[%s1 + $0xd8] sm:$0xf]
  %v82 = vld [vmem:[%s1 + $0xdc] sm:$0xf]
  %v83 = vld [vmem:[%s1 + $0xe0] sm:$0xf]
  %v84 = vld [vmem:[%s1 + $0xe4] sm:$0xf]
  %v85 = vld [vmem:[%s1 + $0xe8] sm:$0xf]
  %v86 = vld [vmem:[%s1 + $0xec] sm:$0xf]
  %v87 = vld [vmem:[%s1 + $0xf0] sm:$0xf]
  %v88 = vld [vmem:[%s1 + $0xf4] sm:$0xf]
  %v89 = vld [vmem:[%s1 + $0xf8] sm:$0xf]
  %v90 = vld [vmem:[%s1 + $0xfc] sm:$0xf]
  %v91 = vld [vmem:[%s1 + $0x100] sm:$0xf]
  %v92 = vld [vmem:[%s1 + $0x104] sm:$0xf]
  %v93 = vld [vmem:[%s1 + $0x108] sm:$0xf]
  %v94 = vld [vmem:[%s1 + $0x10c] sm:$0xf]
  %v95 = vld [vmem:[%s1 + $0x110] sm:$0xf]
  %v96 = vld [vmem:[%s1 + $0x114] sm:$0xf]
  %v97 = vld [vmem:[%s1 + $0x118] sm:$0xf]
  %v98 = vld [vmem:[%s1 + $0x11c] sm:$0xf]
  %v111 = vunpack.c.l.b16 %v15
  %v112 = vunpack.c.h.b16 %v15
  %v113 = vunpack.c.l.b16 %v16
  %v114 = vunpack.c.h.b16 %v16
  %v115 = vunpack.c.l.b16 %v17
  %v116 = vunpack.c.l.b16 %v18
  %v117 = vunpack.c.h.b16 %v18
  %v118 = vunpack.c.l.b16 %v19
  %v119 = vunpack.c.h.b16 %v19
  %v120 = vunpack.c.l.b16 %v20
  %v121 = vunpack.c.l.b16 %v21
  %v122 = vunpack.c.h.b16 %v21
  %v123 = vunpack.c.l.b16 %v22
  %v124 = vunpack.c.h.b16 %v22
  %v125 = vunpack.c.l.b16 %v23
  %v126 = vunpack.c.l.b16 %v24
  %v127 = vunpack.c.h.b16 %v24
  %v128 = vunpack.c.l.b16 %v25
  %v129 = vunpack.c.h.b16 %v25
  %v130 = vunpack.c.l.b16 %v26
  %v131 = vpack.c.b16 %v116, %v111
  %v132 = vpack.c.b16 %v117, %v112
  %v133 = vpack.c.b16 %v118, %v113
  %v134 = vpack.c.b16 %v119, %v114
  %v135 = vpack.c.b16 %v120, %v115
  %v136 = vpack.c.b16 %v126, %v121
  %v137 = vpack.c.b16 %v127, %v122
  %v138 = vpack.c.b16 %v128, %v123
  %v139 = vpack.c.b16 %v129, %v124
  %v140 = vpack.c.b16 %v130, %v125
  %v221 = vunpack.c.l.b16 %v27
  %v222 = vunpack.c.l.b16 %v28
  %v223 = vunpack.c.l.b16 %v29
  %v224 = vunpack.c.l.b16 %v30
  %v225 = vunpack.c.l.b16 %v31
  %v226 = vunpack.c.l.b16 %v32
  %v227 = vunpack.c.l.b16 %v33
  %v228 = vunpack.c.l.b16 %v34
  %v229 = vunpack.c.l.b16 %v35
  %v230 = vunpack.c.l.b16 %v36
  %v231 = vunpack.c.l.b16 %v37
  %v232 = vunpack.c.l.b16 %v38
  %v233 = vunpack.c.l.b16 %v39
  %v234 = vunpack.c.l.b16 %v40
  %v235 = vunpack.c.l.b16 %v41
  %v236 = vunpack.c.l.b16 %v42
  %v237 = vunpack.c.l.b16 %v43
  %v238 = vunpack.c.l.b16 %v44
  %v239 = vunpack.c.l.b16 %v45
  %v240 = vunpack.c.l.b16 %v46
  %v241 = vunpack.c.l.b16 %v47
  %v242 = vunpack.c.l.b16 %v48
  %v243 = vunpack.c.l.b16 %v49
  %v244 = vunpack.c.l.b16 %v50
  %v245 = vunpack.c.l.b16 %v51
  %v246 = vunpack.c.l.b16 %v52
  %v247 = vunpack.c.l.b16 %v53
  %v248 = vunpack.c.l.b16 %v54
  %v249 = vunpack.c.l.b16 %v55
  %v250 = vunpack.c.l.b16 %v56
  %v251 = vunpack.c.l.b16 %v57
  %v252 = vunpack.c.l.b16 %v58
  %v253 = vunpack.c.l.b16 %v59
  %v254 = vunpack.c.l.b16 %v60
  %v255 = vunpack.c.l.b16 %v61
  %v256 = vunpack.c.l.b16 %v62
  %v257 = vunpack.c.l.b16 %v63
  %v258 = vunpack.c.l.b16 %v64
  %v259 = vunpack.c.l.b16 %v65
  %v260 = vunpack.c.l.b16 %v66
  %v261 = vunpack.c.l.b16 %v67
  %v262 = vunpack.c.l.b16 %v68
  %v263 = vunpack.c.l.b16 %v69
  %v264 = vunpack.c.l.b16 %v70
  %v265 = vunpack.c.l.b16 %v71
  %v266 = vunpack.c.l.b16 %v72
  %v267 = vunpack.c.l.b16 %v73
  %v268 = vunpack.c.l.b16 %v74
  %v269 = vunpack.c.l.b16 %v75
  %v270 = vunpack.c.l.b16 %v76
  %v271 = vunpack.c.l.b16 %v77
  %v272 = vunpack.c.l.b16 %v78
  %v273 = vunpack.c.l.b16 %v79
  %v274 = vunpack.c.l.b16 %v80
  %v275 = vunpack.c.l.b16 %v81
  %v276 = vunpack.c.l.b16 %v82
  %v277 = vunpack.c.l.b16 %v83
  %v278 = vunpack.c.l.b16 %v84
  %v279 = vunpack.c.l.b16 %v85
  %v280 = vunpack.c.l.b16 %v86
  %v281 = vunpack.c.l.b16 %v87
  %v282 = vunpack.c.l.b16 %v88
  %v283 = vunpack.c.l.b16 %v89
  %v284 = vunpack.c.l.b16 %v90
  %v285 = vunpack.c.l.b16 %v91
  %v286 = vunpack.c.l.b16 %v92
  %v287 = vunpack.c.l.b16 %v93
  %v288 = vunpack.c.l.b16 %v94
  %v289 = vunpack.c.l.b16 %v95
  %v290 = vunpack.c.l.b16 %v96
  %v291 = vunpack.c.l.b16 %v97
  %v292 = vunpack.c.l.b16 %v98
  %v293 = vpack.c.b16 %v222, %v221
  %v294 = vpack.c.b16 %v224, %v223
  %v295 = vpack.c.b16 %v226, %v225
  %v296 = vpack.c.b16 %v228, %v227
  %v297 = vpack.c.b16 %v230, %v229
  %v298 = vpack.c.b16 %v232, %v231
  %v299 = vpack.c.b16 %v234, %v233
  %v300 = vpack.c.b16 %v236, %v235
  %v301 = vpack.c.b16 %v238, %v237
  %v302 = vpack.c.b16 %v240, %v239
  %v303 = vpack.c.b16 %v242, %v241
  %v304 = vpack.c.b16 %v244, %v243
  %v305 = vpack.c.b16 %v246, %v245
  %v306 = vpack.c.b16 %v248, %v247
  %v307 = vpack.c.b16 %v250, %v249
  %v308 = vpack.c.b16 %v252, %v251
  %v309 = vpack.c.b16 %v254, %v253
  %v310 = vpack.c.b16 %v256, %v255
  %v311 = vpack.c.b16 %v258, %v257
  %v312 = vpack.c.b16 %v260, %v259
  %v313 = vpack.c.b16 %v262, %v261
  %v314 = vpack.c.b16 %v264, %v263
  %v315 = vpack.c.b16 %v266, %v265
  %v316 = vpack.c.b16 %v268, %v267
  %v317 = vpack.c.b16 %v270, %v269
  %v318 = vpack.c.b16 %v272, %v271
  %v319 = vpack.c.b16 %v274, %v273
  %v320 = vpack.c.b16 %v276, %v275
  %v321 = vpack.c.b16 %v278, %v277
  %v322 = vpack.c.b16 %v280, %v279
  %v323 = vpack.c.b16 %v282, %v281
  %v324 = vpack.c.b16 %v284, %v283
  %v325 = vpack.c.b16 %v286, %v285
  %v326 = vpack.c.b16 %v288, %v287
  %v327 = vpack.c.b16 %v290, %v289
  %v328 = vpack.c.b16 %v292, %v291
  %vm365 = vcmask 523264
  %v367 = vsel %vm365, %v135, 0
  %v370 = vsel %vm365, %v140, 0
  %372 = vmatprep.subr.bf16.mxu0 0
  %373 = vmatpush1.bf16.msra.mxu0 %v293
  %374 = vmatprep.subr.bf16.mxu0 0
  %375 = vmatpush1.bf16.msra.mxu0 %v294
  %376 = vmatprep.subr.bf16.mxu0 0
  %377 = vmatpush1.bf16.msra.mxu0 %v295
  %378 = vmatprep.subr.bf16.mxu0 0
  %379 = vmatpush1.bf16.msra.mxu0 %v296
  %380 = vmatprep.subr.bf16.mxu0 0
  %381 = vmatpush1.bf16.msra.mxu0 %v297
  %382 = vmatprep.subr.bf16.mxu0 0
  %383 = vmatpush1.bf16.msra.mxu0 %v298
  %384 = vmatprep.subr.bf16.mxu0 0
  %385 = vmatpush1.bf16.msra.mxu0 %v299
  %386 = vmatprep.subr.bf16.mxu0 0
  %387 = vmatpush1.bf16.msra.mxu0 %v300
  %388 = vmatprep.subr.bf16.mxu0 0
  %389 = vmatpush1.bf16.msra.mxu0 %v301
  %390 = vmatprep.subr.bf16.mxu0 0
  %391 = vmatpush1.bf16.msra.mxu0 %v302
  %392 = vmatprep.subr.bf16.mxu0 0
  %393 = vmatpush1.bf16.msra.mxu0 %v303
  %394 = vmatprep.subr.bf16.mxu0 0
  %395 = vmatpush1.bf16.msra.mxu0 %v304
  %396 = vmatprep.subr.bf16.mxu0 0
  %397 = vmatpush1.bf16.msra.mxu0 %v305
  %398 = vmatprep.subr.bf16.mxu0 0
  %399 = vmatpush1.bf16.msra.mxu0 %v306
  %400 = vmatprep.subr.bf16.mxu0 0
  %401 = vmatpush1.bf16.msra.mxu0 %v307
  %402 = vmatprep.subr.bf16.mxu0 0
  %403 = vmatpush1.bf16.msra.mxu0 %v308
  %404 = vmatprep.mubr.bf16.mxu0 %v132
  %405 = vmatmul.mubr.bf16.gmra.mrb[0].mxu0 %v131
  %v406 = vpop.f32.mrb[0].mxu0
  %v407 = vadd.f32 0.0, %v406
  %v408 = vpop.f32.mrb[0].mxu0
  %v409 = vpop.f32.mrb[0].mxu0
  %v410 = vadd.f32 0.0, %v409
  %v411 = vpop.f32.mrb[0].mxu0
  %412 = vmatprep.mubr.bf16.mxu0 %v137
  %413 = vmatmul.mubr.bf16.gmra.mrb[0].mxu0 %v136
  %v414 = vpop.f32.mrb[0].mxu0
  %v415 = vadd.f32 0.0, %v414
  %v416 = vpop.f32.mrb[0].mxu0
  %v417 = vpop.f32.mrb[0].mxu0
  %v418 = vadd.f32 0.0, %v417
  %v419 = vpop.f32.mrb[0].mxu0
  %420 = vdwg.mxu0
  %421 = vmatprep.subr.bf16.mxu0 0
  %422 = vmatpush1.bf16.msra.mxu0 %v309
  %423 = vmatprep.subr.bf16.mxu0 0
  %424 = vmatpush1.bf16.msra.mxu0 %v310
  %425 = vmatprep.subr.bf16.mxu0 0
  %426 = vmatpush1.bf16.msra.mxu0 %v311
  %427 = vmatprep.subr.bf16.mxu0 0
  %428 = vmatpush1.bf16.msra.mxu0 %v312
  %429 = vmatprep.subr.bf16.mxu0 0
  %430 = vmatpush1.bf16.msra.mxu0 %v313
  %431 = vmatprep.subr.bf16.mxu0 0
  %432 = vmatpush1.bf16.msra.mxu0 %v314
  %433 = vmatprep.subr.bf16.mxu0 0
  %434 = vmatpush1.bf16.msra.mxu0 %v315
  %435 = vmatprep.subr.bf16.mxu0 0
  %436 = vmatpush1.bf16.msra.mxu0 %v316
  %437 = vmatprep.subr.bf16.mxu0 0
  %438 = vmatpush1.bf16.msra.mxu0 %v317
  %439 = vmatprep.subr.bf16.mxu0 0
  %440 = vmatpush1.bf16.msra.mxu0 %v318
  %441 = vmatprep.subr.bf16.mxu0 0
  %442 = vmatpush1.bf16.msra.mxu0 %v319
  %443 = vmatprep.subr.bf16.mxu0 0
  %444 = vmatpush1.bf16.msra.mxu0 %v320
  %445 = vmatprep.subr.bf16.mxu0 0
  %446 = vmatpush1.bf16.msra.mxu0 %v321
  %447 = vmatprep.subr.bf16.mxu0 0
  %448 = vmatpush1.bf16.msra.mxu0 %v322
  %449 = vmatprep.subr.bf16.mxu0 0
  %450 = vmatpush1.bf16.msra.mxu0 %v323
  %451 = vmatprep.subr.bf16.mxu0 0
  %452 = vmatpush1.bf16.msra.mxu0 %v324
  %453 = vmatprep.mubr.bf16.mxu0 %v134
  %454 = vmatmul.mubr.bf16.gmra.mrb[0].mxu0 %v133
  %v455 = vpop.f32.mrb[0].mxu0
  %v456 = vadd.f32 %v407, %v455
  %v457 = vpop.f32.mrb[0].mxu0
  %v458 = vpop.f32.mrb[0].mxu0
  %v459 = vadd.f32 %v410, %v458
  %v460 = vpop.f32.mrb[0].mxu0
  %461 = vmatprep.mubr.bf16.mxu0 %v139
  %462 = vmatmul.mubr.bf16.gmra.mrb[0].mxu0 %v138
  %v463 = vpop.f32.mrb[0].mxu0
  %v464 = vadd.f32 %v415, %v463
  %v465 = vpop.f32.mrb[0].mxu0
  %v466 = vpop.f32.mrb[0].mxu0
  %v467 = vadd.f32 %v418, %v466
  %v468 = vpop.f32.mrb[0].mxu0
  %469 = vdwg.mxu0
  %470 = vmatprep.subr.bf16.mxu0 0
  %471 = vmatpush1.bf16.msra.mxu0 %v325
  %472 = vmatprep.subr.bf16.mxu0 0
  %473 = vmatpush1.bf16.msra.mxu0 %v326
  %474 = vmatprep.subr.bf16.mxu0 0
  %475 = vmatpush1.bf16.msra.mxu0 %v327
  %476 = vmatprep.subr.bf16.mxu0 0
  %477 = vmatpush1.bf16.msra.mxu0 %v328
  %478 = vmatprep.subr.bf16.mxu0 0
  %479 = vmatpush1.bf16.msra.mxu0 0
  %480 = vmatprep.subr.bf16.mxu0 0
  %481 = vmatpush1.bf16.msra.mxu0 0
  %482 = vmatprep.subr.bf16.mxu0 0
  %483 = vmatpush1.bf16.msra.mxu0 0
  %484 = vmatprep.subr.bf16.mxu0 0
  %485 = vmatpush1.bf16.msra.mxu0 0
  %486 = vmatprep.subr.bf16.mxu0 0
  %487 = vmatpush1.bf16.msra.mxu0 0
  %488 = vmatprep.subr.bf16.mxu0 0
  %489 = vmatpush1.bf16.msra.mxu0 0
  %490 = vmatprep.subr.bf16.mxu0 0
  %491 = vmatpush1.bf16.msra.mxu0 0
  %492 = vmatprep.subr.bf16.mxu0 0
  %493 = vmatpush1.bf16.msra.mxu0 0
  %494 = vmatprep.subr.bf16.mxu0 0
  %495 = vmatpush1.bf16.msra.mxu0 0
  %496 = vmatprep.subr.bf16.mxu0 0
  %497 = vmatpush1.bf16.msra.mxu0 0
  %498 = vmatprep.subr.bf16.mxu0 0
  %499 = vmatpush1.bf16.msra.mxu0 0
  %500 = vmatprep.subr.bf16.mxu0 0
  %501 = vmatpush1.bf16.msra.mxu0 0
  %502 = vmatprep.mubr.bf16.mxu0 0
  %503 = vmatmul.mubr.bf16.gmra.mrb[0].mxu0 %v367
  %v504 = vpop.f32.mrb[0].mxu0
  %v505 = vadd.f32 %v456, %v504
  %v506 = vpop.f32.mrb[0].mxu0
  %v507 = vpop.f32.mrb[0].mxu0
  %v508 = vadd.f32 %v459, %v507
  %v509 = vpop.f32.mrb[0].mxu0
  %510 = vmatprep.mubr.bf16.mxu0 0
  %511 = vmatmul.mubr.bf16.gmra.mrb[0].mxu0 %v370
  %v512 = vpop.f32.mrb[0].mxu0
  %v513 = vadd.f32 %v464, %v512
  %v514 = vpop.f32.mrb[0].mxu0
  %v515 = vpop.f32.mrb[0].mxu0
  %v516 = vadd.f32 %v467, %v515
  %v517 = vpop.f32.mrb[0].mxu0
  %518 = vdwg.mxu0
  %p519 = scmp.eq.s32.totalorder 0, 0
  // Predicated region
  $region10: #{generator_forward.11} parent=0 // pred_check
    %p520 = pneg %p519
  $region11: #{generator_forward.11} parent=0 // pred_check_branch
    %522 = sbr.rel (%p520) target = $region13
  $region12: #{generator_forward.11} parent=0 // pred_region
    %523 = vst [vmem:[%s3] sm:$0x1] 0.0
    %524 = vst [vmem:[%s4] sm:$0x1] 0.0
  $region13: #{generator_forward.11} parent=0 // pred_fallthru
    _
  %v525 = vld [vmem:[%s3] sm:$0x1]
  %v526 = vadd.f32 %v505, %v508
  %v527 = vadd.f32 %v526, %v513
  %v528 = vadd.f32 %v527, %v516
  %v529 = vrot.slane %v528, 4
  %v530 = vadd.f32 %v528, %v529
  %v531 = vrot.slane %v530, 2
  %v532 = vadd.f32 %v530, %v531
  %v533 = vrot.slane %v532, 1
  %v534 = vadd.f32 %v532, %v533
  %v535 = vadd.f32 %v525, %v534
  %536 = vst [vmem:[%s3] sm:$0x1] %v535
  %v537 = vld [vmem:[%s4] sm:$0x1]
  %v538 = vmul.f32 %v505, %v505
  %v539 = vmul.f32 %v508, %v508
  %v540 = vmul.f32 %v513, %v513
  %v541 = vmul.f32 %v516, %v516
  %v542 = vadd.f32 %v538, %v539
  %v543 = vadd.f32 %v542, %v540
  %v544 = vadd.f32 %v543, %v541
  %v545 = vrot.slane %v544, 4
  %v546 = vadd.f32 %v544, %v545
  %v547 = vrot.slane %v546, 2
  %v548 = vadd.f32 %v546, %v547
  %v549 = vrot.slane %v548, 1
  %v550 = vadd.f32 %v548, %v549
  %v551 = vadd.f32 %v537, %v550
  %552 = vst [vmem:[%s4] sm:$0x1] %v551
  %v553 = vpack.c.bf16 %v508, %v505
  %v554 = vpack.c.bf16 %v516, %v513
  %v557 = vunpack.c.l.b16 %v553
  %v558 = vunpack.c.h.b16 %v553
  %v559 = vunpack.c.l.b16 %v554
  %v560 = vunpack.c.h.b16 %v554
  %v561 = vpack.c.b16 %v557, %v557
  %v562 = vpack.c.b16 %v558, %v558
  %v563 = vpack.c.b16 %v559, %v559
  %v564 = vpack.c.b16 %v560, %v560
  %569 = vst [vmem:[%s2] sm:$0xf] %v561
  %570 = vst [vmem:[%s2 + $0x4] sm:$0xf] %v562
  %571 = vst [vmem:[%s2 + $0x8] sm:$0xf] %v563
  %572 = vst [vmem:[%s2 + $0xc] sm:$0xf] %v564
  // Predicated region
  $region14: #{generator_forward.11} parent=0 // pred_check
    _
  $region15: #{generator_forward.11} parent=0 // pred_check_branch
    %574 = sbr.rel (0) target = $region17
  $region16: #{generator_forward.11} parent=0 // pred_region
    _
  $region17: #{generator_forward.11} parent=0 // pred_fallthru
    _
  // Predicated region
  $region18: #{generator_forward.11} parent=0 // pred_check
    _
  $region19: #{generator_forward.11} parent=0 // pred_check_branch
    %576 = sbr.rel (0) target = $region21
  $region20: #{generator_forward.11} parent=0 // pred_region
    _
  $region21: #{generator_forward.11} parent=0 // pred_fallthru
    _
  // Predicated region
  $region22: #{generator_forward.11} parent=0 // pred_check
    _
  $region23: #{generator_forward.11} parent=0 // pred_check_branch
    %578 = sbr.rel (0) target = $region25
  $region24: #{generator_forward.11} parent=0 // pred_region
    _
  $region25: #{generator_forward.11} parent=0 // pred_fallthru
    _
  // Predicated region
  $region26: #{generator_forward.11} parent=0 // pred_check
    _
  $region27: #{generator_forward.11} parent=0 // pred_check_branch
    %580 = sbr.rel (0) target = $region29
  $region28: #{generator_forward.11} parent=0 // pred_region
    _
  $region29: #{generator_forward.11} parent=0 // pred_fallthru
    _
  // Predicated region
  $region30: #{generator_forward.11} parent=0 // pred_check
    _
  $region31: #{generator_forward.11} parent=0 // pred_check_branch
    %582 = sbr.rel (0) target = $region33
  $region32: #{generator_forward.11} parent=0 // pred_region
    _
  $region33: #{generator_forward.11} parent=0 // pred_fallthru
    _
  // Predicated region
  $region34: #{generator_forward.11} parent=0 // pred_check
    _
  $region35: #{generator_forward.11} parent=0 // pred_check_branch
    %584 = sbr.rel (0) target = $region37
  $region36: #{generator_forward.11} parent=0 // pred_region
    _
  $region37: #{generator_forward.11} parent=0 // pred_fallthru
    _

// kernel: squeeze.104
$region0: #{squeeze.104}
  %s0 = inlined_call_operand.vmem [shape: f32[64], index: 0, kind: input, shape index: {}]
  %s1 = inlined_call_operand.vmem [shape: f32[4,16], index: 1, kind: output, shape index: {}]
  $region1: #{squeeze.104} parent=0
    #allocation0 [shape = 'u8[4096]{0}', space=vmem, size = 0x1000, scoped, tag = 'scoped mem for output reshape']
    #allocation1 [shape = 'u8[4096]{0}', space=vmem, size = 0x1000, scoped, tag = 'scoped mem for input reshape']
    %s3 = sshllo.u32 0, 1
    %v4 = vld [vmem:[%s0] sm:%s3]
    %5 = vst [vmem:[#allocation1] sm:%s3] %v4
    %v6 = vld [vmem:[#allocation1] sm:$0x1]
    %vm7 = vcmask 130048
    %8 = vst.msk [vmem:[#allocation0] sm:$0x1] %vm7, %v6
    %v9 = vld [vmem:[#allocation1] sm:$0x1]
    %10 = vrot.lane.b32.xlu0 %v9, 112
    %v11 = vpop.permute.xlu0 %10
    %vm12 = vcmask 130048
    %s13 = scalar_lea.vmem [#allocation0], 1
    %14 = vst.msk [vmem:[%s13] sm:$0x1] %vm12, %v11
    %v15 = vld [vmem:[#allocation1] sm:$0x1]
    %16 = vrot.lane.b32.xlu0 %v15, 96
    %v17 = vpop.permute.xlu0 %16
    %vm18 = vcmask 130048
    %s19 = scalar_lea.vmem [#allocation0], 2
    %20 = vst.msk [vmem:[%s19] sm:$0x1] %vm18, %v17
    %v21 = vld [vmem:[#allocation1] sm:$0x1]
    %22 = vrot.lane.b32.xlu0 %v21, 80
    %v23 = vpop.permute.xlu0 %22
    %vm24 = vcmask 130048
    %s25 = scalar_lea.vmem [#allocation0], 3
    %26 = vst.msk [vmem:[%s25] sm:$0x1] %vm24, %v23
    %s28 = sshllo.u32 0, 4
    %v30 = vld [vmem:[#allocation0] sm:%s28]
    %s31 = sshllo.u32 0, 4
    %32 = vst [vmem:[%s1] sm:%s31] %v30

// kernel: generator_forward.14
$region0: #{generator_forward.14}
  #allocation0 [shape = 'u32[]', space=smem, size = 0x4, offset = 0x4, fixed_abs, tag = 'smem constant byte address 0x4 - core index']
  #allocation1 [shape = 'u32[144,128]{1,0:T(1,128)}', space=vmem, size = 0x12000, scoped, tag = 'internal scratch']
  %s0 = inlined_call_operand.vmem [shape: bf16[128,128], index: 0, kind: input, shape index: {}]
  %s1 = inlined_call_operand.vmem [shape: f32[1,128], index: 1, kind: input, shape index: {}]
  %s2 = inlined_call_operand.vmem [shape: f32[1,128], index: 2, kind: input, shape index: {}]
  %s3 = inlined_call_operand.vmem [shape: bf16[128,128], index: 3, kind: output, shape index: {}]
  %s4 = sld [smem:[#allocation0]]
  $region22: #{generator_forward.14} parent=0
    _
  %s6 = ssub.s32 1, %s4
  %s7 = scalar_select 0, %s6, %s4
  // Predicated region
  $region2: #{generator_forward.14} parent=0 // pred_check
    _
  $region3: #{generator_forward.14} parent=0 // pred_check_branch
    %9 = sbr.rel (0) target = $region5
  $region4: #{generator_forward.14} parent=0 // pred_region
    _
  $region5: #{generator_forward.14} parent=0 // pred_fallthru
    _
  // Predicated region
  $region6: #{generator_forward.14} parent=0 // pred_check
    _
  $region7: #{generator_forward.14} parent=0 // pred_check_branch
    %11 = sbr.rel (0) target = $region9
  $region8: #{generator_forward.14} parent=0 // pred_region
    _
  $region9: #{generator_forward.14} parent=0 // pred_fallthru
    _
  // Predicated region
  $region10: #{generator_forward.14} parent=0 // pred_check
    _
  $region11: #{generator_forward.14} parent=0 // pred_check_branch
    %13 = sbr.rel (0) target = $region13
  $region12: #{generator_forward.14} parent=0 // pred_region
    _
  $region13: #{generator_forward.14} parent=0 // pred_fallthru
    _
  %v14 = vld [vmem:[%s0] sm:$0xf]
  %v15 = vld [vmem:[%s0 + $0x4] sm:$0xf]
  %v16 = vld [vmem:[%s0 + $0x8] sm:$0xf]
  %v17 = vld [vmem:[%s0 + $0xc] sm:$0xf]
  %v18 = vld [vmem:[%s0 + $0x10] sm:$0xf]
  %v19 = vld [vmem:[%s0 + $0x14] sm:$0xf]
  %v20 = vld [vmem:[%s0 + $0x18] sm:$0xf]
  %v21 = vld [vmem:[%s0 + $0x1c] sm:$0xf]
  %v22 = vld [vmem:[%s0 + $0x20] sm:$0xf]
  %v23 = vld [vmem:[%s0 + $0x24] sm:$0xf]
  %v24 = vld [vmem:[%s0 + $0x28] sm:$0xf]
  %v25 = vld [vmem:[%s0 + $0x2c] sm:$0xf]
  %v26 = vld [vmem:[%s0 + $0x30] sm:$0xf]
  %v27 = vld [vmem:[%s0 + $0x34] sm:$0xf]
  %v28 = vld [vmem:[%s0 + $0x38] sm:$0xf]
  %v29 = vld [vmem:[%s0 + $0x3c] sm:$0xf]
  %v30 = vunpack.c.l.bf16 %v14
  %v31 = vunpack.c.l.bf16 %v15
  %v32 = vunpack.c.l.bf16 %v16
  %v33 = vunpack.c.l.bf16 %v17
  %v34 = vunpack.c.l.bf16 %v18
  %v35 = vunpack.c.l.bf16 %v19
  %v36 = vunpack.c.l.bf16 %v20
  %v37 = vunpack.c.l.bf16 %v21
  %v38 = vunpack.c.l.bf16 %v22
  %v39 = vunpack.c.l.bf16 %v23
  %v40 = vunpack.c.l.bf16 %v24
  %v41 = vunpack.c.l.bf16 %v25
  %v42 = vunpack.c.l.bf16 %v26
  %v43 = vunpack.c.l.bf16 %v27
  %v44 = vunpack.c.l.bf16 %v28
  %v45 = vunpack.c.l.bf16 %v29
  %v46 = vld [vmem:[%s1] sm:$0x1]
  %v48 = vlaneseq
  %v49 = vshrl.u32 %v48, 7
  %v50 = vsub.s32 0, %v49
  %v51 = vrot.slane %v46, %v50
  %v53 = vmul.f32 %v30, %v51
  %v54 = vmul.f32 %v31, %v51
  %v55 = vmul.f32 %v32, %v51
  %v56 = vmul.f32 %v33, %v51
  %v57 = vmul.f32 %v34, %v51
  %v58 = vmul.f32 %v35, %v51
  %v59 = vmul.f32 %v36, %v51
  %v60 = vmul.f32 %v37, %v51
  %v61 = vmul.f32 %v38, %v51
  %v62 = vmul.f32 %v39, %v51
  %v63 = vmul.f32 %v40, %v51
  %v64 = vmul.f32 %v41, %v51
  %v65 = vmul.f32 %v42, %v51
  %v66 = vmul.f32 %v43, %v51
  %v67 = vmul.f32 %v44, %v51
  %v68 = vmul.f32 %v45, %v51
  %v69 = vld [vmem:[%s2] sm:$0x1]
  %v71 = vlaneseq
  %v72 = vshrl.u32 %v71, 7
  %v73 = vsub.s32 0, %v72
  %v74 = vrot.slane %v69, %v73
  %v76 = vadd.f32 %v53, %v74
  %v77 = vadd.f32 %v54, %v74
  %v78 = vadd.f32 %v55, %v74
  %v79 = vadd.f32 %v56, %v74
  %v80 = vadd.f32 %v57, %v74
  %v81 = vadd.f32 %v58, %v74
  %v82 = vadd.f32 %v59, %v74
  %v83 = vadd.f32 %v60, %v74
  %v84 = vadd.f32 %v61, %v74
  %v85 = vadd.f32 %v62, %v74
  %v86 = vadd.f32 %v63, %v74
  %v87 = vadd.f32 %v64, %v74
  %v88 = vadd.f32 %v65, %v74
  %v89 = vadd.f32 %v66, %v74
  %v90 = vadd.f32 %v67, %v74
  %v91 = vadd.f32 %v68, %v74
  %v92 = vmax.f32 %v76, 0.0
  %v93 = vmax.f32 %v77, 0.0
  %v94 = vmax.f32 %v78, 0.0
  %v95 = vmax.f32 %v79, 0.0
  %v96 = vmax.f32 %v80, 0.0
  %v97 = vmax.f32 %v81, 0.0
  %v98 = vmax.f32 %v82, 0.0
  %v99 = vmax.f32 %v83, 0.0
  %v100 = vmax.f32 %v84, 0.0
  %v101 = vmax.f32 %v85, 0.0
  %v102 = vmax.f32 %v86, 0.0
  %v103 = vmax.f32 %v87, 0.0
  %v104 = vmax.f32 %v88, 0.0
  %v105 = vmax.f32 %v89, 0.0
  %v106 = vmax.f32 %v90, 0.0
  %v107 = vmax.f32 %v91, 0.0
  %v108 = vpack.c.bf16 %v93, %v92
  %v109 = vpack.c.bf16 %v95, %v94
  %v110 = vpack.c.bf16 %v97, %v96
  %v111 = vpack.c.bf16 %v99, %v98
  %v112 = vpack.c.bf16 %v101, %v100
  %v113 = vpack.c.bf16 %v103, %v102
  %v114 = vpack.c.bf16 %v105, %v104
  %v115 = vpack.c.bf16 %v107, %v106
  %v124 = vunpack.c.l.b16 %v108
  %v125 = vunpack.c.h.b16 %v108
  %v126 = vunpack.c.l.b16 %v109
  %v127 = vunpack.c.h.b16 %v109
  %v128 = vunpack.c.l.b16 %v110
  %v129 = vunpack.c.h.b16 %v110
  %v130 = vunpack.c.l.b16 %v111
  %v131 = vunpack.c.h.b16 %v111
  %v132 = vunpack.c.l.b16 %v112
  %v133 = vunpack.c.h.b16 %v112
  %v134 = vunpack.c.l.b16 %v113
  %v135 = vunpack.c.h.b16 %v113
  %v136 = vunpack.c.l.b16 %v114
  %v137 = vunpack.c.h.b16 %v114
  %v138 = vunpack.c.l.b16 %v115
  %v139 = vunpack.c.h.b16 %v115
  %v140 = vpack.c.b16 %v124, %v124
  %v141 = vpack.c.b16 %v125, %v125
  %v142 = vpack.c.b16 %v126, %v126
  %v143 = vpack.c.b16 %v127, %v127
  %v144 = vpack.c.b16 %v128, %v128
  %v145 = vpack.c.b16 %v129, %v129
  %v146 = vpack.c.b16 %v130, %v130
  %v147 = vpack.c.b16 %v131, %v131
  %v148 = vpack.c.b16 %v132, %v132
  %v149 = vpack.c.b16 %v133, %v133
  %v150 = vpack.c.b16 %v134, %v134
  %v151 = vpack.c.b16 %v135, %v135
  %v152 = vpack.c.b16 %v136, %v136
  %v153 = vpack.c.b16 %v137, %v137
  %v154 = vpack.c.b16 %v138, %v138
  %v155 = vpack.c.b16 %v139, %v139
  %172 = vst [vmem:[%s3] sm:$0xf] %v140
  %173 = vst [vmem:[%s3 + $0x4] sm:$0xf] %v141
  %174 = vst [vmem:[%s3 + $0x8] sm:$0xf] %v142
  %175 = vst [vmem:[%s3 + $0xc] sm:$0xf] %v143
  %176 = vst [vmem:[%s3 + $0x10] sm:$0xf] %v144
  %177 = vst [vmem:[%s3 + $0x14] sm:$0xf] %v145
  %178 = vst [vmem:[%s3 + $0x18] sm:$0xf] %v146
  %179 = vst [vmem:[%s3 + $0x1c] sm:$0xf] %v147
  %180 = vst [vmem:[%s3 + $0x20] sm:$0xf] %v148
  %181 = vst [vmem:[%s3 + $0x24] sm:$0xf] %v149
  %182 = vst [vmem:[%s3 + $0x28] sm:$0xf] %v150
  %183 = vst [vmem:[%s3 + $0x2c] sm:$0xf] %v151
  %184 = vst [vmem:[%s3 + $0x30] sm:$0xf] %v152
  %185 = vst [vmem:[%s3 + $0x34] sm:$0xf] %v153
  %186 = vst [vmem:[%s3 + $0x38] sm:$0xf] %v154
  %187 = vst [vmem:[%s3 + $0x3c] sm:$0xf] %v155
  // Predicated region
  $region14: #{generator_forward.14} parent=0 // pred_check
    _
  $region15: #{generator_forward.14} parent=0 // pred_check_branch
    %189 = sbr.rel (0) target = $region17
  $region16: #{generator_forward.14} parent=0 // pred_region
    _
  $region17: #{generator_forward.14} parent=0 // pred_fallthru
    _
  // Predicated region
  $region18: #{generator_forward.14} parent=0 // pred_check
    _
  $region19: #{generator_forward.14} parent=0 // pred_check_branch
    %191 = sbr.rel (0) target = $region21
  $region20: #{generator_forward.14} parent=0 // pred_region
    _
  $region21: #{generator_forward.14} parent=0 // pred_fallthru
    _

// kernel: generator_forward.13
$region0: #{generator_forward.13}
  #allocation0 [shape = 'u32[]', space=smem, size = 0x4, offset = 0x4, fixed_abs, tag = 'smem constant byte address 0x4 - core index']
  #allocation1 [shape = 'u32[144,128]{1,0:T(1,128)}', space=vmem, size = 0x12000, scoped, tag = 'internal scratch']
  %s0 = inlined_call_operand.vmem [shape: bf16[128,288], index: 0, kind: input, shape index: {}]
  %s1 = inlined_call_operand.vmem [shape: bf16[288,128], index: 1, kind: input, shape index: {}]
  %s2 = inlined_call_operand.vmem [shape: bf16[128,128], index: 2, kind: output, shape index: {0}]
  %s3 = inlined_call_operand.vmem [shape: f32[1,128], index: 3, kind: output, shape index: {1}]
  %s4 = inlined_call_operand.vmem [shape: f32[1,128], index: 4, kind: output, shape index: {2}]
  %5 = xla_tuple %s2, %s3, %s4
  %s6 = sld [smem:[#allocation0]]
  $region38: #{generator_forward.13} parent=0
    _
  %s8 = ssub.s32 1, %s6
  %s9 = scalar_select 0, %s8, %s6
  // Predicated region
  $region2: #{generator_forward.13} parent=0 // pred_check
    _
  $region3: #{generator_forward.13} parent=0 // pred_check_branch
    %11 = sbr.rel (0) target = $region5
  $region4: #{generator_forward.13} parent=0 // pred_region
    _
  $region5: #{generator_forward.13} parent=0 // pred_fallthru
    _
  // Predicated region
  $region6: #{generator_forward.13} parent=0 // pred_check
    _
  $region7: #{generator_forward.13} parent=0 // pred_check_branch
    %13 = sbr.rel (0) target = $region9
  $region8: #{generator_forward.13} parent=0 // pred_region
    _
  $region9: #{generator_forward.13} parent=0 // pred_fallthru
    _
  %v15 = vld [vmem:[%s0] sm:$0xff]
  %v16 = vld [vmem:[%s0 + $0x8] sm:$0xf]
  %v17 = vld [vmem:[%s0 + $0xc] sm:$0xff]
  %v18 = vld [vmem:[%s0 + $0x14] sm:$0xf]
  %v19 = vld [vmem:[%s0 + $0x18] sm:$0xff]
  %v20 = vld [vmem:[%s0 + $0x20] sm:$0xf]
  %v21 = vld [vmem:[%s0 + $0x24] sm:$0xff]
  %v22 = vld [vmem:[%s0 + $0x2c] sm:$0xf]
  %v23 = vld [vmem:[%s0 + $0x30] sm:$0xff]
  %v24 = vld [vmem:[%s0 + $0x38] sm:$0xf]
  %v25 = vld [vmem:[%s0 + $0x3c] sm:$0xff]
  %v26 = vld [vmem:[%s0 + $0x44] sm:$0xf]
  %v27 = vld [vmem:[%s0 + $0x48] sm:$0xff]
  %v28 = vld [vmem:[%s0 + $0x50] sm:$0xf]
  %v29 = vld [vmem:[%s0 + $0x54] sm:$0xff]
  %v30 = vld [vmem:[%s0 + $0x5c] sm:$0xf]
  %v31 = vld [vmem:[%s0 + $0x60] sm:$0xff]
  %v32 = vld [vmem:[%s0 + $0x68] sm:$0xf]
  %v33 = vld [vmem:[%s0 + $0x6c] sm:$0xff]
  %v34 = vld [vmem:[%s0 + $0x74] sm:$0xf]
  %v35 = vld [vmem:[%s0 + $0x78] sm:$0xff]
  %v36 = vld [vmem:[%s0 + $0x80] sm:$0xf]
  %v37 = vld [vmem:[%s0 + $0x84] sm:$0xff]
  %v38 = vld [vmem:[%s0 + $0x8c] sm:$0xf]
  %v39 = vld [vmem:[%s0 + $0x90] sm:$0xff]
  %v40 = vld [vmem:[%s0 + $0x98] sm:$0xf]
  %v41 = vld [vmem:[%s0 + $0x9c] sm:$0xff]
  %v42 = vld [vmem:[%s0 + $0xa4] sm:$0xf]
  %v43 = vld [vmem:[%s0 + $0xa8] sm:$0xff]
  %v44 = vld [vmem:[%s0 + $0xb0] sm:$0xf]
  %v45 = vld [vmem:[%s0 + $0xb4] sm:$0xff]
  %v46 = vld [vmem:[%s0 + $0xbc] sm:$0xf]
  %v47 = vld [vmem:[%s1] sm:$0xf]
  %v48 = vld [vmem:[%s1 + $0x4] sm:$0xf]
  %v49 = vld [vmem:[%s1 + $0x8] sm:$0xf]
  %v50 = vld [vmem:[%s1 + $0xc] sm:$0xf]
  %v51 = vld [vmem:[%s1 + $0x10] sm:$0xf]
  %v52 = vld [vmem:[%s1 + $0x14] sm:$0xf]
  %v53 = vld [vmem:[%s1 + $0x18] sm:$0xf]
  %v54 = vld [vmem:[%s1 + $0x1c] sm:$0xf]
  %v55 = vld [vmem:[%s1 + $0x20] sm:$0xf]
  %v56 = vld [vmem:[%s1 + $0x24] sm:$0xf]
  %v57 = vld [vmem:[%s1 + $0x28] sm:$0xf]
  %v58 = vld [vmem:[%s1 + $0x2c] sm:$0xf]
  %v59 = vld [vmem:[%s1 + $0x30] sm:$0xf]
  %v60 = vld [vmem:[%s1 + $0x34] sm:$0xf]
  %v61 = vld [vmem:[%s1 + $0x38] sm:$0xf]
  %v62 = vld [vmem:[%s1 + $0x3c] sm:$0xf]
  %v63 = vld [vmem:[%s1 + $0x40] sm:$0xf]
  %v64 = vld [vmem:[%s1 + $0x44] sm:$0xf]
  %v65 = vld [vmem:[%s1 + $0x48] sm:$0xf]
  %v66 = vld [vmem:[%s1 + $0x4c] sm:$0xf]
  %v67 = vld [vmem:[%s1 + $0x50] sm:$0xf]
  %v68 = vld [vmem:[%s1 + $0x54] sm:$0xf]
  %v69 = vld [vmem:[%s1 + $0x58] sm:$0xf]
  %v70 = vld [vmem:[%s1 + $0x5c] sm:$0xf]
  %v71 = vld [vmem:[%s1 + $0x60] sm:$0xf]
  %v72 = vld [vmem:[%s1 + $0x64] sm:$0xf]
  %v73 = vld [vmem:[%s1 + $0x68] sm:$0xf]
  %v74 = vld [vmem:[%s1 + $0x6c] sm:$0xf]
  %v75 = vld [vmem:[%s1 + $0x70] sm:$0xf]
  %v76 = vld [vmem:[%s1 + $0x74] sm:$0xf]
  %v77 = vld [vmem:[%s1 + $0x78] sm:$0xf]
  %v78 = vld [vmem:[%s1 + $0x7c] sm:$0xf]
  %v79 = vld [vmem:[%s1 + $0x80] sm:$0xf]
  %v80 = vld [vmem:[%s1 + $0x84] sm:$0xf]
  %v81 = vld [vmem:[%s1 + $0x88] sm:$0xf]
  %v82 = vld [vmem:[%s1 + $0x8c] sm:$0xf]
  %v115 = vunpack.c.l.b16 %v15
  %v116 = vunpack.c.h.b16 %v15
  %v117 = vunpack.c.l.b16 %v16
  %v118 = vunpack.c.l.b16 %v17
  %v119 = vunpack.c.h.b16 %v17
  %v120 = vunpack.c.l.b16 %v18
  %v121 = vunpack.c.l.b16 %v19
  %v122 = vunpack.c.h.b16 %v19
  %v123 = vunpack.c.l.b16 %v20
  %v124 = vunpack.c.l.b16 %v21
  %v125 = vunpack.c.h.b16 %v21
  %v126 = vunpack.c.l.b16 %v22
  %v127 = vunpack.c.l.b16 %v23
  %v128 = vunpack.c.h.b16 %v23
  %v129 = vunpack.c.l.b16 %v24
  %v130 = vunpack.c.l.b16 %v25
  %v131 = vunpack.c.h.b16 %v25
  %v132 = vunpack.c.l.b16 %v26
  %v133 = vunpack.c.l.b16 %v27
  %v134 = vunpack.c.h.b16 %v27
  %v135 = vunpack.c.l.b16 %v28
  %v136 = vunpack.c.l.b16 %v29
  %v137 = vunpack.c.h.b16 %v29
  %v138 = vunpack.c.l.b16 %v30
  %v139 = vunpack.c.l.b16 %v31
  %v140 = vunpack.c.h.b16 %v31
  %v141 = vunpack.c.l.b16 %v32
  %v142 = vunpack.c.l.b16 %v33
  %v143 = vunpack.c.h.b16 %v33
  %v144 = vunpack.c.l.b16 %v34
  %v145 = vunpack.c.l.b16 %v35
  %v146 = vunpack.c.h.b16 %v35
  %v147 = vunpack.c.l.b16 %v36
  %v148 = vunpack.c.l.b16 %v37
  %v149 = vunpack.c.h.b16 %v37
  %v150 = vunpack.c.l.b16 %v38
  %v151 = vunpack.c.l.b16 %v39
  %v152 = vunpack.c.h.b16 %v39
  %v153 = vunpack.c.l.b16 %v40
  %v154 = vunpack.c.l.b16 %v41
  %v155 = vunpack.c.h.b16 %v41
  %v156 = vunpack.c.l.b16 %v42
  %v157 = vunpack.c.l.b16 %v43
  %v158 = vunpack.c.h.b16 %v43
  %v159 = vunpack.c.l.b16 %v44
  %v160 = vunpack.c.l.b16 %v45
  %v161 = vunpack.c.h.b16 %v45
  %v162 = vunpack.c.l.b16 %v46
  %v163 = vpack.c.b16 %v118, %v115
  %v164 = vpack.c.b16 %v119, %v116
  %v165 = vpack.c.b16 %v120, %v117
  %v166 = vpack.c.b16 %v124, %v121
  %v167 = vpack.c.b16 %v125, %v122
  %v168 = vpack.c.b16 %v126, %v123
  %v169 = vpack.c.b16 %v130, %v127
  %v170 = vpack.c.b16 %v131, %v128
  %v171 = vpack.c.b16 %v132, %v129
  %v172 = vpack.c.b16 %v136, %v133
  %v173 = vpack.c.b16 %v137, %v134
  %v174 = vpack.c.b16 %v138, %v135
  %v175 = vpack.c.b16 %v142, %v139
  %v176 = vpack.c.b16 %v143, %v140
  %v177 = vpack.c.b16 %v144, %v141
  %v178 = vpack.c.b16 %v148, %v145
  %v179 = vpack.c.b16 %v149, %v146
  %v180 = vpack.c.b16 %v150, %v147
  %v181 = vpack.c.b16 %v154, %v151
  %v182 = vpack.c.b16 %v155, %v152
  %v183 = vpack.c.b16 %v156, %v153
  %v184 = vpack.c.b16 %v160, %v157
  %v185 = vpack.c.b16 %v161, %v158
  %v186 = vpack.c.b16 %v162, %v159
  %v239 = vunpack.c.l.b16 %v47
  %v240 = vunpack.c.l.b16 %v48
  %v241 = vunpack.c.l.b16 %v49
  %v242 = vunpack.c.l.b16 %v50
  %v243 = vunpack.c.l.b16 %v51
  %v244 = vunpack.c.l.b16 %v52
  %v245 = vunpack.c.l.b16 %v53
  %v246 = vunpack.c.l.b16 %v54
  %v247 = vunpack.c.l.b16 %v55
  %v248 = vunpack.c.l.b16 %v56
  %v249 = vunpack.c.l.b16 %v57
  %v250 = vunpack.c.l.b16 %v58
  %v251 = vunpack.c.l.b16 %v59
  %v252 = vunpack.c.l.b16 %v60
  %v253 = vunpack.c.l.b16 %v61
  %v254 = vunpack.c.l.b16 %v62
  %v255 = vunpack.c.l.b16 %v63
  %v256 = vunpack.c.l.b16 %v64
  %v257 = vunpack.c.l.b16 %v65
  %v258 = vunpack.c.l.b16 %v66
  %v259 = vunpack.c.l.b16 %v67
  %v260 = vunpack.c.l.b16 %v68
  %v261 = vunpack.c.l.b16 %v69
  %v262 = vunpack.c.l.b16 %v70
  %v263 = vunpack.c.l.b16 %v71
  %v264 = vunpack.c.l.b16 %v72
  %v265 = vunpack.c.l.b16 %v73
  %v266 = vunpack.c.l.b16 %v74
  %v267 = vunpack.c.l.b16 %v75
  %v268 = vunpack.c.l.b16 %v76
  %v269 = vunpack.c.l.b16 %v77
  %v270 = vunpack.c.l.b16 %v78
  %v271 = vunpack.c.l.b16 %v79
  %v272 = vunpack.c.l.b16 %v80
  %v273 = vunpack.c.l.b16 %v81
  %v274 = vunpack.c.l.b16 %v82
  %v275 = vpack.c.b16 %v240, %v239
  %v276 = vpack.c.b16 %v242, %v241
  %v277 = vpack.c.b16 %v244, %v243
  %v278 = vpack.c.b16 %v246, %v245
  %v279 = vpack.c.b16 %v248, %v247
  %v280 = vpack.c.b16 %v250, %v249
  %v281 = vpack.c.b16 %v252, %v251
  %v282 = vpack.c.b16 %v254, %v253
  %v283 = vpack.c.b16 %v256, %v255
  %v284 = vpack.c.b16 %v258, %v257
  %v285 = vpack.c.b16 %v260, %v259
  %v286 = vpack.c.b16 %v262, %v261
  %v287 = vpack.c.b16 %v264, %v263
  %v288 = vpack.c.b16 %v266, %v265
  %v289 = vpack.c.b16 %v268, %v267
  %v290 = vpack.c.b16 %v270, %v269
  %v291 = vpack.c.b16 %v272, %v271
  %v292 = vpack.c.b16 %v274, %v273
  %vm311 = vcmask 261120
  %v313 = vsel %vm311, %v165, 0
  %v316 = vsel %vm311, %v168, 0
  %v319 = vsel %vm311, %v171, 0
  %v322 = vsel %vm311, %v174, 0
  %v325 = vsel %vm311, %v177, 0
  %v328 = vsel %vm311, %v180, 0
  %v331 = vsel %vm311, %v183, 0
  %v334 = vsel %vm311, %v186, 0
  %336 = vmatprep.subr.bf16.mxu0 0
  %337 = vmatpush1.bf16.msra.mxu0 %v275
  %338 = vmatprep.subr.bf16.mxu0 0
  %339 = vmatpush1.bf16.msra.mxu0 %v276
  %340 = vmatprep.subr.bf16.mxu0 0
  %341 = vmatpush1.bf16.msra.mxu0 %v277
  %342 = vmatprep.subr.bf16.mxu0 0
  %343 = vmatpush1.bf16.msra.mxu0 %v278
  %344 = vmatprep.subr.bf16.mxu0 0
  %345 = vmatpush1.bf16.msra.mxu0 %v279
  %346 = vmatprep.subr.bf16.mxu0 0
  %347 = vmatpush1.bf16.msra.mxu0 %v280
  %348 = vmatprep.subr.bf16.mxu0 0
  %349 = vmatpush1.bf16.msra.mxu0 %v281
  %350 = vmatprep.subr.bf16.mxu0 0
  %351 = vmatpush1.bf16.msra.mxu0 %v282
  %352 = vmatprep.subr.bf16.mxu0 0
  %353 = vmatpush1.bf16.msra.mxu0 %v283
  %354 = vmatprep.subr.bf16.mxu0 0
  %355 = vmatpush1.bf16.msra.mxu0 %v284
  %356 = vmatprep.subr.bf16.mxu0 0
  %357 = vmatpush1.bf16.msra.mxu0 %v285
  %358 = vmatprep.subr.bf16.mxu0 0
  %359 = vmatpush1.bf16.msra.mxu0 %v286
  %360 = vmatprep.subr.bf16.mxu0 0
  %361 = vmatpush1.bf16.msra.mxu0 %v287
  %362 = vmatprep.subr.bf16.mxu0 0
  %363 = vmatpush1.bf16.msra.mxu0 %v288
  %364 = vmatprep.subr.bf16.mxu0 0
  %365 = vmatpush1.bf16.msra.mxu0 %v289
  %366 = vmatprep.subr.bf16.mxu0 0
  %367 = vmatpush1.bf16.msra.mxu0 %v290
  %368 = vmatprep.mubr.bf16.mxu0 %v164
  %369 = vmatmul.mubr.bf16.gmra.mrb[0].mxu0 %v163
  %v370 = vpop.f32.mrb[0].mxu0
  %v371 = vadd.f32 0.0, %v370
  %v372 = vpop.f32.mrb[0].mxu0
  %v373 = vpop.f32.mrb[0].mxu0
  %v374 = vadd.f32 0.0, %v373
  %v375 = vpop.f32.mrb[0].mxu0
  %376 = vmatprep.mubr.bf16.mxu0 %v167
  %377 = vmatmul.mubr.bf16.gmra.mrb[0].mxu0 %v166
  %v378 = vpop.f32.mrb[0].mxu0
  %v379 = vadd.f32 0.0, %v378
  %v380 = vpop.f32.mrb[0].mxu0
  %v381 = vpop.f32.mrb[0].mxu0
  %v382 = vadd.f32 0.0, %v381
  %v383 = vpop.f32.mrb[0].mxu0
  %384 = vmatprep.mubr.bf16.mxu0 %v170
  %385 = vmatmul.mubr.bf16.gmra.mrb[0].mxu0 %v169
  %v386 = vpop.f32.mrb[0].mxu0
  %v387 = vadd.f32 0.0, %v386
  %v388 = vpop.f32.mrb[0].mxu0
  %v389 = vpop.f32.mrb[0].mxu0
  %v390 = vadd.f32 0.0, %v389
  %v391 = vpop.f32.mrb[0].mxu0
  %392 = vmatprep.mubr.bf16.mxu0 %v173
  %393 = vmatmul.mubr.bf16.gmra.mrb[0].mxu0 %v172
  %v394 = vpop.f32.mrb[0].mxu0
  %v395 = vadd.f32 0.0, %v394
  %v396 = vpop.f32.mrb[0].mxu0
  %v397 = vpop.f32.mrb[0].mxu0
  %v398 = vadd.f32 0.0, %v397
  %v399 = vpop.f32.mrb[0].mxu0
  %400 = vmatprep.mubr.bf16.mxu0 %v176
  %401 = vmatmul.mubr.bf16.gmra.mrb[0].mxu0 %v175
  %v402 = vpop.f32.mrb[0].mxu0
  %v403 = vadd.f32 0.0, %v402
  %v404 = vpop.f32.mrb[0].mxu0
  %v405 = vpop.f32.mrb[0].mxu0
  %v406 = vadd.f32 0.0, %v405
  %v407 = vpop.f32.mrb[0].mxu0
  %408 = vmatprep.mubr.bf16.mxu0 %v179
  %409 = vmatmul.mubr.bf16.gmra.mrb[0].mxu0 %v178
  %v410 = vpop.f32.mrb[0].mxu0
  %v411 = vadd.f32 0.0, %v410
  %v412 = vpop.f32.mrb[0].mxu0
  %v413 = vpop.f32.mrb[0].mxu0
  %v414 = vadd.f32 0.0, %v413
  %v415 = vpop.f32.mrb[0].mxu0
  %416 = vmatprep.mubr.bf16.mxu0 %v182
  %417 = vmatmul.mubr.bf16.gmra.mrb[0].mxu0 %v181
  %v418 = vpop.f32.mrb[0].mxu0
  %v419 = vadd.f32 0.0, %v418
  %v420 = vpop.f32.mrb[0].mxu0
  %v421 = vpop.f32.mrb[0].mxu0
  %v422 = vadd.f32 0.0, %v421
  %v423 = vpop.f32.mrb[0].mxu0
  %424 = vmatprep.mubr.bf16.mxu0 %v185
  %425 = vmatmul.mubr.bf16.gmra.mrb[0].mxu0 %v184
  %v426 = vpop.f32.mrb[0].mxu0
  %v427 = vadd.f32 0.0, %v426
  %v428 = vpop.f32.mrb[0].mxu0
  %v429 = vpop.f32.mrb[0].mxu0
  %v430 = vadd.f32 0.0, %v429
  %v431 = vpop.f32.mrb[0].mxu0
  %432 = vdwg.mxu0
  %433 = vmatprep.subr.bf16.mxu0 0
  %434 = vmatpush1.bf16.msra.mxu0 %v291
  %435 = vmatprep.subr.bf16.mxu0 0
  %436 = vmatpush1.bf16.msra.mxu0 %v292
  %437 = vmatprep.subr.bf16.mxu0 0
  %438 = vmatpush1.bf16.msra.mxu0 0
  %439 = vmatprep.subr.bf16.mxu0 0
  %440 = vmatpush1.bf16.msra.mxu0 0
  %441 = vmatprep.subr.bf16.mxu0 0
  %442 = vmatpush1.bf16.msra.mxu0 0
  %443 = vmatprep.subr.bf16.mxu0 0
  %444 = vmatpush1.bf16.msra.mxu0 0
  %445 = vmatprep.subr.bf16.mxu0 0
  %446 = vmatpush1.bf16.msra.mxu0 0
  %447 = vmatprep.subr.bf16.mxu0 0
  %448 = vmatpush1.bf16.msra.mxu0 0
  %449 = vmatprep.subr.bf16.mxu0 0
  %450 = vmatpush1.bf16.msra.mxu0 0
  %451 = vmatprep.subr.bf16.mxu0 0
  %452 = vmatpush1.bf16.msra.mxu0 0
  %453 = vmatprep.subr.bf16.mxu0 0
  %454 = vmatpush1.bf16.msra.mxu0 0
  %455 = vmatprep.subr.bf16.mxu0 0
  %456 = vmatpush1.bf16.msra.mxu0 0
  %457 = vmatprep.subr.bf16.mxu0 0
  %458 = vmatpush1.bf16.msra.mxu0 0
  %459 = vmatprep.subr.bf16.mxu0 0
  %460 = vmatpush1.bf16.msra.mxu0 0
  %461 = vmatprep.subr.bf16.mxu0 0
  %462 = vmatpush1.bf16.msra.mxu0 0
  %463 = vmatprep.subr.bf16.mxu0 0
  %464 = vmatpush1.bf16.msra.mxu0 0
  %465 = vmatprep.mubr.bf16.mxu0 0
  %466 = vmatmul.mubr.bf16.gmra.mrb[0].mxu0 %v313
  %v467 = vpop.f32.mrb[0].mxu0
  %v468 = vadd.f32 %v371, %v467
  %v469 = vpop.f32.mrb[0].mxu0
  %v470 = vpop.f32.mrb[0].mxu0
  %v471 = vadd.f32 %v374, %v470
  %v472 = vpop.f32.mrb[0].mxu0
  %473 = vmatprep.mubr.bf16.mxu0 0
  %474 = vmatmul.mubr.bf16.gmra.mrb[0].mxu0 %v316
  %v475 = vpop.f32.mrb[0].mxu0
  %v476 = vadd.f32 %v379, %v475
  %v477 = vpop.f32.mrb[0].mxu0
  %v478 = vpop.f32.mrb[0].mxu0
  %v479 = vadd.f32 %v382, %v478
  %v480 = vpop.f32.mrb[0].mxu0
  %481 = vmatprep.mubr.bf16.mxu0 0
  %482 = vmatmul.mubr.bf16.gmra.mrb[0].mxu0 %v319
  %v483 = vpop.f32.mrb[0].mxu0
  %v484 = vadd.f32 %v387, %v483
  %v485 = vpop.f32.mrb[0].mxu0
  %v486 = vpop.f32.mrb[0].mxu0
  %v487 = vadd.f32 %v390, %v486
  %v488 = vpop.f32.mrb[0].mxu0
  %489 = vmatprep.mubr.bf16.mxu0 0
  %490 = vmatmul.mubr.bf16.gmra.mrb[0].mxu0 %v322
  %v491 = vpop.f32.mrb[0].mxu0
  %v492 = vadd.f32 %v395, %v491
  %v493 = vpop.f32.mrb[0].mxu0
  %v494 = vpop.f32.mrb[0].mxu0
  %v495 = vadd.f32 %v398, %v494
  %v496 = vpop.f32.mrb[0].mxu0
  %497 = vmatprep.mubr.bf16.mxu0 0
  %498 = vmatmul.mubr.bf16.gmra.mrb[0].mxu0 %v325
  %v499 = vpop.f32.mrb[0].mxu0
  %v500 = vadd.f32 %v403, %v499
  %v501 = vpop.f32.mrb[0].mxu0
  %v502 = vpop.f32.mrb[0].mxu0
  %v503 = vadd.f32 %v406, %v502
  %v504 = vpop.f32.mrb[0].mxu0
  %505 = vmatprep.mubr.bf16.mxu0 0
  %506 = vmatmul.mubr.bf16.gmra.mrb[0].mxu0 %v328
  %v507 = vpop.f32.mrb[0].mxu0
  %v508 = vadd.f32 %v411, %v507
  %v509 = vpop.f32.mrb[0].mxu0
  %v510 = vpop.f32.mrb[0].mxu0
  %v511 = vadd.f32 %v414, %v510
  %v512 = vpop.f32.mrb[0].mxu0
  %513 = vmatprep.mubr.bf16.mxu0 0
  %514 = vmatmul.mubr.bf16.gmra.mrb[0].mxu0 %v331
  %v515 = vpop.f32.mrb[0].mxu0
  %v516 = vadd.f32 %v419, %v515
  %v517 = vpop.f32.mrb[0].mxu0
  %v518 = vpop.f32.mrb[0].mxu0
  %v519 = vadd.f32 %v422, %v518
  %v520 = vpop.f32.mrb[0].mxu0
  %521 = vmatprep.mubr.bf16.mxu0 0
  %522 = vmatmul.mubr.bf16.gmra.mrb[0].mxu0 %v334
  %v523 = vpop.f32.mrb[0].mxu0
  %v524 = vadd.f32 %v427, %v523
  %v525 = vpop.f32.mrb[0].mxu0
  %v526 = vpop.f32.mrb[0].mxu0
  %v527 = vadd.f32 %v430, %v526
  %v528 = vpop.f32.mrb[0].mxu0
  %529 = vdwg.mxu0
  %p530 = scmp.eq.s32.totalorder 0, 0
  // Predicated region
  $region10: #{generator_forward.13} parent=0 // pred_check
    %p531 = pneg %p530
  $region11: #{generator_forward.13} parent=0 // pred_check_branch
    %533 = sbr.rel (%p531) target = $region13
  $region12: #{generator_forward.13} parent=0 // pred_region
    %534 = vst [vmem:[%s3] sm:$0x1] 0.0
    %535 = vst [vmem:[%s4] sm:$0x1] 0.0
  $region13: #{generator_forward.13} parent=0 // pred_fallthru
    _
  %v536 = vld [vmem:[%s3] sm:$0x1]
  %v537 = vadd.f32 %v468, %v471
  %v538 = vadd.f32 %v537, %v476
  %v539 = vadd.f32 %v538, %v479
  %v540 = vadd.f32 %v539, %v484
  %v541 = vadd.f32 %v540, %v487
  %v542 = vadd.f32 %v541, %v492
  %v543 = vadd.f32 %v542, %v495
  %v544 = vadd.f32 %v543, %v500
  %v545 = vadd.f32 %v544, %v503
  %v546 = vadd.f32 %v545, %v508
  %v547 = vadd.f32 %v546, %v511
  %v548 = vadd.f32 %v547, %v516
  %v549 = vadd.f32 %v548, %v519
  %v550 = vadd.f32 %v549, %v524
  %v551 = vadd.f32 %v550, %v527
  %v552 = vrot.slane %v551, 4
  %v553 = vadd.f32 %v551, %v552
  %v554 = vrot.slane %v553, 2
  %v555 = vadd.f32 %v553, %v554
  %v556 = vrot.slane %v555, 1
  %v557 = vadd.f32 %v555, %v556
  %v558 = vadd.f32 %v536, %v557
  %559 = vst [vmem:[%s3] sm:$0x1] %v558
  %v560 = vld [vmem:[%s4] sm:$0x1]
  %v561 = vmul.f32 %v468, %v468
  %v562 = vmul.f32 %v471, %v471
  %v563 = vmul.f32 %v476, %v476
  %v564 = vmul.f32 %v479, %v479
  %v565 = vmul.f32 %v484, %v484
  %v566 = vmul.f32 %v487, %v487
  %v567 = vmul.f32 %v492, %v492
  %v568 = vmul.f32 %v495, %v495
  %v569 = vmul.f32 %v500, %v500
  %v570 = vmul.f32 %v503, %v503
  %v571 = vmul.f32 %v508, %v508
  %v572 = vmul.f32 %v511, %v511
  %v573 = vmul.f32 %v516, %v516
  %v574 = vmul.f32 %v519, %v519
  %v575 = vmul.f32 %v524, %v524
  %v576 = vmul.f32 %v527, %v527
  %v577 = vadd.f32 %v561, %v562
  %v578 = vadd.f32 %v577, %v563
  %v579 = vadd.f32 %v578, %v564
  %v580 = vadd.f32 %v579, %v565
  %v581 = vadd.f32 %v580, %v566
  %v582 = vadd.f32 %v581, %v567
  %v583 = vadd.f32 %v582, %v568
  %v584 = vadd.f32 %v583, %v569
  %v585 = vadd.f32 %v584, %v570
  %v586 = vadd.f32 %v585, %v571
  %v587 = vadd.f32 %v586, %v572
  %v588 = vadd.f32 %v587, %v573
  %v589 = vadd.f32 %v588, %v574
  %v590 = vadd.f32 %v589, %v575
  %v591 = vadd.f32 %v590, %v576
  %v592 = vrot.slane %v591, 4
  %v593 = vadd.f32 %v591, %v592
  %v594 = vrot.slane %v593, 2
  %v595 = vadd.f32 %v593, %v594
  %v596 = vrot.slane %v595, 1
  %v597 = vadd.f32 %v595, %v596
  %v598 = vadd.f32 %v560, %v597
  %599 = vst [vmem:[%s4] sm:$0x1] %v598
  %v600 = vpack.c.bf16 %v471, %v468
  %v601 = vpack.c.bf16 %v479, %v476
  %v602 = vpack.c.bf16 %v487, %v484
  %v603 = vpack.c.bf16 %v495, %v492
  %v604 = vpack.c.bf16 %v503, %v500
  %v605 = vpack.c.bf16 %v511, %v508
  %v606 = vpack.c.bf16 %v519, %v516
  %v607 = vpack.c.bf16 %v527, %v524
  %v616 = vunpack.c.l.b16 %v600
  %v617 = vunpack.c.h.b16 %v600
  %v618 = vunpack.c.l.b16 %v601
  %v619 = vunpack.c.h.b16 %v601
  %v620 = vunpack.c.l.b16 %v602
  %v621 = vunpack.c.h.b16 %v602
  %v622 = vunpack.c.l.b16 %v603
  %v623 = vunpack.c.h.b16 %v603
  %v624 = vunpack.c.l.b16 %v604
  %v625 = vunpack.c.h.b16 %v604
  %v626 = vunpack.c.l.b16 %v605
  %v627 = vunpack.c.h.b16 %v605
  %v628 = vunpack.c.l.b16 %v606
  %v629 = vunpack.c.h.b16 %v606
  %v630 = vunpack.c.l.b16 %v607
  %v631 = vunpack.c.h.b16 %v607
  %v632 = vpack.c.b16 %v616, %v616
  %v633 = vpack.c.b16 %v617, %v617
  %v634 = vpack.c.b16 %v618, %v618
  %v635 = vpack.c.b16 %v619, %v619
  %v636 = vpack.c.b16 %v620, %v620
  %v637 = vpack.c.b16 %v621, %v621
  %v638 = vpack.c.b16 %v622, %v622
  %v639 = vpack.c.b16 %v623, %v623
  %v640 = vpack.c.b16 %v624, %v624
  %v641 = vpack.c.b16 %v625, %v625
  %v642 = vpack.c.b16 %v626, %v626
  %v643 = vpack.c.b16 %v627, %v627
  %v644 = vpack.c.b16 %v628, %v628
  %v645 = vpack.c.b16 %v629, %v629
  %v646 = vpack.c.b16 %v630, %v630
  %v647 = vpack.c.b16 %v631, %v631
  %664 = vst [vmem:[%s2] sm:$0xf] %v632
  %665 = vst [vmem:[%s2 + $0x4] sm:$0xf] %v633
  %666 = vst [vmem:[%s2 + $0x8] sm:$0xf] %v634
  %667 = vst [vmem:[%s2 + $0xc] sm:$0xf] %v635
  %668 = vst [vmem:[%s2 + $0x10] sm:$0xf] %v636
  %669 = vst [vmem:[%s2 + $0x14] sm:$0xf] %v637
  %670 = vst [vmem:[%s2 + $0x18] sm:$0xf] %v638
  %671 = vst [vmem:[%s2 + $0x1c] sm:$0xf] %v639
  %672 = vst [vmem:[%s2 + $0x20] sm:$0xf] %v640
  %673 = vst [vmem:[%s2 + $0x24] sm:$0xf] %v641
  %674 = vst [vmem:[%s2 + $0x28] sm:$0xf] %v642
  %675 = vst [vmem:[%s2 + $0x2c] sm:$0xf] %v643
  %676 = vst [vmem:[%s2 + $0x30] sm:$0xf] %v644
  %677 = vst [vmem:[%s2 + $0x34] sm:$0xf] %v645
  %678 = vst [vmem:[%s2 + $0x38] sm:$0xf] %v646
  %679 = vst [vmem:[%s2 + $0x3c] sm:$0xf] %v647
  // Predicated region
  $region14: #{generator_forward.13} parent=0 // pred_check
    _
  $region15: #{generator_forward.13} parent=0 // pred_check_branch
    %681 = sbr.rel (0) target = $region17
  $region16: #{generator_forward.13} parent=0 // pred_region
    _
  $region17: #{generator_forward.13} parent=0 // pred_fallthru
    _
  // Predicated region
  $region18: #{generator_forward.13} parent=0 // pred_check
    _
  $region19: #{generator_forward.13} parent=0 // pred_check_branch
    %683 = sbr.rel (0) target = $region21
  $region20: #{generator_forward.13} parent=0 // pred_region
    _
  $region21: #{generator_forward.13} parent=0 // pred_fallthru
    _
  // Predicated region
  $region22: #{generator_forward.13} parent=0 // pred_check
    _
  $region23: #{generator_forward.13} parent=0 // pred_check_branch
    %685 = sbr.rel (0) target = $region25
  $region24: #{generator_forward.13} parent=0 // pred_region
    _
  $region25: #{generator_forward.13} parent=0 // pred_fallthru
    _
  // Predicated region
  $region26: #{generator_forward.13} parent=0 // pred_check
    _
  $region27: #{generator_forward.13} parent=0 // pred_check_branch
    %687 = sbr.rel (0) target = $region29
  $region28: #{generator_forward.13} parent=0 // pred_region
    _
  $region29: #{generator_forward.13} parent=0 // pred_fallthru
    _
  // Predicated region
  $region30: #{generator_forward.13} parent=0 // pred_check
    _
  $region31: #{generator_forward.13} parent=0 // pred_check_branch
    %689 = sbr.rel (0) target = $region33
  $region32: #{generator_forward.13} parent=0 // pred_region
    _
  $region33: #{generator_forward.13} parent=0 // pred_fallthru
    _
  // Predicated region
  $region34: #{generator_forward.13} parent=0 // pred_check
    _
  $region35: #{generator_forward.13} parent=0 // pred_check_branch
    %691 = sbr.rel (0) target = $region37
  $region36: #{generator_forward.13} parent=0 // pred_region
    _
  $region37: #{generator_forward.13} parent=0 // pred_fallthru
    _

// kernel: squeeze.122
$region0: #{squeeze.122}
  %s0 = inlined_call_operand.vmem [shape: f32[32], index: 0, kind: input, shape index: {}]
  %s1 = inlined_call_operand.vmem [shape: f32[4,8], index: 1, kind: output, shape index: {}]
  $region1: #{squeeze.122} parent=0
    #allocation0 [shape = 'u8[4096]{0}', space=vmem, size = 0x1000, scoped, tag = 'scoped mem for output reshape']
    #allocation1 [shape = 'u8[4096]{0}', space=vmem, size = 0x1000, scoped, tag = 'scoped mem for input reshape']
    %s3 = sshllo.u32 0, 1
    %v4 = vld [vmem:[%s0] sm:%s3]
    %5 = vst [vmem:[#allocation1] sm:%s3] %v4
    %v6 = vld [vmem:[#allocation1] sm:$0x1]
    %vm7 = vcmask 64512
    %8 = vst.msk [vmem:[#allocation0] sm:$0x1] %vm7, %v6
    %v9 = vld [vmem:[#allocation1] sm:$0x1]
    %10 = vrot.lane.b32.xlu0 %v9, 120
    %v11 = vpop.permute.xlu0 %10
    %vm12 = vcmask 64512
    %s13 = scalar_lea.vmem [#allocation0], 1
    %14 = vst.msk [vmem:[%s13] sm:$0x1] %vm12, %v11
    %v15 = vld [vmem:[#allocation1] sm:$0x1]
    %16 = vrot.lane.b32.xlu0 %v15, 112
    %v17 = vpop.permute.xlu0 %16
    %vm18 = vcmask 64512
    %s19 = scalar_lea.vmem [#allocation0], 2
    %20 = vst.msk [vmem:[%s19] sm:$0x1] %vm18, %v17
    %v21 = vld [vmem:[#allocation1] sm:$0x1]
    %22 = vrot.lane.b32.xlu0 %v21, 104
    %v23 = vpop.permute.xlu0 %22
    %vm24 = vcmask 64512
    %s25 = scalar_lea.vmem [#allocation0], 3
    %26 = vst.msk [vmem:[%s25] sm:$0x1] %vm24, %v23
    %s28 = sshllo.u32 0, 4
    %v30 = vld [vmem:[#allocation0] sm:%s28]
    %s31 = sshllo.u32 0, 4
    %32 = vst [vmem:[%s1] sm:%s31] %v30

// kernel: generator_forward.15
$region0: #{generator_forward.15}
  #allocation0 [shape = 'u32[]', space=smem, size = 0x4, offset = 0x4, fixed_abs, tag = 'smem constant byte address 0x4 - core index']
  #allocation1 [shape = 'u32[144,128]{1,0:T(1,128)}', space=vmem, size = 0x12000, scoped, tag = 'internal scratch']
  %s0 = inlined_call_operand.vmem [shape: bf16[512,144], index: 0, kind: input, shape index: {}]
  %s1 = inlined_call_operand.vmem [shape: bf16[144,128], index: 1, kind: input, shape index: {}]
  %s2 = inlined_call_operand.vmem [shape: bf16[512,128], index: 2, kind: output, shape index: {0}]
  %s3 = inlined_call_operand.vmem [shape: f32[1,128], index: 3, kind: output, shape index: {1}]
  %s4 = inlined_call_operand.vmem [shape: f32[1,128], index: 4, kind: output, shape index: {2}]
  %5 = xla_tuple %s2, %s3, %s4
  %s6 = sld [smem:[#allocation0]]
  $region38: #{generator_forward.15} parent=0
    _
  %s8 = ssub.s32 1, %s6
  %s9 = scalar_select 0, %s8, %s6
  // Predicated region
  $region2: #{generator_forward.15} parent=0 // pred_check
    _
  $region3: #{generator_forward.15} parent=0 // pred_check_branch
    %11 = sbr.rel (0) target = $region5
  $region4: #{generator_forward.15} parent=0 // pred_region
    _
  $region5: #{generator_forward.15} parent=0 // pred_fallthru
    _
  // Predicated region
  $region6: #{generator_forward.15} parent=0 // pred_check
    _
  $region7: #{generator_forward.15} parent=0 // pred_check_branch
    %13 = sbr.rel (0) target = $region9
  $region8: #{generator_forward.15} parent=0 // pred_region
    _
  $region9: #{generator_forward.15} parent=0 // pred_fallthru
    _
  %v15 = vld [vmem:[%s0] sm:$0xff]
  %v16 = vld [vmem:[%s0 + $0x8] sm:$0xff]
  %v17 = vld [vmem:[%s0 + $0x10] sm:$0xff]
  %v18 = vld [vmem:[%s0 + $0x18] sm:$0xff]
  %v19 = vld [vmem:[%s0 + $0x20] sm:$0xff]
  %v20 = vld [vmem:[%s0 + $0x28] sm:$0xff]
  %v21 = vld [vmem:[%s0 + $0x30] sm:$0xff]
  %v22 = vld [vmem:[%s0 + $0x38] sm:$0xff]
  %v23 = vld [vmem:[%s0 + $0x40] sm:$0xff]
  %v24 = vld [vmem:[%s0 + $0x48] sm:$0xff]
  %v25 = vld [vmem:[%s0 + $0x50] sm:$0xff]
  %v26 = vld [vmem:[%s0 + $0x58] sm:$0xff]
  %v27 = vld [vmem:[%s0 + $0x60] sm:$0xff]
  %v28 = vld [vmem:[%s0 + $0x68] sm:$0xff]
  %v29 = vld [vmem:[%s0 + $0x70] sm:$0xff]
  %v30 = vld [vmem:[%s0 + $0x78] sm:$0xff]
  %v31 = vld [vmem:[%s0 + $0x80] sm:$0xff]
  %v32 = vld [vmem:[%s0 + $0x88] sm:$0xff]
  %v33 = vld [vmem:[%s0 + $0x90] sm:$0xff]
  %v34 = vld [vmem:[%s0 + $0x98] sm:$0xff]
  %v35 = vld [vmem:[%s0 + $0xa0] sm:$0xff]
  %v36 = vld [vmem:[%s0 + $0xa8] sm:$0xff]
  %v37 = vld [vmem:[%s0 + $0xb0] sm:$0xff]
  %v38 = vld [vmem:[%s0 + $0xb8] sm:$0xff]
  %v39 = vld [vmem:[%s0 + $0xc0] sm:$0xff]
  %v40 = vld [vmem:[%s0 + $0xc8] sm:$0xff]
  %v41 = vld [vmem:[%s0 + $0xd0] sm:$0xff]
  %v42 = vld [vmem:[%s0 + $0xd8] sm:$0xff]
  %v43 = vld [vmem:[%s0 + $0xe0] sm:$0xff]
  %v44 = vld [vmem:[%s0 + $0xe8] sm:$0xff]
  %v45 = vld [vmem:[%s0 + $0xf0] sm:$0xff]
  %v46 = vld [vmem:[%s0 + $0xf8] sm:$0xff]
  %v47 = vld [vmem:[%s0 + $0x100] sm:$0xff]
  %v48 = vld [vmem:[%s0 + $0x108] sm:$0xff]
  %v49 = vld [vmem:[%s0 + $0x110] sm:$0xff]
  %v50 = vld [vmem:[%s0 + $0x118] sm:$0xff]
  %v51 = vld [vmem:[%s0 + $0x120] sm:$0xff]
  %v52 = vld [vmem:[%s0 + $0x128] sm:$0xff]
  %v53 = vld [vmem:[%s0 + $0x130] sm:$0xff]
  %v54 = vld [vmem:[%s0 + $0x138] sm:$0xff]
  %v55 = vld [vmem:[%s0 + $0x140] sm:$0xff]
  %v56 = vld [vmem:[%s0 + $0x148] sm:$0xff]
  %v57 = vld [vmem:[%s0 + $0x150] sm:$0xff]
  %v58 = vld [vmem:[%s0 + $0x158] sm:$0xff]
  %v59 = vld [vmem:[%s0 + $0x160] sm:$0xff]
  %v60 = vld [vmem:[%s0 + $0x168] sm:$0xff]
  %v61 = vld [vmem:[%s0 + $0x170] sm:$0xff]
  %v62 = vld [vmem:[%s0 + $0x178] sm:$0xff]
  %v63 = vld [vmem:[%s0 + $0x180] sm:$0xff]
  %v64 = vld [vmem:[%s0 + $0x188] sm:$0xff]
  %v65 = vld [vmem:[%s0 + $0x190] sm:$0xff]
  %v66 = vld [vmem:[%s0 + $0x198] sm:$0xff]
  %v67 = vld [vmem:[%s0 + $0x1a0] sm:$0xff]
  %v68 = vld [vmem:[%s0 + $0x1a8] sm:$0xff]
  %v69 = vld [vmem:[%s0 + $0x1b0] sm:$0xff]
  %v70 = vld [vmem:[%s0 + $0x1b8] sm:$0xff]
  %v71 = vld [vmem:[%s0 + $0x1c0] sm:$0xff]
  %v72 = vld [vmem:[%s0 + $0x1c8] sm:$0xff]
  %v73 = vld [vmem:[%s0 + $0x1d0] sm:$0xff]
  %v74 = vld [vmem:[%s0 + $0x1d8] sm:$0xff]
  %v75 = vld [vmem:[%s0 + $0x1e0] sm:$0xff]
  %v76 = vld [vmem:[%s0 + $0x1e8] sm:$0xff]
  %v77 = vld [vmem:[%s0 + $0x1f0] sm:$0xff]
  %v78 = vld [vmem:[%s0 + $0x1f8] sm:$0xff]
  %v79 = vld [vmem:[%s1] sm:$0xf]
  %v80 = vld [vmem:[%s1 + $0x4] sm:$0xf]
  %v81 = vld [vmem:[%s1 + $0x8] sm:$0xf]
  %v82 = vld [vmem:[%s1 + $0xc] sm:$0xf]
  %v83 = vld [vmem:[%s1 + $0x10] sm:$0xf]
  %v84 = vld [vmem:[%s1 + $0x14] sm:$0xf]
  %v85 = vld [vmem:[%s1 + $0x18] sm:$0xf]
  %v86 = vld [vmem:[%s1 + $0x1c] sm:$0xf]
  %v87 = vld [vmem:[%s1 + $0x20] sm:$0xf]
  %v88 = vld [vmem:[%s1 + $0x24] sm:$0xf]
  %v89 = vld [vmem:[%s1 + $0x28] sm:$0xf]
  %v90 = vld [vmem:[%s1 + $0x2c] sm:$0xf]
  %v91 = vld [vmem:[%s1 + $0x30] sm:$0xf]
  %v92 = vld [vmem:[%s1 + $0x34] sm:$0xf]
  %v93 = vld [vmem:[%s1 + $0x38] sm:$0xf]
  %v94 = vld [vmem:[%s1 + $0x3c] sm:$0xf]
  %v95 = vld [vmem:[%s1 + $0x40] sm:$0xf]
  %v96 = vld [vmem:[%s1 + $0x44] sm:$0xf]
  %v161 = vunpack.c.l.b16 %v15
  %v162 = vunpack.c.h.b16 %v15
  %v163 = vunpack.c.l.b16 %v16
  %v164 = vunpack.c.h.b16 %v16
  %v165 = vunpack.c.l.b16 %v17
  %v166 = vunpack.c.h.b16 %v17
  %v167 = vunpack.c.l.b16 %v18
  %v168 = vunpack.c.h.b16 %v18
  %v169 = vunpack.c.l.b16 %v19
  %v170 = vunpack.c.h.b16 %v19
  %v171 = vunpack.c.l.b16 %v20
  %v172 = vunpack.c.h.b16 %v20
  %v173 = vunpack.c.l.b16 %v21
  %v174 = vunpack.c.h.b16 %v21
  %v175 = vunpack.c.l.b16 %v22
  %v176 = vunpack.c.h.b16 %v22
  %v177 = vunpack.c.l.b16 %v23
  %v178 = vunpack.c.h.b16 %v23
  %v179 = vunpack.c.l.b16 %v24
  %v180 = vunpack.c.h.b16 %v24
  %v181 = vunpack.c.l.b16 %v25
  %v182 = vunpack.c.h.b16 %v25
  %v183 = vunpack.c.l.b16 %v26
  %v184 = vunpack.c.h.b16 %v26
  %v185 = vunpack.c.l.b16 %v27
  %v186 = vunpack.c.h.b16 %v27
  %v187 = vunpack.c.l.b16 %v28
  %v188 = vunpack.c.h.b16 %v28
  %v189 = vunpack.c.l.b16 %v29
  %v190 = vunpack.c.h.b16 %v29
  %v191 = vunpack.c.l.b16 %v30
  %v192 = vunpack.c.h.b16 %v30
  %v193 = vunpack.c.l.b16 %v31
  %v194 = vunpack.c.h.b16 %v31
  %v195 = vunpack.c.l.b16 %v32
  %v196 = vunpack.c.h.b16 %v32
  %v197 = vunpack.c.l.b16 %v33
  %v198 = vunpack.c.h.b16 %v33
  %v199 = vunpack.c.l.b16 %v34
  %v200 = vunpack.c.h.b16 %v34
  %v201 = vunpack.c.l.b16 %v35
  %v202 = vunpack.c.h.b16 %v35
  %v203 = vunpack.c.l.b16 %v36
  %v204 = vunpack.c.h.b16 %v36
  %v205 = vunpack.c.l.b16 %v37
  %v206 = vunpack.c.h.b16 %v37
  %v207 = vunpack.c.l.b16 %v38
  %v208 = vunpack.c.h.b16 %v38
  %v209 = vunpack.c.l.b16 %v39
  %v210 = vunpack.c.h.b16 %v39
  %v211 = vunpack.c.l.b16 %v40
  %v212 = vunpack.c.h.b16 %v40
  %v213 = vunpack.c.l.b16 %v41
  %v214 = vunpack.c.h.b16 %v41
  %v215 = vunpack.c.l.b16 %v42
  %v216 = vunpack.c.h.b16 %v42
  %v217 = vunpack.c.l.b16 %v43
  %v218 = vunpack.c.h.b16 %v43
  %v219 = vunpack.c.l.b16 %v44
  %v220 = vunpack.c.h.b16 %v44
  %v221 = vunpack.c.l.b16 %v45
  %v222 = vunpack.c.h.b16 %v45
  %v223 = vunpack.c.l.b16 %v46
  %v224 = vunpack.c.h.b16 %v46
  %v225 = vunpack.c.l.b16 %v47
  %v226 = vunpack.c.h.b16 %v47
  %v227 = vunpack.c.l.b16 %v48
  %v228 = vunpack.c.h.b16 %v48
  %v229 = vunpack.c.l.b16 %v49
  %v230 = vunpack.c.h.b16 %v49
  %v231 = vunpack.c.l.b16 %v50
  %v232 = vunpack.c.h.b16 %v50
  %v233 = vunpack.c.l.b16 %v51
  %v234 = vunpack.c.h.b16 %v51
  %v235 = vunpack.c.l.b16 %v52
  %v236 = vunpack.c.h.b16 %v52
  %v237 = vunpack.c.l.b16 %v53
  %v238 = vunpack.c.h.b16 %v53
  %v239 = vunpack.c.l.b16 %v54
  %v240 = vunpack.c.h.b16 %v54
  %v241 = vunpack.c.l.b16 %v55
  %v242 = vunpack.c.h.b16 %v55
  %v243 = vunpack.c.l.b16 %v56
  %v244 = vunpack.c.h.b16 %v56
  %v245 = vunpack.c.l.b16 %v57
  %v246 = vunpack.c.h.b16 %v57
  %v247 = vunpack.c.l.b16 %v58
  %v248 = vunpack.c.h.b16 %v58
  %v249 = vunpack.c.l.b16 %v59
  %v250 = vunpack.c.h.b16 %v59
  %v251 = vunpack.c.l.b16 %v60
  %v252 = vunpack.c.h.b16 %v60
  %v253 = vunpack.c.l.b16 %v61
  %v254 = vunpack.c.h.b16 %v61
  %v255 = vunpack.c.l.b16 %v62
  %v256 = vunpack.c.h.b16 %v62
  %v257 = vunpack.c.l.b16 %v63
  %v258 = vunpack.c.h.b16 %v63
  %v259 = vunpack.c.l.b16 %v64
  %v260 = vunpack.c.h.b16 %v64
  %v261 = vunpack.c.l.b16 %v65
  %v262 = vunpack.c.h.b16 %v65
  %v263 = vunpack.c.l.b16 %v66
  %v264 = vunpack.c.h.b16 %v66
  %v265 = vunpack.c.l.b16 %v67
  %v266 = vunpack.c.h.b16 %v67
  %v267 = vunpack.c.l.b16 %v68
  %v268 = vunpack.c.h.b16 %v68
  %v269 = vunpack.c.l.b16 %v69
  %v270 = vunpack.c.h.b16 %v69
  %v271 = vunpack.c.l.b16 %v70
  %v272 = vunpack.c.h.b16 %v70
  %v273 = vunpack.c.l.b16 %v71
  %v274 = vunpack.c.h.b16 %v71
  %v275 = vunpack.c.l.b16 %v72
  %v276 = vunpack.c.h.b16 %v72
  %v277 = vunpack.c.l.b16 %v73
  %v278 = vunpack.c.h.b16 %v73
  %v279 = vunpack.c.l.b16 %v74
  %v280 = vunpack.c.h.b16 %v74
  %v281 = vunpack.c.l.b16 %v75
  %v282 = vunpack.c.h.b16 %v75
  %v283 = vunpack.c.l.b16 %v76
  %v284 = vunpack.c.h.b16 %v76
  %v285 = vunpack.c.l.b16 %v77
  %v286 = vunpack.c.h.b16 %v77
  %v287 = vunpack.c.l.b16 %v78
  %v288 = vunpack.c.h.b16 %v78
  %v289 = vpack.c.b16 %v163, %v161
  %v290 = vpack.c.b16 %v164, %v162
  %v291 = vpack.c.b16 %v167, %v165
  %v292 = vpack.c.b16 %v168, %v166
  %v293 = vpack.c.b16 %v171, %v169
  %v294 = vpack.c.b16 %v172, %v170
  %v295 = vpack.c.b16 %v175, %v173
  %v296 = vpack.c.b16 %v176, %v174
  %v297 = vpack.c.b16 %v179, %v177
  %v298 = vpack.c.b16 %v180, %v178
  %v299 = vpack.c.b16 %v183, %v181
  %v300 = vpack.c.b16 %v184, %v182
  %v301 = vpack.c.b16 %v187, %v185
  %v302 = vpack.c.b16 %v188, %v186
  %v303 = vpack.c.b16 %v191, %v189
  %v304 = vpack.c.b16 %v192, %v190
  %v305 = vpack.c.b16 %v195, %v193
  %v306 = vpack.c.b16 %v196, %v194
  %v307 = vpack.c.b16 %v199, %v197
  %v308 = vpack.c.b16 %v200, %v198
  %v309 = vpack.c.b16 %v203, %v201
  %v310 = vpack.c.b16 %v204, %v202
  %v311 = vpack.c.b16 %v207, %v205
  %v312 = vpack.c.b16 %v208, %v206
  %v313 = vpack.c.b16 %v211, %v209
  %v314 = vpack.c.b16 %v212, %v210
  %v315 = vpack.c.b16 %v215, %v213
  %v316 = vpack.c.b16 %v216, %v214
  %v317 = vpack.c.b16 %v219, %v217
  %v318 = vpack.c.b16 %v220, %v218
  %v319 = vpack.c.b16 %v223, %v221
  %v320 = vpack.c.b16 %v224, %v222
  %v321 = vpack.c.b16 %v227, %v225
  %v322 = vpack.c.b16 %v228, %v226
  %v323 = vpack.c.b16 %v231, %v229
  %v324 = vpack.c.b16 %v232, %v230
  %v325 = vpack.c.b16 %v235, %v233
  %v326 = vpack.c.b16 %v236, %v234
  %v327 = vpack.c.b16 %v239, %v237
  %v328 = vpack.c.b16 %v240, %v238
  %v329 = vpack.c.b16 %v243, %v241
  %v330 = vpack.c.b16 %v244, %v242
  %v331 = vpack.c.b16 %v247, %v245
  %v332 = vpack.c.b16 %v248, %v246
  %v333 = vpack.c.b16 %v251, %v249
  %v334 = vpack.c.b16 %v252, %v250
  %v335 = vpack.c.b16 %v255, %v253
  %v336 = vpack.c.b16 %v256, %v254
  %v337 = vpack.c.b16 %v259, %v257
  %v338 = vpack.c.b16 %v260, %v258
  %v339 = vpack.c.b16 %v263, %v261
  %v340 = vpack.c.b16 %v264, %v262
  %v341 = vpack.c.b16 %v267, %v265
  %v342 = vpack.c.b16 %v268, %v266
  %v343 = vpack.c.b16 %v271, %v269
  %v344 = vpack.c.b16 %v272, %v270
  %v345 = vpack.c.b16 %v275, %v273
  %v346 = vpack.c.b16 %v276, %v274
  %v347 = vpack.c.b16 %v279, %v277
  %v348 = vpack.c.b16 %v280, %v278
  %v349 = vpack.c.b16 %v283, %v281
  %v350 = vpack.c.b16 %v284, %v282
  %v351 = vpack.c.b16 %v287, %v285
  %v352 = vpack.c.b16 %v288, %v286
  %v403 = vunpack.c.l.b16 %v79
  %v404 = vunpack.c.l.b16 %v80
  %v405 = vunpack.c.l.b16 %v81
  %v406 = vunpack.c.l.b16 %v82
  %v407 = vunpack.c.l.b16 %v83
  %v408 = vunpack.c.l.b16 %v84
  %v409 = vunpack.c.l.b16 %v85
  %v410 = vunpack.c.l.b16 %v86
  %v411 = vunpack.c.l.b16 %v87
  %v412 = vunpack.c.l.b16 %v88
  %v413 = vunpack.c.l.b16 %v89
  %v414 = vunpack.c.l.b16 %v90
  %v415 = vunpack.c.l.b16 %v91
  %v416 = vunpack.c.l.b16 %v92
  %v417 = vunpack.c.l.b16 %v93
  %v418 = vunpack.c.l.b16 %v94
  %v419 = vunpack.c.l.b16 %v95
  %v420 = vunpack.c.l.b16 %v96
  %v421 = vpack.c.b16 %v404, %v403
  %v422 = vpack.c.b16 %v406, %v405
  %v423 = vpack.c.b16 %v408, %v407
  %v424 = vpack.c.b16 %v410, %v409
  %v425 = vpack.c.b16 %v412, %v411
  %v426 = vpack.c.b16 %v414, %v413
  %v427 = vpack.c.b16 %v416, %v415
  %v428 = vpack.c.b16 %v418, %v417
  %v429 = vpack.c.b16 %v420, %v419
  %vm439 = vcmask 130048
  %v441 = vsel %vm439, %v290, 0
  %v444 = vsel %vm439, %v292, 0
  %v447 = vsel %vm439, %v294, 0
  %v450 = vsel %vm439, %v296, 0
  %v453 = vsel %vm439, %v298, 0
  %v456 = vsel %vm439, %v300, 0
  %v459 = vsel %vm439, %v302, 0
  %v462 = vsel %vm439, %v304, 0
  %v465 = vsel %vm439, %v306, 0
  %v468 = vsel %vm439, %v308, 0
  %v471 = vsel %vm439, %v310, 0
  %v474 = vsel %vm439, %v312, 0
  %v477 = vsel %vm439, %v314, 0
  %v480 = vsel %vm439, %v316, 0
  %v483 = vsel %vm439, %v318, 0
  %v486 = vsel %vm439, %v320, 0
  %v489 = vsel %vm439, %v322, 0
  %v492 = vsel %vm439, %v324, 0
  %v495 = vsel %vm439, %v326, 0
  %v498 = vsel %vm439, %v328, 0
  %v501 = vsel %vm439, %v330, 0
  %v504 = vsel %vm439, %v332, 0
  %v507 = vsel %vm439, %v334, 0
  %v510 = vsel %vm439, %v336, 0
  %v513 = vsel %vm439, %v338, 0
  %v516 = vsel %vm439, %v340, 0
  %v519 = vsel %vm439, %v342, 0
  %v522 = vsel %vm439, %v344, 0
  %v525 = vsel %vm439, %v346, 0
  %v528 = vsel %vm439, %v348, 0
  %v531 = vsel %vm439, %v350, 0
  %v534 = vsel %vm439, %v352, 0
  %536 = vmatprep.subr.bf16.mxu0 0
  %537 = vmatpush1.bf16.msra.mxu0 %v421
  %538 = vmatprep.subr.bf16.mxu0 0
  %539 = vmatpush1.bf16.msra.mxu0 %v422
  %540 = vmatprep.subr.bf16.mxu0 0
  %541 = vmatpush1.bf16.msra.mxu0 %v423
  %542 = vmatprep.subr.bf16.mxu0 0
  %543 = vmatpush1.bf16.msra.mxu0 %v424
  %544 = vmatprep.subr.bf16.mxu0 0
  %545 = vmatpush1.bf16.msra.mxu0 %v425
  %546 = vmatprep.subr.bf16.mxu0 0
  %547 = vmatpush1.bf16.msra.mxu0 %v426
  %548 = vmatprep.subr.bf16.mxu0 0
  %549 = vmatpush1.bf16.msra.mxu0 %v427
  %550 = vmatprep.subr.bf16.mxu0 0
  %551 = vmatpush1.bf16.msra.mxu0 %v428
  %552 = vmatprep.subr.bf16.mxu0 0
  %553 = vmatpush1.bf16.msra.mxu0 %v429
  %554 = vmatprep.subr.bf16.mxu0 0
  %555 = vmatpush1.bf16.msra.mxu0 0
  %556 = vmatprep.subr.bf16.mxu0 0
  %557 = vmatpush1.bf16.msra.mxu0 0
  %558 = vmatprep.subr.bf16.mxu0 0
  %559 = vmatpush1.bf16.msra.mxu0 0
  %560 = vmatprep.subr.bf16.mxu0 0
  %561 = vmatpush1.bf16.msra.mxu0 0
  %562 = vmatprep.subr.bf16.mxu0 0
  %563 = vmatpush1.bf16.msra.mxu0 0
  %564 = vmatprep.subr.bf16.mxu0 0
  %565 = vmatpush1.bf16.msra.mxu0 0
  %566 = vmatprep.subr.bf16.mxu0 0
  %567 = vmatpush1.bf16.msra.mxu0 0
  %568 = vmatprep.mubr.bf16.mxu0 %v441
  %569 = vmatmul.mubr.bf16.gmra.mrb[0].mxu0 %v289
  %v570 = vpop.f32.mrb[0].mxu0
  %v571 = vadd.f32 0.0, %v570
  %v572 = vpop.f32.mrb[0].mxu0
  %v573 = vpop.f32.mrb[0].mxu0
  %v574 = vadd.f32 0.0, %v573
  %v575 = vpop.f32.mrb[0].mxu0
  %576 = vmatprep.mubr.bf16.mxu0 %v444
  %577 = vmatmul.mubr.bf16.gmra.mrb[0].mxu0 %v291
  %v578 = vpop.f32.mrb[0].mxu0
  %v579 = vadd.f32 0.0, %v578
  %v580 = vpop.f32.mrb[0].mxu0
  %v581 = vpop.f32.mrb[0].mxu0
  %v582 = vadd.f32 0.0, %v581
  %v583 = vpop.f32.mrb[0].mxu0
  %584 = vmatprep.mubr.bf16.mxu0 %v447
  %585 = vmatmul.mubr.bf16.gmra.mrb[0].mxu0 %v293
  %v586 = vpop.f32.mrb[0].mxu0
  %v587 = vadd.f32 0.0, %v586
  %v588 = vpop.f32.mrb[0].mxu0
  %v589 = vpop.f32.mrb[0].mxu0
  %v590 = vadd.f32 0.0, %v589
  %v591 = vpop.f32.mrb[0].mxu0
  %592 = vmatprep.mubr.bf16.mxu0 %v450
  %593 = vmatmul.mubr.bf16.gmra.mrb[0].mxu0 %v295
  %v594 = vpop.f32.mrb[0].mxu0
  %v595 = vadd.f32 0.0, %v594
  %v596 = vpop.f32.mrb[0].mxu0
  %v597 = vpop.f32.mrb[0].mxu0
  %v598 = vadd.f32 0.0, %v597
  %v599 = vpop.f32.mrb[0].mxu0
  %600 = vmatprep.mubr.bf16.mxu0 %v453
  %601 = vmatmul.mubr.bf16.gmra.mrb[0].mxu0 %v297
  %v602 = vpop.f32.mrb[0].mxu0
  %v603 = vadd.f32 0.0, %v602
  %v604 = vpop.f32.mrb[0].mxu0
  %v605 = vpop.f32.mrb[0].mxu0
  %v606 = vadd.f32 0.0, %v605
  %v607 = vpop.f32.mrb[0].mxu0
  %608 = vmatprep.mubr.bf16.mxu0 %v456
  %609 = vmatmul.mubr.bf16.gmra.mrb[0].mxu0 %v299
  %v610 = vpop.f32.mrb[0].mxu0
  %v611 = vadd.f32 0.0, %v610
  %v612 = vpop.f32.mrb[0].mxu0
  %v613 = vpop.f32.mrb[0].mxu0
  %v614 = vadd.f32 0.0, %v613
  %v615 = vpop.f32.mrb[0].mxu0
  %616 = vmatprep.mubr.bf16.mxu0 %v459
  %617 = vmatmul.mubr.bf16.gmra.mrb[0].mxu0 %v301
  %v618 = vpop.f32.mrb[0].mxu0
  %v619 = vadd.f32 0.0, %v618
  %v620 = vpop.f32.mrb[0].mxu0
  %v621 = vpop.f32.mrb[0].mxu0
  %v622 = vadd.f32 0.0, %v621
  %v623 = vpop.f32.mrb[0].mxu0
  %624 = vmatprep.mubr.bf16.mxu0 %v462
  %625 = vmatmul.mubr.bf16.gmra.mrb[0].mxu0 %v303
  %v626 = vpop.f32.mrb[0].mxu0
  %v627 = vadd.f32 0.0, %v626
  %v628 = vpop.f32.mrb[0].mxu0
  %v629 = vpop.f32.mrb[0].mxu0
  %v630 = vadd.f32 0.0, %v629
  %v631 = vpop.f32.mrb[0].mxu0
  %632 = vmatprep.mubr.bf16.mxu0 %v465
  %633 = vmatmul.mubr.bf16.gmra.mrb[0].mxu0 %v305
  %v634 = vpop.f32.mrb[0].mxu0
  %v635 = vadd.f32 0.0, %v634
  %v636 = vpop.f32.mrb[0].mxu0
  %v637 = vpop.f32.mrb[0].mxu0
  %v638 = vadd.f32 0.0, %v637
  %v639 = vpop.f32.mrb[0].mxu0
  %640 = vmatprep.mubr.bf16.mxu0 %v468
  %641 = vmatmul.mubr.bf16.gmra.mrb[0].mxu0 %v307
  %v642 = vpop.f32.mrb[0].mxu0
  %v643 = vadd.f32 0.0, %v642
  %v644 = vpop.f32.mrb[0].mxu0
  %v645 = vpop.f32.mrb[0].mxu0
  %v646 = vadd.f32 0.0, %v645
  %v647 = vpop.f32.mrb[0].mxu0
  %648 = vmatprep.mubr.bf16.mxu0 %v471
  %649 = vmatmul.mubr.bf16.gmra.mrb[0].mxu0 %v309
  %v650 = vpop.f32.mrb[0].mxu0
  %v651 = vadd.f32 0.0, %v650
  %v652 = vpop.f32.mrb[0].mxu0
  %v653 = vpop.f32.mrb[0].mxu0
  %v654 = vadd.f32 0.0, %v653
  %v655 = vpop.f32.mrb[0].mxu0
  %656 = vmatprep.mubr.bf16.mxu0 %v474
  %657 = vmatmul.mubr.bf16.gmra.mrb[0].mxu0 %v311
  %v658 = vpop.f32.mrb[0].mxu0
  %v659 = vadd.f32 0.0, %v658
  %v660 = vpop.f32.mrb[0].mxu0
  %v661 = vpop.f32.mrb[0].mxu0
  %v662 = vadd.f32 0.0, %v661
  %v663 = vpop.f32.mrb[0].mxu0
  %664 = vmatprep.mubr.bf16.mxu0 %v477
  %665 = vmatmul.mubr.bf16.gmra.mrb[0].mxu0 %v313
  %v666 = vpop.f32.mrb[0].mxu0
  %v667 = vadd.f32 0.0, %v666
  %v668 = vpop.f32.mrb[0].mxu0
  %v669 = vpop.f32.mrb[0].mxu0
  %v670 = vadd.f32 0.0, %v669
  %v671 = vpop.f32.mrb[0].mxu0
  %672 = vmatprep.mubr.bf16.mxu0 %v480
  %673 = vmatmul.mubr.bf16.gmra.mrb[0].mxu0 %v315
  %v674 = vpop.f32.mrb[0].mxu0
  %v675 = vadd.f32 0.0, %v674
  %v676 = vpop.f32.mrb[0].mxu0
  %v677 = vpop.f32.mrb[0].mxu0
  %v678 = vadd.f32 0.0, %v677
  %v679 = vpop.f32.mrb[0].mxu0
  %680 = vmatprep.mubr.bf16.mxu0 %v483
  %681 = vmatmul.mubr.bf16.gmra.mrb[0].mxu0 %v317
  %v682 = vpop.f32.mrb[0].mxu0
  %v683 = vadd.f32 0.0, %v682
  %v684 = vpop.f32.mrb[0].mxu0
  %v685 = vpop.f32.mrb[0].mxu0
  %v686 = vadd.f32 0.0, %v685
  %v687 = vpop.f32.mrb[0].mxu0
  %688 = vmatprep.mubr.bf16.mxu0 %v486
  %689 = vmatmul.mubr.bf16.gmra.mrb[0].mxu0 %v319
  %v690 = vpop.f32.mrb[0].mxu0
  %v691 = vadd.f32 0.0, %v690
  %v692 = vpop.f32.mrb[0].mxu0
  %v693 = vpop.f32.mrb[0].mxu0
  %v694 = vadd.f32 0.0, %v693
  %v695 = vpop.f32.mrb[0].mxu0
  %696 = vmatprep.mubr.bf16.mxu0 %v489
  %697 = vmatmul.mubr.bf16.gmra.mrb[0].mxu0 %v321
  %v698 = vpop.f32.mrb[0].mxu0
  %v699 = vadd.f32 0.0, %v698
  %v700 = vpop.f32.mrb[0].mxu0
  %v701 = vpop.f32.mrb[0].mxu0
  %v702 = vadd.f32 0.0, %v701
  %v703 = vpop.f32.mrb[0].mxu0
  %704 = vmatprep.mubr.bf16.mxu0 %v492
  %705 = vmatmul.mubr.bf16.gmra.mrb[0].mxu0 %v323
  %v706 = vpop.f32.mrb[0].mxu0
  %v707 = vadd.f32 0.0, %v706
  %v708 = vpop.f32.mrb[0].mxu0
  %v709 = vpop.f32.mrb[0].mxu0
  %v710 = vadd.f32 0.0, %v709
  %v711 = vpop.f32.mrb[0].mxu0
  %712 = vmatprep.mubr.bf16.mxu0 %v495
  %713 = vmatmul.mubr.bf16.gmra.mrb[0].mxu0 %v325
  %v714 = vpop.f32.mrb[0].mxu0
  %v715 = vadd.f32 0.0, %v714
  %v716 = vpop.f32.mrb[0].mxu0
  %v717 = vpop.f32.mrb[0].mxu0
  %v718 = vadd.f32 0.0, %v717
  %v719 = vpop.f32.mrb[0].mxu0
  %720 = vmatprep.mubr.bf16.mxu0 %v498
  %721 = vmatmul.mubr.bf16.gmra.mrb[0].mxu0 %v327
  %v722 = vpop.f32.mrb[0].mxu0
  %v723 = vadd.f32 0.0, %v722
  %v724 = vpop.f32.mrb[0].mxu0
  %v725 = vpop.f32.mrb[0].mxu0
  %v726 = vadd.f32 0.0, %v725
  %v727 = vpop.f32.mrb[0].mxu0
  %728 = vmatprep.mubr.bf16.mxu0 %v501
  %729 = vmatmul.mubr.bf16.gmra.mrb[0].mxu0 %v329
  %v730 = vpop.f32.mrb[0].mxu0
  %v731 = vadd.f32 0.0, %v730
  %v732 = vpop.f32.mrb[0].mxu0
  %v733 = vpop.f32.mrb[0].mxu0
  %v734 = vadd.f32 0.0, %v733
  %v735 = vpop.f32.mrb[0].mxu0
  %736 = vmatprep.mubr.bf16.mxu0 %v504
  %737 = vmatmul.mubr.bf16.gmra.mrb[0].mxu0 %v331
  %v738 = vpop.f32.mrb[0].mxu0
  %v739 = vadd.f32 0.0, %v738
  %v740 = vpop.f32.mrb[0].mxu0
  %v741 = vpop.f32.mrb[0].mxu0
  %v742 = vadd.f32 0.0, %v741
  %v743 = vpop.f32.mrb[0].mxu0
  %744 = vmatprep.mubr.bf16.mxu0 %v507
  %745 = vmatmul.mubr.bf16.gmra.mrb[0].mxu0 %v333
  %v746 = vpop.f32.mrb[0].mxu0
  %v747 = vadd.f32 0.0, %v746
  %v748 = vpop.f32.mrb[0].mxu0
  %v749 = vpop.f32.mrb[0].mxu0
  %v750 = vadd.f32 0.0, %v749
  %v751 = vpop.f32.mrb[0].mxu0
  %752 = vmatprep.mubr.bf16.mxu0 %v510
  %753 = vmatmul.mubr.bf16.gmra.mrb[0].mxu0 %v335
  %v754 = vpop.f32.mrb[0].mxu0
  %v755 = vadd.f32 0.0, %v754
  %v756 = vpop.f32.mrb[0].mxu0
  %v757 = vpop.f32.mrb[0].mxu0
  %v758 = vadd.f32 0.0, %v757
  %v759 = vpop.f32.mrb[0].mxu0
  %760 = vmatprep.mubr.bf16.mxu0 %v513
  %761 = vmatmul.mubr.bf16.gmra.mrb[0].mxu0 %v337
  %v762 = vpop.f32.mrb[0].mxu0
  %v763 = vadd.f32 0.0, %v762
  %v764 = vpop.f32.mrb[0].mxu0
  %v765 = vpop.f32.mrb[0].mxu0
  %v766 = vadd.f32 0.0, %v765
  %v767 = vpop.f32.mrb[0].mxu0
  %768 = vmatprep.mubr.bf16.mxu0 %v516
  %769 = vmatmul.mubr.bf16.gmra.mrb[0].mxu0 %v339
  %v770 = vpop.f32.mrb[0].mxu0
  %v771 = vadd.f32 0.0, %v770
  %v772 = vpop.f32.mrb[0].mxu0
  %v773 = vpop.f32.mrb[0].mxu0
  %v774 = vadd.f32 0.0, %v773
  %v775 = vpop.f32.mrb[0].mxu0
  %776 = vmatprep.mubr.bf16.mxu0 %v519
  %777 = vmatmul.mubr.bf16.gmra.mrb[0].mxu0 %v341
  %v778 = vpop.f32.mrb[0].mxu0
  %v779 = vadd.f32 0.0, %v778
  %v780 = vpop.f32.mrb[0].mxu0
  %v781 = vpop.f32.mrb[0].mxu0
  %v782 = vadd.f32 0.0, %v781
  %v783 = vpop.f32.mrb[0].mxu0
  %784 = vmatprep.mubr.bf16.mxu0 %v522
  %785 = vmatmul.mubr.bf16.gmra.mrb[0].mxu0 %v343
  %v786 = vpop.f32.mrb[0].mxu0
  %v787 = vadd.f32 0.0, %v786
  %v788 = vpop.f32.mrb[0].mxu0
  %v789 = vpop.f32.mrb[0].mxu0
  %v790 = vadd.f32 0.0, %v789
  %v791 = vpop.f32.mrb[0].mxu0
  %792 = vmatprep.mubr.bf16.mxu0 %v525
  %793 = vmatmul.mubr.bf16.gmra.mrb[0].mxu0 %v345
  %v794 = vpop.f32.mrb[0].mxu0
  %v795 = vadd.f32 0.0, %v794
  %v796 = vpop.f32.mrb[0].mxu0
  %v797 = vpop.f32.mrb[0].mxu0
  %v798 = vadd.f32 0.0, %v797
  %v799 = vpop.f32.mrb[0].mxu0
  %800 = vmatprep.mubr.bf16.mxu0 %v528
  %801 = vmatmul.mubr.bf16.gmra.mrb[0].mxu0 %v347
  %v802 = vpop.f32.mrb[0].mxu0
  %v803 = vadd.f32 0.0, %v802
  %v804 = vpop.f32.mrb[0].mxu0
  %v805 = vpop.f32.mrb[0].mxu0
  %v806 = vadd.f32 0.0, %v805
  %v807 = vpop.f32.mrb[0].mxu0
  %808 = vmatprep.mubr.bf16.mxu0 %v531
  %809 = vmatmul.mubr.bf16.gmra.mrb[0].mxu0 %v349
  %v810 = vpop.f32.mrb[0].mxu0
  %v811 = vadd.f32 0.0, %v810
  %v812 = vpop.f32.mrb[0].mxu0
  %v813 = vpop.f32.mrb[0].mxu0
  %v814 = vadd.f32 0.0, %v813
  %v815 = vpop.f32.mrb[0].mxu0
  %816 = vmatprep.mubr.bf16.mxu0 %v534
  %817 = vmatmul.mubr.bf16.gmra.mrb[0].mxu0 %v351
  %v818 = vpop.f32.mrb[0].mxu0
  %v819 = vadd.f32 0.0, %v818
  %v820 = vpop.f32.mrb[0].mxu0
  %v821 = vpop.f32.mrb[0].mxu0
  %v822 = vadd.f32 0.0, %v821
  %v823 = vpop.f32.mrb[0].mxu0
  %824 = vdwg.mxu0
  %p825 = scmp.eq.s32.totalorder 0, 0
  // Predicated region
  $region10: #{generator_forward.15} parent=0 // pred_check
    %p826 = pneg %p825
  $region11: #{generator_forward.15} parent=0 // pred_check_branch
    %828 = sbr.rel (%p826) target = $region13
  $region12: #{generator_forward.15} parent=0 // pred_region
    %829 = vst [vmem:[%s3] sm:$0x1] 0.0
    %830 = vst [vmem:[%s4] sm:$0x1] 0.0
  $region13: #{generator_forward.15} parent=0 // pred_fallthru
    _
  %v831 = vld [vmem:[%s3] sm:$0x1]
  %v832 = vadd.f32 %v571, %v574
  %v833 = vadd.f32 %v832, %v579
  %v834 = vadd.f32 %v833, %v582
  %v835 = vadd.f32 %v834, %v587
  %v836 = vadd.f32 %v835, %v590
  %v837 = vadd.f32 %v836, %v595
  %v838 = vadd.f32 %v837, %v598
  %v839 = vadd.f32 %v838, %v603
  %v840 = vadd.f32 %v839, %v606
  %v841 = vadd.f32 %v840, %v611
  %v842 = vadd.f32 %v841, %v614
  %v843 = vadd.f32 %v842, %v619
  %v844 = vadd.f32 %v843, %v622
  %v845 = vadd.f32 %v844, %v627
  %v846 = vadd.f32 %v845, %v630
  %v847 = vadd.f32 %v846, %v635
  %v848 = vadd.f32 %v847, %v638
  %v849 = vadd.f32 %v848, %v643
  %v850 = vadd.f32 %v849, %v646
  %v851 = vadd.f32 %v850, %v651
  %v852 = vadd.f32 %v851, %v654
  %v853 = vadd.f32 %v852, %v659
  %v854 = vadd.f32 %v853, %v662
  %v855 = vadd.f32 %v854, %v667
  %v856 = vadd.f32 %v855, %v670
  %v857 = vadd.f32 %v856, %v675
  %v858 = vadd.f32 %v857, %v678
  %v859 = vadd.f32 %v858, %v683
  %v860 = vadd.f32 %v859, %v686
  %v861 = vadd.f32 %v860, %v691
  %v862 = vadd.f32 %v861, %v694
  %v863 = vadd.f32 %v862, %v699
  %v864 = vadd.f32 %v863, %v702
  %v865 = vadd.f32 %v864, %v707
  %v866 = vadd.f32 %v865, %v710
  %v867 = vadd.f32 %v866, %v715
  %v868 = vadd.f32 %v867, %v718
  %v869 = vadd.f32 %v868, %v723
  %v870 = vadd.f32 %v869, %v726
  %v871 = vadd.f32 %v870, %v731
  %v872 = vadd.f32 %v871, %v734
  %v873 = vadd.f32 %v872, %v739
  %v874 = vadd.f32 %v873, %v742
  %v875 = vadd.f32 %v874, %v747
  %v876 = vadd.f32 %v875, %v750
  %v877 = vadd.f32 %v876, %v755
  %v878 = vadd.f32 %v877, %v758
  %v879 = vadd.f32 %v878, %v763
  %v880 = vadd.f32 %v879, %v766
  %v881 = vadd.f32 %v880, %v771
  %v882 = vadd.f32 %v881, %v774
  %v883 = vadd.f32 %v882, %v779
  %v884 = vadd.f32 %v883, %v782
  %v885 = vadd.f32 %v884, %v787
  %v886 = vadd.f32 %v885, %v790
  %v887 = vadd.f32 %v886, %v795
  %v888 = vadd.f32 %v887, %v798
  %v889 = vadd.f32 %v888, %v803
  %v890 = vadd.f32 %v889, %v806
  %v891 = vadd.f32 %v890, %v811
  %v892 = vadd.f32 %v891, %v814
  %v893 = vadd.f32 %v892, %v819
  %v894 = vadd.f32 %v893, %v822
  %v895 = vrot.slane %v894, 4
  %v896 = vadd.f32 %v894, %v895
  %v897 = vrot.slane %v896, 2
  %v898 = vadd.f32 %v896, %v897
  %v899 = vrot.slane %v898, 1
  %v900 = vadd.f32 %v898, %v899
  %v901 = vadd.f32 %v831, %v900
  %902 = vst [vmem:[%s3] sm:$0x1] %v901
  %v903 = vld [vmem:[%s4] sm:$0x1]
  %v904 = vmul.f32 %v571, %v571
  %v905 = vmul.f32 %v574, %v574
  %v906 = vmul.f32 %v579, %v579
  %v907 = vmul.f32 %v582, %v582
  %v908 = vmul.f32 %v587, %v587
  %v909 = vmul.f32 %v590, %v590
  %v910 = vmul.f32 %v595, %v595
  %v911 = vmul.f32 %v598, %v598
  %v912 = vmul.f32 %v603, %v603
  %v913 = vmul.f32 %v606, %v606
  %v914 = vmul.f32 %v611, %v611
  %v915 = vmul.f32 %v614, %v614
  %v916 = vmul.f32 %v619, %v619
  %v917 = vmul.f32 %v622, %v622
  %v918 = vmul.f32 %v627, %v627
  %v919 = vmul.f32 %v630, %v630
  %v920 = vmul.f32 %v635, %v635
  %v921 = vmul.f32 %v638, %v638
  %v922 = vmul.f32 %v643, %v643
  %v923 = vmul.f32 %v646, %v646
  %v924 = vmul.f32 %v651, %v651
  %v925 = vmul.f32 %v654, %v654
  %v926 = vmul.f32 %v659, %v659
  %v927 = vmul.f32 %v662, %v662
  %v928 = vmul.f32 %v667, %v667
  %v929 = vmul.f32 %v670, %v670
  %v930 = vmul.f32 %v675, %v675
  %v931 = vmul.f32 %v678, %v678
  %v932 = vmul.f32 %v683, %v683
  %v933 = vmul.f32 %v686, %v686
  %v934 = vmul.f32 %v691, %v691
  %v935 = vmul.f32 %v694, %v694
  %v936 = vmul.f32 %v699, %v699
  %v937 = vmul.f32 %v702, %v702
  %v938 = vmul.f32 %v707, %v707
  %v939 = vmul.f32 %v710, %v710
  %v940 = vmul.f32 %v715, %v715
  %v941 = vmul.f32 %v718, %v718
  %v942 = vmul.f32 %v723, %v723
  %v943 = vmul.f32 %v726, %v726
  %v944 = vmul.f32 %v731, %v731
  %v945 = vmul.f32 %v734, %v734
  %v946 = vmul.f32 %v739, %v739
  %v947 = vmul.f32 %v742, %v742
  %v948 = vmul.f32 %v747, %v747
  %v949 = vmul.f32 %v750, %v750
  %v950 = vmul.f32 %v755, %v755
  %v951 = vmul.f32 %v758, %v758
  %v952 = vmul.f32 %v763, %v763
  %v953 = vmul.f32 %v766, %v766
  %v954 = vmul.f32 %v771, %v771
  %v955 = vmul.f32 %v774, %v774
  %v956 = vmul.f32 %v779, %v779
  %v957 = vmul.f32 %v782, %v782
  %v958 = vmul.f32 %v787, %v787
  %v959 = vmul.f32 %v790, %v790
  %v960 = vmul.f32 %v795, %v795
  %v961 = vmul.f32 %v798, %v798
  %v962 = vmul.f32 %v803, %v803
  %v963 = vmul.f32 %v806, %v806
  %v964 = vmul.f32 %v811, %v811
  %v965 = vmul.f32 %v814, %v814
  %v966 = vmul.f32 %v819, %v819
  %v967 = vmul.f32 %v822, %v822
  %v968 = vadd.f32 %v904, %v905
  %v969 = vadd.f32 %v968, %v906
  %v970 = vadd.f32 %v969, %v907
  %v971 = vadd.f32 %v970, %v908
  %v972 = vadd.f32 %v971, %v909
  %v973 = vadd.f32 %v972, %v910
  %v974 = vadd.f32 %v973, %v911
  %v975 = vadd.f32 %v974, %v912
  %v976 = vadd.f32 %v975, %v913
  %v977 = vadd.f32 %v976, %v914
  %v978 = vadd.f32 %v977, %v915
  %v979 = vadd.f32 %v978, %v916
  %v980 = vadd.f32 %v979, %v917
  %v981 = vadd.f32 %v980, %v918
  %v982 = vadd.f32 %v981, %v919
  %v983 = vadd.f32 %v982, %v920
  %v984 = vadd.f32 %v983, %v921
  %v985 = vadd.f32 %v984, %v922
  %v986 = vadd.f32 %v985, %v923
  %v987 = vadd.f32 %v986, %v924
  %v988 = vadd.f32 %v987, %v925
  %v989 = vadd.f32 %v988, %v926
  %v990 = vadd.f32 %v989, %v927
  %v991 = vadd.f32 %v990, %v928
  %v992 = vadd.f32 %v991, %v929
  %v993 = vadd.f32 %v992, %v930
  %v994 = vadd.f32 %v993, %v931
  %v995 = vadd.f32 %v994, %v932
  %v996 = vadd.f32 %v995, %v933
  %v997 = vadd.f32 %v996, %v934
  %v998 = vadd.f32 %v997, %v935
  %v999 = vadd.f32 %v998, %v936
  %v1000 = vadd.f32 %v999, %v937
  %v1001 = vadd.f32 %v1000, %v938
  %v1002 = vadd.f32 %v1001, %v939
  %v1003 = vadd.f32 %v1002, %v940
  %v1004 = vadd.f32 %v1003, %v941
  %v1005 = vadd.f32 %v1004, %v942
  %v1006 = vadd.f32 %v1005, %v943
  %v1007 = vadd.f32 %v1006, %v944
  %v1008 = vadd.f32 %v1007, %v945
  %v1009 = vadd.f32 %v1008, %v946
  %v1010 = vadd.f32 %v1009, %v947
  %v1011 = vadd.f32 %v1010, %v948
  %v1012 = vadd.f32 %v1011, %v949
  %v1013 = vadd.f32 %v1012, %v950
  %v1014 = vadd.f32 %v1013, %v951
  %v1015 = vadd.f32 %v1014, %v952
  %v1016 = vadd.f32 %v1015, %v953
  %v1017 = vadd.f32 %v1016, %v954
  %v1018 = vadd.f32 %v1017, %v955
  %v1019 = vadd.f32 %v1018, %v956
  %v1020 = vadd.f32 %v1019, %v957
  %v1021 = vadd.f32 %v1020, %v958
  %v1022 = vadd.f32 %v1021, %v959
  %v1023 = vadd.f32 %v1022, %v960
  %v1024 = vadd.f32 %v1023, %v961
  %v1025 = vadd.f32 %v1024, %v962
  %v1026 = vadd.f32 %v1025, %v963
  %v1027 = vadd.f32 %v1026, %v964
  %v1028 = vadd.f32 %v1027, %v965
  %v1029 = vadd.f32 %v1028, %v966
  %v1030 = vadd.f32 %v1029, %v967
  %v1031 = vrot.slane %v1030, 4
  %v1032 = vadd.f32 %v1030, %v1031
  %v1033 = vrot.slane %v1032, 2
  %v1034 = vadd.f32 %v1032, %v1033
  %v1035 = vrot.slane %v1034, 1
  %v1036 = vadd.f32 %v1034, %v1035
  %v1037 = vadd.f32 %v903, %v1036
  %1038 = vst [vmem:[%s4] sm:$0x1] %v1037
  %v1039 = vpack.c.bf16 %v574, %v571
  %v1040 = vpack.c.bf16 %v582, %v579
  %v1041 = vpack.c.bf16 %v590, %v587
  %v1042 = vpack.c.bf16 %v598, %v595
  %v1043 = vpack.c.bf16 %v606, %v603
  %v1044 = vpack.c.bf16 %v614, %v611
  %v1045 = vpack.c.bf16 %v622, %v619
  %v1046 = vpack.c.bf16 %v630, %v627
  %v1047 = vpack.c.bf16 %v638, %v635
  %v1048 = vpack.c.bf16 %v646, %v643
  %v1049 = vpack.c.bf16 %v654, %v651
  %v1050 = vpack.c.bf16 %v662, %v659
  %v1051 = vpack.c.bf16 %v670, %v667
  %v1052 = vpack.c.bf16 %v678, %v675
  %v1053 = vpack.c.bf16 %v686, %v683
  %v1054 = vpack.c.bf16 %v694, %v691
  %v1055 = vpack.c.bf16 %v702, %v699
  %v1056 = vpack.c.bf16 %v710, %v707
  %v1057 = vpack.c.bf16 %v718, %v715
  %v1058 = vpack.c.bf16 %v726, %v723
  %v1059 = vpack.c.bf16 %v734, %v731
  %v1060 = vpack.c.bf16 %v742, %v739
  %v1061 = vpack.c.bf16 %v750, %v747
  %v1062 = vpack.c.bf16 %v758, %v755
  %v1063 = vpack.c.bf16 %v766, %v763
  %v1064 = vpack.c.bf16 %v774, %v771
  %v1065 = vpack.c.bf16 %v782, %v779
  %v1066 = vpack.c.bf16 %v790, %v787
  %v1067 = vpack.c.bf16 %v798, %v795
  %v1068 = vpack.c.bf16 %v806, %v803
  %v1069 = vpack.c.bf16 %v814, %v811
  %v1070 = vpack.c.bf16 %v822, %v819
  %v1103 = vunpack.c.l.b16 %v1039
  %v1104 = vunpack.c.h.b16 %v1039
  %v1105 = vunpack.c.l.b16 %v1040
  %v1106 = vunpack.c.h.b16 %v1040
  %v1107 = vunpack.c.l.b16 %v1041
  %v1108 = vunpack.c.h.b16 %v1041
  %v1109 = vunpack.c.l.b16 %v1042
  %v1110 = vunpack.c.h.b16 %v1042
  %v1111 = vunpack.c.l.b16 %v1043
  %v1112 = vunpack.c.h.b16 %v1043
  %v1113 = vunpack.c.l.b16 %v1044
  %v1114 = vunpack.c.h.b16 %v1044
  %v1115 = vunpack.c.l.b16 %v1045
  %v1116 = vunpack.c.h.b16 %v1045
  %v1117 = vunpack.c.l.b16 %v1046
  %v1118 = vunpack.c.h.b16 %v1046
  %v1119 = vunpack.c.l.b16 %v1047
  %v1120 = vunpack.c.h.b16 %v1047
  %v1121 = vunpack.c.l.b16 %v1048
  %v1122 = vunpack.c.h.b16 %v1048
  %v1123 = vunpack.c.l.b16 %v1049
  %v1124 = vunpack.c.h.b16 %v1049
  %v1125 = vunpack.c.l.b16 %v1050
  %v1126 = vunpack.c.h.b16 %v1050
  %v1127 = vunpack.c.l.b16 %v1051
  %v1128 = vunpack.c.h.b16 %v1051
  %v1129 = vunpack.c.l.b16 %v1052
  %v1130 = vunpack.c.h.b16 %v1052
  %v1131 = vunpack.c.l.b16 %v1053
  %v1132 = vunpack.c.h.b16 %v1053
  %v1133 = vunpack.c.l.b16 %v1054
  %v1134 = vunpack.c.h.b16 %v1054
  %v1135 = vunpack.c.l.b16 %v1055
  %v1136 = vunpack.c.h.b16 %v1055
  %v1137 = vunpack.c.l.b16 %v1056
  %v1138 = vunpack.c.h.b16 %v1056
  %v1139 = vunpack.c.l.b16 %v1057
  %v1140 = vunpack.c.h.b16 %v1057
  %v1141 = vunpack.c.l.b16 %v1058
  %v1142 = vunpack.c.h.b16 %v1058
  %v1143 = vunpack.c.l.b16 %v1059
  %v1144 = vunpack.c.h.b16 %v1059
  %v1145 = vunpack.c.l.b16 %v1060
  %v1146 = vunpack.c.h.b16 %v1060
  %v1147 = vunpack.c.l.b16 %v1061
  %v1148 = vunpack.c.h.b16 %v1061
  %v1149 = vunpack.c.l.b16 %v1062
  %v1150 = vunpack.c.h.b16 %v1062
  %v1151 = vunpack.c.l.b16 %v1063
  %v1152 = vunpack.c.h.b16 %v1063
  %v1153 = vunpack.c.l.b16 %v1064
  %v1154 = vunpack.c.h.b16 %v1064
  %v1155 = vunpack.c.l.b16 %v1065
  %v1156 = vunpack.c.h.b16 %v1065
  %v1157 = vunpack.c.l.b16 %v1066
  %v1158 = vunpack.c.h.b16 %v1066
  %v1159 = vunpack.c.l.b16 %v1067
  %v1160 = vunpack.c.h.b16 %v1067
  %v1161 = vunpack.c.l.b16 %v1068
  %v1162 = vunpack.c.h.b16 %v1068
  %v1163 = vunpack.c.l.b16 %v1069
  %v1164 = vunpack.c.h.b16 %v1069
  %v1165 = vunpack.c.l.b16 %v1070
  %v1166 = vunpack.c.h.b16 %v1070
  %v1167 = vpack.c.b16 %v1103, %v1103
  %v1168 = vpack.c.b16 %v1104, %v1104
  %v1169 = vpack.c.b16 %v1105, %v1105
  %v1170 = vpack.c.b16 %v1106, %v1106
  %v1171 = vpack.c.b16 %v1107, %v1107
  %v1172 = vpack.c.b16 %v1108, %v1108
  %v1173 = vpack.c.b16 %v1109, %v1109
  %v1174 = vpack.c.b16 %v1110, %v1110
  %v1175 = vpack.c.b16 %v1111, %v1111
  %v1176 = vpack.c.b16 %v1112, %v1112
  %v1177 = vpack.c.b16 %v1113, %v1113
  %v1178 = vpack.c.b16 %v1114, %v1114
  %v1179 = vpack.c.b16 %v1115, %v1115
  %v1180 = vpack.c.b16 %v1116, %v1116
  %v1181 = vpack.c.b16 %v1117, %v1117
  %v1182 = vpack.c.b16 %v1118, %v1118
  %v1183 = vpack.c.b16 %v1119, %v1119
  %v1184 = vpack.c.b16 %v1120, %v1120
  %v1185 = vpack.c.b16 %v1121, %v1121
  %v1186 = vpack.c.b16 %v1122, %v1122
  %v1187 = vpack.c.b16 %v1123, %v1123
  %v1188 = vpack.c.b16 %v1124, %v1124
  %v1189 = vpack.c.b16 %v1125, %v1125
  %v1190 = vpack.c.b16 %v1126, %v1126
  %v1191 = vpack.c.b16 %v1127, %v1127
  %v1192 = vpack.c.b16 %v1128, %v1128
  %v1193 = vpack.c.b16 %v1129, %v1129
  %v1194 = vpack.c.b16 %v1130, %v1130
  %v1195 = vpack.c.b16 %v1131, %v1131
  %v1196 = vpack.c.b16 %v1132, %v1132
  %v1197 = vpack.c.b16 %v1133, %v1133
  %v1198 = vpack.c.b16 %v1134, %v1134
  %v1199 = vpack.c.b16 %v1135, %v1135
  %v1200 = vpack.c.b16 %v1136, %v1136
  %v1201 = vpack.c.b16 %v1137, %v1137
  %v1202 = vpack.c.b16 %v1138, %v1138
  %v1203 = vpack.c.b16 %v1139, %v1139
  %v1204 = vpack.c.b16 %v1140, %v1140
  %v1205 = vpack.c.b16 %v1141, %v1141
  %v1206 = vpack.c.b16 %v1142, %v1142
  %v1207 = vpack.c.b16 %v1143, %v1143
  %v1208 = vpack.c.b16 %v1144, %v1144
  %v1209 = vpack.c.b16 %v1145, %v1145
  %v1210 = vpack.c.b16 %v1146, %v1146
  %v1211 = vpack.c.b16 %v1147, %v1147
  %v1212 = vpack.c.b16 %v1148, %v1148
  %v1213 = vpack.c.b16 %v1149, %v1149
  %v1214 = vpack.c.b16 %v1150, %v1150
  %v1215 = vpack.c.b16 %v1151, %v1151
  %v1216 = vpack.c.b16 %v1152, %v1152
  %v1217 = vpack.c.b16 %v1153, %v1153
  %v1218 = vpack.c.b16 %v1154, %v1154
  %v1219 = vpack.c.b16 %v1155, %v1155
  %v1220 = vpack.c.b16 %v1156, %v1156
  %v1221 = vpack.c.b16 %v1157, %v1157
  %v1222 = vpack.c.b16 %v1158, %v1158
  %v1223 = vpack.c.b16 %v1159, %v1159
  %v1224 = vpack.c.b16 %v1160, %v1160
  %v1225 = vpack.c.b16 %v1161, %v1161
  %v1226 = vpack.c.b16 %v1162, %v1162
  %v1227 = vpack.c.b16 %v1163, %v1163
  %v1228 = vpack.c.b16 %v1164, %v1164
  %v1229 = vpack.c.b16 %v1165, %v1165
  %v1230 = vpack.c.b16 %v1166, %v1166
  %1295 = vst [vmem:[%s2] sm:$0xf] %v1167
  %1296 = vst [vmem:[%s2 + $0x4] sm:$0xf] %v1168
  %1297 = vst [vmem:[%s2 + $0x8] sm:$0xf] %v1169
  %1298 = vst [vmem:[%s2 + $0xc] sm:$0xf] %v1170
  %1299 = vst [vmem:[%s2 + $0x10] sm:$0xf] %v1171
  %1300 = vst [vmem:[%s2 + $0x14] sm:$0xf] %v1172
  %1301 = vst [vmem:[%s2 + $0x18] sm:$0xf] %v1173
  %1302 = vst [vmem:[%s2 + $0x1c] sm:$0xf] %v1174
  %1303 = vst [vmem:[%s2 + $0x20] sm:$0xf] %v1175
  %1304 = vst [vmem:[%s2 + $0x24] sm:$0xf] %v1176
  %1305 = vst [vmem:[%s2 + $0x28] sm:$0xf] %v1177
  %1306 = vst [vmem:[%s2 + $0x2c] sm:$0xf] %v1178
  %1307 = vst [vmem:[%s2 + $0x30] sm:$0xf] %v1179
  %1308 = vst [vmem:[%s2 + $0x34] sm:$0xf] %v1180
  %1309 = vst [vmem:[%s2 + $0x38] sm:$0xf] %v1181
  %1310 = vst [vmem:[%s2 + $0x3c] sm:$0xf] %v1182
  %1311 = vst [vmem:[%s2 + $0x40] sm:$0xf] %v1183
  %1312 = vst [vmem:[%s2 + $0x44] sm:$0xf] %v1184
  %1313 = vst [vmem:[%s2 + $0x48] sm:$0xf] %v1185
  %1314 = vst [vmem:[%s2 + $0x4c] sm:$0xf] %v1186
  %1315 = vst [vmem:[%s2 + $0x50] sm:$0xf] %v1187
  %1316 = vst [vmem:[%s2 + $0x54] sm:$0xf] %v1188
  %1317 = vst [vmem:[%s2 + $0x58] sm:$0xf] %v1189
  %1318 = vst [vmem:[%s2 + $0x5c] sm:$0xf] %v1190
  %1319 = vst [vmem:[%s2 + $0x60] sm:$0xf] %v1191
  %1320 = vst [vmem:[%s2 + $0x64] sm:$0xf] %v1192
  %1321 = vst [vmem:[%s2 + $0x68] sm:$0xf] %v1193
  %1322 = vst [vmem:[%s2 + $0x6c] sm:$0xf] %v1194
  %1323 = vst [vmem:[%s2 + $0x70] sm:$0xf] %v1195
  %1324 = vst [vmem:[%s2 + $0x74] sm:$0xf] %v1196
  %1325 = vst [vmem:[%s2 + $0x78] sm:$0xf] %v1197
  %1326 = vst [vmem:[%s2 + $0x7c] sm:$0xf] %v1198
  %1327 = vst [vmem:[%s2 + $0x80] sm:$0xf] %v1199
  %1328 = vst [vmem:[%s2 + $0x84] sm:$0xf] %v1200
  %1329 = vst [vmem:[%s2 + $0x88] sm:$0xf] %v1201
  %1330 = vst [vmem:[%s2 + $0x8c] sm:$0xf] %v1202
  %1331 = vst [vmem:[%s2 + $0x90] sm:$0xf] %v1203
  %1332 = vst [vmem:[%s2 + $0x94] sm:$0xf] %v1204
  %1333 = vst [vmem:[%s2 + $0x98] sm:$0xf] %v1205
  %1334 = vst [vmem:[%s2 + $0x9c] sm:$0xf] %v1206
  %1335 = vst [vmem:[%s2 + $0xa0] sm:$0xf] %v1207
  %1336 = vst [vmem:[%s2 + $0xa4] sm:$0xf] %v1208
  %1337 = vst [vmem:[%s2 + $0xa8] sm:$0xf] %v1209
  %1338 = vst [vmem:[%s2 + $0xac] sm:$0xf] %v1210
  %1339 = vst [vmem:[%s2 + $0xb0] sm:$0xf] %v1211
  %1340 = vst [vmem:[%s2 + $0xb4] sm:$0xf] %v1212
  %1341 = vst [vmem:[%s2 + $0xb8] sm:$0xf] %v1213
  %1342 = vst [vmem:[%s2 + $0xbc] sm:$0xf] %v1214
  %1343 = vst [vmem:[%s2 + $0xc0] sm:$0xf] %v1215
  %1344 = vst [vmem:[%s2 + $0xc4] sm:$0xf] %v1216
  %1345 = vst [vmem:[%s2 + $0xc8] sm:$0xf] %v1217
  %1346 = vst [vmem:[%s2 + $0xcc] sm:$0xf] %v1218
  %1347 = vst [vmem:[%s2 + $0xd0] sm:$0xf] %v1219
  %1348 = vst [vmem:[%s2 + $0xd4] sm:$0xf] %v1220
  %1349 = vst [vmem:[%s2 + $0xd8] sm:$0xf] %v1221
  %1350 = vst [vmem:[%s2 + $0xdc] sm:$0xf] %v1222
  %1351 = vst [vmem:[%s2 + $0xe0] sm:$0xf] %v1223
  %1352 = vst [vmem:[%s2 + $0xe4] sm:$0xf] %v1224
  %1353 = vst [vmem:[%s2 + $0xe8] sm:$0xf] %v1225
  %1354 = vst [vmem:[%s2 + $0xec] sm:$0xf] %v1226
  %1355 = vst [vmem:[%s2 + $0xf0] sm:$0xf] %v1227
  %1356 = vst [vmem:[%s2 + $0xf4] sm:$0xf] %v1228
  %1357 = vst [vmem:[%s2 + $0xf8] sm:$0xf] %v1229
  %1358 = vst [vmem:[%s2 + $0xfc] sm:$0xf] %v1230
  // Predicated region
  $region14: #{generator_forward.15} parent=0 // pred_check
    _
  $region15: #{generator_forward.15} parent=0 // pred_check_branch
    %1360 = sbr.rel (0) target = $region17
  $region16: #{generator_forward.15} parent=0 // pred_region
    _
  $region17: #{generator_forward.15} parent=0 // pred_fallthru
    _
  // Predicated region
  $region18: #{generator_forward.15} parent=0 // pred_check
    _
  $region19: #{generator_forward.15} parent=0 // pred_check_branch
    %1362 = sbr.rel (0) target = $region21
  $region20: #{generator_forward.15} parent=0 // pred_region
    _
  $region21: #{generator_forward.15} parent=0 // pred_fallthru
    _
  // Predicated region
  $region22: #{generator_forward.15} parent=0 // pred_check
    _
  $region23: #{generator_forward.15} parent=0 // pred_check_branch
    %1364 = sbr.rel (0) target = $region25
  $region24: #{generator_forward.15} parent=0 // pred_region
    _
  $region25: #{generator_forward.15} parent=0 // pred_fallthru
    _
  // Predicated region
  $region26: #{generator_forward.15} parent=0 // pred_check
    _
  $region27: #{generator_forward.15} parent=0 // pred_check_branch
    %1366 = sbr.rel (0) target = $region29
  $region28: #{generator_forward.15} parent=0 // pred_region
    _
  $region29: #{generator_forward.15} parent=0 // pred_fallthru
    _
  // Predicated region
  $region30: #{generator_forward.15} parent=0 // pred_check
    _
  $region31: #{generator_forward.15} parent=0 // pred_check_branch
    %1368 = sbr.rel (0) target = $region33
  $region32: #{generator_forward.15} parent=0 // pred_region
    _
  $region33: #{generator_forward.15} parent=0 // pred_fallthru
    _
  // Predicated region
  $region34: #{generator_forward.15} parent=0 // pred_check
    _
  $region35: #{generator_forward.15} parent=0 // pred_check_branch
    %1370 = sbr.rel (0) target = $region37
  $region36: #{generator_forward.15} parent=0 // pred_region
    _
  $region37: #{generator_forward.15} parent=0 // pred_fallthru
    _

// kernel: generator_forward.16
$region0: #{generator_forward.16}
  #allocation0 [shape = 'u32[]', space=smem, size = 0x4, offset = 0x4, fixed_abs, tag = 'smem constant byte address 0x4 - core index']
  #allocation1 [shape = 'u32[144,128]{1,0:T(1,128)}', space=vmem, size = 0x12000, scoped, tag = 'internal scratch']
  %s0 = inlined_call_operand.vmem [shape: bf16[512,128], index: 0, kind: input, shape index: {}]
  %s1 = inlined_call_operand.vmem [shape: f32[1,128], index: 1, kind: input, shape index: {}]
  %s2 = inlined_call_operand.vmem [shape: f32[1,128], index: 2, kind: input, shape index: {}]
  %s3 = inlined_call_operand.vmem [shape: bf16[512,128], index: 3, kind: output, shape index: {}]
  %s4 = sld [smem:[#allocation0]]
  $region22: #{generator_forward.16} parent=0
    _
  %s6 = ssub.s32 1, %s4
  %s7 = scalar_select 0, %s6, %s4
  // Predicated region
  $region2: #{generator_forward.16} parent=0 // pred_check
    _
  $region3: #{generator_forward.16} parent=0 // pred_check_branch
    %9 = sbr.rel (0) target = $region5
  $region4: #{generator_forward.16} parent=0 // pred_region
    _
  $region5: #{generator_forward.16} parent=0 // pred_fallthru
    _
  // Predicated region
  $region6: #{generator_forward.16} parent=0 // pred_check
    _
  $region7: #{generator_forward.16} parent=0 // pred_check_branch
    %11 = sbr.rel (0) target = $region9
  $region8: #{generator_forward.16} parent=0 // pred_region
    _
  $region9: #{generator_forward.16} parent=0 // pred_fallthru
    _
  // Predicated region
  $region10: #{generator_forward.16} parent=0 // pred_check
    _
  $region11: #{generator_forward.16} parent=0 // pred_check_branch
    %13 = sbr.rel (0) target = $region13
  $region12: #{generator_forward.16} parent=0 // pred_region
    _
  $region13: #{generator_forward.16} parent=0 // pred_fallthru
    _
  %v14 = vld [vmem:[%s0] sm:$0xf]
  %v15 = vld [vmem:[%s0 + $0x4] sm:$0xf]
  %v16 = vld [vmem:[%s0 + $0x8] sm:$0xf]
  %v17 = vld [vmem:[%s0 + $0xc] sm:$0xf]
  %v18 = vld [vmem:[%s0 + $0x10] sm:$0xf]
  %v19 = vld [vmem:[%s0 + $0x14] sm:$0xf]
  %v20 = vld [vmem:[%s0 + $0x18] sm:$0xf]
  %v21 = vld [vmem:[%s0 + $0x1c] sm:$0xf]
  %v22 = vld [vmem:[%s0 + $0x20] sm:$0xf]
  %v23 = vld [vmem:[%s0 + $0x24] sm:$0xf]
  %v24 = vld [vmem:[%s0 + $0x28] sm:$0xf]
  %v25 = vld [vmem:[%s0 + $0x2c] sm:$0xf]
  %v26 = vld [vmem:[%s0 + $0x30] sm:$0xf]
  %v27 = vld [vmem:[%s0 + $0x34] sm:$0xf]
  %v28 = vld [vmem:[%s0 + $0x38] sm:$0xf]
  %v29 = vld [vmem:[%s0 + $0x3c] sm:$0xf]
  %v30 = vld [vmem:[%s0 + $0x40] sm:$0xf]
  %v31 = vld [vmem:[%s0 + $0x44] sm:$0xf]
  %v32 = vld [vmem:[%s0 + $0x48] sm:$0xf]
  %v33 = vld [vmem:[%s0 + $0x4c] sm:$0xf]
  %v34 = vld [vmem:[%s0 + $0x50] sm:$0xf]
  %v35 = vld [vmem:[%s0 + $0x54] sm:$0xf]
  %v36 = vld [vmem:[%s0 + $0x58] sm:$0xf]
  %v37 = vld [vmem:[%s0 + $0x5c] sm:$0xf]
  %v38 = vld [vmem:[%s0 + $0x60] sm:$0xf]
  %v39 = vld [vmem:[%s0 + $0x64] sm:$0xf]
  %v40 = vld [vmem:[%s0 + $0x68] sm:$0xf]
  %v41 = vld [vmem:[%s0 + $0x6c] sm:$0xf]
  %v42 = vld [vmem:[%s0 + $0x70] sm:$0xf]
  %v43 = vld [vmem:[%s0 + $0x74] sm:$0xf]
  %v44 = vld [vmem:[%s0 + $0x78] sm:$0xf]
  %v45 = vld [vmem:[%s0 + $0x7c] sm:$0xf]
  %v46 = vld [vmem:[%s0 + $0x80] sm:$0xf]
  %v47 = vld [vmem:[%s0 + $0x84] sm:$0xf]
  %v48 = vld [vmem:[%s0 + $0x88] sm:$0xf]
  %v49 = vld [vmem:[%s0 + $0x8c] sm:$0xf]
  %v50 = vld [vmem:[%s0 + $0x90] sm:$0xf]
  %v51 = vld [vmem:[%s0 + $0x94] sm:$0xf]
  %v52 = vld [vmem:[%s0 + $0x98] sm:$0xf]
  %v53 = vld [vmem:[%s0 + $0x9c] sm:$0xf]
  %v54 = vld [vmem:[%s0 + $0xa0] sm:$0xf]
  %v55 = vld [vmem:[%s0 + $0xa4] sm:$0xf]
  %v56 = vld [vmem:[%s0 + $0xa8] sm:$0xf]
  %v57 = vld [vmem:[%s0 + $0xac] sm:$0xf]
  %v58 = vld [vmem:[%s0 + $0xb0] sm:$0xf]
  %v59 = vld [vmem:[%s0 + $0xb4] sm:$0xf]
  %v60 = vld [vmem:[%s0 + $0xb8] sm:$0xf]
  %v61 = vld [vmem:[%s0 + $0xbc] sm:$0xf]
  %v62 = vld [vmem:[%s0 + $0xc0] sm:$0xf]
  %v63 = vld [vmem:[%s0 + $0xc4] sm:$0xf]
  %v64 = vld [vmem:[%s0 + $0xc8] sm:$0xf]
  %v65 = vld [vmem:[%s0 + $0xcc] sm:$0xf]
  %v66 = vld [vmem:[%s0 + $0xd0] sm:$0xf]
  %v67 = vld [vmem:[%s0 + $0xd4] sm:$0xf]
  %v68 = vld [vmem:[%s0 + $0xd8] sm:$0xf]
  %v69 = vld [vmem:[%s0 + $0xdc] sm:$0xf]
  %v70 = vld [vmem:[%s0 + $0xe0] sm:$0xf]
  %v71 = vld [vmem:[%s0 + $0xe4] sm:$0xf]
  %v72 = vld [vmem:[%s0 + $0xe8] sm:$0xf]
  %v73 = vld [vmem:[%s0 + $0xec] sm:$0xf]
  %v74 = vld [vmem:[%s0 + $0xf0] sm:$0xf]
  %v75 = vld [vmem:[%s0 + $0xf4] sm:$0xf]
  %v76 = vld [vmem:[%s0 + $0xf8] sm:$0xf]
  %v77 = vld [vmem:[%s0 + $0xfc] sm:$0xf]
  %v78 = vunpack.c.l.bf16 %v14
  %v79 = vunpack.c.l.bf16 %v15
  %v80 = vunpack.c.l.bf16 %v16
  %v81 = vunpack.c.l.bf16 %v17
  %v82 = vunpack.c.l.bf16 %v18
  %v83 = vunpack.c.l.bf16 %v19
  %v84 = vunpack.c.l.bf16 %v20
  %v85 = vunpack.c.l.bf16 %v21
  %v86 = vunpack.c.l.bf16 %v22
  %v87 = vunpack.c.l.bf16 %v23
  %v88 = vunpack.c.l.bf16 %v24
  %v89 = vunpack.c.l.bf16 %v25
  %v90 = vunpack.c.l.bf16 %v26
  %v91 = vunpack.c.l.bf16 %v27
  %v92 = vunpack.c.l.bf16 %v28
  %v93 = vunpack.c.l.bf16 %v29
  %v94 = vunpack.c.l.bf16 %v30
  %v95 = vunpack.c.l.bf16 %v31
  %v96 = vunpack.c.l.bf16 %v32
  %v97 = vunpack.c.l.bf16 %v33
  %v98 = vunpack.c.l.bf16 %v34
  %v99 = vunpack.c.l.bf16 %v35
  %v100 = vunpack.c.l.bf16 %v36
  %v101 = vunpack.c.l.bf16 %v37
  %v102 = vunpack.c.l.bf16 %v38
  %v103 = vunpack.c.l.bf16 %v39
  %v104 = vunpack.c.l.bf16 %v40
  %v105 = vunpack.c.l.bf16 %v41
  %v106 = vunpack.c.l.bf16 %v42
  %v107 = vunpack.c.l.bf16 %v43
  %v108 = vunpack.c.l.bf16 %v44
  %v109 = vunpack.c.l.bf16 %v45
  %v110 = vunpack.c.l.bf16 %v46
  %v111 = vunpack.c.l.bf16 %v47
  %v112 = vunpack.c.l.bf16 %v48
  %v113 = vunpack.c.l.bf16 %v49
  %v114 = vunpack.c.l.bf16 %v50
  %v115 = vunpack.c.l.bf16 %v51
  %v116 = vunpack.c.l.bf16 %v52
  %v117 = vunpack.c.l.bf16 %v53
  %v118 = vunpack.c.l.bf16 %v54
  %v119 = vunpack.c.l.bf16 %v55
  %v120 = vunpack.c.l.bf16 %v56
  %v121 = vunpack.c.l.bf16 %v57
  %v122 = vunpack.c.l.bf16 %v58
  %v123 = vunpack.c.l.bf16 %v59
  %v124 = vunpack.c.l.bf16 %v60
  %v125 = vunpack.c.l.bf16 %v61
  %v126 = vunpack.c.l.bf16 %v62
  %v127 = vunpack.c.l.bf16 %v63
  %v128 = vunpack.c.l.bf16 %v64
  %v129 = vunpack.c.l.bf16 %v65
  %v130 = vunpack.c.l.bf16 %v66
  %v131 = vunpack.c.l.bf16 %v67
  %v132 = vunpack.c.l.bf16 %v68
  %v133 = vunpack.c.l.bf16 %v69
  %v134 = vunpack.c.l.bf16 %v70
  %v135 = vunpack.c.l.bf16 %v71
  %v136 = vunpack.c.l.bf16 %v72
  %v137 = vunpack.c.l.bf16 %v73
  %v138 = vunpack.c.l.bf16 %v74
  %v139 = vunpack.c.l.bf16 %v75
  %v140 = vunpack.c.l.bf16 %v76
  %v141 = vunpack.c.l.bf16 %v77
  %v142 = vld [vmem:[%s1] sm:$0x1]
  %v144 = vlaneseq
  %v145 = vshrl.u32 %v144, 7
  %v146 = vsub.s32 0, %v145
  %v147 = vrot.slane %v142, %v146
  %v149 = vmul.f32 %v78, %v147
  %v150 = vmul.f32 %v79, %v147
  %v151 = vmul.f32 %v80, %v147
  %v152 = vmul.f32 %v81, %v147
  %v153 = vmul.f32 %v82, %v147
  %v154 = vmul.f32 %v83, %v147
  %v155 = vmul.f32 %v84, %v147
  %v156 = vmul.f32 %v85, %v147
  %v157 = vmul.f32 %v86, %v147
  %v158 = vmul.f32 %v87, %v147
  %v159 = vmul.f32 %v88, %v147
  %v160 = vmul.f32 %v89, %v147
  %v161 = vmul.f32 %v90, %v147
  %v162 = vmul.f32 %v91, %v147
  %v163 = vmul.f32 %v92, %v147
  %v164 = vmul.f32 %v93, %v147
  %v165 = vmul.f32 %v94, %v147
  %v166 = vmul.f32 %v95, %v147
  %v167 = vmul.f32 %v96, %v147
  %v168 = vmul.f32 %v97, %v147
  %v169 = vmul.f32 %v98, %v147
  %v170 = vmul.f32 %v99, %v147
  %v171 = vmul.f32 %v100, %v147
  %v172 = vmul.f32 %v101, %v147
  %v173 = vmul.f32 %v102, %v147
  %v174 = vmul.f32 %v103, %v147
  %v175 = vmul.f32 %v104, %v147
  %v176 = vmul.f32 %v105, %v147
  %v177 = vmul.f32 %v106, %v147
  %v178 = vmul.f32 %v107, %v147
  %v179 = vmul.f32 %v108, %v147
  %v180 = vmul.f32 %v109, %v147
  %v181 = vmul.f32 %v110, %v147
  %v182 = vmul.f32 %v111, %v147
  %v183 = vmul.f32 %v112, %v147
  %v184 = vmul.f32 %v113, %v147
  %v185 = vmul.f32 %v114, %v147
  %v186 = vmul.f32 %v115, %v147
  %v187 = vmul.f32 %v116, %v147
  %v188 = vmul.f32 %v117, %v147
  %v189 = vmul.f32 %v118, %v147
  %v190 = vmul.f32 %v119, %v147
  %v191 = vmul.f32 %v120, %v147
  %v192 = vmul.f32 %v121, %v147
  %v193 = vmul.f32 %v122, %v147
  %v194 = vmul.f32 %v123, %v147
  %v195 = vmul.f32 %v124, %v147
  %v196 = vmul.f32 %v125, %v147
  %v197 = vmul.f32 %v126, %v147
  %v198 = vmul.f32 %v127, %v147
  %v199 = vmul.f32 %v128, %v147
  %v200 = vmul.f32 %v129, %v147
  %v201 = vmul.f32 %v130, %v147
  %v202 = vmul.f32 %v131, %v147
  %v203 = vmul.f32 %v132, %v147
  %v204 = vmul.f32 %v133, %v147
  %v205 = vmul.f32 %v134, %v147
  %v206 = vmul.f32 %v135, %v147
  %v207 = vmul.f32 %v136, %v147
  %v208 = vmul.f32 %v137, %v147
  %v209 = vmul.f32 %v138, %v147
  %v210 = vmul.f32 %v139, %v147
  %v211 = vmul.f32 %v140, %v147
  %v212 = vmul.f32 %v141, %v147
  %v213 = vld [vmem:[%s2] sm:$0x1]
  %v215 = vlaneseq
  %v216 = vshrl.u32 %v215, 7
  %v217 = vsub.s32 0, %v216
  %v218 = vrot.slane %v213, %v217
  %v220 = vadd.f32 %v149, %v218
  %v221 = vadd.f32 %v150, %v218
  %v222 = vadd.f32 %v151, %v218
  %v223 = vadd.f32 %v152, %v218
  %v224 = vadd.f32 %v153, %v218
  %v225 = vadd.f32 %v154, %v218
  %v226 = vadd.f32 %v155, %v218
  %v227 = vadd.f32 %v156, %v218
  %v228 = vadd.f32 %v157, %v218
  %v229 = vadd.f32 %v158, %v218
  %v230 = vadd.f32 %v159, %v218
  %v231 = vadd.f32 %v160, %v218
  %v232 = vadd.f32 %v161, %v218
  %v233 = vadd.f32 %v162, %v218
  %v234 = vadd.f32 %v163, %v218
  %v235 = vadd.f32 %v164, %v218
  %v236 = vadd.f32 %v165, %v218
  %v237 = vadd.f32 %v166, %v218
  %v238 = vadd.f32 %v167, %v218
  %v239 = vadd.f32 %v168, %v218
  %v240 = vadd.f32 %v169, %v218
  %v241 = vadd.f32 %v170, %v218
  %v242 = vadd.f32 %v171, %v218
  %v243 = vadd.f32 %v172, %v218
  %v244 = vadd.f32 %v173, %v218
  %v245 = vadd.f32 %v174, %v218
  %v246 = vadd.f32 %v175, %v218
  %v247 = vadd.f32 %v176, %v218
  %v248 = vadd.f32 %v177, %v218
  %v249 = vadd.f32 %v178, %v218
  %v250 = vadd.f32 %v179, %v218
  %v251 = vadd.f32 %v180, %v218
  %v252 = vadd.f32 %v181, %v218
  %v253 = vadd.f32 %v182, %v218
  %v254 = vadd.f32 %v183, %v218
  %v255 = vadd.f32 %v184, %v218
  %v256 = vadd.f32 %v185, %v218
  %v257 = vadd.f32 %v186, %v218
  %v258 = vadd.f32 %v187, %v218
  %v259 = vadd.f32 %v188, %v218
  %v260 = vadd.f32 %v189, %v218
  %v261 = vadd.f32 %v190, %v218
  %v262 = vadd.f32 %v191, %v218
  %v263 = vadd.f32 %v192, %v218
  %v264 = vadd.f32 %v193, %v218
  %v265 = vadd.f32 %v194, %v218
  %v266 = vadd.f32 %v195, %v218
  %v267 = vadd.f32 %v196, %v218
  %v268 = vadd.f32 %v197, %v218
  %v269 = vadd.f32 %v198, %v218
  %v270 = vadd.f32 %v199, %v218
  %v271 = vadd.f32 %v200, %v218
  %v272 = vadd.f32 %v201, %v218
  %v273 = vadd.f32 %v202, %v218
  %v274 = vadd.f32 %v203, %v218
  %v275 = vadd.f32 %v204, %v218
  %v276 = vadd.f32 %v205, %v218
  %v277 = vadd.f32 %v206, %v218
  %v278 = vadd.f32 %v207, %v218
  %v279 = vadd.f32 %v208, %v218
  %v280 = vadd.f32 %v209, %v218
  %v281 = vadd.f32 %v210, %v218
  %v282 = vadd.f32 %v211, %v218
  %v283 = vadd.f32 %v212, %v218
  %v284 = vmax.f32 %v220, 0.0
  %v285 = vmax.f32 %v221, 0.0
  %v286 = vmax.f32 %v222, 0.0
  %v287 = vmax.f32 %v223, 0.0
  %v288 = vmax.f32 %v224, 0.0
  %v289 = vmax.f32 %v225, 0.0
  %v290 = vmax.f32 %v226, 0.0
  %v291 = vmax.f32 %v227, 0.0
  %v292 = vmax.f32 %v228, 0.0
  %v293 = vmax.f32 %v229, 0.0
  %v294 = vmax.f32 %v230, 0.0
  %v295 = vmax.f32 %v231, 0.0
  %v296 = vmax.f32 %v232, 0.0
  %v297 = vmax.f32 %v233, 0.0
  %v298 = vmax.f32 %v234, 0.0
  %v299 = vmax.f32 %v235, 0.0
  %v300 = vmax.f32 %v236, 0.0
  %v301 = vmax.f32 %v237, 0.0
  %v302 = vmax.f32 %v238, 0.0
  %v303 = vmax.f32 %v239, 0.0
  %v304 = vmax.f32 %v240, 0.0
  %v305 = vmax.f32 %v241, 0.0
  %v306 = vmax.f32 %v242, 0.0
  %v307 = vmax.f32 %v243, 0.0
  %v308 = vmax.f32 %v244, 0.0
  %v309 = vmax.f32 %v245, 0.0
  %v310 = vmax.f32 %v246, 0.0
  %v311 = vmax.f32 %v247, 0.0
  %v312 = vmax.f32 %v248, 0.0
  %v313 = vmax.f32 %v249, 0.0
  %v314 = vmax.f32 %v250, 0.0
  %v315 = vmax.f32 %v251, 0.0
  %v316 = vmax.f32 %v252, 0.0
  %v317 = vmax.f32 %v253, 0.0
  %v318 = vmax.f32 %v254, 0.0
  %v319 = vmax.f32 %v255, 0.0
  %v320 = vmax.f32 %v256, 0.0
  %v321 = vmax.f32 %v257, 0.0
  %v322 = vmax.f32 %v258, 0.0
  %v323 = vmax.f32 %v259, 0.0
  %v324 = vmax.f32 %v260, 0.0
  %v325 = vmax.f32 %v261, 0.0
  %v326 = vmax.f32 %v262, 0.0
  %v327 = vmax.f32 %v263, 0.0
  %v328 = vmax.f32 %v264, 0.0
  %v329 = vmax.f32 %v265, 0.0
  %v330 = vmax.f32 %v266, 0.0
  %v331 = vmax.f32 %v267, 0.0
  %v332 = vmax.f32 %v268, 0.0
  %v333 = vmax.f32 %v269, 0.0
  %v334 = vmax.f32 %v270, 0.0
  %v335 = vmax.f32 %v271, 0.0
  %v336 = vmax.f32 %v272, 0.0
  %v337 = vmax.f32 %v273, 0.0
  %v338 = vmax.f32 %v274, 0.0
  %v339 = vmax.f32 %v275, 0.0
  %v340 = vmax.f32 %v276, 0.0
  %v341 = vmax.f32 %v277, 0.0
  %v342 = vmax.f32 %v278, 0.0
  %v343 = vmax.f32 %v279, 0.0
  %v344 = vmax.f32 %v280, 0.0
  %v345 = vmax.f32 %v281, 0.0
  %v346 = vmax.f32 %v282, 0.0
  %v347 = vmax.f32 %v283, 0.0
  %v348 = vpack.c.bf16 %v285, %v284
  %v349 = vpack.c.bf16 %v287, %v286
  %v350 = vpack.c.bf16 %v289, %v288
  %v351 = vpack.c.bf16 %v291, %v290
  %v352 = vpack.c.bf16 %v293, %v292
  %v353 = vpack.c.bf16 %v295, %v294
  %v354 = vpack.c.bf16 %v297, %v296
  %v355 = vpack.c.bf16 %v299, %v298
  %v356 = vpack.c.bf16 %v301, %v300
  %v357 = vpack.c.bf16 %v303, %v302
  %v358 = vpack.c.bf16 %v305, %v304
  %v359 = vpack.c.bf16 %v307, %v306
  %v360 = vpack.c.bf16 %v309, %v308
  %v361 = vpack.c.bf16 %v311, %v310
  %v362 = vpack.c.bf16 %v313, %v312
  %v363 = vpack.c.bf16 %v315, %v314
  %v364 = vpack.c.bf16 %v317, %v316
  %v365 = vpack.c.bf16 %v319, %v318
  %v366 = vpack.c.bf16 %v321, %v320
  %v367 = vpack.c.bf16 %v323, %v322
  %v368 = vpack.c.bf16 %v325, %v324
  %v369 = vpack.c.bf16 %v327, %v326
  %v370 = vpack.c.bf16 %v329, %v328
  %v371 = vpack.c.bf16 %v331, %v330
  %v372 = vpack.c.bf16 %v333, %v332
  %v373 = vpack.c.bf16 %v335, %v334
  %v374 = vpack.c.bf16 %v337, %v336
  %v375 = vpack.c.bf16 %v339, %v338
  %v376 = vpack.c.bf16 %v341, %v340
  %v377 = vpack.c.bf16 %v343, %v342
  %v378 = vpack.c.bf16 %v345, %v344
  %v379 = vpack.c.bf16 %v347, %v346
  %v412 = vunpack.c.l.b16 %v348
  %v413 = vunpack.c.h.b16 %v348
  %v414 = vunpack.c.l.b16 %v349
  %v415 = vunpack.c.h.b16 %v349
  %v416 = vunpack.c.l.b16 %v350
  %v417 = vunpack.c.h.b16 %v350
  %v418 = vunpack.c.l.b16 %v351
  %v419 = vunpack.c.h.b16 %v351
  %v420 = vunpack.c.l.b16 %v352
  %v421 = vunpack.c.h.b16 %v352
  %v422 = vunpack.c.l.b16 %v353
  %v423 = vunpack.c.h.b16 %v353
  %v424 = vunpack.c.l.b16 %v354
  %v425 = vunpack.c.h.b16 %v354
  %v426 = vunpack.c.l.b16 %v355
  %v427 = vunpack.c.h.b16 %v355
  %v428 = vunpack.c.l.b16 %v356
  %v429 = vunpack.c.h.b16 %v356
  %v430 = vunpack.c.l.b16 %v357
  %v431 = vunpack.c.h.b16 %v357
  %v432 = vunpack.c.l.b16 %v358
  %v433 = vunpack.c.h.b16 %v358
  %v434 = vunpack.c.l.b16 %v359
  %v435 = vunpack.c.h.b16 %v359
  %v436 = vunpack.c.l.b16 %v360
  %v437 = vunpack.c.h.b16 %v360
  %v438 = vunpack.c.l.b16 %v361
  %v439 = vunpack.c.h.b16 %v361
  %v440 = vunpack.c.l.b16 %v362
  %v441 = vunpack.c.h.b16 %v362
  %v442 = vunpack.c.l.b16 %v363
  %v443 = vunpack.c.h.b16 %v363
  %v444 = vunpack.c.l.b16 %v364
  %v445 = vunpack.c.h.b16 %v364
  %v446 = vunpack.c.l.b16 %v365
  %v447 = vunpack.c.h.b16 %v365
  %v448 = vunpack.c.l.b16 %v366
  %v449 = vunpack.c.h.b16 %v366
  %v450 = vunpack.c.l.b16 %v367
  %v451 = vunpack.c.h.b16 %v367
  %v452 = vunpack.c.l.b16 %v368
  %v453 = vunpack.c.h.b16 %v368
  %v454 = vunpack.c.l.b16 %v369
  %v455 = vunpack.c.h.b16 %v369
  %v456 = vunpack.c.l.b16 %v370
  %v457 = vunpack.c.h.b16 %v370
  %v458 = vunpack.c.l.b16 %v371
  %v459 = vunpack.c.h.b16 %v371
  %v460 = vunpack.c.l.b16 %v372
  %v461 = vunpack.c.h.b16 %v372
  %v462 = vunpack.c.l.b16 %v373
  %v463 = vunpack.c.h.b16 %v373
  %v464 = vunpack.c.l.b16 %v374
  %v465 = vunpack.c.h.b16 %v374
  %v466 = vunpack.c.l.b16 %v375
  %v467 = vunpack.c.h.b16 %v375
  %v468 = vunpack.c.l.b16 %v376
  %v469 = vunpack.c.h.b16 %v376
  %v470 = vunpack.c.l.b16 %v377
  %v471 = vunpack.c.h.b16 %v377
  %v472 = vunpack.c.l.b16 %v378
  %v473 = vunpack.c.h.b16 %v378
  %v474 = vunpack.c.l.b16 %v379
  %v475 = vunpack.c.h.b16 %v379
  %v476 = vpack.c.b16 %v412, %v412
  %v477 = vpack.c.b16 %v413, %v413
  %v478 = vpack.c.b16 %v414, %v414
  %v479 = vpack.c.b16 %v415, %v415
  %v480 = vpack.c.b16 %v416, %v416
  %v481 = vpack.c.b16 %v417, %v417
  %v482 = vpack.c.b16 %v418, %v418
  %v483 = vpack.c.b16 %v419, %v419
  %v484 = vpack.c.b16 %v420, %v420
  %v485 = vpack.c.b16 %v421, %v421
  %v486 = vpack.c.b16 %v422, %v422
  %v487 = vpack.c.b16 %v423, %v423
  %v488 = vpack.c.b16 %v424, %v424
  %v489 = vpack.c.b16 %v425, %v425
  %v490 = vpack.c.b16 %v426, %v426
  %v491 = vpack.c.b16 %v427, %v427
  %v492 = vpack.c.b16 %v428, %v428
  %v493 = vpack.c.b16 %v429, %v429
  %v494 = vpack.c.b16 %v430, %v430
  %v495 = vpack.c.b16 %v431, %v431
  %v496 = vpack.c.b16 %v432, %v432
  %v497 = vpack.c.b16 %v433, %v433
  %v498 = vpack.c.b16 %v434, %v434
  %v499 = vpack.c.b16 %v435, %v435
  %v500 = vpack.c.b16 %v436, %v436
  %v501 = vpack.c.b16 %v437, %v437
  %v502 = vpack.c.b16 %v438, %v438
  %v503 = vpack.c.b16 %v439, %v439
  %v504 = vpack.c.b16 %v440, %v440
  %v505 = vpack.c.b16 %v441, %v441
  %v506 = vpack.c.b16 %v442, %v442
  %v507 = vpack.c.b16 %v443, %v443
  %v508 = vpack.c.b16 %v444, %v444
  %v509 = vpack.c.b16 %v445, %v445
  %v510 = vpack.c.b16 %v446, %v446
  %v511 = vpack.c.b16 %v447, %v447
  %v512 = vpack.c.b16 %v448, %v448
  %v513 = vpack.c.b16 %v449, %v449
  %v514 = vpack.c.b16 %v450, %v450
  %v515 = vpack.c.b16 %v451, %v451
  %v516 = vpack.c.b16 %v452, %v452
  %v517 = vpack.c.b16 %v453, %v453
  %v518 = vpack.c.b16 %v454, %v454
  %v519 = vpack.c.b16 %v455, %v455
  %v520 = vpack.c.b16 %v456, %v456
  %v521 = vpack.c.b16 %v457, %v457
  %v522 = vpack.c.b16 %v458, %v458
  %v523 = vpack.c.b16 %v459, %v459
  %v524 = vpack.c.b16 %v460, %v460
  %v525 = vpack.c.b16 %v461, %v461
  %v526 = vpack.c.b16 %v462, %v462
  %v527 = vpack.c.b16 %v463, %v463
  %v528 = vpack.c.b16 %v464, %v464
  %v529 = vpack.c.b16 %v465, %v465
  %v530 = vpack.c.b16 %v466, %v466
  %v531 = vpack.c.b16 %v467, %v467
  %v532 = vpack.c.b16 %v468, %v468
  %v533 = vpack.c.b16 %v469, %v469
  %v534 = vpack.c.b16 %v470, %v470
  %v535 = vpack.c.b16 %v471, %v471
  %v536 = vpack.c.b16 %v472, %v472
  %v537 = vpack.c.b16 %v473, %v473
  %v538 = vpack.c.b16 %v474, %v474
  %v539 = vpack.c.b16 %v475, %v475
  %604 = vst [vmem:[%s3] sm:$0xf] %v476
  %605 = vst [vmem:[%s3 + $0x4] sm:$0xf] %v477
  %606 = vst [vmem:[%s3 + $0x8] sm:$0xf] %v478
  %607 = vst [vmem:[%s3 + $0xc] sm:$0xf] %v479
  %608 = vst [vmem:[%s3 + $0x10] sm:$0xf] %v480
  %609 = vst [vmem:[%s3 + $0x14] sm:$0xf] %v481
  %610 = vst [vmem:[%s3 + $0x18] sm:$0xf] %v482
  %611 = vst [vmem:[%s3 + $0x1c] sm:$0xf] %v483
  %612 = vst [vmem:[%s3 + $0x20] sm:$0xf] %v484
  %613 = vst [vmem:[%s3 + $0x24] sm:$0xf] %v485
  %614 = vst [vmem:[%s3 + $0x28] sm:$0xf] %v486
  %615 = vst [vmem:[%s3 + $0x2c] sm:$0xf] %v487
  %616 = vst [vmem:[%s3 + $0x30] sm:$0xf] %v488
  %617 = vst [vmem:[%s3 + $0x34] sm:$0xf] %v489
  %618 = vst [vmem:[%s3 + $0x38] sm:$0xf] %v490
  %619 = vst [vmem:[%s3 + $0x3c] sm:$0xf] %v491
  %620 = vst [vmem:[%s3 + $0x40] sm:$0xf] %v492
  %621 = vst [vmem:[%s3 + $0x44] sm:$0xf] %v493
  %622 = vst [vmem:[%s3 + $0x48] sm:$0xf] %v494
  %623 = vst [vmem:[%s3 + $0x4c] sm:$0xf] %v495
  %624 = vst [vmem:[%s3 + $0x50] sm:$0xf] %v496
  %625 = vst [vmem:[%s3 + $0x54] sm:$0xf] %v497
  %626 = vst [vmem:[%s3 + $0x58] sm:$0xf] %v498
  %627 = vst [vmem:[%s3 + $0x5c] sm:$0xf] %v499
  %628 = vst [vmem:[%s3 + $0x60] sm:$0xf] %v500
  %629 = vst [vmem:[%s3 + $0x64] sm:$0xf] %v501
  %630 = vst [vmem:[%s3 + $0x68] sm:$0xf] %v502
  %631 = vst [vmem:[%s3 + $0x6c] sm:$0xf] %v503
  %632 = vst [vmem:[%s3 + $0x70] sm:$0xf] %v504
  %633 = vst [vmem:[%s3 + $0x74] sm:$0xf] %v505
  %634 = vst [vmem:[%s3 + $0x78] sm:$0xf] %v506
  %635 = vst [vmem:[%s3 + $0x7c] sm:$0xf] %v507
  %636 = vst [vmem:[%s3 + $0x80] sm:$0xf] %v508
  %637 = vst [vmem:[%s3 + $0x84] sm:$0xf] %v509
  %638 = vst [vmem:[%s3 + $0x88] sm:$0xf] %v510
  %639 = vst [vmem:[%s3 + $0x8c] sm:$0xf] %v511
  %640 = vst [vmem:[%s3 + $0x90] sm:$0xf] %v512
  %641 = vst [vmem:[%s3 + $0x94] sm:$0xf] %v513
  %642 = vst [vmem:[%s3 + $0x98] sm:$0xf] %v514
  %643 = vst [vmem:[%s3 + $0x9c] sm:$0xf] %v515
  %644 = vst [vmem:[%s3 + $0xa0] sm:$0xf] %v516
  %645 = vst [vmem:[%s3 + $0xa4] sm:$0xf] %v517
  %646 = vst [vmem:[%s3 + $0xa8] sm:$0xf] %v518
  %647 = vst [vmem:[%s3 + $0xac] sm:$0xf] %v519
  %648 = vst [vmem:[%s3 + $0xb0] sm:$0xf] %v520
  %649 = vst [vmem:[%s3 + $0xb4] sm:$0xf] %v521
  %650 = vst [vmem:[%s3 + $0xb8] sm:$0xf] %v522
  %651 = vst [vmem:[%s3 + $0xbc] sm:$0xf] %v523
  %652 = vst [vmem:[%s3 + $0xc0] sm:$0xf] %v524
  %653 = vst [vmem:[%s3 + $0xc4] sm:$0xf] %v525
  %654 = vst [vmem:[%s3 + $0xc8] sm:$0xf] %v526
  %655 = vst [vmem:[%s3 + $0xcc] sm:$0xf] %v527
  %656 = vst [vmem:[%s3 + $0xd0] sm:$0xf] %v528
  %657 = vst [vmem:[%s3 + $0xd4] sm:$0xf] %v529
  %658 = vst [vmem:[%s3 + $0xd8] sm:$0xf] %v530
  %659 = vst [vmem:[%s3 + $0xdc] sm:$0xf] %v531
  %660 = vst [vmem:[%s3 + $0xe0] sm:$0xf] %v532
  %661 = vst [vmem:[%s3 + $0xe4] sm:$0xf] %v533
  %662 = vst [vmem:[%s3 + $0xe8] sm:$0xf] %v534
  %663 = vst [vmem:[%s3 + $0xec] sm:$0xf] %v535
  %664 = vst [vmem:[%s3 + $0xf0] sm:$0xf] %v536
  %665 = vst [vmem:[%s3 + $0xf4] sm:$0xf] %v537
  %666 = vst [vmem:[%s3 + $0xf8] sm:$0xf] %v538
  %667 = vst [vmem:[%s3 + $0xfc] sm:$0xf] %v539
  // Predicated region
  $region14: #{generator_forward.16} parent=0 // pred_check
    _
  $region15: #{generator_forward.16} parent=0 // pred_check_branch
    %669 = sbr.rel (0) target = $region17
  $region16: #{generator_forward.16} parent=0 // pred_region
    _
  $region17: #{generator_forward.16} parent=0 // pred_fallthru
    _
  // Predicated region
  $region18: #{generator_forward.16} parent=0 // pred_check
    _
  $region19: #{generator_forward.16} parent=0 // pred_check_branch
    %671 = sbr.rel (0) target = $region21
  $region20: #{generator_forward.16} parent=0 // pred_region
    _
  $region21: #{generator_forward.16} parent=0 // pred_fallthru
    _

// kernel: generator_forward.17
$region0: #{generator_forward.17}
  #allocation0 [shape = 'u32[]', space=smem, size = 0x4, offset = 0x4, fixed_abs, tag = 'smem constant byte address 0x4 - core index']
  #allocation1 [shape = 'u32[144,128]{1,0:T(1,128)}', space=vmem, size = 0x12000, scoped, tag = 'internal scratch']
  %s0 = inlined_call_operand.vmem [shape: bf16[2048,72], index: 0, kind: input, shape index: {}]
  %s1 = inlined_call_operand.vmem [shape: bf16[72,128], index: 1, kind: input, shape index: {}]
  %s2 = inlined_call_operand.vmem [shape: f32[2048,128], index: 2, kind: output, shape index: {}]
  %s3 = sld [smem:[#allocation0]]
  $region18: #{generator_forward.17} parent=0
    _
  %s5 = ssub.s32 1, %s3
  %s6 = scalar_select 0, %s5, %s3
  // Predicated region
  $region2: #{generator_forward.17} parent=0 // pred_check
    _
  $region3: #{generator_forward.17} parent=0 // pred_check_branch
    %8 = sbr.rel (0) target = $region5
  $region4: #{generator_forward.17} parent=0 // pred_region
    _
  $region5: #{generator_forward.17} parent=0 // pred_fallthru
    _
  // Predicated region
  $region6: #{generator_forward.17} parent=0 // pred_check
    _
  $region7: #{generator_forward.17} parent=0 // pred_check_branch
    %10 = sbr.rel (0) target = $region9
  $region8: #{generator_forward.17} parent=0 // pred_region
    _
  $region9: #{generator_forward.17} parent=0 // pred_fallthru
    _
  %v12 = vld [vmem:[%s0] sm:$0xf]
  %v13 = vld [vmem:[%s0 + $0x4] sm:$0xf]
  %v14 = vld [vmem:[%s0 + $0x8] sm:$0xf]
  %v15 = vld [vmem:[%s0 + $0xc] sm:$0xf]
  %v16 = vld [vmem:[%s0 + $0x10] sm:$0xf]
  %v17 = vld [vmem:[%s0 + $0x14] sm:$0xf]
  %v18 = vld [vmem:[%s0 + $0x18] sm:$0xf]
  %v19 = vld [vmem:[%s0 + $0x1c] sm:$0xf]
  %v20 = vld [vmem:[%s0 + $0x20] sm:$0xf]
  %v21 = vld [vmem:[%s0 + $0x24] sm:$0xf]
  %v22 = vld [vmem:[%s0 + $0x28] sm:$0xf]
  %v23 = vld [vmem:[%s0 + $0x2c] sm:$0xf]
  %v24 = vld [vmem:[%s0 + $0x30] sm:$0xf]
  %v25 = vld [vmem:[%s0 + $0x34] sm:$0xf]
  %v26 = vld [vmem:[%s0 + $0x38] sm:$0xf]
  %v27 = vld [vmem:[%s0 + $0x3c] sm:$0xf]
  %v28 = vld [vmem:[%s0 + $0x40] sm:$0xf]
  %v29 = vld [vmem:[%s0 + $0x44] sm:$0xf]
  %v30 = vld [vmem:[%s0 + $0x48] sm:$0xf]
  %v31 = vld [vmem:[%s0 + $0x4c] sm:$0xf]
  %v32 = vld [vmem:[%s0 + $0x50] sm:$0xf]
  %v33 = vld [vmem:[%s0 + $0x54] sm:$0xf]
  %v34 = vld [vmem:[%s0 + $0x58] sm:$0xf]
  %v35 = vld [vmem:[%s0 + $0x5c] sm:$0xf]
  %v36 = vld [vmem:[%s0 + $0x60] sm:$0xf]
  %v37 = vld [vmem:[%s0 + $0x64] sm:$0xf]
  %v38 = vld [vmem:[%s0 + $0x68] sm:$0xf]
  %v39 = vld [vmem:[%s0 + $0x6c] sm:$0xf]
  %v40 = vld [vmem:[%s0 + $0x70] sm:$0xf]
  %v41 = vld [vmem:[%s0 + $0x74] sm:$0xf]
  %v42 = vld [vmem:[%s0 + $0x78] sm:$0xf]
  %v43 = vld [vmem:[%s0 + $0x7c] sm:$0xf]
  %v44 = vld [vmem:[%s0 + $0x80] sm:$0xf]
  %v45 = vld [vmem:[%s0 + $0x84] sm:$0xf]
  %v46 = vld [vmem:[%s0 + $0x88] sm:$0xf]
  %v47 = vld [vmem:[%s0 + $0x8c] sm:$0xf]
  %v48 = vld [vmem:[%s0 + $0x90] sm:$0xf]
  %v49 = vld [vmem:[%s0 + $0x94] sm:$0xf]
  %v50 = vld [vmem:[%s0 + $0x98] sm:$0xf]
  %v51 = vld [vmem:[%s0 + $0x9c] sm:$0xf]
  %v52 = vld [vmem:[%s0 + $0xa0] sm:$0xf]
  %v53 = vld [vmem:[%s0 + $0xa4] sm:$0xf]
  %v54 = vld [vmem:[%s0 + $0xa8] sm:$0xf]
  %v55 = vld [vmem:[%s0 + $0xac] sm:$0xf]
  %v56 = vld [vmem:[%s0 + $0xb0] sm:$0xf]
  %v57 = vld [vmem:[%s0 + $0xb4] sm:$0xf]
  %v58 = vld [vmem:[%s0 + $0xb8] sm:$0xf]
  %v59 = vld [vmem:[%s0 + $0xbc] sm:$0xf]
  %v60 = vld [vmem:[%s0 + $0xc0] sm:$0xf]
  %v61 = vld [vmem:[%s0 + $0xc4] sm:$0xf]
  %v62 = vld [vmem:[%s0 + $0xc8] sm:$0xf]
  %v63 = vld [vmem:[%s0 + $0xcc] sm:$0xf]
  %v64 = vld [vmem:[%s0 + $0xd0] sm:$0xf]
  %v65 = vld [vmem:[%s0 + $0xd4] sm:$0xf]
  %v66 = vld [vmem:[%s0 + $0xd8] sm:$0xf]
  %v67 = vld [vmem:[%s0 + $0xdc] sm:$0xf]
  %v68 = vld [vmem:[%s0 + $0xe0] sm:$0xf]
  %v69 = vld [vmem:[%s0 + $0xe4] sm:$0xf]
  %v70 = vld [vmem:[%s0 + $0xe8] sm:$0xf]
  %v71 = vld [vmem:[%s0 + $0xec] sm:$0xf]
  %v72 = vld [vmem:[%s0 + $0xf0] sm:$0xf]
  %v73 = vld [vmem:[%s0 + $0xf4] sm:$0xf]
  %v74 = vld [vmem:[%s0 + $0xf8] sm:$0xf]
  %v75 = vld [vmem:[%s0 + $0xfc] sm:$0xf]
  %v76 = vld [vmem:[%s0 + $0x100] sm:$0xf]
  %v77 = vld [vmem:[%s0 + $0x104] sm:$0xf]
  %v78 = vld [vmem:[%s0 + $0x108] sm:$0xf]
  %v79 = vld [vmem:[%s0 + $0x10c] sm:$0xf]
  %v80 = vld [vmem:[%s0 + $0x110] sm:$0xf]
  %v81 = vld [vmem:[%s0 + $0x114] sm:$0xf]
  %v82 = vld [vmem:[%s0 + $0x118] sm:$0xf]
  %v83 = vld [vmem:[%s0 + $0x11c] sm:$0xf]
  %v84 = vld [vmem:[%s0 + $0x120] sm:$0xf]
  %v85 = vld [vmem:[%s0 + $0x124] sm:$0xf]
  %v86 = vld [vmem:[%s0 + $0x128] sm:$0xf]
  %v87 = vld [vmem:[%s0 + $0x12c] sm:$0xf]
  %v88 = vld [vmem:[%s0 + $0x130] sm:$0xf]
  %v89 = vld [vmem:[%s0 + $0x134] sm:$0xf]
  %v90 = vld [vmem:[%s0 + $0x138] sm:$0xf]
  %v91 = vld [vmem:[%s0 + $0x13c] sm:$0xf]
  %v92 = vld [vmem:[%s0 + $0x140] sm:$0xf]
  %v93 = vld [vmem:[%s0 + $0x144] sm:$0xf]
  %v94 = vld [vmem:[%s0 + $0x148] sm:$0xf]
  %v95 = vld [vmem:[%s0 + $0x14c] sm:$0xf]
  %v96 = vld [vmem:[%s0 + $0x150] sm:$0xf]
  %v97 = vld [vmem:[%s0 + $0x154] sm:$0xf]
  %v98 = vld [vmem:[%s0 + $0x158] sm:$0xf]
  %v99 = vld [vmem:[%s0 + $0x15c] sm:$0xf]
  %v100 = vld [vmem:[%s0 + $0x160] sm:$0xf]
  %v101 = vld [vmem:[%s0 + $0x164] sm:$0xf]
  %v102 = vld [vmem:[%s0 + $0x168] sm:$0xf]
  %v103 = vld [vmem:[%s0 + $0x16c] sm:$0xf]
  %v104 = vld [vmem:[%s0 + $0x170] sm:$0xf]
  %v105 = vld [vmem:[%s0 + $0x174] sm:$0xf]
  %v106 = vld [vmem:[%s0 + $0x178] sm:$0xf]
  %v107 = vld [vmem:[%s0 + $0x17c] sm:$0xf]
  %v108 = vld [vmem:[%s0 + $0x180] sm:$0xf]
  %v109 = vld [vmem:[%s0 + $0x184] sm:$0xf]
  %v110 = vld [vmem:[%s0 + $0x188] sm:$0xf]
  %v111 = vld [vmem:[%s0 + $0x18c] sm:$0xf]
  %v112 = vld [vmem:[%s0 + $0x190] sm:$0xf]
  %v113 = vld [vmem:[%s0 + $0x194] sm:$0xf]
  %v114 = vld [vmem:[%s0 + $0x198] sm:$0xf]
  %v115 = vld [vmem:[%s0 + $0x19c] sm:$0xf]
  %v116 = vld [vmem:[%s0 + $0x1a0] sm:$0xf]
  %v117 = vld [vmem:[%s0 + $0x1a4] sm:$0xf]
  %v118 = vld [vmem:[%s0 + $0x1a8] sm:$0xf]
  %v119 = vld [vmem:[%s0 + $0x1ac] sm:$0xf]
  %v120 = vld [vmem:[%s0 + $0x1b0] sm:$0xf]
  %v121 = vld [vmem:[%s0 + $0x1b4] sm:$0xf]
  %v122 = vld [vmem:[%s0 + $0x1b8] sm:$0xf]
  %v123 = vld [vmem:[%s0 + $0x1bc] sm:$0xf]
  %v124 = vld [vmem:[%s0 + $0x1c0] sm:$0xf]
  %v125 = vld [vmem:[%s0 + $0x1c4] sm:$0xf]
  %v126 = vld [vmem:[%s0 + $0x1c8] sm:$0xf]
  %v127 = vld [vmem:[%s0 + $0x1cc] sm:$0xf]
  %v128 = vld [vmem:[%s0 + $0x1d0] sm:$0xf]
  %v129 = vld [vmem:[%s0 + $0x1d4] sm:$0xf]
  %v130 = vld [vmem:[%s0 + $0x1d8] sm:$0xf]
  %v131 = vld [vmem:[%s0 + $0x1dc] sm:$0xf]
  %v132 = vld [vmem:[%s0 + $0x1e0] sm:$0xf]
  %v133 = vld [vmem:[%s0 + $0x1e4] sm:$0xf]
  %v134 = vld [vmem:[%s0 + $0x1e8] sm:$0xf]
  %v135 = vld [vmem:[%s0 + $0x1ec] sm:$0xf]
  %v136 = vld [vmem:[%s0 + $0x1f0] sm:$0xf]
  %v137 = vld [vmem:[%s0 + $0x1f4] sm:$0xf]
  %v138 = vld [vmem:[%s0 + $0x1f8] sm:$0xf]
  %v139 = vld [vmem:[%s0 + $0x1fc] sm:$0xf]
  %v140 = vld [vmem:[%s0 + $0x200] sm:$0xf]
  %v141 = vld [vmem:[%s0 + $0x204] sm:$0xf]
  %v142 = vld [vmem:[%s0 + $0x208] sm:$0xf]
  %v143 = vld [vmem:[%s0 + $0x20c] sm:$0xf]
  %v144 = vld [vmem:[%s0 + $0x210] sm:$0xf]
  %v145 = vld [vmem:[%s0 + $0x214] sm:$0xf]
  %v146 = vld [vmem:[%s0 + $0x218] sm:$0xf]
  %v147 = vld [vmem:[%s0 + $0x21c] sm:$0xf]
  %v148 = vld [vmem:[%s0 + $0x220] sm:$0xf]
  %v149 = vld [vmem:[%s0 + $0x224] sm:$0xf]
  %v150 = vld [vmem:[%s0 + $0x228] sm:$0xf]
  %v151 = vld [vmem:[%s0 + $0x22c] sm:$0xf]
  %v152 = vld [vmem:[%s0 + $0x230] sm:$0xf]
  %v153 = vld [vmem:[%s0 + $0x234] sm:$0xf]
  %v154 = vld [vmem:[%s0 + $0x238] sm:$0xf]
  %v155 = vld [vmem:[%s0 + $0x23c] sm:$0xf]
  %v156 = vld [vmem:[%s0 + $0x240] sm:$0xf]
  %v157 = vld [vmem:[%s0 + $0x244] sm:$0xf]
  %v158 = vld [vmem:[%s0 + $0x248] sm:$0xf]
  %v159 = vld [vmem:[%s0 + $0x24c] sm:$0xf]
  %v160 = vld [vmem:[%s0 + $0x250] sm:$0xf]
  %v161 = vld [vmem:[%s0 + $0x254] sm:$0xf]
  %v162 = vld [vmem:[%s0 + $0x258] sm:$0xf]
  %v163 = vld [vmem:[%s0 + $0x25c] sm:$0xf]
  %v164 = vld [vmem:[%s0 + $0x260] sm:$0xf]
  %v165 = vld [vmem:[%s0 + $0x264] sm:$0xf]
  %v166 = vld [vmem:[%s0 + $0x268] sm:$0xf]
  %v167 = vld [vmem:[%s0 + $0x26c] sm:$0xf]
  %v168 = vld [vmem:[%s0 + $0x270] sm:$0xf]
  %v169 = vld [vmem:[%s0 + $0x274] sm:$0xf]
  %v170 = vld [vmem:[%s0 + $0x278] sm:$0xf]
  %v171 = vld [vmem:[%s0 + $0x27c] sm:$0xf]
  %v172 = vld [vmem:[%s0 + $0x280] sm:$0xf]
  %v173 = vld [vmem:[%s0 + $0x284] sm:$0xf]
  %v174 = vld [vmem:[%s0 + $0x288] sm:$0xf]
  %v175 = vld [vmem:[%s0 + $0x28c] sm:$0xf]
  %v176 = vld [vmem:[%s0 + $0x290] sm:$0xf]
  %v177 = vld [vmem:[%s0 + $0x294] sm:$0xf]
  %v178 = vld [vmem:[%s0 + $0x298] sm:$0xf]
  %v179 = vld [vmem:[%s0 + $0x29c] sm:$0xf]
  %v180 = vld [vmem:[%s0 + $0x2a0] sm:$0xf]
  %v181 = vld [vmem:[%s0 + $0x2a4] sm:$0xf]
  %v182 = vld [vmem:[%s0 + $0x2a8] sm:$0xf]
  %v183 = vld [vmem:[%s0 + $0x2ac] sm:$0xf]
  %v184 = vld [vmem:[%s0 + $0x2b0] sm:$0xf]
  %v185 = vld [vmem:[%s0 + $0x2b4] sm:$0xf]
  %v186 = vld [vmem:[%s0 + $0x2b8] sm:$0xf]
  %v187 = vld [vmem:[%s0 + $0x2bc] sm:$0xf]
  %v188 = vld [vmem:[%s0 + $0x2c0] sm:$0xf]
  %v189 = vld [vmem:[%s0 + $0x2c4] sm:$0xf]
  %v190 = vld [vmem:[%s0 + $0x2c8] sm:$0xf]
  %v191 = vld [vmem:[%s0 + $0x2cc] sm:$0xf]
  %v192 = vld [vmem:[%s0 + $0x2d0] sm:$0xf]
  %v193 = vld [vmem:[%s0 + $0x2d4] sm:$0xf]
  %v194 = vld [vmem:[%s0 + $0x2d8] sm:$0xf]
  %v195 = vld [vmem:[%s0 + $0x2dc] sm:$0xf]
  %v196 = vld [vmem:[%s0 + $0x2e0] sm:$0xf]
  %v197 = vld [vmem:[%s0 + $0x2e4] sm:$0xf]
  %v198 = vld [vmem:[%s0 + $0x2e8] sm:$0xf]
  %v199 = vld [vmem:[%s0 + $0x2ec] sm:$0xf]
  %v200 = vld [vmem:[%s0 + $0x2f0] sm:$0xf]
  %v201 = vld [vmem:[%s0 + $0x2f4] sm:$0xf]
  %v202 = vld [vmem:[%s0 + $0x2f8] sm:$0xf]
  %v203 = vld [vmem:[%s0 + $0x2fc] sm:$0xf]
  %v204 = vld [vmem:[%s0 + $0x300] sm:$0xf]
  %v205 = vld [vmem:[%s0 + $0x304] sm:$0xf]
  %v206 = vld [vmem:[%s0 + $0x308] sm:$0xf]
  %v207 = vld [vmem:[%s0 + $0x30c] sm:$0xf]
  %v208 = vld [vmem:[%s0 + $0x310] sm:$0xf]
  %v209 = vld [vmem:[%s0 + $0x314] sm:$0xf]
  %v210 = vld [vmem:[%s0 + $0x318] sm:$0xf]
  %v211 = vld [vmem:[%s0 + $0x31c] sm:$0xf]
  %v212 = vld [vmem:[%s0 + $0x320] sm:$0xf]
  %v213 = vld [vmem:[%s0 + $0x324] sm:$0xf]
  %v214 = vld [vmem:[%s0 + $0x328] sm:$0xf]
  %v215 = vld [vmem:[%s0 + $0x32c] sm:$0xf]
  %v216 = vld [vmem:[%s0 + $0x330] sm:$0xf]
  %v217 = vld [vmem:[%s0 + $0x334] sm:$0xf]
  %v218 = vld [vmem:[%s0 + $0x338] sm:$0xf]
  %v219 = vld [vmem:[%s0 + $0x33c] sm:$0xf]
  %v220 = vld [vmem:[%s0 + $0x340] sm:$0xf]
  %v221 = vld [vmem:[%s0 + $0x344] sm:$0xf]
  %v222 = vld [vmem:[%s0 + $0x348] sm:$0xf]
  %v223 = vld [vmem:[%s0 + $0x34c] sm:$0xf]
  %v224 = vld [vmem:[%s0 + $0x350] sm:$0xf]
  %v225 = vld [vmem:[%s0 + $0x354] sm:$0xf]
  %v226 = vld [vmem:[%s0 + $0x358] sm:$0xf]
  %v227 = vld [vmem:[%s0 + $0x35c] sm:$0xf]
  %v228 = vld [vmem:[%s0 + $0x360] sm:$0xf]
  %v229 = vld [vmem:[%s0 + $0x364] sm:$0xf]
  %v230 = vld [vmem:[%s0 + $0x368] sm:$0xf]
  %v231 = vld [vmem:[%s0 + $0x36c] sm:$0xf]
  %v232 = vld [vmem:[%s0 + $0x370] sm:$0xf]
  %v233 = vld [vmem:[%s0 + $0x374] sm:$0xf]
  %v234 = vld [vmem:[%s0 + $0x378] sm:$0xf]
  %v235 = vld [vmem:[%s0 + $0x37c] sm:$0xf]
  %v236 = vld [vmem:[%s0 + $0x380] sm:$0xf]
  %v237 = vld [vmem:[%s0 + $0x384] sm:$0xf]
  %v238 = vld [vmem:[%s0 + $0x388] sm:$0xf]
  %v239 = vld [vmem:[%s0 + $0x38c] sm:$0xf]
  %v240 = vld [vmem:[%s0 + $0x390] sm:$0xf]
  %v241 = vld [vmem:[%s0 + $0x394] sm:$0xf]
  %v242 = vld [vmem:[%s0 + $0x398] sm:$0xf]
  %v243 = vld [vmem:[%s0 + $0x39c] sm:$0xf]
  %v244 = vld [vmem:[%s0 + $0x3a0] sm:$0xf]
  %v245 = vld [vmem:[%s0 + $0x3a4] sm:$0xf]
  %v246 = vld [vmem:[%s0 + $0x3a8] sm:$0xf]
  %v247 = vld [vmem:[%s0 + $0x3ac] sm:$0xf]
  %v248 = vld [vmem:[%s0 + $0x3b0] sm:$0xf]
  %v249 = vld [vmem:[%s0 + $0x3b4] sm:$0xf]
  %v250 = vld [vmem:[%s0 + $0x3b8] sm:$0xf]
  %v251 = vld [vmem:[%s0 + $0x3bc] sm:$0xf]
  %v252 = vld [vmem:[%s0 + $0x3c0] sm:$0xf]
  %v253 = vld [vmem:[%s0 + $0x3c4] sm:$0xf]
  %v254 = vld [vmem:[%s0 + $0x3c8] sm:$0xf]
  %v255 = vld [vmem:[%s0 + $0x3cc] sm:$0xf]
  %v256 = vld [vmem:[%s0 + $0x3d0] sm:$0xf]
  %v257 = vld [vmem:[%s0 + $0x3d4] sm:$0xf]
  %v258 = vld [vmem:[%s0 + $0x3d8] sm:$0xf]
  %v259 = vld [vmem:[%s0 + $0x3dc] sm:$0xf]
  %v260 = vld [vmem:[%s0 + $0x3e0] sm:$0xf]
  %v261 = vld [vmem:[%s0 + $0x3e4] sm:$0xf]
  %v262 = vld [vmem:[%s0 + $0x3e8] sm:$0xf]
  %v263 = vld [vmem:[%s0 + $0x3ec] sm:$0xf]
  %v264 = vld [vmem:[%s0 + $0x3f0] sm:$0xf]
  %v265 = vld [vmem:[%s0 + $0x3f4] sm:$0xf]
  %v266 = vld [vmem:[%s0 + $0x3f8] sm:$0xf]
  %v267 = vld [vmem:[%s0 + $0x3fc] sm:$0xf]
  %v268 = vld [vmem:[%s1] sm:$0xf]
  %v269 = vld [vmem:[%s1 + $0x4] sm:$0xf]
  %v270 = vld [vmem:[%s1 + $0x8] sm:$0xf]
  %v271 = vld [vmem:[%s1 + $0xc] sm:$0xf]
  %v272 = vld [vmem:[%s1 + $0x10] sm:$0xf]
  %v273 = vld [vmem:[%s1 + $0x14] sm:$0xf]
  %v274 = vld [vmem:[%s1 + $0x18] sm:$0xf]
  %v275 = vld [vmem:[%s1 + $0x1c] sm:$0xf]
  %v276 = vld [vmem:[%s1 + $0x20] sm:$0xf]
  %v533 = vunpack.c.l.b16 %v12
  %v534 = vunpack.c.l.b16 %v13
  %v535 = vunpack.c.l.b16 %v14
  %v536 = vunpack.c.l.b16 %v15
  %v537 = vunpack.c.l.b16 %v16
  %v538 = vunpack.c.l.b16 %v17
  %v539 = vunpack.c.l.b16 %v18
  %v540 = vunpack.c.l.b16 %v19
  %v541 = vunpack.c.l.b16 %v20
  %v542 = vunpack.c.l.b16 %v21
  %v543 = vunpack.c.l.b16 %v22
  %v544 = vunpack.c.l.b16 %v23
  %v545 = vunpack.c.l.b16 %v24
  %v546 = vunpack.c.l.b16 %v25
  %v547 = vunpack.c.l.b16 %v26
  %v548 = vunpack.c.l.b16 %v27
  %v549 = vunpack.c.l.b16 %v28
  %v550 = vunpack.c.l.b16 %v29
  %v551 = vunpack.c.l.b16 %v30
  %v552 = vunpack.c.l.b16 %v31
  %v553 = vunpack.c.l.b16 %v32
  %v554 = vunpack.c.l.b16 %v33
  %v555 = vunpack.c.l.b16 %v34
  %v556 = vunpack.c.l.b16 %v35
  %v557 = vunpack.c.l.b16 %v36
  %v558 = vunpack.c.l.b16 %v37
  %v559 = vunpack.c.l.b16 %v38
  %v560 = vunpack.c.l.b16 %v39
  %v561 = vunpack.c.l.b16 %v40
  %v562 = vunpack.c.l.b16 %v41
  %v563 = vunpack.c.l.b16 %v42
  %v564 = vunpack.c.l.b16 %v43
  %v565 = vunpack.c.l.b16 %v44
  %v566 = vunpack.c.l.b16 %v45
  %v567 = vunpack.c.l.b16 %v46
  %v568 = vunpack.c.l.b16 %v47
  %v569 = vunpack.c.l.b16 %v48
  %v570 = vunpack.c.l.b16 %v49
  %v571 = vunpack.c.l.b16 %v50
  %v572 = vunpack.c.l.b16 %v51
  %v573 = vunpack.c.l.b16 %v52
  %v574 = vunpack.c.l.b16 %v53
  %v575 = vunpack.c.l.b16 %v54
  %v576 = vunpack.c.l.b16 %v55
  %v577 = vunpack.c.l.b16 %v56
  %v578 = vunpack.c.l.b16 %v57
  %v579 = vunpack.c.l.b16 %v58
  %v580 = vunpack.c.l.b16 %v59
  %v581 = vunpack.c.l.b16 %v60
  %v582 = vunpack.c.l.b16 %v61
  %v583 = vunpack.c.l.b16 %v62
  %v584 = vunpack.c.l.b16 %v63
  %v585 = vunpack.c.l.b16 %v64
  %v586 = vunpack.c.l.b16 %v65
  %v587 = vunpack.c.l.b16 %v66
  %v588 = vunpack.c.l.b16 %v67
  %v589 = vunpack.c.l.b16 %v68
  %v590 = vunpack.c.l.b16 %v69
  %v591 = vunpack.c.l.b16 %v70
  %v592 = vunpack.c.l.b16 %v71
  %v593 = vunpack.c.l.b16 %v72
  %v594 = vunpack.c.l.b16 %v73
  %v595 = vunpack.c.l.b16 %v74
  %v596 = vunpack.c.l.b16 %v75
  %v597 = vunpack.c.l.b16 %v76
  %v598 = vunpack.c.l.b16 %v77
  %v599 = vunpack.c.l.b16 %v78
  %v600 = vunpack.c.l.b16 %v79
  %v601 = vunpack.c.l.b16 %v80
  %v602 = vunpack.c.l.b16 %v81
  %v603 = vunpack.c.l.b16 %v82
  %v604 = vunpack.c.l.b16 %v83
  %v605 = vunpack.c.l.b16 %v84
  %v606 = vunpack.c.l.b16 %v85
  %v607 = vunpack.c.l.b16 %v86
  %v608 = vunpack.c.l.b16 %v87
  %v609 = vunpack.c.l.b16 %v88
  %v610 = vunpack.c.l.b16 %v89
  %v611 = vunpack.c.l.b16 %v90
  %v612 = vunpack.c.l.b16 %v91
  %v613 = vunpack.c.l.b16 %v92
  %v614 = vunpack.c.l.b16 %v93
  %v615 = vunpack.c.l.b16 %v94
  %v616 = vunpack.c.l.b16 %v95
  %v617 = vunpack.c.l.b16 %v96
  %v618 = vunpack.c.l.b16 %v97
  %v619 = vunpack.c.l.b16 %v98
  %v620 = vunpack.c.l.b16 %v99
  %v621 = vunpack.c.l.b16 %v100
  %v622 = vunpack.c.l.b16 %v101
  %v623 = vunpack.c.l.b16 %v102
  %v624 = vunpack.c.l.b16 %v103
  %v625 = vunpack.c.l.b16 %v104
  %v626 = vunpack.c.l.b16 %v105
  %v627 = vunpack.c.l.b16 %v106
  %v628 = vunpack.c.l.b16 %v107
  %v629 = vunpack.c.l.b16 %v108
  %v630 = vunpack.c.l.b16 %v109
  %v631 = vunpack.c.l.b16 %v110
  %v632 = vunpack.c.l.b16 %v111
  %v633 = vunpack.c.l.b16 %v112
  %v634 = vunpack.c.l.b16 %v113
  %v635 = vunpack.c.l.b16 %v114
  %v636 = vunpack.c.l.b16 %v115
  %v637 = vunpack.c.l.b16 %v116
  %v638 = vunpack.c.l.b16 %v117
  %v639 = vunpack.c.l.b16 %v118
  %v640 = vunpack.c.l.b16 %v119
  %v641 = vunpack.c.l.b16 %v120
  %v642 = vunpack.c.l.b16 %v121
  %v643 = vunpack.c.l.b16 %v122
  %v644 = vunpack.c.l.b16 %v123
  %v645 = vunpack.c.l.b16 %v124
  %v646 = vunpack.c.l.b16 %v125
  %v647 = vunpack.c.l.b16 %v126
  %v648 = vunpack.c.l.b16 %v127
  %v649 = vunpack.c.l.b16 %v128
  %v650 = vunpack.c.l.b16 %v129
  %v651 = vunpack.c.l.b16 %v130
  %v652 = vunpack.c.l.b16 %v131
  %v653 = vunpack.c.l.b16 %v132
  %v654 = vunpack.c.l.b16 %v133
  %v655 = vunpack.c.l.b16 %v134
  %v656 = vunpack.c.l.b16 %v135
  %v657 = vunpack.c.l.b16 %v136
  %v658 = vunpack.c.l.b16 %v137
  %v659 = vunpack.c.l.b16 %v138
  %v660 = vunpack.c.l.b16 %v139
  %v661 = vunpack.c.l.b16 %v140
  %v662 = vunpack.c.l.b16 %v141
  %v663 = vunpack.c.l.b16 %v142
  %v664 = vunpack.c.l.b16 %v143
  %v665 = vunpack.c.l.b16 %v144
  %v666 = vunpack.c.l.b16 %v145
  %v667 = vunpack.c.l.b16 %v146
  %v668 = vunpack.c.l.b16 %v147
  %v669 = vunpack.c.l.b16 %v148
  %v670 = vunpack.c.l.b16 %v149
  %v671 = vunpack.c.l.b16 %v150
  %v672 = vunpack.c.l.b16 %v151
  %v673 = vunpack.c.l.b16 %v152
  %v674 = vunpack.c.l.b16 %v153
  %v675 = vunpack.c.l.b16 %v154
  %v676 = vunpack.c.l.b16 %v155
  %v677 = vunpack.c.l.b16 %v156
  %v678 = vunpack.c.l.b16 %v157
  %v679 = vunpack.c.l.b16 %v158
  %v680 = vunpack.c.l.b16 %v159
  %v681 = vunpack.c.l.b16 %v160
  %v682 = vunpack.c.l.b16 %v161
  %v683 = vunpack.c.l.b16 %v162
  %v684 = vunpack.c.l.b16 %v163
  %v685 = vunpack.c.l.b16 %v164
  %v686 = vunpack.c.l.b16 %v165
  %v687 = vunpack.c.l.b16 %v166
  %v688 = vunpack.c.l.b16 %v167
  %v689 = vunpack.c.l.b16 %v168
  %v690 = vunpack.c.l.b16 %v169
  %v691 = vunpack.c.l.b16 %v170
  %v692 = vunpack.c.l.b16 %v171
  %v693 = vunpack.c.l.b16 %v172
  %v694 = vunpack.c.l.b16 %v173
  %v695 = vunpack.c.l.b16 %v174
  %v696 = vunpack.c.l.b16 %v175
  %v697 = vunpack.c.l.b16 %v176
  %v698 = vunpack.c.l.b16 %v177
  %v699 = vunpack.c.l.b16 %v178
  %v700 = vunpack.c.l.b16 %v179
  %v701 = vunpack.c.l.b16 %v180
  %v702 = vunpack.c.l.b16 %v181
  %v703 = vunpack.c.l.b16 %v182
  %v704 = vunpack.c.l.b16 %v183
  %v705 = vunpack.c.l.b16 %v184
  %v706 = vunpack.c.l.b16 %v185
  %v707 = vunpack.c.l.b16 %v186
  %v708 = vunpack.c.l.b16 %v187
  %v709 = vunpack.c.l.b16 %v188
  %v710 = vunpack.c.l.b16 %v189
  %v711 = vunpack.c.l.b16 %v190
  %v712 = vunpack.c.l.b16 %v191
  %v713 = vunpack.c.l.b16 %v192
  %v714 = vunpack.c.l.b16 %v193
  %v715 = vunpack.c.l.b16 %v194
  %v716 = vunpack.c.l.b16 %v195
  %v717 = vunpack.c.l.b16 %v196
  %v718 = vunpack.c.l.b16 %v197
  %v719 = vunpack.c.l.b16 %v198
  %v720 = vunpack.c.l.b16 %v199
  %v721 = vunpack.c.l.b16 %v200
  %v722 = vunpack.c.l.b16 %v201
  %v723 = vunpack.c.l.b16 %v202
  %v724 = vunpack.c.l.b16 %v203
  %v725 = vunpack.c.l.b16 %v204
  %v726 = vunpack.c.l.b16 %v205
  %v727 = vunpack.c.l.b16 %v206
  %v728 = vunpack.c.l.b16 %v207
  %v729 = vunpack.c.l.b16 %v208
  %v730 = vunpack.c.l.b16 %v209
  %v731 = vunpack.c.l.b16 %v210
  %v732 = vunpack.c.l.b16 %v211
  %v733 = vunpack.c.l.b16 %v212
  %v734 = vunpack.c.l.b16 %v213
  %v735 = vunpack.c.l.b16 %v214
  %v736 = vunpack.c.l.b16 %v215
  %v737 = vunpack.c.l.b16 %v216
  %v738 = vunpack.c.l.b16 %v217
  %v739 = vunpack.c.l.b16 %v218
  %v740 = vunpack.c.l.b16 %v219
  %v741 = vunpack.c.l.b16 %v220
  %v742 = vunpack.c.l.b16 %v221
  %v743 = vunpack.c.l.b16 %v222
  %v744 = vunpack.c.l.b16 %v223
  %v745 = vunpack.c.l.b16 %v224
  %v746 = vunpack.c.l.b16 %v225
  %v747 = vunpack.c.l.b16 %v226
  %v748 = vunpack.c.l.b16 %v227
  %v749 = vunpack.c.l.b16 %v228
  %v750 = vunpack.c.l.b16 %v229
  %v751 = vunpack.c.l.b16 %v230
  %v752 = vunpack.c.l.b16 %v231
  %v753 = vunpack.c.l.b16 %v232
  %v754 = vunpack.c.l.b16 %v233
  %v755 = vunpack.c.l.b16 %v234
  %v756 = vunpack.c.l.b16 %v235
  %v757 = vunpack.c.l.b16 %v236
  %v758 = vunpack.c.l.b16 %v237
  %v759 = vunpack.c.l.b16 %v238
  %v760 = vunpack.c.l.b16 %v239
  %v761 = vunpack.c.l.b16 %v240
  %v762 = vunpack.c.l.b16 %v241
  %v763 = vunpack.c.l.b16 %v242
  %v764 = vunpack.c.l.b16 %v243
  %v765 = vunpack.c.l.b16 %v244
  %v766 = vunpack.c.l.b16 %v245
  %v767 = vunpack.c.l.b16 %v246
  %v768 = vunpack.c.l.b16 %v247
  %v769 = vunpack.c.l.b16 %v248
  %v770 = vunpack.c.l.b16 %v249
  %v771 = vunpack.c.l.b16 %v250
  %v772 = vunpack.c.l.b16 %v251
  %v773 = vunpack.c.l.b16 %v252
  %v774 = vunpack.c.l.b16 %v253
  %v775 = vunpack.c.l.b16 %v254
  %v776 = vunpack.c.l.b16 %v255
  %v777 = vunpack.c.l.b16 %v256
  %v778 = vunpack.c.l.b16 %v257
  %v779 = vunpack.c.l.b16 %v258
  %v780 = vunpack.c.l.b16 %v259
  %v781 = vunpack.c.l.b16 %v260
  %v782 = vunpack.c.l.b16 %v261
  %v783 = vunpack.c.l.b16 %v262
  %v784 = vunpack.c.l.b16 %v263
  %v785 = vunpack.c.l.b16 %v264
  %v786 = vunpack.c.l.b16 %v265
  %v787 = vunpack.c.l.b16 %v266
  %v788 = vunpack.c.l.b16 %v267
  %v789 = vpack.c.b16 %v534, %v533
  %v790 = vpack.c.b16 %v536, %v535
  %v791 = vpack.c.b16 %v538, %v537
  %v792 = vpack.c.b16 %v540, %v539
  %v793 = vpack.c.b16 %v542, %v541
  %v794 = vpack.c.b16 %v544, %v543
  %v795 = vpack.c.b16 %v546, %v545
  %v796 = vpack.c.b16 %v548, %v547
  %v797 = vpack.c.b16 %v550, %v549
  %v798 = vpack.c.b16 %v552, %v551
  %v799 = vpack.c.b16 %v554, %v553
  %v800 = vpack.c.b16 %v556, %v555
  %v801 = vpack.c.b16 %v558, %v557
  %v802 = vpack.c.b16 %v560, %v559
  %v803 = vpack.c.b16 %v562, %v561
  %v804 = vpack.c.b16 %v564, %v563
  %v805 = vpack.c.b16 %v566, %v565
  %v806 = vpack.c.b16 %v568, %v567
  %v807 = vpack.c.b16 %v570, %v569
  %v808 = vpack.c.b16 %v572, %v571
  %v809 = vpack.c.b16 %v574, %v573
  %v810 = vpack.c.b16 %v576, %v575
  %v811 = vpack.c.b16 %v578, %v577
  %v812 = vpack.c.b16 %v580, %v579
  %v813 = vpack.c.b16 %v582, %v581
  %v814 = vpack.c.b16 %v584, %v583
  %v815 = vpack.c.b16 %v586, %v585
  %v816 = vpack.c.b16 %v588, %v587
  %v817 = vpack.c.b16 %v590, %v589
  %v818 = vpack.c.b16 %v592, %v591
  %v819 = vpack.c.b16 %v594, %v593
  %v820 = vpack.c.b16 %v596, %v595
  %v821 = vpack.c.b16 %v598, %v597
  %v822 = vpack.c.b16 %v600, %v599
  %v823 = vpack.c.b16 %v602, %v601
  %v824 = vpack.c.b16 %v604, %v603
  %v825 = vpack.c.b16 %v606, %v605
  %v826 = vpack.c.b16 %v608, %v607
  %v827 = vpack.c.b16 %v610, %v609
  %v828 = vpack.c.b16 %v612, %v611
  %v829 = vpack.c.b16 %v614, %v613
  %v830 = vpack.c.b16 %v616, %v615
  %v831 = vpack.c.b16 %v618, %v617
  %v832 = vpack.c.b16 %v620, %v619
  %v833 = vpack.c.b16 %v622, %v621
  %v834 = vpack.c.b16 %v624, %v623
  %v835 = vpack.c.b16 %v626, %v625
  %v836 = vpack.c.b16 %v628, %v627
  %v837 = vpack.c.b16 %v630, %v629
  %v838 = vpack.c.b16 %v632, %v631
  %v839 = vpack.c.b16 %v634, %v633
  %v840 = vpack.c.b16 %v636, %v635
  %v841 = vpack.c.b16 %v638, %v637
  %v842 = vpack.c.b16 %v640, %v639
  %v843 = vpack.c.b16 %v642, %v641
  %v844 = vpack.c.b16 %v644, %v643
  %v845 = vpack.c.b16 %v646, %v645
  %v846 = vpack.c.b16 %v648, %v647
  %v847 = vpack.c.b16 %v650, %v649
  %v848 = vpack.c.b16 %v652, %v651
  %v849 = vpack.c.b16 %v654, %v653
  %v850 = vpack.c.b16 %v656, %v655
  %v851 = vpack.c.b16 %v658, %v657
  %v852 = vpack.c.b16 %v660, %v659
  %v853 = vpack.c.b16 %v662, %v661
  %v854 = vpack.c.b16 %v664, %v663
  %v855 = vpack.c.b16 %v666, %v665
  %v856 = vpack.c.b16 %v668, %v667
  %v857 = vpack.c.b16 %v670, %v669
  %v858 = vpack.c.b16 %v672, %v671
  %v859 = vpack.c.b16 %v674, %v673
  %v860 = vpack.c.b16 %v676, %v675
  %v861 = vpack.c.b16 %v678, %v677
  %v862 = vpack.c.b16 %v680, %v679
  %v863 = vpack.c.b16 %v682, %v681
  %v864 = vpack.c.b16 %v684, %v683
  %v865 = vpack.c.b16 %v686, %v685
  %v866 = vpack.c.b16 %v688, %v687
  %v867 = vpack.c.b16 %v690, %v689
  %v868 = vpack.c.b16 %v692, %v691
  %v869 = vpack.c.b16 %v694, %v693
  %v870 = vpack.c.b16 %v696, %v695
  %v871 = vpack.c.b16 %v698, %v697
  %v872 = vpack.c.b16 %v700, %v699
  %v873 = vpack.c.b16 %v702, %v701
  %v874 = vpack.c.b16 %v704, %v703
  %v875 = vpack.c.b16 %v706, %v705
  %v876 = vpack.c.b16 %v708, %v707
  %v877 = vpack.c.b16 %v710, %v709
  %v878 = vpack.c.b16 %v712, %v711
  %v879 = vpack.c.b16 %v714, %v713
  %v880 = vpack.c.b16 %v716, %v715
  %v881 = vpack.c.b16 %v718, %v717
  %v882 = vpack.c.b16 %v720, %v719
  %v883 = vpack.c.b16 %v722, %v721
  %v884 = vpack.c.b16 %v724, %v723
  %v885 = vpack.c.b16 %v726, %v725
  %v886 = vpack.c.b16 %v728, %v727
  %v887 = vpack.c.b16 %v730, %v729
  %v888 = vpack.c.b16 %v732, %v731
  %v889 = vpack.c.b16 %v734, %v733
  %v890 = vpack.c.b16 %v736, %v735
  %v891 = vpack.c.b16 %v738, %v737
  %v892 = vpack.c.b16 %v740, %v739
  %v893 = vpack.c.b16 %v742, %v741
  %v894 = vpack.c.b16 %v744, %v743
  %v895 = vpack.c.b16 %v746, %v745
  %v896 = vpack.c.b16 %v748, %v747
  %v897 = vpack.c.b16 %v750, %v749
  %v898 = vpack.c.b16 %v752, %v751
  %v899 = vpack.c.b16 %v754, %v753
  %v900 = vpack.c.b16 %v756, %v755
  %v901 = vpack.c.b16 %v758, %v757
  %v902 = vpack.c.b16 %v760, %v759
  %v903 = vpack.c.b16 %v762, %v761
  %v904 = vpack.c.b16 %v764, %v763
  %v905 = vpack.c.b16 %v766, %v765
  %v906 = vpack.c.b16 %v768, %v767
  %v907 = vpack.c.b16 %v770, %v769
  %v908 = vpack.c.b16 %v772, %v771
  %v909 = vpack.c.b16 %v774, %v773
  %v910 = vpack.c.b16 %v776, %v775
  %v911 = vpack.c.b16 %v778, %v777
  %v912 = vpack.c.b16 %v780, %v779
  %v913 = vpack.c.b16 %v782, %v781
  %v914 = vpack.c.b16 %v784, %v783
  %v915 = vpack.c.b16 %v786, %v785
  %v916 = vpack.c.b16 %v788, %v787
  %v926 = vunpack.c.l.b16 %v268
  %v927 = vunpack.c.l.b16 %v269
  %v928 = vunpack.c.l.b16 %v270
  %v929 = vunpack.c.l.b16 %v271
  %v930 = vunpack.c.l.b16 %v272
  %v931 = vunpack.c.l.b16 %v273
  %v932 = vunpack.c.l.b16 %v274
  %v933 = vunpack.c.l.b16 %v275
  %v934 = vunpack.c.l.b16 %v276
  %v935 = vpack.c.b16 %v927, %v926
  %v936 = vpack.c.b16 %v929, %v928
  %v937 = vpack.c.b16 %v931, %v930
  %v938 = vpack.c.b16 %v933, %v932
  %v939 = vpack.c.b16 %v934, %v934
  %vm944 = vcmask 588800
  %v946 = vsel %vm944, %v789, 0
  %v949 = vsel %vm944, %v790, 0
  %v952 = vsel %vm944, %v791, 0
  %v955 = vsel %vm944, %v792, 0
  %v958 = vsel %vm944, %v793, 0
  %v961 = vsel %vm944, %v794, 0
  %v964 = vsel %vm944, %v795, 0
  %v967 = vsel %vm944, %v796, 0
  %v970 = vsel %vm944, %v797, 0
  %v973 = vsel %vm944, %v798, 0
  %v976 = vsel %vm944, %v799, 0
  %v979 = vsel %vm944, %v800, 0
  %v982 = vsel %vm944, %v801, 0
  %v985 = vsel %vm944, %v802, 0
  %v988 = vsel %vm944, %v803, 0
  %v991 = vsel %vm944, %v804, 0
  %v994 = vsel %vm944, %v805, 0
  %v997 = vsel %vm944, %v806, 0
  %v1000 = vsel %vm944, %v807, 0
  %v1003 = vsel %vm944, %v808, 0
  %v1006 = vsel %vm944, %v809, 0
  %v1009 = vsel %vm944, %v810, 0
  %v1012 = vsel %vm944, %v811, 0
  %v1015 = vsel %vm944, %v812, 0
  %v1018 = vsel %vm944, %v813, 0
  %v1021 = vsel %vm944, %v814, 0
  %v1024 = vsel %vm944, %v815, 0
  %v1027 = vsel %vm944, %v816, 0
  %v1030 = vsel %vm944, %v817, 0
  %v1033 = vsel %vm944, %v818, 0
  %v1036 = vsel %vm944, %v819, 0
  %v1039 = vsel %vm944, %v820, 0
  %v1042 = vsel %vm944, %v821, 0
  %v1045 = vsel %vm944, %v822, 0
  %v1048 = vsel %vm944, %v823, 0
  %v1051 = vsel %vm944, %v824, 0
  %v1054 = vsel %vm944, %v825, 0
  %v1057 = vsel %vm944, %v826, 0
  %v1060 = vsel %vm944, %v827, 0
  %v1063 = vsel %vm944, %v828, 0
  %v1066 = vsel %vm944, %v829, 0
  %v1069 = vsel %vm944, %v830, 0
  %v1072 = vsel %vm944, %v831, 0
  %v1075 = vsel %vm944, %v832, 0
  %v1078 = vsel %vm944, %v833, 0
  %v1081 = vsel %vm944, %v834, 0
  %v1084 = vsel %vm944, %v835, 0
  %v1087 = vsel %vm944, %v836, 0
  %v1090 = vsel %vm944, %v837, 0
  %v1093 = vsel %vm944, %v838, 0
  %v1096 = vsel %vm944, %v839, 0
  %v1099 = vsel %vm944, %v840, 0
  %v1102 = vsel %vm944, %v841, 0
  %v1105 = vsel %vm944, %v842, 0
  %v1108 = vsel %vm944, %v843, 0
  %v1111 = vsel %vm944, %v844, 0
  %v1114 = vsel %vm944, %v845, 0
  %v1117 = vsel %vm944, %v846, 0
  %v1120 = vsel %vm944, %v847, 0
  %v1123 = vsel %vm944, %v848, 0
  %v1126 = vsel %vm944, %v849, 0
  %v1129 = vsel %vm944, %v850, 0
  %v1132 = vsel %vm944, %v851, 0
  %v1135 = vsel %vm944, %v852, 0
  %v1138 = vsel %vm944, %v853, 0
  %v1141 = vsel %vm944, %v854, 0
  %v1144 = vsel %vm944, %v855, 0
  %v1147 = vsel %vm944, %v856, 0
  %v1150 = vsel %vm944, %v857, 0
  %v1153 = vsel %vm944, %v858, 0
  %v1156 = vsel %vm944, %v859, 0
  %v1159 = vsel %vm944, %v860, 0
  %v1162 = vsel %vm944, %v861, 0
  %v1165 = vsel %vm944, %v862, 0
  %v1168 = vsel %vm944, %v863, 0
  %v1171 = vsel %vm944, %v864, 0
  %v1174 = vsel %vm944, %v865, 0
  %v1177 = vsel %vm944, %v866, 0
  %v1180 = vsel %vm944, %v867, 0
  %v1183 = vsel %vm944, %v868, 0
  %v1186 = vsel %vm944, %v869, 0
  %v1189 = vsel %vm944, %v870, 0
  %v1192 = vsel %vm944, %v871, 0
  %v1195 = vsel %vm944, %v872, 0
  %v1198 = vsel %vm944, %v873, 0
  %v1201 = vsel %vm944, %v874, 0
  %v1204 = vsel %vm944, %v875, 0
  %v1207 = vsel %vm944, %v876, 0
  %v1210 = vsel %vm944, %v877, 0
  %v1213 = vsel %vm944, %v878, 0
  %v1216 = vsel %vm944, %v879, 0
  %v1219 = vsel %vm944, %v880, 0
  %v1222 = vsel %vm944, %v881, 0
  %v1225 = vsel %vm944, %v882, 0
  %v1228 = vsel %vm944, %v883, 0
  %v1231 = vsel %vm944, %v884, 0
  %v1234 = vsel %vm944, %v885, 0
  %v1237 = vsel %vm944, %v886, 0
  %v1240 = vsel %vm944, %v887, 0
  %v1243 = vsel %vm944, %v888, 0
  %v1246 = vsel %vm944, %v889, 0
  %v1249 = vsel %vm944, %v890, 0
  %v1252 = vsel %vm944, %v891, 0
  %v1255 = vsel %vm944, %v892, 0
  %v1258 = vsel %vm944, %v893, 0
  %v1261 = vsel %vm944, %v894, 0
  %v1264 = vsel %vm944, %v895, 0
  %v1267 = vsel %vm944, %v896, 0
  %v1270 = vsel %vm944, %v897, 0
  %v1273 = vsel %vm944, %v898, 0
  %v1276 = vsel %vm944, %v899, 0
  %v1279 = vsel %vm944, %v900, 0
  %v1282 = vsel %vm944, %v901, 0
  %v1285 = vsel %vm944, %v902, 0
  %v1288 = vsel %vm944, %v903, 0
  %v1291 = vsel %vm944, %v904, 0
  %v1294 = vsel %vm944, %v905, 0
  %v1297 = vsel %vm944, %v906, 0
  %v1300 = vsel %vm944, %v907, 0
  %v1303 = vsel %vm944, %v908, 0
  %v1306 = vsel %vm944, %v909, 0
  %v1309 = vsel %vm944, %v910, 0
  %v1312 = vsel %vm944, %v911, 0
  %v1315 = vsel %vm944, %v912, 0
  %v1318 = vsel %vm944, %v913, 0
  %v1321 = vsel %vm944, %v914, 0
  %v1324 = vsel %vm944, %v915, 0
  %v1327 = vsel %vm944, %v916, 0
  %vm1329 = vcmask 1043456
  %v1331 = vsel %vm1329, %v939, 0
  %1333 = vmatprep.subr.bf16.mxu0 0
  %1334 = vmatpush1.bf16.msra.mxu0 %v935
  %1335 = vmatprep.subr.bf16.mxu0 0
  %1336 = vmatpush1.bf16.msra.mxu0 %v936
  %1337 = vmatprep.subr.bf16.mxu0 0
  %1338 = vmatpush1.bf16.msra.mxu0 %v937
  %1339 = vmatprep.subr.bf16.mxu0 0
  %1340 = vmatpush1.bf16.msra.mxu0 %v938
  %1341 = vmatprep.subr.bf16.mxu0 0
  %1342 = vmatpush1.bf16.msra.mxu0 %v1331
  %1343 = vmatprep.subr.bf16.mxu0 0
  %1344 = vmatpush1.bf16.msra.mxu0 0
  %1345 = vmatprep.subr.bf16.mxu0 0
  %1346 = vmatpush1.bf16.msra.mxu0 0
  %1347 = vmatprep.subr.bf16.mxu0 0
  %1348 = vmatpush1.bf16.msra.mxu0 0
  %1349 = vmatprep.subr.bf16.mxu0 0
  %1350 = vmatpush1.bf16.msra.mxu0 0
  %1351 = vmatprep.subr.bf16.mxu0 0
  %1352 = vmatpush1.bf16.msra.mxu0 0
  %1353 = vmatprep.subr.bf16.mxu0 0
  %1354 = vmatpush1.bf16.msra.mxu0 0
  %1355 = vmatprep.subr.bf16.mxu0 0
  %1356 = vmatpush1.bf16.msra.mxu0 0
  %1357 = vmatprep.subr.bf16.mxu0 0
  %1358 = vmatpush1.bf16.msra.mxu0 0
  %1359 = vmatprep.subr.bf16.mxu0 0
  %1360 = vmatpush1.bf16.msra.mxu0 0
  %1361 = vmatprep.subr.bf16.mxu0 0
  %1362 = vmatpush1.bf16.msra.mxu0 0
  %1363 = vmatprep.subr.bf16.mxu0 0
  %1364 = vmatpush1.bf16.msra.mxu0 0
  %1365 = vmatprep.mubr.bf16.mxu0 0
  %1366 = vmatmul.mubr.bf16.gmra.mrb[0].mxu0 %v946
  %v1367 = vpop.f32.mrb[0].mxu0
  %v1368 = vadd.f32 0.0, %v1367
  %v1369 = vpop.f32.mrb[0].mxu0
  %v1370 = vpop.f32.mrb[0].mxu0
  %v1371 = vadd.f32 0.0, %v1370
  %v1372 = vpop.f32.mrb[0].mxu0
  %1373 = vmatprep.mubr.bf16.mxu0 0
  %1374 = vmatmul.mubr.bf16.gmra.mrb[0].mxu0 %v949
  %v1375 = vpop.f32.mrb[0].mxu0
  %v1376 = vadd.f32 0.0, %v1375
  %v1377 = vpop.f32.mrb[0].mxu0
  %v1378 = vpop.f32.mrb[0].mxu0
  %v1379 = vadd.f32 0.0, %v1378
  %v1380 = vpop.f32.mrb[0].mxu0
  %1381 = vmatprep.mubr.bf16.mxu0 0
  %1382 = vmatmul.mubr.bf16.gmra.mrb[0].mxu0 %v952
  %v1383 = vpop.f32.mrb[0].mxu0
  %v1384 = vadd.f32 0.0, %v1383
  %v1385 = vpop.f32.mrb[0].mxu0
  %v1386 = vpop.f32.mrb[0].mxu0
  %v1387 = vadd.f32 0.0, %v1386
  %v1388 = vpop.f32.mrb[0].mxu0
  %1389 = vmatprep.mubr.bf16.mxu0 0
  %1390 = vmatmul.mubr.bf16.gmra.mrb[0].mxu0 %v955
  %v1391 = vpop.f32.mrb[0].mxu0
  %v1392 = vadd.f32 0.0, %v1391
  %v1393 = vpop.f32.mrb[0].mxu0
  %v1394 = vpop.f32.mrb[0].mxu0
  %v1395 = vadd.f32 0.0, %v1394
  %v1396 = vpop.f32.mrb[0].mxu0
  %1397 = vmatprep.mubr.bf16.mxu0 0
  %1398 = vmatmul.mubr.bf16.gmra.mrb[0].mxu0 %v958
  %v1399 = vpop.f32.mrb[0].mxu0
  %v1400 = vadd.f32 0.0, %v1399
  %v1401 = vpop.f32.mrb[0].mxu0
  %v1402 = vpop.f32.mrb[0].mxu0
  %v1403 = vadd.f32 0.0, %v1402
  %v1404 = vpop.f32.mrb[0].mxu0
  %1405 = vmatprep.mubr.bf16.mxu0 0
  %1406 = vmatmul.mubr.bf16.gmra.mrb[0].mxu0 %v961
  %v1407 = vpop.f32.mrb[0].mxu0
  %v1408 = vadd.f32 0.0, %v1407
  %v1409 = vpop.f32.mrb[0].mxu0
  %v1410 = vpop.f32.mrb[0].mxu0
  %v1411 = vadd.f32 0.0, %v1410
  %v1412 = vpop.f32.mrb[0].mxu0
  %1413 = vmatprep.mubr.bf16.mxu0 0
  %1414 = vmatmul.mubr.bf16.gmra.mrb[0].mxu0 %v964
  %v1415 = vpop.f32.mrb[0].mxu0
  %v1416 = vadd.f32 0.0, %v1415
  %v1417 = vpop.f32.mrb[0].mxu0
  %v1418 = vpop.f32.mrb[0].mxu0
  %v1419 = vadd.f32 0.0, %v1418
  %v1420 = vpop.f32.mrb[0].mxu0
  %1421 = vmatprep.mubr.bf16.mxu0 0
  %1422 = vmatmul.mubr.bf16.gmra.mrb[0].mxu0 %v967
  %v1423 = vpop.f32.mrb[0].mxu0
  %v1424 = vadd.f32 0.0, %v1423
  %v1425 = vpop.f32.mrb[0].mxu0
  %v1426 = vpop.f32.mrb[0].mxu0
  %v1427 = vadd.f32 0.0, %v1426
  %v1428 = vpop.f32.mrb[0].mxu0
  %1429 = vmatprep.mubr.bf16.mxu0 0
  %1430 = vmatmul.mubr.bf16.gmra.mrb[0].mxu0 %v970
  %v1431 = vpop.f32.mrb[0].mxu0
  %v1432 = vadd.f32 0.0, %v1431
  %v1433 = vpop.f32.mrb[0].mxu0
  %v1434 = vpop.f32.mrb[0].mxu0
  %v1435 = vadd.f32 0.0, %v1434
  %v1436 = vpop.f32.mrb[0].mxu0
  %1437 = vmatprep.mubr.bf16.mxu0 0
  %1438 = vmatmul.mubr.bf16.gmra.mrb[0].mxu0 %v973
  %v1439 = vpop.f32.mrb[0].mxu0
  %v1440 = vadd.f32 0.0, %v1439
  %v1441 = vpop.f32.mrb[0].mxu0
  %v1442 = vpop.f32.mrb[0].mxu0
  %v1443 = vadd.f32 0.0, %v1442
  %v1444 = vpop.f32.mrb[0].mxu0
  %1445 = vmatprep.mubr.bf16.mxu0 0
  %1446 = vmatmul.mubr.bf16.gmra.mrb[0].mxu0 %v976
  %v1447 = vpop.f32.mrb[0].mxu0
  %v1448 = vadd.f32 0.0, %v1447
  %v1449 = vpop.f32.mrb[0].mxu0
  %v1450 = vpop.f32.mrb[0].mxu0
  %v1451 = vadd.f32 0.0, %v1450
  %v1452 = vpop.f32.mrb[0].mxu0
  %1453 = vmatprep.mubr.bf16.mxu0 0
  %1454 = vmatmul.mubr.bf16.gmra.mrb[0].mxu0 %v979
  %v1455 = vpop.f32.mrb[0].mxu0
  %v1456 = vadd.f32 0.0, %v1455
  %v1457 = vpop.f32.mrb[0].mxu0
  %v1458 = vpop.f32.mrb[0].mxu0
  %v1459 = vadd.f32 0.0, %v1458
  %v1460 = vpop.f32.mrb[0].mxu0
  %1461 = vmatprep.mubr.bf16.mxu0 0
  %1462 = vmatmul.mubr.bf16.gmra.mrb[0].mxu0 %v982
  %v1463 = vpop.f32.mrb[0].mxu0
  %v1464 = vadd.f32 0.0, %v1463
  %v1465 = vpop.f32.mrb[0].mxu0
  %v1466 = vpop.f32.mrb[0].mxu0
  %v1467 = vadd.f32 0.0, %v1466
  %v1468 = vpop.f32.mrb[0].mxu0
  %1469 = vmatprep.mubr.bf16.mxu0 0
  %1470 = vmatmul.mubr.bf16.gmra.mrb[0].mxu0 %v985
  %v1471 = vpop.f32.mrb[0].mxu0
  %v1472 = vadd.f32 0.0, %v1471
  %v1473 = vpop.f32.mrb[0].mxu0
  %v1474 = vpop.f32.mrb[0].mxu0
  %v1475 = vadd.f32 0.0, %v1474
  %v1476 = vpop.f32.mrb[0].mxu0
  %1477 = vmatprep.mubr.bf16.mxu0 0
  %1478 = vmatmul.mubr.bf16.gmra.mrb[0].mxu0 %v988
  %v1479 = vpop.f32.mrb[0].mxu0
  %v1480 = vadd.f32 0.0, %v1479
  %v1481 = vpop.f32.mrb[0].mxu0
  %v1482 = vpop.f32.mrb[0].mxu0
  %v1483 = vadd.f32 0.0, %v1482
  %v1484 = vpop.f32.mrb[0].mxu0
  %1485 = vmatprep.mubr.bf16.mxu0 0
  %1486 = vmatmul.mubr.bf16.gmra.mrb[0].mxu0 %v991
  %v1487 = vpop.f32.mrb[0].mxu0
  %v1488 = vadd.f32 0.0, %v1487
  %v1489 = vpop.f32.mrb[0].mxu0
  %v1490 = vpop.f32.mrb[0].mxu0
  %v1491 = vadd.f32 0.0, %v1490
  %v1492 = vpop.f32.mrb[0].mxu0
  %1493 = vmatprep.mubr.bf16.mxu0 0
  %1494 = vmatmul.mubr.bf16.gmra.mrb[0].mxu0 %v994
  %v1495 = vpop.f32.mrb[0].mxu0
  %v1496 = vadd.f32 0.0, %v1495
  %v1497 = vpop.f32.mrb[0].mxu0
  %v1498 = vpop.f32.mrb[0].mxu0
  %v1499 = vadd.f32 0.0, %v1498
  %v1500 = vpop.f32.mrb[0].mxu0
  %1501 = vmatprep.mubr.bf16.mxu0 0
  %1502 = vmatmul.mubr.bf16.gmra.mrb[0].mxu0 %v997
  %v1503 = vpop.f32.mrb[0].mxu0
  %v1504 = vadd.f32 0.0, %v1503
  %v1505 = vpop.f32.mrb[0].mxu0
  %v1506 = vpop.f32.mrb[0].mxu0
  %v1507 = vadd.f32 0.0, %v1506
  %v1508 = vpop.f32.mrb[0].mxu0
  %1509 = vmatprep.mubr.bf16.mxu0 0
  %1510 = vmatmul.mubr.bf16.gmra.mrb[0].mxu0 %v1000
  %v1511 = vpop.f32.mrb[0].mxu0
  %v1512 = vadd.f32 0.0, %v1511
  %v1513 = vpop.f32.mrb[0].mxu0
  %v1514 = vpop.f32.mrb[0].mxu0
  %v1515 = vadd.f32 0.0, %v1514
  %v1516 = vpop.f32.mrb[0].mxu0
  %1517 = vmatprep.mubr.bf16.mxu0 0
  %1518 = vmatmul.mubr.bf16.gmra.mrb[0].mxu0 %v1003
  %v1519 = vpop.f32.mrb[0].mxu0
  %v1520 = vadd.f32 0.0, %v1519
  %v1521 = vpop.f32.mrb[0].mxu0
  %v1522 = vpop.f32.mrb[0].mxu0
  %v1523 = vadd.f32 0.0, %v1522
  %v1524 = vpop.f32.mrb[0].mxu0
  %1525 = vmatprep.mubr.bf16.mxu0 0
  %1526 = vmatmul.mubr.bf16.gmra.mrb[0].mxu0 %v1006
  %v1527 = vpop.f32.mrb[0].mxu0
  %v1528 = vadd.f32 0.0, %v1527
  %v1529 = vpop.f32.mrb[0].mxu0
  %v1530 = vpop.f32.mrb[0].mxu0
  %v1531 = vadd.f32 0.0, %v1530
  %v1532 = vpop.f32.mrb[0].mxu0
  %1533 = vmatprep.mubr.bf16.mxu0 0
  %1534 = vmatmul.mubr.bf16.gmra.mrb[0].mxu0 %v1009
  %v1535 = vpop.f32.mrb[0].mxu0
  %v1536 = vadd.f32 0.0, %v1535
  %v1537 = vpop.f32.mrb[0].mxu0
  %v1538 = vpop.f32.mrb[0].mxu0
  %v1539 = vadd.f32 0.0, %v1538
  %v1540 = vpop.f32.mrb[0].mxu0
  %1541 = vmatprep.mubr.bf16.mxu0 0
  %1542 = vmatmul.mubr.bf16.gmra.mrb[0].mxu0 %v1012
  %v1543 = vpop.f32.mrb[0].mxu0
  %v1544 = vadd.f32 0.0, %v1543
  %v1545 = vpop.f32.mrb[0].mxu0
  %v1546 = vpop.f32.mrb[0].mxu0
  %v1547 = vadd.f32 0.0, %v1546
  %v1548 = vpop.f32.mrb[0].mxu0
  %1549 = vmatprep.mubr.bf16.mxu0 0
  %1550 = vmatmul.mubr.bf16.gmra.mrb[0].mxu0 %v1015
  %v1551 = vpop.f32.mrb[0].mxu0
  %v1552 = vadd.f32 0.0, %v1551
  %v1553 = vpop.f32.mrb[0].mxu0
  %v1554 = vpop.f32.mrb[0].mxu0
  %v1555 = vadd.f32 0.0, %v1554
  %v1556 = vpop.f32.mrb[0].mxu0
  %1557 = vmatprep.mubr.bf16.mxu0 0
  %1558 = vmatmul.mubr.bf16.gmra.mrb[0].mxu0 %v1018
  %v1559 = vpop.f32.mrb[0].mxu0
  %v1560 = vadd.f32 0.0, %v1559
  %v1561 = vpop.f32.mrb[0].mxu0
  %v1562 = vpop.f32.mrb[0].mxu0
  %v1563 = vadd.f32 0.0, %v1562
  %v1564 = vpop.f32.mrb[0].mxu0
  %1565 = vmatprep.mubr.bf16.mxu0 0
  %1566 = vmatmul.mubr.bf16.gmra.mrb[0].mxu0 %v1021
  %v1567 = vpop.f32.mrb[0].mxu0
  %v1568 = vadd.f32 0.0, %v1567
  %v1569 = vpop.f32.mrb[0].mxu0
  %v1570 = vpop.f32.mrb[0].mxu0
  %v1571 = vadd.f32 0.0, %v1570
  %v1572 = vpop.f32.mrb[0].mxu0
  %1573 = vmatprep.mubr.bf16.mxu0 0
  %1574 = vmatmul.mubr.bf16.gmra.mrb[0].mxu0 %v1024
  %v1575 = vpop.f32.mrb[0].mxu0
  %v1576 = vadd.f32 0.0, %v1575
  %v1577 = vpop.f32.mrb[0].mxu0
  %v1578 = vpop.f32.mrb[0].mxu0
  %v1579 = vadd.f32 0.0, %v1578
  %v1580 = vpop.f32.mrb[0].mxu0
  %1581 = vmatprep.mubr.bf16.mxu0 0
  %1582 = vmatmul.mubr.bf16.gmra.mrb[0].mxu0 %v1027
  %v1583 = vpop.f32.mrb[0].mxu0
  %v1584 = vadd.f32 0.0, %v1583
  %v1585 = vpop.f32.mrb[0].mxu0
  %v1586 = vpop.f32.mrb[0].mxu0
  %v1587 = vadd.f32 0.0, %v1586
  %v1588 = vpop.f32.mrb[0].mxu0
  %1589 = vmatprep.mubr.bf16.mxu0 0
  %1590 = vmatmul.mubr.bf16.gmra.mrb[0].mxu0 %v1030
  %v1591 = vpop.f32.mrb[0].mxu0
  %v1592 = vadd.f32 0.0, %v1591
  %v1593 = vpop.f32.mrb[0].mxu0
  %v1594 = vpop.f32.mrb[0].mxu0
  %v1595 = vadd.f32 0.0, %v1594
  %v1596 = vpop.f32.mrb[0].mxu0
  %1597 = vmatprep.mubr.bf16.mxu0 0
  %1598 = vmatmul.mubr.bf16.gmra.mrb[0].mxu0 %v1033
  %v1599 = vpop.f32.mrb[0].mxu0
  %v1600 = vadd.f32 0.0, %v1599
  %v1601 = vpop.f32.mrb[0].mxu0
  %v1602 = vpop.f32.mrb[0].mxu0
  %v1603 = vadd.f32 0.0, %v1602
  %v1604 = vpop.f32.mrb[0].mxu0
  %1605 = vmatprep.mubr.bf16.mxu0 0
  %1606 = vmatmul.mubr.bf16.gmra.mrb[0].mxu0 %v1036
  %v1607 = vpop.f32.mrb[0].mxu0
  %v1608 = vadd.f32 0.0, %v1607
  %v1609 = vpop.f32.mrb[0].mxu0
  %v1610 = vpop.f32.mrb[0].mxu0
  %v1611 = vadd.f32 0.0, %v1610
  %v1612 = vpop.f32.mrb[0].mxu0
  %1613 = vmatprep.mubr.bf16.mxu0 0
  %1614 = vmatmul.mubr.bf16.gmra.mrb[0].mxu0 %v1039
  %v1615 = vpop.f32.mrb[0].mxu0
  %v1616 = vadd.f32 0.0, %v1615
  %v1617 = vpop.f32.mrb[0].mxu0
  %v1618 = vpop.f32.mrb[0].mxu0
  %v1619 = vadd.f32 0.0, %v1618
  %v1620 = vpop.f32.mrb[0].mxu0
  %1621 = vmatprep.mubr.bf16.mxu0 0
  %1622 = vmatmul.mubr.bf16.gmra.mrb[0].mxu0 %v1042
  %v1623 = vpop.f32.mrb[0].mxu0
  %v1624 = vadd.f32 0.0, %v1623
  %v1625 = vpop.f32.mrb[0].mxu0
  %v1626 = vpop.f32.mrb[0].mxu0
  %v1627 = vadd.f32 0.0, %v1626
  %v1628 = vpop.f32.mrb[0].mxu0
  %1629 = vmatprep.mubr.bf16.mxu0 0
  %1630 = vmatmul.mubr.bf16.gmra.mrb[0].mxu0 %v1045
  %v1631 = vpop.f32.mrb[0].mxu0
  %v1632 = vadd.f32 0.0, %v1631
  %v1633 = vpop.f32.mrb[0].mxu0
  %v1634 = vpop.f32.mrb[0].mxu0
  %v1635 = vadd.f32 0.0, %v1634
  %v1636 = vpop.f32.mrb[0].mxu0
  %1637 = vmatprep.mubr.bf16.mxu0 0
  %1638 = vmatmul.mubr.bf16.gmra.mrb[0].mxu0 %v1048
  %v1639 = vpop.f32.mrb[0].mxu0
  %v1640 = vadd.f32 0.0, %v1639
  %v1641 = vpop.f32.mrb[0].mxu0
  %v1642 = vpop.f32.mrb[0].mxu0
  %v1643 = vadd.f32 0.0, %v1642
  %v1644 = vpop.f32.mrb[0].mxu0
  %1645 = vmatprep.mubr.bf16.mxu0 0
  %1646 = vmatmul.mubr.bf16.gmra.mrb[0].mxu0 %v1051
  %v1647 = vpop.f32.mrb[0].mxu0
  %v1648 = vadd.f32 0.0, %v1647
  %v1649 = vpop.f32.mrb[0].mxu0
  %v1650 = vpop.f32.mrb[0].mxu0
  %v1651 = vadd.f32 0.0, %v1650
  %v1652 = vpop.f32.mrb[0].mxu0
  %1653 = vmatprep.mubr.bf16.mxu0 0
  %1654 = vmatmul.mubr.bf16.gmra.mrb[0].mxu0 %v1054
  %v1655 = vpop.f32.mrb[0].mxu0
  %v1656 = vadd.f32 0.0, %v1655
  %v1657 = vpop.f32.mrb[0].mxu0
  %v1658 = vpop.f32.mrb[0].mxu0
  %v1659 = vadd.f32 0.0, %v1658
  %v1660 = vpop.f32.mrb[0].mxu0
  %1661 = vmatprep.mubr.bf16.mxu0 0
  %1662 = vmatmul.mubr.bf16.gmra.mrb[0].mxu0 %v1057
  %v1663 = vpop.f32.mrb[0].mxu0
  %v1664 = vadd.f32 0.0, %v1663
  %v1665 = vpop.f32.mrb[0].mxu0
  %v1666 = vpop.f32.mrb[0].mxu0
  %v1667 = vadd.f32 0.0, %v1666
  %v1668 = vpop.f32.mrb[0].mxu0
  %1669 = vmatprep.mubr.bf16.mxu0 0
  %1670 = vmatmul.mubr.bf16.gmra.mrb[0].mxu0 %v1060
  %v1671 = vpop.f32.mrb[0].mxu0
  %v1672 = vadd.f32 0.0, %v1671
  %v1673 = vpop.f32.mrb[0].mxu0
  %v1674 = vpop.f32.mrb[0].mxu0
  %v1675 = vadd.f32 0.0, %v1674
  %v1676 = vpop.f32.mrb[0].mxu0
  %1677 = vmatprep.mubr.bf16.mxu0 0
  %1678 = vmatmul.mubr.bf16.gmra.mrb[0].mxu0 %v1063
  %v1679 = vpop.f32.mrb[0].mxu0
  %v1680 = vadd.f32 0.0, %v1679
  %v1681 = vpop.f32.mrb[0].mxu0
  %v1682 = vpop.f32.mrb[0].mxu0
  %v1683 = vadd.f32 0.0, %v1682
  %v1684 = vpop.f32.mrb[0].mxu0
  %1685 = vmatprep.mubr.bf16.mxu0 0
  %1686 = vmatmul.mubr.bf16.gmra.mrb[0].mxu0 %v1066
  %v1687 = vpop.f32.mrb[0].mxu0
  %v1688 = vadd.f32 0.0, %v1687
  %v1689 = vpop.f32.mrb[0].mxu0
  %v1690 = vpop.f32.mrb[0].mxu0
  %v1691 = vadd.f32 0.0, %v1690
  %v1692 = vpop.f32.mrb[0].mxu0
  %1693 = vmatprep.mubr.bf16.mxu0 0
  %1694 = vmatmul.mubr.bf16.gmra.mrb[0].mxu0 %v1069
  %v1695 = vpop.f32.mrb[0].mxu0
  %v1696 = vadd.f32 0.0, %v1695
  %v1697 = vpop.f32.mrb[0].mxu0
  %v1698 = vpop.f32.mrb[0].mxu0
  %v1699 = vadd.f32 0.0, %v1698
  %v1700 = vpop.f32.mrb[0].mxu0
  %1701 = vmatprep.mubr.bf16.mxu0 0
  %1702 = vmatmul.mubr.bf16.gmra.mrb[0].mxu0 %v1072
  %v1703 = vpop.f32.mrb[0].mxu0
  %v1704 = vadd.f32 0.0, %v1703
  %v1705 = vpop.f32.mrb[0].mxu0
  %v1706 = vpop.f32.mrb[0].mxu0
  %v1707 = vadd.f32 0.0, %v1706
  %v1708 = vpop.f32.mrb[0].mxu0
  %1709 = vmatprep.mubr.bf16.mxu0 0
  %1710 = vmatmul.mubr.bf16.gmra.mrb[0].mxu0 %v1075
  %v1711 = vpop.f32.mrb[0].mxu0
  %v1712 = vadd.f32 0.0, %v1711
  %v1713 = vpop.f32.mrb[0].mxu0
  %v1714 = vpop.f32.mrb[0].mxu0
  %v1715 = vadd.f32 0.0, %v1714
  %v1716 = vpop.f32.mrb[0].mxu0
  %1717 = vmatprep.mubr.bf16.mxu0 0
  %1718 = vmatmul.mubr.bf16.gmra.mrb[0].mxu0 %v1078
  %v1719 = vpop.f32.mrb[0].mxu0
  %v1720 = vadd.f32 0.0, %v1719
  %v1721 = vpop.f32.mrb[0].mxu0
  %v1722 = vpop.f32.mrb[0].mxu0
  %v1723 = vadd.f32 0.0, %v1722
  %v1724 = vpop.f32.mrb[0].mxu0
  %1725 = vmatprep.mubr.bf16.mxu0 0
  %1726 = vmatmul.mubr.bf16.gmra.mrb[0].mxu0 %v1081
  %v1727 = vpop.f32.mrb[0].mxu0
  %v1728 = vadd.f32 0.0, %v1727
  %v1729 = vpop.f32.mrb[0].mxu0
  %v1730 = vpop.f32.mrb[0].mxu0
  %v1731 = vadd.f32 0.0, %v1730
  %v1732 = vpop.f32.mrb[0].mxu0
  %1733 = vmatprep.mubr.bf16.mxu0 0
  %1734 = vmatmul.mubr.bf16.gmra.mrb[0].mxu0 %v1084
  %v1735 = vpop.f32.mrb[0].mxu0
  %v1736 = vadd.f32 0.0, %v1735
  %v1737 = vpop.f32.mrb[0].mxu0
  %v1738 = vpop.f32.mrb[0].mxu0
  %v1739 = vadd.f32 0.0, %v1738
  %v1740 = vpop.f32.mrb[0].mxu0
  %1741 = vmatprep.mubr.bf16.mxu0 0
  %1742 = vmatmul.mubr.bf16.gmra.mrb[0].mxu0 %v1087
  %v1743 = vpop.f32.mrb[0].mxu0
  %v1744 = vadd.f32 0.0, %v1743
  %v1745 = vpop.f32.mrb[0].mxu0
  %v1746 = vpop.f32.mrb[0].mxu0
  %v1747 = vadd.f32 0.0, %v1746
  %v1748 = vpop.f32.mrb[0].mxu0
  %1749 = vmatprep.mubr.bf16.mxu0 0
  %1750 = vmatmul.mubr.bf16.gmra.mrb[0].mxu0 %v1090
  %v1751 = vpop.f32.mrb[0].mxu0
  %v1752 = vadd.f32 0.0, %v1751
  %v1753 = vpop.f32.mrb[0].mxu0
  %v1754 = vpop.f32.mrb[0].mxu0
  %v1755 = vadd.f32 0.0, %v1754
  %v1756 = vpop.f32.mrb[0].mxu0
  %1757 = vmatprep.mubr.bf16.mxu0 0
  %1758 = vmatmul.mubr.bf16.gmra.mrb[0].mxu0 %v1093
  %v1759 = vpop.f32.mrb[0].mxu0
  %v1760 = vadd.f32 0.0, %v1759
  %v1761 = vpop.f32.mrb[0].mxu0
  %v1762 = vpop.f32.mrb[0].mxu0
  %v1763 = vadd.f32 0.0, %v1762
  %v1764 = vpop.f32.mrb[0].mxu0
  %1765 = vmatprep.mubr.bf16.mxu0 0
  %1766 = vmatmul.mubr.bf16.gmra.mrb[0].mxu0 %v1096
  %v1767 = vpop.f32.mrb[0].mxu0
  %v1768 = vadd.f32 0.0, %v1767
  %v1769 = vpop.f32.mrb[0].mxu0
  %v1770 = vpop.f32.mrb[0].mxu0
  %v1771 = vadd.f32 0.0, %v1770
  %v1772 = vpop.f32.mrb[0].mxu0
  %1773 = vmatprep.mubr.bf16.mxu0 0
  %1774 = vmatmul.mubr.bf16.gmra.mrb[0].mxu0 %v1099
  %v1775 = vpop.f32.mrb[0].mxu0
  %v1776 = vadd.f32 0.0, %v1775
  %v1777 = vpop.f32.mrb[0].mxu0
  %v1778 = vpop.f32.mrb[0].mxu0
  %v1779 = vadd.f32 0.0, %v1778
  %v1780 = vpop.f32.mrb[0].mxu0
  %1781 = vmatprep.mubr.bf16.mxu0 0
  %1782 = vmatmul.mubr.bf16.gmra.mrb[0].mxu0 %v1102
  %v1783 = vpop.f32.mrb[0].mxu0
  %v1784 = vadd.f32 0.0, %v1783
  %v1785 = vpop.f32.mrb[0].mxu0
  %v1786 = vpop.f32.mrb[0].mxu0
  %v1787 = vadd.f32 0.0, %v1786
  %v1788 = vpop.f32.mrb[0].mxu0
  %1789 = vmatprep.mubr.bf16.mxu0 0
  %1790 = vmatmul.mubr.bf16.gmra.mrb[0].mxu0 %v1105
  %v1791 = vpop.f32.mrb[0].mxu0
  %v1792 = vadd.f32 0.0, %v1791
  %v1793 = vpop.f32.mrb[0].mxu0
  %v1794 = vpop.f32.mrb[0].mxu0
  %v1795 = vadd.f32 0.0, %v1794
  %v1796 = vpop.f32.mrb[0].mxu0
  %1797 = vmatprep.mubr.bf16.mxu0 0
  %1798 = vmatmul.mubr.bf16.gmra.mrb[0].mxu0 %v1108
  %v1799 = vpop.f32.mrb[0].mxu0
  %v1800 = vadd.f32 0.0, %v1799
  %v1801 = vpop.f32.mrb[0].mxu0
  %v1802 = vpop.f32.mrb[0].mxu0
  %v1803 = vadd.f32 0.0, %v1802
  %v1804 = vpop.f32.mrb[0].mxu0
  %1805 = vmatprep.mubr.bf16.mxu0 0
  %1806 = vmatmul.mubr.bf16.gmra.mrb[0].mxu0 %v1111
  %v1807 = vpop.f32.mrb[0].mxu0
  %v1808 = vadd.f32 0.0, %v1807
  %v1809 = vpop.f32.mrb[0].mxu0
  %v1810 = vpop.f32.mrb[0].mxu0
  %v1811 = vadd.f32 0.0, %v1810
  %v1812 = vpop.f32.mrb[0].mxu0
  %1813 = vmatprep.mubr.bf16.mxu0 0
  %1814 = vmatmul.mubr.bf16.gmra.mrb[0].mxu0 %v1114
  %v1815 = vpop.f32.mrb[0].mxu0
  %v1816 = vadd.f32 0.0, %v1815
  %v1817 = vpop.f32.mrb[0].mxu0
  %v1818 = vpop.f32.mrb[0].mxu0
  %v1819 = vadd.f32 0.0, %v1818
  %v1820 = vpop.f32.mrb[0].mxu0
  %1821 = vmatprep.mubr.bf16.mxu0 0
  %1822 = vmatmul.mubr.bf16.gmra.mrb[0].mxu0 %v1117
  %v1823 = vpop.f32.mrb[0].mxu0
  %v1824 = vadd.f32 0.0, %v1823
  %v1825 = vpop.f32.mrb[0].mxu0
  %v1826 = vpop.f32.mrb[0].mxu0
  %v1827 = vadd.f32 0.0, %v1826
  %v1828 = vpop.f32.mrb[0].mxu0
  %1829 = vmatprep.mubr.bf16.mxu0 0
  %1830 = vmatmul.mubr.bf16.gmra.mrb[0].mxu0 %v1120
  %v1831 = vpop.f32.mrb[0].mxu0
  %v1832 = vadd.f32 0.0, %v1831
  %v1833 = vpop.f32.mrb[0].mxu0
  %v1834 = vpop.f32.mrb[0].mxu0
  %v1835 = vadd.f32 0.0, %v1834
  %v1836 = vpop.f32.mrb[0].mxu0
  %1837 = vmatprep.mubr.bf16.mxu0 0
  %1838 = vmatmul.mubr.bf16.gmra.mrb[0].mxu0 %v1123
  %v1839 = vpop.f32.mrb[0].mxu0
  %v1840 = vadd.f32 0.0, %v1839
  %v1841 = vpop.f32.mrb[0].mxu0
  %v1842 = vpop.f32.mrb[0].mxu0
  %v1843 = vadd.f32 0.0, %v1842
  %v1844 = vpop.f32.mrb[0].mxu0
  %1845 = vmatprep.mubr.bf16.mxu0 0
  %1846 = vmatmul.mubr.bf16.gmra.mrb[0].mxu0 %v1126
  %v1847 = vpop.f32.mrb[0].mxu0
  %v1848 = vadd.f32 0.0, %v1847
  %v1849 = vpop.f32.mrb[0].mxu0
  %v1850 = vpop.f32.mrb[0].mxu0
  %v1851 = vadd.f32 0.0, %v1850
  %v1852 = vpop.f32.mrb[0].mxu0
  %1853 = vmatprep.mubr.bf16.mxu0 0
  %1854 = vmatmul.mubr.bf16.gmra.mrb[0].mxu0 %v1129
  %v1855 = vpop.f32.mrb[0].mxu0
  %v1856 = vadd.f32 0.0, %v1855
  %v1857 = vpop.f32.mrb[0].mxu0
  %v1858 = vpop.f32.mrb[0].mxu0
  %v1859 = vadd.f32 0.0, %v1858
  %v1860 = vpop.f32.mrb[0].mxu0
  %1861 = vmatprep.mubr.bf16.mxu0 0
  %1862 = vmatmul.mubr.bf16.gmra.mrb[0].mxu0 %v1132
  %v1863 = vpop.f32.mrb[0].mxu0
  %v1864 = vadd.f32 0.0, %v1863
  %v1865 = vpop.f32.mrb[0].mxu0
  %v1866 = vpop.f32.mrb[0].mxu0
  %v1867 = vadd.f32 0.0, %v1866
  %v1868 = vpop.f32.mrb[0].mxu0
  %1869 = vmatprep.mubr.bf16.mxu0 0
  %1870 = vmatmul.mubr.bf16.gmra.mrb[0].mxu0 %v1135
  %v1871 = vpop.f32.mrb[0].mxu0
  %v1872 = vadd.f32 0.0, %v1871
  %v1873 = vpop.f32.mrb[0].mxu0
  %v1874 = vpop.f32.mrb[0].mxu0
  %v1875 = vadd.f32 0.0, %v1874
  %v1876 = vpop.f32.mrb[0].mxu0
  %1877 = vmatprep.mubr.bf16.mxu0 0
  %1878 = vmatmul.mubr.bf16.gmra.mrb[0].mxu0 %v1138
  %v1879 = vpop.f32.mrb[0].mxu0
  %v1880 = vadd.f32 0.0, %v1879
  %v1881 = vpop.f32.mrb[0].mxu0
  %v1882 = vpop.f32.mrb[0].mxu0
  %v1883 = vadd.f32 0.0, %v1882
  %v1884 = vpop.f32.mrb[0].mxu0
  %1885 = vmatprep.mubr.bf16.mxu0 0
  %1886 = vmatmul.mubr.bf16.gmra.mrb[0].mxu0 %v1141
  %v1887 = vpop.f32.mrb[0].mxu0
  %v1888 = vadd.f32 0.0, %v1887
  %v1889 = vpop.f32.mrb[0].mxu0
  %v1890 = vpop.f32.mrb[0].mxu0
  %v1891 = vadd.f32 0.0, %v1890
  %v1892 = vpop.f32.mrb[0].mxu0
  %1893 = vmatprep.mubr.bf16.mxu0 0
  %1894 = vmatmul.mubr.bf16.gmra.mrb[0].mxu0 %v1144
  %v1895 = vpop.f32.mrb[0].mxu0
  %v1896 = vadd.f32 0.0, %v1895
  %v1897 = vpop.f32.mrb[0].mxu0
  %v1898 = vpop.f32.mrb[0].mxu0
  %v1899 = vadd.f32 0.0, %v1898
  %v1900 = vpop.f32.mrb[0].mxu0
  %1901 = vmatprep.mubr.bf16.mxu0 0
  %1902 = vmatmul.mubr.bf16.gmra.mrb[0].mxu0 %v1147
  %v1903 = vpop.f32.mrb[0].mxu0
  %v1904 = vadd.f32 0.0, %v1903
  %v1905 = vpop.f32.mrb[0].mxu0
  %v1906 = vpop.f32.mrb[0].mxu0
  %v1907 = vadd.f32 0.0, %v1906
  %v1908 = vpop.f32.mrb[0].mxu0
  %1909 = vmatprep.mubr.bf16.mxu0 0
  %1910 = vmatmul.mubr.bf16.gmra.mrb[0].mxu0 %v1150
  %v1911 = vpop.f32.mrb[0].mxu0
  %v1912 = vadd.f32 0.0, %v1911
  %v1913 = vpop.f32.mrb[0].mxu0
  %v1914 = vpop.f32.mrb[0].mxu0
  %v1915 = vadd.f32 0.0, %v1914
  %v1916 = vpop.f32.mrb[0].mxu0
  %1917 = vmatprep.mubr.bf16.mxu0 0
  %1918 = vmatmul.mubr.bf16.gmra.mrb[0].mxu0 %v1153
  %v1919 = vpop.f32.mrb[0].mxu0
  %v1920 = vadd.f32 0.0, %v1919
  %v1921 = vpop.f32.mrb[0].mxu0
  %v1922 = vpop.f32.mrb[0].mxu0
  %v1923 = vadd.f32 0.0, %v1922
  %v1924 = vpop.f32.mrb[0].mxu0
  %1925 = vmatprep.mubr.bf16.mxu0 0
  %1926 = vmatmul.mubr.bf16.gmra.mrb[0].mxu0 %v1156
  %v1927 = vpop.f32.mrb[0].mxu0
  %v1928 = vadd.f32 0.0, %v1927
  %v1929 = vpop.f32.mrb[0].mxu0
  %v1930 = vpop.f32.mrb[0].mxu0
  %v1931 = vadd.f32 0.0, %v1930
  %v1932 = vpop.f32.mrb[0].mxu0
  %1933 = vmatprep.mubr.bf16.mxu0 0
  %1934 = vmatmul.mubr.bf16.gmra.mrb[0].mxu0 %v1159
  %v1935 = vpop.f32.mrb[0].mxu0
  %v1936 = vadd.f32 0.0, %v1935
  %v1937 = vpop.f32.mrb[0].mxu0
  %v1938 = vpop.f32.mrb[0].mxu0
  %v1939 = vadd.f32 0.0, %v1938
  %v1940 = vpop.f32.mrb[0].mxu0
  %1941 = vmatprep.mubr.bf16.mxu0 0
  %1942 = vmatmul.mubr.bf16.gmra.mrb[0].mxu0 %v1162
  %v1943 = vpop.f32.mrb[0].mxu0
  %v1944 = vadd.f32 0.0, %v1943
  %v1945 = vpop.f32.mrb[0].mxu0
  %v1946 = vpop.f32.mrb[0].mxu0
  %v1947 = vadd.f32 0.0, %v1946
  %v1948 = vpop.f32.mrb[0].mxu0
  %1949 = vmatprep.mubr.bf16.mxu0 0
  %1950 = vmatmul.mubr.bf16.gmra.mrb[0].mxu0 %v1165
  %v1951 = vpop.f32.mrb[0].mxu0
  %v1952 = vadd.f32 0.0, %v1951
  %v1953 = vpop.f32.mrb[0].mxu0
  %v1954 = vpop.f32.mrb[0].mxu0
  %v1955 = vadd.f32 0.0, %v1954
  %v1956 = vpop.f32.mrb[0].mxu0
  %1957 = vmatprep.mubr.bf16.mxu0 0
  %1958 = vmatmul.mubr.bf16.gmra.mrb[0].mxu0 %v1168
  %v1959 = vpop.f32.mrb[0].mxu0
  %v1960 = vadd.f32 0.0, %v1959
  %v1961 = vpop.f32.mrb[0].mxu0
  %v1962 = vpop.f32.mrb[0].mxu0
  %v1963 = vadd.f32 0.0, %v1962
  %v1964 = vpop.f32.mrb[0].mxu0
  %1965 = vmatprep.mubr.bf16.mxu0 0
  %1966 = vmatmul.mubr.bf16.gmra.mrb[0].mxu0 %v1171
  %v1967 = vpop.f32.mrb[0].mxu0
  %v1968 = vadd.f32 0.0, %v1967
  %v1969 = vpop.f32.mrb[0].mxu0
  %v1970 = vpop.f32.mrb[0].mxu0
  %v1971 = vadd.f32 0.0, %v1970
  %v1972 = vpop.f32.mrb[0].mxu0
  %1973 = vmatprep.mubr.bf16.mxu0 0
  %1974 = vmatmul.mubr.bf16.gmra.mrb[0].mxu0 %v1174
  %v1975 = vpop.f32.mrb[0].mxu0
  %v1976 = vadd.f32 0.0, %v1975
  %v1977 = vpop.f32.mrb[0].mxu0
  %v1978 = vpop.f32.mrb[0].mxu0
  %v1979 = vadd.f32 0.0, %v1978
  %v1980 = vpop.f32.mrb[0].mxu0
  %1981 = vmatprep.mubr.bf16.mxu0 0
  %1982 = vmatmul.mubr.bf16.gmra.mrb[0].mxu0 %v1177
  %v1983 = vpop.f32.mrb[0].mxu0
  %v1984 = vadd.f32 0.0, %v1983
  %v1985 = vpop.f32.mrb[0].mxu0
  %v1986 = vpop.f32.mrb[0].mxu0
  %v1987 = vadd.f32 0.0, %v1986
  %v1988 = vpop.f32.mrb[0].mxu0
  %1989 = vmatprep.mubr.bf16.mxu0 0
  %1990 = vmatmul.mubr.bf16.gmra.mrb[0].mxu0 %v1180
  %v1991 = vpop.f32.mrb[0].mxu0
  %v1992 = vadd.f32 0.0, %v1991
  %v1993 = vpop.f32.mrb[0].mxu0
  %v1994 = vpop.f32.mrb[0].mxu0
  %v1995 = vadd.f32 0.0, %v1994
  %v1996 = vpop.f32.mrb[0].mxu0
  %1997 = vmatprep.mubr.bf16.mxu0 0
  %1998 = vmatmul.mubr.bf16.gmra.mrb[0].mxu0 %v1183
  %v1999 = vpop.f32.mrb[0].mxu0
  %v2000 = vadd.f32 0.0, %v1999
  %v2001 = vpop.f32.mrb[0].mxu0
  %v2002 = vpop.f32.mrb[0].mxu0
  %v2003 = vadd.f32 0.0, %v2002
  %v2004 = vpop.f32.mrb[0].mxu0
  %2005 = vmatprep.mubr.bf16.mxu0 0
  %2006 = vmatmul.mubr.bf16.gmra.mrb[0].mxu0 %v1186
  %v2007 = vpop.f32.mrb[0].mxu0
  %v2008 = vadd.f32 0.0, %v2007
  %v2009 = vpop.f32.mrb[0].mxu0
  %v2010 = vpop.f32.mrb[0].mxu0
  %v2011 = vadd.f32 0.0, %v2010
  %v2012 = vpop.f32.mrb[0].mxu0
  %2013 = vmatprep.mubr.bf16.mxu0 0
  %2014 = vmatmul.mubr.bf16.gmra.mrb[0].mxu0 %v1189
  %v2015 = vpop.f32.mrb[0].mxu0
  %v2016 = vadd.f32 0.0, %v2015
  %v2017 = vpop.f32.mrb[0].mxu0
  %v2018 = vpop.f32.mrb[0].mxu0
  %v2019 = vadd.f32 0.0, %v2018
  %v2020 = vpop.f32.mrb[0].mxu0
  %2021 = vmatprep.mubr.bf16.mxu0 0
  %2022 = vmatmul.mubr.bf16.gmra.mrb[0].mxu0 %v1192
  %v2023 = vpop.f32.mrb[0].mxu0
  %v2024 = vadd.f32 0.0, %v2023
  %v2025 = vpop.f32.mrb[0].mxu0
  %v2026 = vpop.f32.mrb[0].mxu0
  %v2027 = vadd.f32 0.0, %v2026
  %v2028 = vpop.f32.mrb[0].mxu0
  %2029 = vmatprep.mubr.bf16.mxu0 0
  %2030 = vmatmul.mubr.bf16.gmra.mrb[0].mxu0 %v1195
  %v2031 = vpop.f32.mrb[0].mxu0
  %v2032 = vadd.f32 0.0, %v2031
  %v2033 = vpop.f32.mrb[0].mxu0
  %v2034 = vpop.f32.mrb[0].mxu0
  %v2035 = vadd.f32 0.0, %v2034
  %v2036 = vpop.f32.mrb[0].mxu0
  %2037 = vmatprep.mubr.bf16.mxu0 0
  %2038 = vmatmul.mubr.bf16.gmra.mrb[0].mxu0 %v1198
  %v2039 = vpop.f32.mrb[0].mxu0
  %v2040 = vadd.f32 0.0, %v2039
  %v2041 = vpop.f32.mrb[0].mxu0
  %v2042 = vpop.f32.mrb[0].mxu0
  %v2043 = vadd.f32 0.0, %v2042
  %v2044 = vpop.f32.mrb[0].mxu0
  %2045 = vmatprep.mubr.bf16.mxu0 0
  %2046 = vmatmul.mubr.bf16.gmra.mrb[0].mxu0 %v1201
  %v2047 = vpop.f32.mrb[0].mxu0
  %v2048 = vadd.f32 0.0, %v2047
  %v2049 = vpop.f32.mrb[0].mxu0
  %v2050 = vpop.f32.mrb[0].mxu0
  %v2051 = vadd.f32 0.0, %v2050
  %v2052 = vpop.f32.mrb[0].mxu0
  %2053 = vmatprep.mubr.bf16.mxu0 0
  %2054 = vmatmul.mubr.bf16.gmra.mrb[0].mxu0 %v1204
  %v2055 = vpop.f32.mrb[0].mxu0
  %v2056 = vadd.f32 0.0, %v2055
  %v2057 = vpop.f32.mrb[0].mxu0
  %v2058 = vpop.f32.mrb[0].mxu0
  %v2059 = vadd.f32 0.0, %v2058
  %v2060 = vpop.f32.mrb[0].mxu0
  %2061 = vmatprep.mubr.bf16.mxu0 0
  %2062 = vmatmul.mubr.bf16.gmra.mrb[0].mxu0 %v1207
  %v2063 = vpop.f32.mrb[0].mxu0
  %v2064 = vadd.f32 0.0, %v2063
  %v2065 = vpop.f32.mrb[0].mxu0
  %v2066 = vpop.f32.mrb[0].mxu0
  %v2067 = vadd.f32 0.0, %v2066
  %v2068 = vpop.f32.mrb[0].mxu0
  %2069 = vmatprep.mubr.bf16.mxu0 0
  %2070 = vmatmul.mubr.bf16.gmra.mrb[0].mxu0 %v1210
  %v2071 = vpop.f32.mrb[0].mxu0
  %v2072 = vadd.f32 0.0, %v2071
  %v2073 = vpop.f32.mrb[0].mxu0
  %v2074 = vpop.f32.mrb[0].mxu0
  %v2075 = vadd.f32 0.0, %v2074
  %v2076 = vpop.f32.mrb[0].mxu0
  %2077 = vmatprep.mubr.bf16.mxu0 0
  %2078 = vmatmul.mubr.bf16.gmra.mrb[0].mxu0 %v1213
  %v2079 = vpop.f32.mrb[0].mxu0
  %v2080 = vadd.f32 0.0, %v2079
  %v2081 = vpop.f32.mrb[0].mxu0
  %v2082 = vpop.f32.mrb[0].mxu0
  %v2083 = vadd.f32 0.0, %v2082
  %v2084 = vpop.f32.mrb[0].mxu0
  %2085 = vmatprep.mubr.bf16.mxu0 0
  %2086 = vmatmul.mubr.bf16.gmra.mrb[0].mxu0 %v1216
  %v2087 = vpop.f32.mrb[0].mxu0
  %v2088 = vadd.f32 0.0, %v2087
  %v2089 = vpop.f32.mrb[0].mxu0
  %v2090 = vpop.f32.mrb[0].mxu0
  %v2091 = vadd.f32 0.0, %v2090
  %v2092 = vpop.f32.mrb[0].mxu0
  %2093 = vmatprep.mubr.bf16.mxu0 0
  %2094 = vmatmul.mubr.bf16.gmra.mrb[0].mxu0 %v1219
  %v2095 = vpop.f32.mrb[0].mxu0
  %v2096 = vadd.f32 0.0, %v2095
  %v2097 = vpop.f32.mrb[0].mxu0
  %v2098 = vpop.f32.mrb[0].mxu0
  %v2099 = vadd.f32 0.0, %v2098
  %v2100 = vpop.f32.mrb[0].mxu0
  %2101 = vmatprep.mubr.bf16.mxu0 0
  %2102 = vmatmul.mubr.bf16.gmra.mrb[0].mxu0 %v1222
  %v2103 = vpop.f32.mrb[0].mxu0
  %v2104 = vadd.f32 0.0, %v2103
  %v2105 = vpop.f32.mrb[0].mxu0
  %v2106 = vpop.f32.mrb[0].mxu0
  %v2107 = vadd.f32 0.0, %v2106
  %v2108 = vpop.f32.mrb[0].mxu0
  %2109 = vmatprep.mubr.bf16.mxu0 0
  %2110 = vmatmul.mubr.bf16.gmra.mrb[0].mxu0 %v1225
  %v2111 = vpop.f32.mrb[0].mxu0
  %v2112 = vadd.f32 0.0, %v2111
  %v2113 = vpop.f32.mrb[0].mxu0
  %v2114 = vpop.f32.mrb[0].mxu0
  %v2115 = vadd.f32 0.0, %v2114
  %v2116 = vpop.f32.mrb[0].mxu0
  %2117 = vmatprep.mubr.bf16.mxu0 0
  %2118 = vmatmul.mubr.bf16.gmra.mrb[0].mxu0 %v1228
  %v2119 = vpop.f32.mrb[0].mxu0
  %v2120 = vadd.f32 0.0, %v2119
  %v2121 = vpop.f32.mrb[0].mxu0
  %v2122 = vpop.f32.mrb[0].mxu0
  %v2123 = vadd.f32 0.0, %v2122
  %v2124 = vpop.f32.mrb[0].mxu0
  %2125 = vmatprep.mubr.bf16.mxu0 0
  %2126 = vmatmul.mubr.bf16.gmra.mrb[0].mxu0 %v1231
  %v2127 = vpop.f32.mrb[0].mxu0
  %v2128 = vadd.f32 0.0, %v2127
  %v2129 = vpop.f32.mrb[0].mxu0
  %v2130 = vpop.f32.mrb[0].mxu0
  %v2131 = vadd.f32 0.0, %v2130
  %v2132 = vpop.f32.mrb[0].mxu0
  %2133 = vmatprep.mubr.bf16.mxu0 0
  %2134 = vmatmul.mubr.bf16.gmra.mrb[0].mxu0 %v1234
  %v2135 = vpop.f32.mrb[0].mxu0
  %v2136 = vadd.f32 0.0, %v2135
  %v2137 = vpop.f32.mrb[0].mxu0
  %v2138 = vpop.f32.mrb[0].mxu0
  %v2139 = vadd.f32 0.0, %v2138
  %v2140 = vpop.f32.mrb[0].mxu0
  %2141 = vmatprep.mubr.bf16.mxu0 0
  %2142 = vmatmul.mubr.bf16.gmra.mrb[0].mxu0 %v1237
  %v2143 = vpop.f32.mrb[0].mxu0
  %v2144 = vadd.f32 0.0, %v2143
  %v2145 = vpop.f32.mrb[0].mxu0
  %v2146 = vpop.f32.mrb[0].mxu0
  %v2147 = vadd.f32 0.0, %v2146
  %v2148 = vpop.f32.mrb[0].mxu0
  %2149 = vmatprep.mubr.bf16.mxu0 0
  %2150 = vmatmul.mubr.bf16.gmra.mrb[0].mxu0 %v1240
  %v2151 = vpop.f32.mrb[0].mxu0
  %v2152 = vadd.f32 0.0, %v2151
  %v2153 = vpop.f32.mrb[0].mxu0
  %v2154 = vpop.f32.mrb[0].mxu0
  %v2155 = vadd.f32 0.0, %v2154
  %v2156 = vpop.f32.mrb[0].mxu0
  %2157 = vmatprep.mubr.bf16.mxu0 0
  %2158 = vmatmul.mubr.bf16.gmra.mrb[0].mxu0 %v1243
  %v2159 = vpop.f32.mrb[0].mxu0
  %v2160 = vadd.f32 0.0, %v2159
  %v2161 = vpop.f32.mrb[0].mxu0
  %v2162 = vpop.f32.mrb[0].mxu0
  %v2163 = vadd.f32 0.0, %v2162
  %v2164 = vpop.f32.mrb[0].mxu0
  %2165 = vmatprep.mubr.bf16.mxu0 0
  %2166 = vmatmul.mubr.bf16.gmra.mrb[0].mxu0 %v1246
  %v2167 = vpop.f32.mrb[0].mxu0
  %v2168 = vadd.f32 0.0, %v2167
  %v2169 = vpop.f32.mrb[0].mxu0
  %v2170 = vpop.f32.mrb[0].mxu0
  %v2171 = vadd.f32 0.0, %v2170
  %v2172 = vpop.f32.mrb[0].mxu0
  %2173 = vmatprep.mubr.bf16.mxu0 0
  %2174 = vmatmul.mubr.bf16.gmra.mrb[0].mxu0 %v1249
  %v2175 = vpop.f32.mrb[0].mxu0
  %v2176 = vadd.f32 0.0, %v2175
  %v2177 = vpop.f32.mrb[0].mxu0
  %v2178 = vpop.f32.mrb[0].mxu0
  %v2179 = vadd.f32 0.0, %v2178
  %v2180 = vpop.f32.mrb[0].mxu0
  %2181 = vmatprep.mubr.bf16.mxu0 0
  %2182 = vmatmul.mubr.bf16.gmra.mrb[0].mxu0 %v1252
  %v2183 = vpop.f32.mrb[0].mxu0
  %v2184 = vadd.f32 0.0, %v2183
  %v2185 = vpop.f32.mrb[0].mxu0
  %v2186 = vpop.f32.mrb[0].mxu0
  %v2187 = vadd.f32 0.0, %v2186
  %v2188 = vpop.f32.mrb[0].mxu0
  %2189 = vmatprep.mubr.bf16.mxu0 0
  %2190 = vmatmul.mubr.bf16.gmra.mrb[0].mxu0 %v1255
  %v2191 = vpop.f32.mrb[0].mxu0
  %v2192 = vadd.f32 0.0, %v2191
  %v2193 = vpop.f32.mrb[0].mxu0
  %v2194 = vpop.f32.mrb[0].mxu0
  %v2195 = vadd.f32 0.0, %v2194
  %v2196 = vpop.f32.mrb[0].mxu0
  %2197 = vmatprep.mubr.bf16.mxu0 0
  %2198 = vmatmul.mubr.bf16.gmra.mrb[0].mxu0 %v1258
  %v2199 = vpop.f32.mrb[0].mxu0
  %v2200 = vadd.f32 0.0, %v2199
  %v2201 = vpop.f32.mrb[0].mxu0
  %v2202 = vpop.f32.mrb[0].mxu0
  %v2203 = vadd.f32 0.0, %v2202
  %v2204 = vpop.f32.mrb[0].mxu0
  %2205 = vmatprep.mubr.bf16.mxu0 0
  %2206 = vmatmul.mubr.bf16.gmra.mrb[0].mxu0 %v1261
  %v2207 = vpop.f32.mrb[0].mxu0
  %v2208 = vadd.f32 0.0, %v2207
  %v2209 = vpop.f32.mrb[0].mxu0
  %v2210 = vpop.f32.mrb[0].mxu0
  %v2211 = vadd.f32 0.0, %v2210
  %v2212 = vpop.f32.mrb[0].mxu0
  %2213 = vmatprep.mubr.bf16.mxu0 0
  %2214 = vmatmul.mubr.bf16.gmra.mrb[0].mxu0 %v1264
  %v2215 = vpop.f32.mrb[0].mxu0
  %v2216 = vadd.f32 0.0, %v2215
  %v2217 = vpop.f32.mrb[0].mxu0
  %v2218 = vpop.f32.mrb[0].mxu0
  %v2219 = vadd.f32 0.0, %v2218
  %v2220 = vpop.f32.mrb[0].mxu0
  %2221 = vmatprep.mubr.bf16.mxu0 0
  %2222 = vmatmul.mubr.bf16.gmra.mrb[0].mxu0 %v1267
  %v2223 = vpop.f32.mrb[0].mxu0
  %v2224 = vadd.f32 0.0, %v2223
  %v2225 = vpop.f32.mrb[0].mxu0
  %v2226 = vpop.f32.mrb[0].mxu0
  %v2227 = vadd.f32 0.0, %v2226
  %v2228 = vpop.f32.mrb[0].mxu0
  %2229 = vmatprep.mubr.bf16.mxu0 0
  %2230 = vmatmul.mubr.bf16.gmra.mrb[0].mxu0 %v1270
  %v2231 = vpop.f32.mrb[0].mxu0
  %v2232 = vadd.f32 0.0, %v2231
  %v2233 = vpop.f32.mrb[0].mxu0
  %v2234 = vpop.f32.mrb[0].mxu0
  %v2235 = vadd.f32 0.0, %v2234
  %v2236 = vpop.f32.mrb[0].mxu0
  %2237 = vmatprep.mubr.bf16.mxu0 0
  %2238 = vmatmul.mubr.bf16.gmra.mrb[0].mxu0 %v1273
  %v2239 = vpop.f32.mrb[0].mxu0
  %v2240 = vadd.f32 0.0, %v2239
  %v2241 = vpop.f32.mrb[0].mxu0
  %v2242 = vpop.f32.mrb[0].mxu0
  %v2243 = vadd.f32 0.0, %v2242
  %v2244 = vpop.f32.mrb[0].mxu0
  %2245 = vmatprep.mubr.bf16.mxu0 0
  %2246 = vmatmul.mubr.bf16.gmra.mrb[0].mxu0 %v1276
  %v2247 = vpop.f32.mrb[0].mxu0
  %v2248 = vadd.f32 0.0, %v2247
  %v2249 = vpop.f32.mrb[0].mxu0
  %v2250 = vpop.f32.mrb[0].mxu0
  %v2251 = vadd.f32 0.0, %v2250
  %v2252 = vpop.f32.mrb[0].mxu0
  %2253 = vmatprep.mubr.bf16.mxu0 0
  %2254 = vmatmul.mubr.bf16.gmra.mrb[0].mxu0 %v1279
  %v2255 = vpop.f32.mrb[0].mxu0
  %v2256 = vadd.f32 0.0, %v2255
  %v2257 = vpop.f32.mrb[0].mxu0
  %v2258 = vpop.f32.mrb[0].mxu0
  %v2259 = vadd.f32 0.0, %v2258
  %v2260 = vpop.f32.mrb[0].mxu0
  %2261 = vmatprep.mubr.bf16.mxu0 0
  %2262 = vmatmul.mubr.bf16.gmra.mrb[0].mxu0 %v1282
  %v2263 = vpop.f32.mrb[0].mxu0
  %v2264 = vadd.f32 0.0, %v2263
  %v2265 = vpop.f32.mrb[0].mxu0
  %v2266 = vpop.f32.mrb[0].mxu0
  %v2267 = vadd.f32 0.0, %v2266
  %v2268 = vpop.f32.mrb[0].mxu0
  %2269 = vmatprep.mubr.bf16.mxu0 0
  %2270 = vmatmul.mubr.bf16.gmra.mrb[0].mxu0 %v1285
  %v2271 = vpop.f32.mrb[0].mxu0
  %v2272 = vadd.f32 0.0, %v2271
  %v2273 = vpop.f32.mrb[0].mxu0
  %v2274 = vpop.f32.mrb[0].mxu0
  %v2275 = vadd.f32 0.0, %v2274
  %v2276 = vpop.f32.mrb[0].mxu0
  %2277 = vmatprep.mubr.bf16.mxu0 0
  %2278 = vmatmul.mubr.bf16.gmra.mrb[0].mxu0 %v1288
  %v2279 = vpop.f32.mrb[0].mxu0
  %v2280 = vadd.f32 0.0, %v2279
  %v2281 = vpop.f32.mrb[0].mxu0
  %v2282 = vpop.f32.mrb[0].mxu0
  %v2283 = vadd.f32 0.0, %v2282
  %v2284 = vpop.f32.mrb[0].mxu0
  %2285 = vmatprep.mubr.bf16.mxu0 0
  %2286 = vmatmul.mubr.bf16.gmra.mrb[0].mxu0 %v1291
  %v2287 = vpop.f32.mrb[0].mxu0
  %v2288 = vadd.f32 0.0, %v2287
  %v2289 = vpop.f32.mrb[0].mxu0
  %v2290 = vpop.f32.mrb[0].mxu0
  %v2291 = vadd.f32 0.0, %v2290
  %v2292 = vpop.f32.mrb[0].mxu0
  %2293 = vmatprep.mubr.bf16.mxu0 0
  %2294 = vmatmul.mubr.bf16.gmra.mrb[0].mxu0 %v1294
  %v2295 = vpop.f32.mrb[0].mxu0
  %v2296 = vadd.f32 0.0, %v2295
  %v2297 = vpop.f32.mrb[0].mxu0
  %v2298 = vpop.f32.mrb[0].mxu0
  %v2299 = vadd.f32 0.0, %v2298
  %v2300 = vpop.f32.mrb[0].mxu0
  %2301 = vmatprep.mubr.bf16.mxu0 0
  %2302 = vmatmul.mubr.bf16.gmra.mrb[0].mxu0 %v1297
  %v2303 = vpop.f32.mrb[0].mxu0
  %v2304 = vadd.f32 0.0, %v2303
  %v2305 = vpop.f32.mrb[0].mxu0
  %v2306 = vpop.f32.mrb[0].mxu0
  %v2307 = vadd.f32 0.0, %v2306
  %v2308 = vpop.f32.mrb[0].mxu0
  %2309 = vmatprep.mubr.bf16.mxu0 0
  %2310 = vmatmul.mubr.bf16.gmra.mrb[0].mxu0 %v1300
  %v2311 = vpop.f32.mrb[0].mxu0
  %v2312 = vadd.f32 0.0, %v2311
  %v2313 = vpop.f32.mrb[0].mxu0
  %v2314 = vpop.f32.mrb[0].mxu0
  %v2315 = vadd.f32 0.0, %v2314
  %v2316 = vpop.f32.mrb[0].mxu0
  %2317 = vmatprep.mubr.bf16.mxu0 0
  %2318 = vmatmul.mubr.bf16.gmra.mrb[0].mxu0 %v1303
  %v2319 = vpop.f32.mrb[0].mxu0
  %v2320 = vadd.f32 0.0, %v2319
  %v2321 = vpop.f32.mrb[0].mxu0
  %v2322 = vpop.f32.mrb[0].mxu0
  %v2323 = vadd.f32 0.0, %v2322
  %v2324 = vpop.f32.mrb[0].mxu0
  %2325 = vmatprep.mubr.bf16.mxu0 0
  %2326 = vmatmul.mubr.bf16.gmra.mrb[0].mxu0 %v1306
  %v2327 = vpop.f32.mrb[0].mxu0
  %v2328 = vadd.f32 0.0, %v2327
  %v2329 = vpop.f32.mrb[0].mxu0
  %v2330 = vpop.f32.mrb[0].mxu0
  %v2331 = vadd.f32 0.0, %v2330
  %v2332 = vpop.f32.mrb[0].mxu0
  %2333 = vmatprep.mubr.bf16.mxu0 0
  %2334 = vmatmul.mubr.bf16.gmra.mrb[0].mxu0 %v1309
  %v2335 = vpop.f32.mrb[0].mxu0
  %v2336 = vadd.f32 0.0, %v2335
  %v2337 = vpop.f32.mrb[0].mxu0
  %v2338 = vpop.f32.mrb[0].mxu0
  %v2339 = vadd.f32 0.0, %v2338
  %v2340 = vpop.f32.mrb[0].mxu0
  %2341 = vmatprep.mubr.bf16.mxu0 0
  %2342 = vmatmul.mubr.bf16.gmra.mrb[0].mxu0 %v1312
  %v2343 = vpop.f32.mrb[0].mxu0
  %v2344 = vadd.f32 0.0, %v2343
  %v2345 = vpop.f32.mrb[0].mxu0
  %v2346 = vpop.f32.mrb[0].mxu0
  %v2347 = vadd.f32 0.0, %v2346
  %v2348 = vpop.f32.mrb[0].mxu0
  %2349 = vmatprep.mubr.bf16.mxu0 0
  %2350 = vmatmul.mubr.bf16.gmra.mrb[0].mxu0 %v1315
  %v2351 = vpop.f32.mrb[0].mxu0
  %v2352 = vadd.f32 0.0, %v2351
  %v2353 = vpop.f32.mrb[0].mxu0
  %v2354 = vpop.f32.mrb[0].mxu0
  %v2355 = vadd.f32 0.0, %v2354
  %v2356 = vpop.f32.mrb[0].mxu0
  %2357 = vmatprep.mubr.bf16.mxu0 0
  %2358 = vmatmul.mubr.bf16.gmra.mrb[0].mxu0 %v1318
  %v2359 = vpop.f32.mrb[0].mxu0
  %v2360 = vadd.f32 0.0, %v2359
  %v2361 = vpop.f32.mrb[0].mxu0
  %v2362 = vpop.f32.mrb[0].mxu0
  %v2363 = vadd.f32 0.0, %v2362
  %v2364 = vpop.f32.mrb[0].mxu0
  %2365 = vmatprep.mubr.bf16.mxu0 0
  %2366 = vmatmul.mubr.bf16.gmra.mrb[0].mxu0 %v1321
  %v2367 = vpop.f32.mrb[0].mxu0
  %v2368 = vadd.f32 0.0, %v2367
  %v2369 = vpop.f32.mrb[0].mxu0
  %v2370 = vpop.f32.mrb[0].mxu0
  %v2371 = vadd.f32 0.0, %v2370
  %v2372 = vpop.f32.mrb[0].mxu0
  %2373 = vmatprep.mubr.bf16.mxu0 0
  %2374 = vmatmul.mubr.bf16.gmra.mrb[0].mxu0 %v1324
  %v2375 = vpop.f32.mrb[0].mxu0
  %v2376 = vadd.f32 0.0, %v2375
  %v2377 = vpop.f32.mrb[0].mxu0
  %v2378 = vpop.f32.mrb[0].mxu0
  %v2379 = vadd.f32 0.0, %v2378
  %v2380 = vpop.f32.mrb[0].mxu0
  %2381 = vmatprep.mubr.bf16.mxu0 0
  %2382 = vmatmul.mubr.bf16.gmra.mrb[0].mxu0 %v1327
  %v2383 = vpop.f32.mrb[0].mxu0
  %v2384 = vadd.f32 0.0, %v2383
  %v2385 = vpop.f32.mrb[0].mxu0
  %v2386 = vpop.f32.mrb[0].mxu0
  %v2387 = vadd.f32 0.0, %v2386
  %v2388 = vpop.f32.mrb[0].mxu0
  %2389 = vdwg.mxu0
  %v2390 = vtanh.pop %v1368
  %v2391 = vtanh.pop %v1371
  %v2392 = vtanh.pop %v1376
  %v2393 = vtanh.pop %v1379
  %v2394 = vtanh.pop %v1384
  %v2395 = vtanh.pop %v1387
  %v2396 = vtanh.pop %v1392
  %v2397 = vtanh.pop %v1395
  %v2398 = vtanh.pop %v1400
  %v2399 = vtanh.pop %v1403
  %v2400 = vtanh.pop %v1408
  %v2401 = vtanh.pop %v1411
  %v2402 = vtanh.pop %v1416
  %v2403 = vtanh.pop %v1419
  %v2404 = vtanh.pop %v1424
  %v2405 = vtanh.pop %v1427
  %v2406 = vtanh.pop %v1432
  %v2407 = vtanh.pop %v1435
  %v2408 = vtanh.pop %v1440
  %v2409 = vtanh.pop %v1443
  %v2410 = vtanh.pop %v1448
  %v2411 = vtanh.pop %v1451
  %v2412 = vtanh.pop %v1456
  %v2413 = vtanh.pop %v1459
  %v2414 = vtanh.pop %v1464
  %v2415 = vtanh.pop %v1467
  %v2416 = vtanh.pop %v1472
  %v2417 = vtanh.pop %v1475
  %v2418 = vtanh.pop %v1480
  %v2419 = vtanh.pop %v1483
  %v2420 = vtanh.pop %v1488
  %v2421 = vtanh.pop %v1491
  %v2422 = vtanh.pop %v1496
  %v2423 = vtanh.pop %v1499
  %v2424 = vtanh.pop %v1504
  %v2425 = vtanh.pop %v1507
  %v2426 = vtanh.pop %v1512
  %v2427 = vtanh.pop %v1515
  %v2428 = vtanh.pop %v1520
  %v2429 = vtanh.pop %v1523
  %v2430 = vtanh.pop %v1528
  %v2431 = vtanh.pop %v1531
  %v2432 = vtanh.pop %v1536
  %v2433 = vtanh.pop %v1539
  %v2434 = vtanh.pop %v1544
  %v2435 = vtanh.pop %v1547
  %v2436 = vtanh.pop %v1552
  %v2437 = vtanh.pop %v1555
  %v2438 = vtanh.pop %v1560
  %v2439 = vtanh.pop %v1563
  %v2440 = vtanh.pop %v1568
  %v2441 = vtanh.pop %v1571
  %v2442 = vtanh.pop %v1576
  %v2443 = vtanh.pop %v1579
  %v2444 = vtanh.pop %v1584
  %v2445 = vtanh.pop %v1587
  %v2446 = vtanh.pop %v1592
  %v2447 = vtanh.pop %v1595
  %v2448 = vtanh.pop %v1600
  %v2449 = vtanh.pop %v1603
  %v2450 = vtanh.pop %v1608
  %v2451 = vtanh.pop %v1611
  %v2452 = vtanh.pop %v1616
  %v2453 = vtanh.pop %v1619
  %v2454 = vtanh.pop %v1624
  %v2455 = vtanh.pop %v1627
  %v2456 = vtanh.pop %v1632
  %v2457 = vtanh.pop %v1635
  %v2458 = vtanh.pop %v1640
  %v2459 = vtanh.pop %v1643
  %v2460 = vtanh.pop %v1648
  %v2461 = vtanh.pop %v1651
  %v2462 = vtanh.pop %v1656
  %v2463 = vtanh.pop %v1659
  %v2464 = vtanh.pop %v1664
  %v2465 = vtanh.pop %v1667
  %v2466 = vtanh.pop %v1672
  %v2467 = vtanh.pop %v1675
  %v2468 = vtanh.pop %v1680
  %v2469 = vtanh.pop %v1683
  %v2470 = vtanh.pop %v1688
  %v2471 = vtanh.pop %v1691
  %v2472 = vtanh.pop %v1696
  %v2473 = vtanh.pop %v1699
  %v2474 = vtanh.pop %v1704
  %v2475 = vtanh.pop %v1707
  %v2476 = vtanh.pop %v1712
  %v2477 = vtanh.pop %v1715
  %v2478 = vtanh.pop %v1720
  %v2479 = vtanh.pop %v1723
  %v2480 = vtanh.pop %v1728
  %v2481 = vtanh.pop %v1731
  %v2482 = vtanh.pop %v1736
  %v2483 = vtanh.pop %v1739
  %v2484 = vtanh.pop %v1744
  %v2485 = vtanh.pop %v1747
  %v2486 = vtanh.pop %v1752
  %v2487 = vtanh.pop %v1755
  %v2488 = vtanh.pop %v1760
  %v2489 = vtanh.pop %v1763
  %v2490 = vtanh.pop %v1768
  %v2491 = vtanh.pop %v1771
  %v2492 = vtanh.pop %v1776
  %v2493 = vtanh.pop %v1779
  %v2494 = vtanh.pop %v1784
  %v2495 = vtanh.pop %v1787
  %v2496 = vtanh.pop %v1792
  %v2497 = vtanh.pop %v1795
  %v2498 = vtanh.pop %v1800
  %v2499 = vtanh.pop %v1803
  %v2500 = vtanh.pop %v1808
  %v2501 = vtanh.pop %v1811
  %v2502 = vtanh.pop %v1816
  %v2503 = vtanh.pop %v1819
  %v2504 = vtanh.pop %v1824
  %v2505 = vtanh.pop %v1827
  %v2506 = vtanh.pop %v1832
  %v2507 = vtanh.pop %v1835
  %v2508 = vtanh.pop %v1840
  %v2509 = vtanh.pop %v1843
  %v2510 = vtanh.pop %v1848
  %v2511 = vtanh.pop %v1851
  %v2512 = vtanh.pop %v1856
  %v2513 = vtanh.pop %v1859
  %v2514 = vtanh.pop %v1864
  %v2515 = vtanh.pop %v1867
  %v2516 = vtanh.pop %v1872
  %v2517 = vtanh.pop %v1875
  %v2518 = vtanh.pop %v1880
  %v2519 = vtanh.pop %v1883
  %v2520 = vtanh.pop %v1888
  %v2521 = vtanh.pop %v1891
  %v2522 = vtanh.pop %v1896
  %v2523 = vtanh.pop %v1899
  %v2524 = vtanh.pop %v1904
  %v2525 = vtanh.pop %v1907
  %v2526 = vtanh.pop %v1912
  %v2527 = vtanh.pop %v1915
  %v2528 = vtanh.pop %v1920
  %v2529 = vtanh.pop %v1923
  %v2530 = vtanh.pop %v1928
  %v2531 = vtanh.pop %v1931
  %v2532 = vtanh.pop %v1936
  %v2533 = vtanh.pop %v1939
  %v2534 = vtanh.pop %v1944
  %v2535 = vtanh.pop %v1947
  %v2536 = vtanh.pop %v1952
  %v2537 = vtanh.pop %v1955
  %v2538 = vtanh.pop %v1960
  %v2539 = vtanh.pop %v1963
  %v2540 = vtanh.pop %v1968
  %v2541 = vtanh.pop %v1971
  %v2542 = vtanh.pop %v1976
  %v2543 = vtanh.pop %v1979
  %v2544 = vtanh.pop %v1984
  %v2545 = vtanh.pop %v1987
  %v2546 = vtanh.pop %v1992
  %v2547 = vtanh.pop %v1995
  %v2548 = vtanh.pop %v2000
  %v2549 = vtanh.pop %v2003
  %v2550 = vtanh.pop %v2008
  %v2551 = vtanh.pop %v2011
  %v2552 = vtanh.pop %v2016
  %v2553 = vtanh.pop %v2019
  %v2554 = vtanh.pop %v2024
  %v2555 = vtanh.pop %v2027
  %v2556 = vtanh.pop %v2032
  %v2557 = vtanh.pop %v2035
  %v2558 = vtanh.pop %v2040
  %v2559 = vtanh.pop %v2043
  %v2560 = vtanh.pop %v2048
  %v2561 = vtanh.pop %v2051
  %v2562 = vtanh.pop %v2056
  %v2563 = vtanh.pop %v2059
  %v2564 = vtanh.pop %v2064
  %v2565 = vtanh.pop %v2067
  %v2566 = vtanh.pop %v2072
  %v2567 = vtanh.pop %v2075
  %v2568 = vtanh.pop %v2080
  %v2569 = vtanh.pop %v2083
  %v2570 = vtanh.pop %v2088
  %v2571 = vtanh.pop %v2091
  %v2572 = vtanh.pop %v2096
  %v2573 = vtanh.pop %v2099
  %v2574 = vtanh.pop %v2104
  %v2575 = vtanh.pop %v2107
  %v2576 = vtanh.pop %v2112
  %v2577 = vtanh.pop %v2115
  %v2578 = vtanh.pop %v2120
  %v2579 = vtanh.pop %v2123
  %v2580 = vtanh.pop %v2128
  %v2581 = vtanh.pop %v2131
  %v2582 = vtanh.pop %v2136
  %v2583 = vtanh.pop %v2139
  %v2584 = vtanh.pop %v2144
  %v2585 = vtanh.pop %v2147
  %v2586 = vtanh.pop %v2152
  %v2587 = vtanh.pop %v2155
  %v2588 = vtanh.pop %v2160
  %v2589 = vtanh.pop %v2163
  %v2590 = vtanh.pop %v2168
  %v2591 = vtanh.pop %v2171
  %v2592 = vtanh.pop %v2176
  %v2593 = vtanh.pop %v2179
  %v2594 = vtanh.pop %v2184
  %v2595 = vtanh.pop %v2187
  %v2596 = vtanh.pop %v2192
  %v2597 = vtanh.pop %v2195
  %v2598 = vtanh.pop %v2200
  %v2599 = vtanh.pop %v2203
  %v2600 = vtanh.pop %v2208
  %v2601 = vtanh.pop %v2211
  %v2602 = vtanh.pop %v2216
  %v2603 = vtanh.pop %v2219
  %v2604 = vtanh.pop %v2224
  %v2605 = vtanh.pop %v2227
  %v2606 = vtanh.pop %v2232
  %v2607 = vtanh.pop %v2235
  %v2608 = vtanh.pop %v2240
  %v2609 = vtanh.pop %v2243
  %v2610 = vtanh.pop %v2248
  %v2611 = vtanh.pop %v2251
  %v2612 = vtanh.pop %v2256
  %v2613 = vtanh.pop %v2259
  %v2614 = vtanh.pop %v2264
  %v2615 = vtanh.pop %v2267
  %v2616 = vtanh.pop %v2272
  %v2617 = vtanh.pop %v2275
  %v2618 = vtanh.pop %v2280
  %v2619 = vtanh.pop %v2283
  %v2620 = vtanh.pop %v2288
  %v2621 = vtanh.pop %v2291
  %v2622 = vtanh.pop %v2296
  %v2623 = vtanh.pop %v2299
  %v2624 = vtanh.pop %v2304
  %v2625 = vtanh.pop %v2307
  %v2626 = vtanh.pop %v2312
  %v2627 = vtanh.pop %v2315
  %v2628 = vtanh.pop %v2320
  %v2629 = vtanh.pop %v2323
  %v2630 = vtanh.pop %v2328
  %v2631 = vtanh.pop %v2331
  %v2632 = vtanh.pop %v2336
  %v2633 = vtanh.pop %v2339
  %v2634 = vtanh.pop %v2344
  %v2635 = vtanh.pop %v2347
  %v2636 = vtanh.pop %v2352
  %v2637 = vtanh.pop %v2355
  %v2638 = vtanh.pop %v2360
  %v2639 = vtanh.pop %v2363
  %v2640 = vtanh.pop %v2368
  %v2641 = vtanh.pop %v2371
  %v2642 = vtanh.pop %v2376
  %v2643 = vtanh.pop %v2379
  %v2644 = vtanh.pop %v2384
  %v2645 = vtanh.pop %v2387
  %2646 = vst [vmem:[%s2] sm:$0xff] %v2390
  %2647 = vst [vmem:[%s2 + $0x8] sm:$0xff] %v2391
  %2648 = vst [vmem:[%s2 + $0x10] sm:$0xff] %v2392
  %2649 = vst [vmem:[%s2 + $0x18] sm:$0xff] %v2393
  %2650 = vst [vmem:[%s2 + $0x20] sm:$0xff] %v2394
  %2651 = vst [vmem:[%s2 + $0x28] sm:$0xff] %v2395
  %2652 = vst [vmem:[%s2 + $0x30] sm:$0xff] %v2396
  %2653 = vst [vmem:[%s2 + $0x38] sm:$0xff] %v2397
  %2654 = vst [vmem:[%s2 + $0x40] sm:$0xff] %v2398
  %2655 = vst [vmem:[%s2 + $0x48] sm:$0xff] %v2399
  %2656 = vst [vmem:[%s2 + $0x50] sm:$0xff] %v2400
  %2657 = vst [vmem:[%s2 + $0x58] sm:$0xff] %v2401
  %2658 = vst [vmem:[%s2 + $0x60] sm:$0xff] %v2402
  %2659 = vst [vmem:[%s2 + $0x68] sm:$0xff] %v2403
  %2660 = vst [vmem:[%s2 + $0x70] sm:$0xff] %v2404
  %2661 = vst [vmem:[%s2 + $0x78] sm:$0xff] %v2405
  %2662 = vst [vmem:[%s2 + $0x80] sm:$0xff] %v2406
  %2663 = vst [vmem:[%s2 + $0x88] sm:$0xff] %v2407
  %2664 = vst [vmem:[%s2 + $0x90] sm:$0xff] %v2408
  %2665 = vst [vmem:[%s2 + $0x98] sm:$0xff] %v2409
  %2666 = vst [vmem:[%s2 + $0xa0] sm:$0xff] %v2410
  %2667 = vst [vmem:[%s2 + $0xa8] sm:$0xff] %v2411
  %2668 = vst [vmem:[%s2 + $0xb0] sm:$0xff] %v2412
  %2669 = vst [vmem:[%s2 + $0xb8] sm:$0xff] %v2413
  %2670 = vst [vmem:[%s2 + $0xc0] sm:$0xff] %v2414
  %2671 = vst [vmem:[%s2 + $0xc8] sm:$0xff] %v2415
  %2672 = vst [vmem:[%s2 + $0xd0] sm:$0xff] %v2416
  %2673 = vst [vmem:[%s2 + $0xd8] sm:$0xff] %v2417
  %2674 = vst [vmem:[%s2 + $0xe0] sm:$0xff] %v2418
  %2675 = vst [vmem:[%s2 + $0xe8] sm:$0xff] %v2419
  %2676 = vst [vmem:[%s2 + $0xf0] sm:$0xff] %v2420
  %2677 = vst [vmem:[%s2 + $0xf8] sm:$0xff] %v2421
  %2678 = vst [vmem:[%s2 + $0x100] sm:$0xff] %v2422
  %2679 = vst [vmem:[%s2 + $0x108] sm:$0xff] %v2423
  %2680 = vst [vmem:[%s2 + $0x110] sm:$0xff] %v2424
  %2681 = vst [vmem:[%s2 + $0x118] sm:$0xff] %v2425
  %2682 = vst [vmem:[%s2 + $0x120] sm:$0xff] %v2426
  %2683 = vst [vmem:[%s2 + $0x128] sm:$0xff] %v2427
  %2684 = vst [vmem:[%s2 + $0x130] sm:$0xff] %v2428
  %2685 = vst [vmem:[%s2 + $0x138] sm:$0xff] %v2429
  %2686 = vst [vmem:[%s2 + $0x140] sm:$0xff] %v2430
  %2687 = vst [vmem:[%s2 + $0x148] sm:$0xff] %v2431
  %2688 = vst [vmem:[%s2 + $0x150] sm:$0xff] %v2432
  %2689 = vst [vmem:[%s2 + $0x158] sm:$0xff] %v2433
  %2690 = vst [vmem:[%s2 + $0x160] sm:$0xff] %v2434
  %2691 = vst [vmem:[%s2 + $0x168] sm:$0xff] %v2435
  %2692 = vst [vmem:[%s2 + $0x170] sm:$0xff] %v2436
  %2693 = vst [vmem:[%s2 + $0x178] sm:$0xff] %v2437
  %2694 = vst [vmem:[%s2 + $0x180] sm:$0xff] %v2438
  %2695 = vst [vmem:[%s2 + $0x188] sm:$0xff] %v2439
  %2696 = vst [vmem:[%s2 + $0x190] sm:$0xff] %v2440
  %2697 = vst [vmem:[%s2 + $0x198] sm:$0xff] %v2441
  %2698 = vst [vmem:[%s2 + $0x1a0] sm:$0xff] %v2442
  %2699 = vst [vmem:[%s2 + $0x1a8] sm:$0xff] %v2443
  %2700 = vst [vmem:[%s2 + $0x1b0] sm:$0xff] %v2444
  %2701 = vst [vmem:[%s2 + $0x1b8] sm:$0xff] %v2445
  %2702 = vst [vmem:[%s2 + $0x1c0] sm:$0xff] %v2446
  %2703 = vst [vmem:[%s2 + $0x1c8] sm:$0xff] %v2447
  %2704 = vst [vmem:[%s2 + $0x1d0] sm:$0xff] %v2448
  %2705 = vst [vmem:[%s2 + $0x1d8] sm:$0xff] %v2449
  %2706 = vst [vmem:[%s2 + $0x1e0] sm:$0xff] %v2450
  %2707 = vst [vmem:[%s2 + $0x1e8] sm:$0xff] %v2451
  %2708 = vst [vmem:[%s2 + $0x1f0] sm:$0xff] %v2452
  %2709 = vst [vmem:[%s2 + $0x1f8] sm:$0xff] %v2453
  %2710 = vst [vmem:[%s2 + $0x200] sm:$0xff] %v2454
  %2711 = vst [vmem:[%s2 + $0x208] sm:$0xff] %v2455
  %2712 = vst [vmem:[%s2 + $0x210] sm:$0xff] %v2456
  %2713 = vst [vmem:[%s2 + $0x218] sm:$0xff] %v2457
  %2714 = vst [vmem:[%s2 + $0x220] sm:$0xff] %v2458
  %2715 = vst [vmem:[%s2 + $0x228] sm:$0xff] %v2459
  %2716 = vst [vmem:[%s2 + $0x230] sm:$0xff] %v2460
  %2717 = vst [vmem:[%s2 + $0x238] sm:$0xff] %v2461
  %2718 = vst [vmem:[%s2 + $0x240] sm:$0xff] %v2462
  %2719 = vst [vmem:[%s2 + $0x248] sm:$0xff] %v2463
  %2720 = vst [vmem:[%s2 + $0x250] sm:$0xff] %v2464
  %2721 = vst [vmem:[%s2 + $0x258] sm:$0xff] %v2465
  %2722 = vst [vmem:[%s2 + $0x260] sm:$0xff] %v2466
  %2723 = vst [vmem:[%s2 + $0x268] sm:$0xff] %v2467
  %2724 = vst [vmem:[%s2 + $0x270] sm:$0xff] %v2468
  %2725 = vst [vmem:[%s2 + $0x278] sm:$0xff] %v2469
  %2726 = vst [vmem:[%s2 + $0x280] sm:$0xff] %v2470
  %2727 = vst [vmem:[%s2 + $0x288] sm:$0xff] %v2471
  %2728 = vst [vmem:[%s2 + $0x290] sm:$0xff] %v2472
  %2729 = vst [vmem:[%s2 + $0x298] sm:$0xff] %v2473
  %2730 = vst [vmem:[%s2 + $0x2a0] sm:$0xff] %v2474
  %2731 = vst [vmem:[%s2 + $0x2a8] sm:$0xff] %v2475
  %2732 = vst [vmem:[%s2 + $0x2b0] sm:$0xff] %v2476
  %2733 = vst [vmem:[%s2 + $0x2b8] sm:$0xff] %v2477
  %2734 = vst [vmem:[%s2 + $0x2c0] sm:$0xff] %v2478
  %2735 = vst [vmem:[%s2 + $0x2c8] sm:$0xff] %v2479
  %2736 = vst [vmem:[%s2 + $0x2d0] sm:$0xff] %v2480
  %2737 = vst [vmem:[%s2 + $0x2d8] sm:$0xff] %v2481
  %2738 = vst [vmem:[%s2 + $0x2e0] sm:$0xff] %v2482
  %2739 = vst [vmem:[%s2 + $0x2e8] sm:$0xff] %v2483
  %2740 = vst [vmem:[%s2 + $0x2f0] sm:$0xff] %v2484
  %2741 = vst [vmem:[%s2 + $0x2f8] sm:$0xff] %v2485
  %2742 = vst [vmem:[%s2 + $0x300] sm:$0xff] %v2486
  %2743 = vst [vmem:[%s2 + $0x308] sm:$0xff] %v2487
  %2744 = vst [vmem:[%s2 + $0x310] sm:$0xff] %v2488
  %2745 = vst [vmem:[%s2 + $0x318] sm:$0xff] %v2489
  %2746 = vst [vmem:[%s2 + $0x320] sm:$0xff] %v2490
  %2747 = vst [vmem:[%s2 + $0x328] sm:$0xff] %v2491
  %2748 = vst [vmem:[%s2 + $0x330] sm:$0xff] %v2492
  %2749 = vst [vmem:[%s2 + $0x338] sm:$0xff] %v2493
  %2750 = vst [vmem:[%s2 + $0x340] sm:$0xff] %v2494
  %2751 = vst [vmem:[%s2 + $0x348] sm:$0xff] %v2495
  %2752 = vst [vmem:[%s2 + $0x350] sm:$0xff] %v2496
  %2753 = vst [vmem:[%s2 + $0x358] sm:$0xff] %v2497
  %2754 = vst [vmem:[%s2 + $0x360] sm:$0xff] %v2498
  %2755 = vst [vmem:[%s2 + $0x368] sm:$0xff] %v2499
  %2756 = vst [vmem:[%s2 + $0x370] sm:$0xff] %v2500
  %2757 = vst [vmem:[%s2 + $0x378] sm:$0xff] %v2501
  %2758 = vst [vmem:[%s2 + $0x380] sm:$0xff] %v2502
  %2759 = vst [vmem:[%s2 + $0x388] sm:$0xff] %v2503
  %2760 = vst [vmem:[%s2 + $0x390] sm:$0xff] %v2504
  %2761 = vst [vmem:[%s2 + $0x398] sm:$0xff] %v2505
  %2762 = vst [vmem:[%s2 + $0x3a0] sm:$0xff] %v2506
  %2763 = vst [vmem:[%s2 + $0x3a8] sm:$0xff] %v2507
  %2764 = vst [vmem:[%s2 + $0x3b0] sm:$0xff] %v2508
  %2765 = vst [vmem:[%s2 + $0x3b8] sm:$0xff] %v2509
  %2766 = vst [vmem:[%s2 + $0x3c0] sm:$0xff] %v2510
  %2767 = vst [vmem:[%s2 + $0x3c8] sm:$0xff] %v2511
  %2768 = vst [vmem:[%s2 + $0x3d0] sm:$0xff] %v2512
  %2769 = vst [vmem:[%s2 + $0x3d8] sm:$0xff] %v2513
  %2770 = vst [vmem:[%s2 + $0x3e0] sm:$0xff] %v2514
  %2771 = vst [vmem:[%s2 + $0x3e8] sm:$0xff] %v2515
  %2772 = vst [vmem:[%s2 + $0x3f0] sm:$0xff] %v2516
  %2773 = vst [vmem:[%s2 + $0x3f8] sm:$0xff] %v2517
  %2774 = vst [vmem:[%s2 + $0x400] sm:$0xff] %v2518
  %2775 = vst [vmem:[%s2 + $0x408] sm:$0xff] %v2519
  %2776 = vst [vmem:[%s2 + $0x410] sm:$0xff] %v2520
  %2777 = vst [vmem:[%s2 + $0x418] sm:$0xff] %v2521
  %2778 = vst [vmem:[%s2 + $0x420] sm:$0xff] %v2522
  %2779 = vst [vmem:[%s2 + $0x428] sm:$0xff] %v2523
  %2780 = vst [vmem:[%s2 + $0x430] sm:$0xff] %v2524
  %2781 = vst [vmem:[%s2 + $0x438] sm:$0xff] %v2525
  %2782 = vst [vmem:[%s2 + $0x440] sm:$0xff] %v2526
  %2783 = vst [vmem:[%s2 + $0x448] sm:$0xff] %v2527
  %2784 = vst [vmem:[%s2 + $0x450] sm:$0xff] %v2528
  %2785 = vst [vmem:[%s2 + $0x458] sm:$0xff] %v2529
  %2786 = vst [vmem:[%s2 + $0x460] sm:$0xff] %v2530
  %2787 = vst [vmem:[%s2 + $0x468] sm:$0xff] %v2531
  %2788 = vst [vmem:[%s2 + $0x470] sm:$0xff] %v2532
  %2789 = vst [vmem:[%s2 + $0x478] sm:$0xff] %v2533
  %2790 = vst [vmem:[%s2 + $0x480] sm:$0xff] %v2534
  %2791 = vst [vmem:[%s2 + $0x488] sm:$0xff] %v2535
  %2792 = vst [vmem:[%s2 + $0x490] sm:$0xff] %v2536
  %2793 = vst [vmem:[%s2 + $0x498] sm:$0xff] %v2537
  %2794 = vst [vmem:[%s2 + $0x4a0] sm:$0xff] %v2538
  %2795 = vst [vmem:[%s2 + $0x4a8] sm:$0xff] %v2539
  %2796 = vst [vmem:[%s2 + $0x4b0] sm:$0xff] %v2540
  %2797 = vst [vmem:[%s2 + $0x4b8] sm:$0xff] %v2541
  %2798 = vst [vmem:[%s2 + $0x4c0] sm:$0xff] %v2542
  %2799 = vst [vmem:[%s2 + $0x4c8] sm:$0xff] %v2543
  %2800 = vst [vmem:[%s2 + $0x4d0] sm:$0xff] %v2544
  %2801 = vst [vmem:[%s2 + $0x4d8] sm:$0xff] %v2545
  %2802 = vst [vmem:[%s2 + $0x4e0] sm:$0xff] %v2546
  %2803 = vst [vmem:[%s2 + $0x4e8] sm:$0xff] %v2547
  %2804 = vst [vmem:[%s2 + $0x4f0] sm:$0xff] %v2548
  %2805 = vst [vmem:[%s2 + $0x4f8] sm:$0xff] %v2549
  %2806 = vst [vmem:[%s2 + $0x500] sm:$0xff] %v2550
  %2807 = vst [vmem:[%s2 + $0x508] sm:$0xff] %v2551
  %2808 = vst [vmem:[%s2 + $0x510] sm:$0xff] %v2552
  %2809 = vst [vmem:[%s2 + $0x518] sm:$0xff] %v2553
  %2810 = vst [vmem:[%s2 + $0x520] sm:$0xff] %v2554
  %2811 = vst [vmem:[%s2 + $0x528] sm:$0xff] %v2555
  %2812 = vst [vmem:[%s2 + $0x530] sm:$0xff] %v2556
  %2813 = vst [vmem:[%s2 + $0x538] sm:$0xff] %v2557
  %2814 = vst [vmem:[%s2 + $0x540] sm:$0xff] %v2558
  %2815 = vst [vmem:[%s2 + $0x548] sm:$0xff] %v2559
  %2816 = vst [vmem:[%s2 + $0x550] sm:$0xff] %v2560
  %2817 = vst [vmem:[%s2 + $0x558] sm:$0xff] %v2561
  %2818 = vst [vmem:[%s2 + $0x560] sm:$0xff] %v2562
  %2819 = vst [vmem:[%s2 + $0x568] sm:$0xff] %v2563
  %2820 = vst [vmem:[%s2 + $0x570] sm:$0xff] %v2564
  %2821 = vst [vmem:[%s2 + $0x578] sm:$0xff] %v2565
  %2822 = vst [vmem:[%s2 + $0x580] sm:$0xff] %v2566
  %2823 = vst [vmem:[%s2 + $0x588] sm:$0xff] %v2567
  %2824 = vst [vmem:[%s2 + $0x590] sm:$0xff] %v2568
  %2825 = vst [vmem:[%s2 + $0x598] sm:$0xff] %v2569
  %2826 = vst [vmem:[%s2 + $0x5a0] sm:$0xff] %v2570
  %2827 = vst [vmem:[%s2 + $0x5a8] sm:$0xff] %v2571
  %2828 = vst [vmem:[%s2 + $0x5b0] sm:$0xff] %v2572
  %2829 = vst [vmem:[%s2 + $0x5b8] sm:$0xff] %v2573
  %2830 = vst [vmem:[%s2 + $0x5c0] sm:$0xff] %v2574
  %2831 = vst [vmem:[%s2 + $0x5c8] sm:$0xff] %v2575
  %2832 = vst [vmem:[%s2 + $0x5d0] sm:$0xff] %v2576
  %2833 = vst [vmem:[%s2 + $0x5d8] sm:$0xff] %v2577
  %2834 = vst [vmem:[%s2 + $0x5e0] sm:$0xff] %v2578
  %2835 = vst [vmem:[%s2 + $0x5e8] sm:$0xff] %v2579
  %2836 = vst [vmem:[%s2 + $0x5f0] sm:$0xff] %v2580
  %2837 = vst [vmem:[%s2 + $0x5f8] sm:$0xff] %v2581
  %2838 = vst [vmem:[%s2 + $0x600] sm:$0xff] %v2582
  %2839 = vst [vmem:[%s2 + $0x608] sm:$0xff] %v2583
  %2840 = vst [vmem:[%s2 + $0x610] sm:$0xff] %v2584
  %2841 = vst [vmem:[%s2 + $0x618] sm:$0xff] %v2585
  %2842 = vst [vmem:[%s2 + $0x620] sm:$0xff] %v2586
  %2843 = vst [vmem:[%s2 + $0x628] sm:$0xff] %v2587
  %2844 = vst [vmem:[%s2 + $0x630] sm:$0xff] %v2588
  %2845 = vst [vmem:[%s2 + $0x638] sm:$0xff] %v2589
  %2846 = vst [vmem:[%s2 + $0x640] sm:$0xff] %v2590
  %2847 = vst [vmem:[%s2 + $0x648] sm:$0xff] %v2591
  %2848 = vst [vmem:[%s2 + $0x650] sm:$0xff] %v2592
  %2849 = vst [vmem:[%s2 + $0x658] sm:$0xff] %v2593
  %2850 = vst [vmem:[%s2 + $0x660] sm:$0xff] %v2594
  %2851 = vst [vmem:[%s2 + $0x668] sm:$0xff] %v2595
  %2852 = vst [vmem:[%s2 + $0x670] sm:$0xff] %v2596
  %2853 = vst [vmem:[%s2 + $0x678] sm:$0xff] %v2597
  %2854 = vst [vmem:[%s2 + $0x680] sm:$0xff] %v2598
  %2855 = vst [vmem:[%s2 + $0x688] sm:$0xff] %v2599
  %2856 = vst [vmem:[%s2 + $0x690] sm:$0xff] %v2600
  %2857 = vst [vmem:[%s2 + $0x698] sm:$0xff] %v2601
  %2858 = vst [vmem:[%s2 + $0x6a0] sm:$0xff] %v2602
  %2859 = vst [vmem:[%s2 + $0x6a8] sm:$0xff] %v2603
  %2860 = vst [vmem:[%s2 + $0x6b0] sm:$0xff] %v2604
  %2861 = vst [vmem:[%s2 + $0x6b8] sm:$0xff] %v2605
  %2862 = vst [vmem:[%s2 + $0x6c0] sm:$0xff] %v2606
  %2863 = vst [vmem:[%s2 + $0x6c8] sm:$0xff] %v2607
  %2864 = vst [vmem:[%s2 + $0x6d0] sm:$0xff] %v2608
  %2865 = vst [vmem:[%s2 + $0x6d8] sm:$0xff] %v2609
  %2866 = vst [vmem:[%s2 + $0x6e0] sm:$0xff] %v2610
  %2867 = vst [vmem:[%s2 + $0x6e8] sm:$0xff] %v2611
  %2868 = vst [vmem:[%s2 + $0x6f0] sm:$0xff] %v2612
  %2869 = vst [vmem:[%s2 + $0x6f8] sm:$0xff] %v2613
  %2870 = vst [vmem:[%s2 + $0x700] sm:$0xff] %v2614
  %2871 = vst [vmem:[%s2 + $0x708] sm:$0xff] %v2615
  %2872 = vst [vmem:[%s2 + $0x710] sm:$0xff] %v2616
  %2873 = vst [vmem:[%s2 + $0x718] sm:$0xff] %v2617
  %2874 = vst [vmem:[%s2 + $0x720] sm:$0xff] %v2618
  %2875 = vst [vmem:[%s2 + $0x728] sm:$0xff] %v2619
  %2876 = vst [vmem:[%s2 + $0x730] sm:$0xff] %v2620
  %2877 = vst [vmem:[%s2 + $0x738] sm:$0xff] %v2621
  %2878 = vst [vmem:[%s2 + $0x740] sm:$0xff] %v2622
  %2879 = vst [vmem:[%s2 + $0x748] sm:$0xff] %v2623
  %2880 = vst [vmem:[%s2 + $0x750] sm:$0xff] %v2624
  %2881 = vst [vmem:[%s2 + $0x758] sm:$0xff] %v2625
  %2882 = vst [vmem:[%s2 + $0x760] sm:$0xff] %v2626
  %2883 = vst [vmem:[%s2 + $0x768] sm:$0xff] %v2627
  %2884 = vst [vmem:[%s2 + $0x770] sm:$0xff] %v2628
  %2885 = vst [vmem:[%s2 + $0x778] sm:$0xff] %v2629
  %2886 = vst [vmem:[%s2 + $0x780] sm:$0xff] %v2630
  %2887 = vst [vmem:[%s2 + $0x788] sm:$0xff] %v2631
  %2888 = vst [vmem:[%s2 + $0x790] sm:$0xff] %v2632
  %2889 = vst [vmem:[%s2 + $0x798] sm:$0xff] %v2633
  %2890 = vst [vmem:[%s2 + $0x7a0] sm:$0xff] %v2634
  %2891 = vst [vmem:[%s2 + $0x7a8] sm:$0xff] %v2635
  %2892 = vst [vmem:[%s2 + $0x7b0] sm:$0xff] %v2636
  %2893 = vst [vmem:[%s2 + $0x7b8] sm:$0xff] %v2637
  %2894 = vst [vmem:[%s2 + $0x7c0] sm:$0xff] %v2638
  %2895 = vst [vmem:[%s2 + $0x7c8] sm:$0xff] %v2639
  %2896 = vst [vmem:[%s2 + $0x7d0] sm:$0xff] %v2640
  %2897 = vst [vmem:[%s2 + $0x7d8] sm:$0xff] %v2641
  %2898 = vst [vmem:[%s2 + $0x7e0] sm:$0xff] %v2642
  %2899 = vst [vmem:[%s2 + $0x7e8] sm:$0xff] %v2643
  %2900 = vst [vmem:[%s2 + $0x7f0] sm:$0xff] %v2644
  %2901 = vst [vmem:[%s2 + $0x7f8] sm:$0xff] %v2645
  // Predicated region
  $region10: #{generator_forward.17} parent=0 // pred_check
    _
  $region11: #{generator_forward.17} parent=0 // pred_check_branch
    %2903 = sbr.rel (0) target = $region13
  $region12: #{generator_forward.17} parent=0 // pred_region
    _
  $region13: #{generator_forward.17} parent=0 // pred_fallthru
    _
  // Predicated region
  $region14: #{generator_forward.17} parent=0 // pred_check
    _
  $region15: #{generator_forward.17} parent=0 // pred_check_branch
    %2905 = sbr.rel (0) target = $region17
  $region16: #{generator_forward.17} parent=0 // pred_region
    _
  $region17: #{generator_forward.17} parent=0 // pred_fallthru
    _

</llo_original>
